<compile_context>
chip_gen: v6e
topology: v6e:2x2x1
jax: 0.10.0
libtpu: 0.0.40
codegen_flags: <defaults>
</compile_context>

<pallas_src>
import numpy as np
import jax
import jax.numpy as jnp
from jax.experimental import pallas as pl
from jax.experimental.pallas import tpu as pltpu

N_HIDDEN = 512   # n
P_DROP = 0.2     # p  (identity in eval mode)


def _round_up(x, m):
    return (x + m - 1) // m * m


# --------------------- fused matmul + bias + ReLU (MXU) ---------------------

def _matmul_bias_relu_kernel(x_ref, w_ref, b_ref, o_ref):
    # bf16 x bf16 on the MXU, f32 accumulation; bias add + ReLU in f32 (VPU).
    acc = jnp.dot(x_ref[...], w_ref[...], preferred_element_type=jnp.float32)
    o_ref[...] = jnp.maximum(acc + b_ref[...], 0.0).astype(o_ref.dtype)


def _adaptive_tile_m(M, K, tn, out_bytes, budget_bytes):
    """Largest M tile (multiple of 8, <=4096) whose double-buffered footprint
    (x block + out block per row; weight + bias fixed) fits the VMEM budget."""
    fixed = 2 * (K * tn * 2) + 2 * (tn * 4)            # weights (bf16) + bias (f32)
    per_row = 2 * (K * 2) + 2 * (tn * out_bytes)       # x (bf16) + out
    tm = (budget_bytes - fixed) // per_row if budget_bytes > fixed else 8
    tm = max(8, min(int(tm), 4096))
    tm = (tm // 8) * 8
    tm = min(tm, _round_up(M, 8))
    return max(tm, 8)


def matmul_bias_relu(x, w, b2d, *, out_dtype=jnp.float32, tile_n=256,
                     vmem_budget=20 * 1024 * 1024):
    """relu(x @ w + b).  x: [M, K], w: [K, N] (bf16), b2d: [1, N] f32.

    * M tiled adaptively (up to 4096 rows) with a "parallel" grid axis.
    * N tiled (tn=tile_n, multiple of 128) only when it divides N -> second
      "parallel" grid axis so v7x can shard the fc layers across its 2 TCs;
      otherwise the full (true, unpadded) N is used -> no padded writeback.
    * MXU operands bf16, accumulation f32; output stored as `out_dtype`.
    """
    M, K = x.shape
    K2, N = w.shape
    assert K == K2 and b2d.shape == (1, N)

    if N > tile_n and N % tile_n == 0 and tile_n % 128 == 0:
        tn = tile_n
    else:
        tn = N                                   # true N, full-dim block (legal)

    out_bytes = jnp.dtype(out_dtype).itemsize
    tm = _adaptive_tile_m(M, K, tn, out_bytes, vmem_budget)
    m_pad = _round_up(M, tm)

    xp = x.astype(jnp.bfloat16)
    if m_pad != M:
        xp = jnp.pad(xp, ((0, m_pad - M), (0, 0)))
    wp = w.astype(jnp.bfloat16)
    bp = b2d.astype(jnp.float32)

    grid = (m_pad // tm, N // tn)
    flops = 2 * m_pad * K * N
    bytes_accessed = (m_pad * K * 2 + K * N * 2 * grid[0] + N * 4
                      + m_pad * N * out_bytes)

    out = pl.pallas_call(
        _matmul_bias_relu_kernel,
        out_shape=jax.ShapeDtypeStruct((m_pad, N), out_dtype),
        grid=grid,
        in_specs=[
            pl.BlockSpec((tm, K), lambda i, j: (i, 0)),
            pl.BlockSpec((K, tn), lambda i, j: (0, j)),
            pl.BlockSpec((1, tn), lambda i, j: (0, j)),
        ],
        out_specs=pl.BlockSpec((tm, tn), lambda i, j: (i, j)),
        compiler_params=pltpu.CompilerParams(
            dimension_semantics=("parallel", "parallel"),
            vmem_limit_bytes=32 * 1024 * 1024,
        ),
        cost_estimate=pl.CostEstimate(
            flops=flops, transcendentals=0, bytes_accessed=bytes_accessed),
    )(xp, wp, bp)

    if m_pad != M:
        out = out[:M]
    return out


# --------------------- fused 2x2 max-pool (single pass) ----------------------

def _make_pool_kernel(ho):
    def kernel(x_ref, se_ref, so_ref, o_ref):
        # x_ref: [Bt, H, W*C]; o_ref: [Bt, ho, wo*C]; se/so: [W*C, wo*C] 0/1.
        se = se_ref[...]
        so = so_ref[...]
        for h in range(ho):                               # static unroll (<=13)
            ev = x_ref[:, 2 * h, :]                       # [Bt, W*C]
            od = x_ref[:, 2 * h + 1, :]
            m = jnp.maximum(ev, od)                       # H-pair max (VPU)
            # W-pair max + lane compaction via exact 0/1-selection matmuls (MXU).
            a = jnp.dot(m, se, preferred_element_type=jnp.float32)
            b = jnp.dot(m, so, preferred_element_type=jnp.float32)
            o_ref[:, h, :] = jnp.maximum(a, b).astype(o_ref.dtype)
    return kernel


def _pool_selection_mats(W, C, dtype):
    wo = W // 2
    se = np.zeros((W * C, wo * C), dtype=np.float32)
    so = np.zeros((W * C, wo * C), dtype=np.float32)
    for j in range(wo):
        for c in range(C):
            se[(2 * j) * C + c, j * C + c] = 1.0
            so[(2 * j + 1) * C + c, j * C + c] = 1.0
    return jnp.asarray(se, dtype), jnp.asarray(so, dtype)


def _pick_batch_tile(B, target=64):
    bt = min(B, target)
    while B % bt:
        bt -= 1
    return max(bt, 1)


def maxpool2x2_nhwc(x):
    """nn.MaxPool2d(2, 2) on an NHWC tensor (floor semantics), single Pallas pass.
    Lane axis stays W*C (dense, >=128); blocks are batch-tiled."""
    B, H, W, C = x.shape
    ho, wo = H // 2, W // 2
    se, so = _pool_selection_mats(W, C, x.dtype)
    bt = _pick_batch_tile(B)

    out = pl.pallas_call(
        _make_pool_kernel(ho),
        out_shape=jax.ShapeDtypeStruct((B, ho, wo * C), x.dtype),
        grid=(B // bt,),
        in_specs=[
            pl.BlockSpec((bt, H, W * C), lambda i: (i, 0, 0)),
            pl.BlockSpec((W * C, wo * C), lambda i: (0, 0)),
            pl.BlockSpec((W * C, wo * C), lambda i: (0, 0)),
        ],
        out_specs=pl.BlockSpec((bt, ho, wo * C), lambda i: (i, 0, 0)),
        compiler_params=pltpu.CompilerParams(
            dimension_semantics=("parallel",)),
    )(x.reshape(B, H, W * C), se, so)

    return out.reshape(B, ho, wo, C)


# ------------------------------- conv (NHWC) ---------------------------------

def conv3x3_relu_nhwc(x, w_mat, b2d):
    """3x3 valid conv + bias + ReLU on NHWC input via contiguous bf16 im2col.
    x: [B, H, W, Cin] (bf16); w_mat: [9*Cin, Cout] with row order (kh, kw, cin);
    b2d: [1, Cout] f32.  Output: bf16 [B, H-2, W-2, Cout]."""
    B, H, W, C = x.shape
    ho, wo = H - 2, W - 2
    cols = [x[:, di:di + ho, dj:dj + wo, :]
            for di in range(3) for dj in range(3)]
    patches = jnp.concatenate(cols, axis=-1)            # [B, ho, wo, 9*Cin] bf16
    patches = patches.reshape(B * ho * wo, 9 * C)
    out = matmul_bias_relu(patches, w_mat, b2d, out_dtype=jnp.bfloat16)
    return out.reshape(B, ho, wo, w_mat.shape[1])


# ------------------------------- full forward --------------------------------

def clasificador_conv_forward(x_nchw, params):
    # PyTorch-style NCHW input; with Cin=1 this transpose is a free reshape.
    x = jnp.transpose(x_nchw, (0, 2, 3, 1)).astype(jnp.bfloat16)       # [B,28,28,1]
    # encoder  (Dropout(p) -> identity in eval mode)
    h = conv3x3_relu_nhwc(x, params["conv1_wm"], params["conv1_b"])    # [B,26,26,16] bf16
    h = maxpool2x2_nhwc(h)                                             # [B,13,13,16] bf16
    h = conv3x3_relu_nhwc(h, params["conv2_wm"], params["conv2_b"])    # [B,11,11,32] bf16
    h = maxpool2x2_nhwc(h)                                             # [B,5,5,32]   bf16
    B = h.shape[0]
    h = h.reshape(B, -1)                                               # [B,800] (H,W,C order)
    h = matmul_bias_relu(h, params["fc1_wm"], params["fc1_b"],
                         out_dtype=jnp.bfloat16)                       # [B,512] bf16
    # clasificador
    h = matmul_bias_relu(h, params["fc2_wm"], params["fc2_b"],
                         out_dtype=jnp.float32)                        # [B,10]  f32
    return h


# --------------------------- parameter construction --------------------------

def init_params(key, n=N_HIDDEN):
    """PyTorch-layout parameters (as nn.Conv2d / nn.Linear store them), f32."""
    ks = jax.random.split(key, 8)

    def u(k, shape, fan_in):
        bound = 1.0 / jnp.sqrt(fan_in)
        return jax.random.uniform(k, shape, jnp.float32, -bound, bound)

    return {
        "conv1_w": u(ks[0], (16, 1, 3, 3), 1 * 9),
        "conv1_b": u(ks[1], (16,), 1 * 9),
        "conv2_w": u(ks[2], (32, 16, 3, 3), 16 * 9),
        "conv2_b": u(ks[3], (32,), 16 * 9),
        "fc1_w":   u(ks[4], (n, 32 * 5 * 5), 32 * 5 * 5),   # PyTorch [out, in]
        "fc1_b":   u(ks[5], (n,), 32 * 5 * 5),
        "fc2_w":   u(ks[6], (10, n), n),
        "fc2_b":   u(ks[7], (10,), n),
    }


def prepare_params(p):
    """One-time (outside the jitted forward) repack into kernel-friendly form:
    conv weights -> [9*Cin, Cout] (row order (kh,kw,cin), matching the NHWC
    im2col); fc weights -> [K, N] with fc1 columns permuted from PyTorch's
    (C,H,W) flatten order to our NHWC (H,W,C) order; all MXU weight operands
    stored as bf16 and biases as [1, N] f32."""
    n = p["fc1_w"].shape[0]
    conv1_wm = p["conv1_w"].transpose(2, 3, 1, 0).reshape(9 * 1, 16)
    conv2_wm = p["conv2_w"].transpose(2, 3, 1, 0).reshape(9 * 16, 32)
    fc1_wm = (p["fc1_w"].reshape(n, 32, 5, 5)
                        .transpose(0, 2, 3, 1)          # (n, 5, 5, 32) = (H,W,C)
                        .reshape(n, 32 * 5 * 5).T)      # [800, n]
    fc2_wm = p["fc2_w"].T                               # [n, 10]
    bf16 = lambda a: a.astype(jnp.bfloat16)
    b2d = lambda a: a.astype(jnp.float32).reshape(1, -1)
    return {
        "conv1_wm": bf16(conv1_wm), "conv1_b": b2d(p["conv1_b"]),
        "conv2_wm": bf16(conv2_wm), "conv2_b": b2d(p["conv2_b"]),
        "fc1_wm":   bf16(fc1_wm),   "fc1_b":   b2d(p["fc1_b"]),
        "fc2_wm":   bf16(fc2_wm),   "fc2_b":   b2d(p["fc2_b"]),
    }


if __name__ == "__main__":
    key = jax.random.PRNGKey(0)
    k_x, k_p = jax.random.split(key)
    # batch=2, 1 channel, 28x28 (implied by Linear(32*5*5, n))
    x = jax.random.normal(k_x, (2, 1, 28, 28), dtype=jnp.float32)
    params = prepare_params(init_params(k_p))

    out = jax.jit(clasificador_conv_forward)(x, params)
    out = jax.block_until_ready(out)
    assert out.shape == (2, 10) and out.dtype == jnp.float32
    assert bool(jnp.all(jnp.isfinite(out)))
    print("KERNEL_OK")
</pallas_src>

<mosaic_0001>
module attributes {stable_mosaic.version = 11 : i64} {
  func.func @_matmul_bias_relu_kernel(%arg0: i32, %arg1: i32, %arg2: memref<1352x9xbf16, #tpu.memory_space<vmem>>, %arg3: memref<9x16xbf16, #tpu.memory_space<vmem>>, %arg4: memref<1x16xf32, #tpu.memory_space<vmem>>, %arg5: memref<1352x16xbf16, #tpu.memory_space<vmem>>) attributes {dimension_semantics = [#tpu.dimension_semantics<parallel>, #tpu.dimension_semantics<parallel>], iteration_bounds = array<i64: 1, 1>, scalar_prefetch = 0 : i64, scratch_operands = 0 : i64, tpu.core_type = #tpu.core_type<tc>, window_params = [{transform_indices = @transform_0, window_bounds = array<i64: 1352, 9>}, {transform_indices = @transform_1, window_bounds = array<i64: 9, 16>}, {transform_indices = @transform_2, window_bounds = array<i64: 1, 16>}, {transform_indices = @transform_3, window_bounds = array<i64: 1352, 16>}]} {
    %c0 = arith.constant 0 : index
    %c0_0 = arith.constant 0 : index
    %0 = vector.load %arg2[%c0, %c0_0] : memref<1352x9xbf16, #tpu.memory_space<vmem>>, vector<1352x9xbf16>
    %c0_1 = arith.constant 0 : index
    %c0_2 = arith.constant 0 : index
    %1 = vector.load %arg3[%c0_1, %c0_2] : memref<9x16xbf16, #tpu.memory_space<vmem>>, vector<9x16xbf16>
    %cst = arith.constant dense<0.000000e+00> : vector<1352x16xf32>
    %2 = tpu.matmul %0, %1, %cst {dimension_numbers = #tpu.dot_dimension_numbers<[1], [0], [0], [1], [0, 0, 1, 1], [], []>} : vector<1352x9xbf16>, vector<9x16xbf16>, vector<1352x16xf32> -> vector<1352x16xf32>
    %c0_3 = arith.constant 0 : index
    %c0_4 = arith.constant 0 : index
    %3 = vector.load %arg4[%c0_3, %c0_4] : memref<1x16xf32, #tpu.memory_space<vmem>>, vector<1x16xf32>
    %4 = vector.broadcast %3 : vector<1x16xf32> to vector<1352x16xf32>
    %5 = arith.addf %2, %4 : vector<1352x16xf32>
    %cst_5 = arith.constant 0.000000e+00 : f32
    %6 = vector.broadcast %cst_5 : f32 to vector<1352x16xf32>
    %7 = arith.maximumf %5, %6 : vector<1352x16xf32>
    %8 = arith.truncf %7 : vector<1352x16xf32> to vector<1352x16xbf16>
    %c0_6 = arith.constant 0 : index
    %c0_7 = arith.constant 0 : index
    %9 = vector.load %arg5[%c0_6, %c0_7] : memref<1352x16xbf16, #tpu.memory_space<vmem>>, vector<1352x16xbf16>
    tpu.vector_store %arg5[%c0_6, %c0_7], %8 {strides = array<i32>} : memref<1352x16xbf16, #tpu.memory_space<vmem>>, vector<1352x16xbf16>,
    return
  }
  func.func @transform_0(%arg0: i32, %arg1: i32) -> (i32, i32) {
    %c0_i32 = arith.constant 0 : i32
    %c0_i32_0 = arith.constant 0 : i32
    return %arg0, %c0_i32 : i32, i32
  }
  func.func @transform_1(%arg0: i32, %arg1: i32) -> (i32, i32) {
    %c0_i32 = arith.constant 0 : i32
    %c0_i32_0 = arith.constant 0 : i32
    return %c0_i32, %arg1 : i32, i32
  }
  func.func @transform_2(%arg0: i32, %arg1: i32) -> (i32, i32) {
    %c0_i32 = arith.constant 0 : i32
    %c0_i32_0 = arith.constant 0 : i32
    return %c0_i32, %arg1 : i32, i32
  }
  func.func @transform_3(%arg0: i32, %arg1: i32) -> (i32, i32) {
    %c0_i32 = arith.constant 0 : i32
    return %arg0, %arg1 : i32, i32
  }
}

module attributes {stable_mosaic.version = 11 : i64} {
  func.func @kernel(%arg0: i32, %arg1: memref<2x26x416xbf16, #tpu.memory_space<vmem>>, %arg2: memref<416x208xbf16, #tpu.memory_space<vmem>>, %arg3: memref<416x208xbf16, #tpu.memory_space<vmem>>, %arg4: memref<2x13x208xbf16, #tpu.memory_space<vmem>>) attributes {dimension_semantics = [#tpu.dimension_semantics<parallel>], iteration_bounds = array<i64: 1>, scalar_prefetch = 0 : i64, scratch_operands = 0 : i64, tpu.core_type = #tpu.core_type<tc>, window_params = [{transform_indices = @transform_0, window_bounds = array<i64: 2, 26, 416>}, {pipeline_mode = #tpu.pipeline_mode<synchronous>, transform_indices = @transform_1, window_bounds = array<i64: 416, 208>}, {pipeline_mode = #tpu.pipeline_mode<synchronous>, transform_indices = @transform_2, window_bounds = array<i64: 416, 208>}, {transform_indices = @transform_3, window_bounds = array<i64: 2, 13, 208>}]} {
    %c0 = arith.constant 0 : index
    %c0_0 = arith.constant 0 : index
    %0 = vector.load %arg2[%c0, %c0_0] : memref<416x208xbf16, #tpu.memory_space<vmem>>, vector<416x208xbf16>
    %c0_1 = arith.constant 0 : index
    %c0_2 = arith.constant 0 : index
    %1 = vector.load %arg3[%c0_1, %c0_2] : memref<416x208xbf16, #tpu.memory_space<vmem>>, vector<416x208xbf16>
    %c0_3 = arith.constant 0 : index
    %c0_4 = arith.constant 0 : index
    %c0_5 = arith.constant 0 : index
    %2 = vector.load %arg1[%c0_3, %c0_4, %c0_5] : memref<2x26x416xbf16, #tpu.memory_space<vmem>>, vector<2x1x416xbf16>
    %3 = vector.shape_cast %2 : vector<2x1x416xbf16> to vector<2x416xbf16>
    %c0_6 = arith.constant 0 : index
    %c1 = arith.constant 1 : index
    %c0_7 = arith.constant 0 : index
    %4 = vector.load %arg1[%c0_6, %c1, %c0_7] : memref<2x26x416xbf16, #tpu.memory_space<vmem>>, vector<2x1x416xbf16>
    %5 = vector.shape_cast %4 : vector<2x1x416xbf16> to vector<2x416xbf16>
    %6 = arith.maximumf %3, %5 : vector<2x416xbf16>
    %cst = arith.constant dense<0.000000e+00> : vector<2x208xf32>
    %7 = tpu.matmul %6, %0, %cst {dimension_numbers = #tpu.dot_dimension_numbers<[1], [0], [0], [1], [0, 0, 1, 1], [], []>} : vector<2x416xbf16>, vector<416x208xbf16>, vector<2x208xf32> -> vector<2x208xf32>
    %cst_8 = arith.constant dense<0.000000e+00> : vector<2x208xf32>
    %8 = tpu.matmul %6, %1, %cst_8 {dimension_numbers = #tpu.dot_dimension_numbers<[1], [0], [0], [1], [0, 0, 1, 1], [], []>} : vector<2x416xbf16>, vector<416x208xbf16>, vector<2x208xf32> -> vector<2x208xf32>
    %9 = arith.maximumf %7, %8 : vector<2x208xf32>
    %10 = arith.truncf %9 : vector<2x208xf32> to vector<2x208xbf16>
    %c0_9 = arith.constant 0 : index
    %c0_10 = arith.constant 0 : index
    %c0_11 = arith.constant 0 : index
    %11 = vector.load %arg4[%c0_9, %c0_10, %c0_11] : memref<2x13x208xbf16, #tpu.memory_space<vmem>>, vector<2x1x208xbf16>
    %12 = vector.shape_cast %11 : vector<2x1x208xbf16> to vector<2x208xbf16>
    %13 = vector.shape_cast %10 : vector<2x208xbf16> to vector<2x1x208xbf16>
    tpu.vector_store %arg4[%c0_9, %c0_10, %c0_11], %13 {strides = array<i32>} : memref<2x13x208xbf16, #tpu.memory_space<vmem>>, vector<2x1x208xbf16>,
    %c0_12 = arith.constant 0 : index
    %c2 = arith.constant 2 : index
    %c0_13 = arith.constant 0 : index
    %14 = vector.load %arg1[%c0_12, %c2, %c0_13] : memref<2x26x416xbf16, #tpu.memory_space<vmem>>, vector<2x1x416xbf16>
    %15 = vector.shape_cast %14 : vector<2x1x416xbf16> to vector<2x416xbf16>
    %c0_14 = arith.constant 0 : index
    %c3 = arith.constant 3 : index
    %c0_15 = arith.constant 0 : index
    %16 = vector.load %arg1[%c0_14, %c3, %c0_15] : memref<2x26x416xbf16, #tpu.memory_space<vmem>>, vector<2x1x416xbf16>
    %17 = vector.shape_cast %16 : vector<2x1x416xbf16> to vector<2x416xbf16>
    %18 = arith.maximumf %15, %17 : vector<2x416xbf16>
    %cst_16 = arith.constant dense<0.000000e+00> : vector<2x208xf32>
    %19 = tpu.matmul %18, %0, %cst_16 {dimension_numbers = #tpu.dot_dimension_numbers<[1], [0], [0], [1], [0, 0, 1, 1], [], []>} : vector<2x416xbf16>, vector<416x208xbf16>, vector<2x208xf32> -> vector<2x208xf32>
    %cst_17 = arith.constant dense<0.000000e+00> : vector<2x208xf32>
    %20 = tpu.matmul %18, %1, %cst_17 {dimension_numbers = #tpu.dot_dimension_numbers<[1], [0], [0], [1], [0, 0, 1, 1], [], []>} : vector<2x416xbf16>, vector<416x208xbf16>, vector<2x208xf32> -> vector<2x208xf32>
    %21 = arith.maximumf %19, %20 : vector<2x208xf32>
    %22 = arith.truncf %21 : vector<2x208xf32> to vector<2x208xbf16>
    %c0_18 = arith.constant 0 : index
    %c1_19 = arith.constant 1 : index
    %c0_20 = arith.constant 0 : index
    %23 = vector.load %arg4[%c0_18, %c1_19, %c0_20] : memref<2x13x208xbf16, #tpu.memory_space<vmem>>, vector<2x1x208xbf16>
    %24 = vector.shape_cast %23 : vector<2x1x208xbf16> to vector<2x208xbf16>
    %25 = vector.shape_cast %22 : vector<2x208xbf16> to vector<2x1x208xbf16>
    tpu.vector_store %arg4[%c0_18, %c1_19, %c0_20], %25 {strides = array<i32>} : memref<2x13x208xbf16, #tpu.memory_space<vmem>>, vector<2x1x208xbf16>,
    %c0_21 = arith.constant 0 : index
    %c4 = arith.constant 4 : index
    %c0_22 = arith.constant 0 : index
    %26 = vector.load %arg1[%c0_21, %c4, %c0_22] : memref<2x26x416xbf16, #tpu.memory_space<vmem>>, vector<2x1x416xbf16>
    %27 = vector.shape_cast %26 : vector<2x1x416xbf16> to vector<2x416xbf16>
    %c0_23 = arith.constant 0 : index
    %c5 = arith.constant 5 : index
    %c0_24 = arith.constant 0 : index
    %28 = vector.load %arg1[%c0_23, %c5, %c0_24] : memref<2x26x416xbf16, #tpu.memory_space<vmem>>, vector<2x1x416xbf16>
    %29 = vector.shape_cast %28 : vector<2x1x416xbf16> to vector<2x416xbf16>
    %30 = arith.maximumf %27, %29 : vector<2x416xbf16>
    %cst_25 = arith.constant dense<0.000000e+00> : vector<2x208xf32>
    %31 = tpu.matmul %30, %0, %cst_25 {dimension_numbers = #tpu.dot_dimension_numbers<[1], [0], [0], [1], [0, 0, 1, 1], [], []>} : vector<2x416xbf16>, vector<416x208xbf16>, vector<2x208xf32> -> vector<2x208xf32>
    %cst_26 = arith.constant dense<0.000000e+00> : vector<2x208xf32>
    %32 = tpu.matmul %30, %1, %cst_26 {dimension_numbers = #tpu.dot_dimension_numbers<[1], [0], [0], [1], [0, 0, 1, 1], [], []>} : vector<2x416xbf16>, vector<416x208xbf16>, vector<2x208xf32> -> vector<2x208xf32>
    %33 = arith.maximumf %31, %32 : vector<2x208xf32>
    %34 = arith.truncf %33 : vector<2x208xf32> to vector<2x208xbf16>
    %c0_27 = arith.constant 0 : index
    %c2_28 = arith.constant 2 : index
    %c0_29 = arith.constant 0 : index
    %35 = vector.load %arg4[%c0_27, %c2_28, %c0_29] : memref<2x13x208xbf16, #tpu.memory_space<vmem>>, vector<2x1x208xbf16>
    %36 = vector.shape_cast %35 : vector<2x1x208xbf16> to vector<2x208xbf16>
    %37 = vector.shape_cast %34 : vector<2x208xbf16> to vector<2x1x208xbf16>
    tpu.vector_store %arg4[%c0_27, %c2_28, %c0_29], %37 {strides = array<i32>} : memref<2x13x208xbf16, #tpu.memory_space<vmem>>, vector<2x1x208xbf16>,
    %c0_30 = arith.constant 0 : index
    %c6 = arith.constant 6 : index
    %c0_31 = arith.constant 0 : index
    %38 = vector.load %arg1[%c0_30, %c6, %c0_31] : memref<2x26x416xbf16, #tpu.memory_space<vmem>>, vector<2x1x416xbf16>
    %39 = vector.shape_cast %38 : vector<2x1x416xbf16> to vector<2x416xbf16>
    %c0_32 = arith.constant 0 : index
    %c7 = arith.constant 7 : index
    %c0_33 = arith.constant 0 : index
    %40 = vector.load %arg1[%c0_32, %c7, %c0_33] : memref<2x26x416xbf16, #tpu.memory_space<vmem>>, vector<2x1x416xbf16>
    %41 = vector.shape_cast %40 : vector<2x1x416xbf16> to vector<2x416xbf16>
    %42 = arith.maximumf %39, %41 : vector<2x416xbf16>
    %cst_34 = arith.constant dense<0.000000e+00> : vector<2x208xf32>
    %43 = tpu.matmul %42, %0, %cst_34 {dimension_numbers = #tpu.dot_dimension_numbers<[1], [0], [0], [1], [0, 0, 1, 1], [], []>} : vector<2x416xbf16>, vector<416x208xbf16>, vector<2x208xf32> -> vector<2x208xf32>
    %cst_35 = arith.constant dense<0.000000e+00> : vector<2x208xf32>
    %44 = tpu.matmul %42, %1, %cst_35 {dimension_numbers = #tpu.dot_dimension_numbers<[1], [0], [0], [1], [0, 0, 1, 1], [], []>} : vector<2x416xbf16>, vector<416x208xbf16>, vector<2x208xf32> -> vector<2x208xf32>
    %45 = arith.maximumf %43, %44 : vector<2x208xf32>
    %46 = arith.truncf %45 : vector<2x208xf32> to vector<2x208xbf16>
    %c0_36 = arith.constant 0 : index
    %c3_37 = arith.constant 3 : index
    %c0_38 = arith.constant 0 : index
    %47 = vector.load %arg4[%c0_36, %c3_37, %c0_38] : memref<2x13x208xbf16, #tpu.memory_space<vmem>>, vector<2x1x208xbf16>
    %48 = vector.shape_cast %47 : vector<2x1x208xbf16> to vector<2x208xbf16>
    %49 = vector.shape_cast %46 : vector<2x208xbf16> to vector<2x1x208xbf16>
    tpu.vector_store %arg4[%c0_36, %c3_37, %c0_38], %49 {strides = array<i32>} : memref<2x13x208xbf16, #tpu.memory_space<vmem>>, vector<2x1x208xbf16>,
    %c0_39 = arith.constant 0 : index
    %c8 = arith.constant 8 : index
    %c0_40 = arith.constant 0 : index
    %50 = vector.load %arg1[%c0_39, %c8, %c0_40] : memref<2x26x416xbf16, #tpu.memory_space<vmem>>, vector<2x1x416xbf16>
    %51 = vector.shape_cast %50 : vector<2x1x416xbf16> to vector<2x416xbf16>
    %c0_41 = arith.constant 0 : index
    %c9 = arith.constant 9 : index
    %c0_42 = arith.constant 0 : index
    %52 = vector.load %arg1[%c0_41, %c9, %c0_42] : memref<2x26x416xbf16, #tpu.memory_space<vmem>>, vector<2x1x416xbf16>
    %53 = vector.shape_cast %52 : vector<2x1x416xbf16> to vector<2x416xbf16>
    %54 = arith.maximumf %51, %53 : vector<2x416xbf16>
    %cst_43 = arith.constant dense<0.000000e+00> : vector<2x208xf32>
    %55 = tpu.matmul %54, %0, %cst_43 {dimension_numbers = #tpu.dot_dimension_numbers<[1], [0], [0], [1], [0, 0, 1, 1], [], []>} : vector<2x416xbf16>, vector<416x208xbf16>, vector<2x208xf32> -> vector<2x208xf32>
    %cst_44 = arith.constant dense<0.000000e+00> : vector<2x208xf32>
    %56 = tpu.matmul %54, %1, %cst_44 {dimension_numbers = #tpu.dot_dimension_numbers<[1], [0], [0], [1], [0, 0, 1, 1], [], []>} : vector<2x416xbf16>, vector<416x208xbf16>, vector<2x208xf32> -> vector<2x208xf32>
    %57 = arith.maximumf %55, %56 : vector<2x208xf32>
    %58 = arith.truncf %57 : vector<2x208xf32> to vector<2x208xbf16>
    %c0_45 = arith.constant 0 : index
    %c4_46 = arith.constant 4 : index
    %c0_47 = arith.constant 0 : index
    %59 = vector.load %arg4[%c0_45, %c4_46, %c0_47] : memref<2x13x208xbf16, #tpu.memory_space<vmem>>, vector<2x1x208xbf16>
    %60 = vector.shape_cast %59 : vector<2x1x208xbf16> to vector<2x208xbf16>
    %61 = vector.shape_cast %58 : vector<2x208xbf16> to vector<2x1x208xbf16>
    tpu.vector_store %arg4[%c0_45, %c4_46, %c0_47], %61 {strides = array<i32>} : memref<2x13x208xbf16, #tpu.memory_space<vmem>>, vector<2x1x208xbf16>,
    %c0_48 = arith.constant 0 : index
    %c10 = arith.constant 10 : index
    %c0_49 = arith.constant 0 : index
    %62 = vector.load %arg1[%c0_48, %c10, %c0_49] : memref<2x26x416xbf16, #tpu.memory_space<vmem>>, vector<2x1x416xbf16>
    %63 = vector.shape_cast %62 : vector<2x1x416xbf16> to vector<2x416xbf16>
    %c0_50 = arith.constant 0 : index
    %c11 = arith.constant 11 : index
    %c0_51 = arith.constant 0 : index
    %64 = vector.load %arg1[%c0_50, %c11, %c0_51] : memref<2x26x416xbf16, #tpu.memory_space<vmem>>, vector<2x1x416xbf16>
    %65 = vector.shape_cast %64 : vector<2x1x416xbf16> to vector<2x416xbf16>
    %66 = arith.maximumf %63, %65 : vector<2x416xbf16>
    %cst_52 = arith.constant dense<0.000000e+00> : vector<2x208xf32>
    %67 = tpu.matmul %66, %0, %cst_52 {dimension_numbers = #tpu.dot_dimension_numbers<[1], [0], [0], [1], [0, 0, 1, 1], [], []>} : vector<2x416xbf16>, vector<416x208xbf16>, vector<2x208xf32> -> vector<2x208xf32>
    %cst_53 = arith.constant dense<0.000000e+00> : vector<2x208xf32>
    %68 = tpu.matmul %66, %1, %cst_53 {dimension_numbers = #tpu.dot_dimension_numbers<[1], [0], [0], [1], [0, 0, 1, 1], [], []>} : vector<2x416xbf16>, vector<416x208xbf16>, vector<2x208xf32> -> vector<2x208xf32>
    %69 = arith.maximumf %67, %68 : vector<2x208xf32>
    %70 = arith.truncf %69 : vector<2x208xf32> to vector<2x208xbf16>
    %c0_54 = arith.constant 0 : index
    %c5_55 = arith.constant 5 : index
    %c0_56 = arith.constant 0 : index
    %71 = vector.load %arg4[%c0_54, %c5_55, %c0_56] : memref<2x13x208xbf16, #tpu.memory_space<vmem>>, vector<2x1x208xbf16>
    %72 = vector.shape_cast %71 : vector<2x1x208xbf16> to vector<2x208xbf16>
    %73 = vector.shape_cast %70 : vector<2x208xbf16> to vector<2x1x208xbf16>
    tpu.vector_store %arg4[%c0_54, %c5_55, %c0_56], %73 {strides = array<i32>} : memref<2x13x208xbf16, #tpu.memory_space<vmem>>, vector<2x1x208xbf16>,
    %c0_57 = arith.constant 0 : index
    %c12 = arith.constant 12 : index
    %c0_58 = arith.constant 0 : index
    %74 = vector.load %arg1[%c0_57, %c12, %c0_58] : memref<2x26x416xbf16, #tpu.memory_space<vmem>>, vector<2x1x416xbf16>
    %75 = vector.shape_cast %74 : vector<2x1x416xbf16> to vector<2x416xbf16>
    %c0_59 = arith.constant 0 : index
    %c13 = arith.constant 13 : index
    %c0_60 = arith.constant 0 : index
    %76 = vector.load %arg1[%c0_59, %c13, %c0_60] : memref<2x26x416xbf16, #tpu.memory_space<vmem>>, vector<2x1x416xbf16>
    %77 = vector.shape_cast %76 : vector<2x1x416xbf16> to vector<2x416xbf16>
    %78 = arith.maximumf %75, %77 : vector<2x416xbf16>
    %cst_61 = arith.constant dense<0.000000e+00> : vector<2x208xf32>
    %79 = tpu.matmul %78, %0, %cst_61 {dimension_numbers = #tpu.dot_dimension_numbers<[1], [0], [0], [1], [0, 0, 1, 1], [], []>} : vector<2x416xbf16>, vector<416x208xbf16>, vector<2x208xf32> -> vector<2x208xf32>
    %cst_62 = arith.constant dense<0.000000e+00> : vector<2x208xf32>
    %80 = tpu.matmul %78, %1, %cst_62 {dimension_numbers = #tpu.dot_dimension_numbers<[1], [0], [0], [1], [0, 0, 1, 1], [], []>} : vector<2x416xbf16>, vector<416x208xbf16>, vector<2x208xf32> -> vector<2x208xf32>
    %81 = arith.maximumf %79, %80 : vector<2x208xf32>
    %82 = arith.truncf %81 : vector<2x208xf32> to vector<2x208xbf16>
    %c0_63 = arith.constant 0 : index
    %c6_64 = arith.constant 6 : index
    %c0_65 = arith.constant 0 : index
    %83 = vector.load %arg4[%c0_63, %c6_64, %c0_65] : memref<2x13x208xbf16, #tpu.memory_space<vmem>>, vector<2x1x208xbf16>
    %84 = vector.shape_cast %83 : vector<2x1x208xbf16> to vector<2x208xbf16>
    %85 = vector.shape_cast %82 : vector<2x208xbf16> to vector<2x1x208xbf16>
    tpu.vector_store %arg4[%c0_63, %c6_64, %c0_65], %85 {strides = array<i32>} : memref<2x13x208xbf16, #tpu.memory_space<vmem>>, vector<2x1x208xbf16>,
    %c0_66 = arith.constant 0 : index
    %c14 = arith.constant 14 : index
    %c0_67 = arith.constant 0 : index
    %86 = vector.load %arg1[%c0_66, %c14, %c0_67] : memref<2x26x416xbf16, #tpu.memory_space<vmem>>, vector<2x1x416xbf16>
    %87 = vector.shape_cast %86 : vector<2x1x416xbf16> to vector<2x416xbf16>
    %c0_68 = arith.constant 0 : index
    %c15 = arith.constant 15 : index
    %c0_69 = arith.constant 0 : index
    %88 = vector.load %arg1[%c0_68, %c15, %c0_69] : memref<2x26x416xbf16, #tpu.memory_space<vmem>>, vector<2x1x416xbf16>
    %89 = vector.shape_cast %88 : vector<2x1x416xbf16> to vector<2x416xbf16>
    %90 = arith.maximumf %87, %89 : vector<2x416xbf16>
    %cst_70 = arith.constant dense<0.000000e+00> : vector<2x208xf32>
    %91 = tpu.matmul %90, %0, %cst_70 {dimension_numbers = #tpu.dot_dimension_numbers<[1], [0], [0], [1], [0, 0, 1, 1], [], []>} : vector<2x416xbf16>, vector<416x208xbf16>, vector<2x208xf32> -> vector<2x208xf32>
    %cst_71 = arith.constant dense<0.000000e+00> : vector<2x208xf32>
    %92 = tpu.matmul %90, %1, %cst_71 {dimension_numbers = #tpu.dot_dimension_numbers<[1], [0], [0], [1], [0, 0, 1, 1], [], []>} : vector<2x416xbf16>, vector<416x208xbf16>, vector<2x208xf32> -> vector<2x208xf32>
    %93 = arith.maximumf %91, %92 : vector<2x208xf32>
    %94 = arith.truncf %93 : vector<2x208xf32> to vector<2x208xbf16>
    %c0_72 = arith.constant 0 : index
    %c7_73 = arith.constant 7 : index
    %c0_74 = arith.constant 0 : index
    %95 = vector.load %arg4[%c0_72, %c7_73, %c0_74] : memref<2x13x208xbf16, #tpu.memory_space<vmem>>, vector<2x1x208xbf16>
    %96 = vector.shape_cast %95 : vector<2x1x208xbf16> to vector<2x208xbf16>
    %97 = vector.shape_cast %94 : vector<2x208xbf16> to vector<2x1x208xbf16>
    tpu.vector_store %arg4[%c0_72, %c7_73, %c0_74], %97 {strides = array<i32>} : memref<2x13x208xbf16, #tpu.memory_space<vmem>>, vector<2x1x208xbf16>,
    %c0_75 = arith.constant 0 : index
    %c16 = arith.constant 16 : index
    %c0_76 = arith.constant 0 : index
    %98 = vector.load %arg1[%c0_75, %c16, %c0_76] : memref<2x26x416xbf16, #tpu.memory_space<vmem>>, vector<2x1x416xbf16>
    %99 = vector.shape_cast %98 : vector<2x1x416xbf16> to vector<2x416xbf16>
    %c0_77 = arith.constant 0 : index
    %c17 = arith.constant 17 : index
    %c0_78 = arith.constant 0 : index
    %100 = vector.load %arg1[%c0_77, %c17, %c0_78] : memref<2x26x416xbf16, #tpu.memory_space<vmem>>, vector<2x1x416xbf16>
    %101 = vector.shape_cast %100 : vector<2x1x416xbf16> to vector<2x416xbf16>
    %102 = arith.maximumf %99, %101 : vector<2x416xbf16>
    %cst_79 = arith.constant dense<0.000000e+00> : vector<2x208xf32>
    %103 = tpu.matmul %102, %0, %cst_79 {dimension_numbers = #tpu.dot_dimension_numbers<[1], [0], [0], [1], [0, 0, 1, 1], [], []>} : vector<2x416xbf16>, vector<416x208xbf16>, vector<2x208xf32> -> vector<2x208xf32>
    %cst_80 = arith.constant dense<0.000000e+00> : vector<2x208xf32>
    %104 = tpu.matmul %102, %1, %cst_80 {dimension_numbers = #tpu.dot_dimension_numbers<[1], [0], [0], [1], [0, 0, 1, 1], [], []>} : vector<2x416xbf16>, vector<416x208xbf16>, vector<2x208xf32> -> vector<2x208xf32>
    %105 = arith.maximumf %103, %104 : vector<2x208xf32>
    %106 = arith.truncf %105 : vector<2x208xf32> to vector<2x208xbf16>
    %c0_81 = arith.constant 0 : index
    %c8_82 = arith.constant 8 : index
    %c0_83 = arith.constant 0 : index
    %107 = vector.load %arg4[%c0_81, %c8_82, %c0_83] : memref<2x13x208xbf16, #tpu.memory_space<vmem>>, vector<2x1x208xbf16>
    %108 = vector.shape_cast %107 : vector<2x1x208xbf16> to vector<2x208xbf16>
    %109 = vector.shape_cast %106 : vector<2x208xbf16> to vector<2x1x208xbf16>
    tpu.vector_store %arg4[%c0_81, %c8_82, %c0_83], %109 {strides = array<i32>} : memref<2x13x208xbf16, #tpu.memory_space<vmem>>, vector<2x1x208xbf16>,
    %c0_84 = arith.constant 0 : index
    %c18 = arith.constant 18 : index
    %c0_85 = arith.constant 0 : index
    %110 = vector.load %arg1[%c0_84, %c18, %c0_85] : memref<2x26x416xbf16, #tpu.memory_space<vmem>>, vector<2x1x416xbf16>
    %111 = vector.shape_cast %110 : vector<2x1x416xbf16> to vector<2x416xbf16>
    %c0_86 = arith.constant 0 : index
    %c19 = arith.constant 19 : index
    %c0_87 = arith.constant 0 : index
    %112 = vector.load %arg1[%c0_86, %c19, %c0_87] : memref<2x26x416xbf16, #tpu.memory_space<vmem>>, vector<2x1x416xbf16>
    %113 = vector.shape_cast %112 : vector<2x1x416xbf16> to vector<2x416xbf16>
    %114 = arith.maximumf %111, %113 : vector<2x416xbf16>
    %cst_88 = arith.constant dense<0.000000e+00> : vector<2x208xf32>
    %115 = tpu.matmul %114, %0, %cst_88 {dimension_numbers = #tpu.dot_dimension_numbers<[1], [0], [0], [1], [0, 0, 1, 1], [], []>} : vector<2x416xbf16>, vector<416x208xbf16>, vector<2x208xf32> -> vector<2x208xf32>
    %cst_89 = arith.constant dense<0.000000e+00> : vector<2x208xf32>
    %116 = tpu.matmul %114, %1, %cst_89 {dimension_numbers = #tpu.dot_dimension_numbers<[1], [0], [0], [1], [0, 0, 1, 1], [], []>} : vector<2x416xbf16>, vector<416x208xbf16>, vector<2x208xf32> -> vector<2x208xf32>
    %117 = arith.maximumf %115, %116 : vector<2x208xf32>
    %118 = arith.truncf %117 : vector<2x208xf32> to vector<2x208xbf16>
    %c0_90 = arith.constant 0 : index
    %c9_91 = arith.constant 9 : index
    %c0_92 = arith.constant 0 : index
    %119 = vector.load %arg4[%c0_90, %c9_91, %c0_92] : memref<2x13x208xbf16, #tpu.memory_space<vmem>>, vector<2x1x208xbf16>
    %120 = vector.shape_cast %119 : vector<2x1x208xbf16> to vector<2x208xbf16>
    %121 = vector.shape_cast %118 : vector<2x208xbf16> to vector<2x1x208xbf16>
    tpu.vector_store %arg4[%c0_90, %c9_91, %c0_92], %121 {strides = array<i32>} : memref<2x13x208xbf16, #tpu.memory_space<vmem>>, vector<2x1x208xbf16>,
    %c0_93 = arith.constant 0 : index
    %c20 = arith.constant 20 : index
    %c0_94 = arith.constant 0 : index
    %122 = vector.load %arg1[%c0_93, %c20, %c0_94] : memref<2x26x416xbf16, #tpu.memory_space<vmem>>, vector<2x1x416xbf16>
    %123 = vector.shape_cast %122 : vector<2x1x416xbf16> to vector<2x416xbf16>
    %c0_95 = arith.constant 0 : index
    %c21 = arith.constant 21 : index
    %c0_96 = arith.constant 0 : index
    %124 = vector.load %arg1[%c0_95, %c21, %c0_96] : memref<2x26x416xbf16, #tpu.memory_space<vmem>>, vector<2x1x416xbf16>
    %125 = vector.shape_cast %124 : vector<2x1x416xbf16> to vector<2x416xbf16>
    %126 = arith.maximumf %123, %125 : vector<2x416xbf16>
    %cst_97 = arith.constant dense<0.000000e+00> : vector<2x208xf32>
    %127 = tpu.matmul %126, %0, %cst_97 {dimension_numbers = #tpu.dot_dimension_numbers<[1], [0], [0], [1], [0, 0, 1, 1], [], []>} : vector<2x416xbf16>, vector<416x208xbf16>, vector<2x208xf32> -> vector<2x208xf32>
    %cst_98 = arith.constant dense<0.000000e+00> : vector<2x208xf32>
    %128 = tpu.matmul %126, %1, %cst_98 {dimension_numbers = #tpu.dot_dimension_numbers<[1], [0], [0], [1], [0, 0, 1, 1], [], []>} : vector<2x416xbf16>, vector<416x208xbf16>, vector<2x208xf32> -> vector<2x208xf32>
    %129 = arith.maximumf %127, %128 : vector<2x208xf32>
    %130 = arith.truncf %129 : vector<2x208xf32> to vector<2x208xbf16>
    %c0_99 = arith.constant 0 : index
    %c10_100 = arith.constant 10 : index
    %c0_101 = arith.constant 0 : index
    %131 = vector.load %arg4[%c0_99, %c10_100, %c0_101] : memref<2x13x208xbf16, #tpu.memory_space<vmem>>, vector<2x1x208xbf16>
    %132 = vector.shape_cast %131 : vector<2x1x208xbf16> to vector<2x208xbf16>
    %133 = vector.shape_cast %130 : vector<2x208xbf16> to vector<2x1x208xbf16>
    tpu.vector_store %arg4[%c0_99, %c10_100, %c0_101], %133 {strides = array<i32>} : memref<2x13x208xbf16, #tpu.memory_space<vmem>>, vector<2x1x208xbf16>,
    %c0_102 = arith.constant 0 : index
    %c22 = arith.constant 22 : index
    %c0_103 = arith.constant 0 : index
    %134 = vector.load %arg1[%c0_102, %c22, %c0_103] : memref<2x26x416xbf16, #tpu.memory_space<vmem>>, vector<2x1x416xbf16>
    %135 = vector.shape_cast %134 : vector<2x1x416xbf16> to vector<2x416xbf16>
    %c0_104 = arith.constant 0 : index
    %c23 = arith.constant 23 : index
    %c0_105 = arith.constant 0 : index
    %136 = vector.load %arg1[%c0_104, %c23, %c0_105] : memref<2x26x416xbf16, #tpu.memory_space<vmem>>, vector<2x1x416xbf16>
    %137 = vector.shape_cast %136 : vector<2x1x416xbf16> to vector<2x416xbf16>
    %138 = arith.maximumf %135, %137 : vector<2x416xbf16>
    %cst_106 = arith.constant dense<0.000000e+00> : vector<2x208xf32>
    %139 = tpu.matmul %138, %0, %cst_106 {dimension_numbers = #tpu.dot_dimension_numbers<[1], [0], [0], [1], [0, 0, 1, 1], [], []>} : vector<2x416xbf16>, vector<416x208xbf16>, vector<2x208xf32> -> vector<2x208xf32>
    %cst_107 = arith.constant dense<0.000000e+00> : vector<2x208xf32>
    %140 = tpu.matmul %138, %1, %cst_107 {dimension_numbers = #tpu.dot_dimension_numbers<[1], [0], [0], [1], [0, 0, 1, 1], [], []>} : vector<2x416xbf16>, vector<416x208xbf16>, vector<2x208xf32> -> vector<2x208xf32>
    %141 = arith.maximumf %139, %140 : vector<2x208xf32>
    %142 = arith.truncf %141 : vector<2x208xf32> to vector<2x208xbf16>
    %c0_108 = arith.constant 0 : index
    %c11_109 = arith.constant 11 : index
    %c0_110 = arith.constant 0 : index
    %143 = vector.load %arg4[%c0_108, %c11_109, %c0_110] : memref<2x13x208xbf16, #tpu.memory_space<vmem>>, vector<2x1x208xbf16>
    %144 = vector.shape_cast %143 : vector<2x1x208xbf16> to vector<2x208xbf16>
    %145 = vector.shape_cast %142 : vector<2x208xbf16> to vector<2x1x208xbf16>
    tpu.vector_store %arg4[%c0_108, %c11_109, %c0_110], %145 {strides = array<i32>} : memref<2x13x208xbf16, #tpu.memory_space<vmem>>, vector<2x1x208xbf16>,
    %c0_111 = arith.constant 0 : index
    %c24 = arith.constant 24 : index
    %c0_112 = arith.constant 0 : index
    %146 = vector.load %arg1[%c0_111, %c24, %c0_112] : memref<2x26x416xbf16, #tpu.memory_space<vmem>>, vector<2x1x416xbf16>
    %147 = vector.shape_cast %146 : vector<2x1x416xbf16> to vector<2x416xbf16>
    %c0_113 = arith.constant 0 : index
    %c25 = arith.constant 25 : index
    %c0_114 = arith.constant 0 : index
    %148 = vector.load %arg1[%c0_113, %c25, %c0_114] : memref<2x26x416xbf16, #tpu.memory_space<vmem>>, vector<2x1x416xbf16>
    %149 = vector.shape_cast %148 : vector<2x1x416xbf16> to vector<2x416xbf16>
    %150 = arith.maximumf %147, %149 : vector<2x416xbf16>
    %cst_115 = arith.constant dense<0.000000e+00> : vector<2x208xf32>
    %151 = tpu.matmul %150, %0, %cst_115 {dimension_numbers = #tpu.dot_dimension_numbers<[1], [0], [0], [1], [0, 0, 1, 1], [], []>} : vector<2x416xbf16>, vector<416x208xbf16>, vector<2x208xf32> -> vector<2x208xf32>
    %cst_116 = arith.constant dense<0.000000e+00> : vector<2x208xf32>
    %152 = tpu.matmul %150, %1, %cst_116 {dimension_numbers = #tpu.dot_dimension_numbers<[1], [0], [0], [1], [0, 0, 1, 1], [], []>} : vector<2x416xbf16>, vector<416x208xbf16>, vector<2x208xf32> -> vector<2x208xf32>
    %153 = arith.maximumf %151, %152 : vector<2x208xf32>
    %154 = arith.truncf %153 : vector<2x208xf32> to vector<2x208xbf16>
    %c0_117 = arith.constant 0 : index
    %c12_118 = arith.constant 12 : index
    %c0_119 = arith.constant 0 : index
    %155 = vector.load %arg4[%c0_117, %c12_118, %c0_119] : memref<2x13x208xbf16, #tpu.memory_space<vmem>>, vector<2x1x208xbf16>
    %156 = vector.shape_cast %155 : vector<2x1x208xbf16> to vector<2x208xbf16>
    %157 = vector.shape_cast %154 : vector<2x208xbf16> to vector<2x1x208xbf16>
    tpu.vector_store %arg4[%c0_117, %c12_118, %c0_119], %157 {strides = array<i32>} : memref<2x13x208xbf16, #tpu.memory_space<vmem>>, vector<2x1x208xbf16>,
    return
  }
  func.func @transform_0(%arg0: i32) -> (i32, i32, i32) {
    %c0_i32 = arith.constant 0 : i32
    %c0_i32_0 = arith.constant 0 : i32
    %c0_i32_1 = arith.constant 0 : i32
    return %arg0, %c0_i32, %c0_i32_0 : i32, i32, i32
  }
  func.func @transform_1(%arg0: i32) -> (i32, i32) {
    %c0_i32 = arith.constant 0 : i32
    %c0_i32_0 = arith.constant 0 : i32
    %c0_i32_1 = arith.constant 0 : i32
    return %c0_i32, %c0_i32_0 : i32, i32
  }
  func.func @transform_2(%arg0: i32) -> (i32, i32) {
    %c0_i32 = arith.constant 0 : i32
    %c0_i32_0 = arith.constant 0 : i32
    %c0_i32_1 = arith.constant 0 : i32
    return %c0_i32, %c0_i32_0 : i32, i32
  }
  func.func @transform_3(%arg0: i32) -> (i32, i32, i32) {
    %c0_i32 = arith.constant 0 : i32
    %c0_i32_0 = arith.constant 0 : i32
    %c0_i32_1 = arith.constant 0 : i32
    return %arg0, %c0_i32, %c0_i32_0 : i32, i32, i32
  }
}

module attributes {stable_mosaic.version = 11 : i64} {
  func.func @_matmul_bias_relu_kernel(%arg0: i32, %arg1: i32, %arg2: memref<248x144xbf16, #tpu.memory_space<vmem>>, %arg3: memref<144x32xbf16, #tpu.memory_space<vmem>>, %arg4: memref<1x32xf32, #tpu.memory_space<vmem>>, %arg5: memref<248x32xbf16, #tpu.memory_space<vmem>>) attributes {dimension_semantics = [#tpu.dimension_semantics<parallel>, #tpu.dimension_semantics<parallel>], iteration_bounds = array<i64: 1, 1>, scalar_prefetch = 0 : i64, scratch_operands = 0 : i64, tpu.core_type = #tpu.core_type<tc>, window_params = [{transform_indices = @transform_0, window_bounds = array<i64: 248, 144>}, {transform_indices = @transform_1, window_bounds = array<i64: 144, 32>}, {transform_indices = @transform_2, window_bounds = array<i64: 1, 32>}, {transform_indices = @transform_3, window_bounds = array<i64: 248, 32>}]} {
    %c0 = arith.constant 0 : index
    %c0_0 = arith.constant 0 : index
    %0 = vector.load %arg2[%c0, %c0_0] : memref<248x144xbf16, #tpu.memory_space<vmem>>, vector<248x144xbf16>
    %c0_1 = arith.constant 0 : index
    %c0_2 = arith.constant 0 : index
    %1 = vector.load %arg3[%c0_1, %c0_2] : memref<144x32xbf16, #tpu.memory_space<vmem>>, vector<144x32xbf16>
    %cst = arith.constant dense<0.000000e+00> : vector<248x32xf32>
    %2 = tpu.matmul %0, %1, %cst {dimension_numbers = #tpu.dot_dimension_numbers<[1], [0], [0], [1], [0, 0, 1, 1], [], []>} : vector<248x144xbf16>, vector<144x32xbf16>, vector<248x32xf32> -> vector<248x32xf32>
    %c0_3 = arith.constant 0 : index
    %c0_4 = arith.constant 0 : index
    %3 = vector.load %arg4[%c0_3, %c0_4] : memref<1x32xf32, #tpu.memory_space<vmem>>, vector<1x32xf32>
    %4 = vector.broadcast %3 : vector<1x32xf32> to vector<248x32xf32>
    %5 = arith.addf %2, %4 : vector<248x32xf32>
    %cst_5 = arith.constant 0.000000e+00 : f32
    %6 = vector.broadcast %cst_5 : f32 to vector<248x32xf32>
    %7 = arith.maximumf %5, %6 : vector<248x32xf32>
    %8 = arith.truncf %7 : vector<248x32xf32> to vector<248x32xbf16>
    %c0_6 = arith.constant 0 : index
    %c0_7 = arith.constant 0 : index
    %9 = vector.load %arg5[%c0_6, %c0_7] : memref<248x32xbf16, #tpu.memory_space<vmem>>, vector<248x32xbf16>
    tpu.vector_store %arg5[%c0_6, %c0_7], %8 {strides = array<i32>} : memref<248x32xbf16, #tpu.memory_space<vmem>>, vector<248x32xbf16>,
    return
  }
  func.func @transform_0(%arg0: i32, %arg1: i32) -> (i32, i32) {
    %c0_i32 = arith.constant 0 : i32
    %c0_i32_0 = arith.constant 0 : i32
    return %arg0, %c0_i32 : i32, i32
  }
  func.func @transform_1(%arg0: i32, %arg1: i32) -> (i32, i32) {
    %c0_i32 = arith.constant 0 : i32
    %c0_i32_0 = arith.constant 0 : i32
    return %c0_i32, %arg1 : i32, i32
  }
  func.func @transform_2(%arg0: i32, %arg1: i32) -> (i32, i32) {
    %c0_i32 = arith.constant 0 : i32
    %c0_i32_0 = arith.constant 0 : i32
    return %c0_i32, %arg1 : i32, i32
  }
  func.func @transform_3(%arg0: i32, %arg1: i32) -> (i32, i32) {
    %c0_i32 = arith.constant 0 : i32
    return %arg0, %arg1 : i32, i32
  }
}

module attributes {stable_mosaic.version = 11 : i64} {
  func.func @kernel(%arg0: i32, %arg1: memref<2x11x352xbf16, #tpu.memory_space<vmem>>, %arg2: memref<352x160xbf16, #tpu.memory_space<vmem>>, %arg3: memref<352x160xbf16, #tpu.memory_space<vmem>>, %arg4: memref<2x5x160xbf16, #tpu.memory_space<vmem>>) attributes {dimension_semantics = [#tpu.dimension_semantics<parallel>], iteration_bounds = array<i64: 1>, scalar_prefetch = 0 : i64, scratch_operands = 0 : i64, tpu.core_type = #tpu.core_type<tc>, window_params = [{transform_indices = @transform_0, window_bounds = array<i64: 2, 11, 352>}, {pipeline_mode = #tpu.pipeline_mode<synchronous>, transform_indices = @transform_1, window_bounds = array<i64: 352, 160>}, {pipeline_mode = #tpu.pipeline_mode<synchronous>, transform_indices = @transform_2, window_bounds = array<i64: 352, 160>}, {transform_indices = @transform_3, window_bounds = array<i64: 2, 5, 160>}]} {
    %c0 = arith.constant 0 : index
    %c0_0 = arith.constant 0 : index
    %0 = vector.load %arg2[%c0, %c0_0] : memref<352x160xbf16, #tpu.memory_space<vmem>>, vector<352x160xbf16>
    %c0_1 = arith.constant 0 : index
    %c0_2 = arith.constant 0 : index
    %1 = vector.load %arg3[%c0_1, %c0_2] : memref<352x160xbf16, #tpu.memory_space<vmem>>, vector<352x160xbf16>
    %c0_3 = arith.constant 0 : index
    %c0_4 = arith.constant 0 : index
    %c0_5 = arith.constant 0 : index
    %2 = vector.load %arg1[%c0_3, %c0_4, %c0_5] : memref<2x11x352xbf16, #tpu.memory_space<vmem>>, vector<2x1x352xbf16>
    %3 = vector.shape_cast %2 : vector<2x1x352xbf16> to vector<2x352xbf16>
    %c0_6 = arith.constant 0 : index
    %c1 = arith.constant 1 : index
    %c0_7 = arith.constant 0 : index
    %4 = vector.load %arg1[%c0_6, %c1, %c0_7] : memref<2x11x352xbf16, #tpu.memory_space<vmem>>, vector<2x1x352xbf16>
    %5 = vector.shape_cast %4 : vector<2x1x352xbf16> to vector<2x352xbf16>
    %6 = arith.maximumf %3, %5 : vector<2x352xbf16>
    %cst = arith.constant dense<0.000000e+00> : vector<2x160xf32>
    %7 = tpu.matmul %6, %0, %cst {dimension_numbers = #tpu.dot_dimension_numbers<[1], [0], [0], [1], [0, 0, 1, 1], [], []>} : vector<2x352xbf16>, vector<352x160xbf16>, vector<2x160xf32> -> vector<2x160xf32>
    %cst_8 = arith.constant dense<0.000000e+00> : vector<2x160xf32>
    %8 = tpu.matmul %6, %1, %cst_8 {dimension_numbers = #tpu.dot_dimension_numbers<[1], [0], [0], [1], [0, 0, 1, 1], [], []>} : vector<2x352xbf16>, vector<352x160xbf16>, vector<2x160xf32> -> vector<2x160xf32>
    %9 = arith.maximumf %7, %8 : vector<2x160xf32>
    %10 = arith.truncf %9 : vector<2x160xf32> to vector<2x160xbf16>
    %c0_9 = arith.constant 0 : index
    %c0_10 = arith.constant 0 : index
    %c0_11 = arith.constant 0 : index
    %11 = vector.load %arg4[%c0_9, %c0_10, %c0_11] : memref<2x5x160xbf16, #tpu.memory_space<vmem>>, vector<2x1x160xbf16>
    %12 = vector.shape_cast %11 : vector<2x1x160xbf16> to vector<2x160xbf16>
    %13 = vector.shape_cast %10 : vector<2x160xbf16> to vector<2x1x160xbf16>
    tpu.vector_store %arg4[%c0_9, %c0_10, %c0_11], %13 {strides = array<i32>} : memref<2x5x160xbf16, #tpu.memory_space<vmem>>, vector<2x1x160xbf16>,
    %c0_12 = arith.constant 0 : index
    %c2 = arith.constant 2 : index
    %c0_13 = arith.constant 0 : index
    %14 = vector.load %arg1[%c0_12, %c2, %c0_13] : memref<2x11x352xbf16, #tpu.memory_space<vmem>>, vector<2x1x352xbf16>
    %15 = vector.shape_cast %14 : vector<2x1x352xbf16> to vector<2x352xbf16>
    %c0_14 = arith.constant 0 : index
    %c3 = arith.constant 3 : index
    %c0_15 = arith.constant 0 : index
    %16 = vector.load %arg1[%c0_14, %c3, %c0_15] : memref<2x11x352xbf16, #tpu.memory_space<vmem>>, vector<2x1x352xbf16>
    %17 = vector.shape_cast %16 : vector<2x1x352xbf16> to vector<2x352xbf16>
    %18 = arith.maximumf %15, %17 : vector<2x352xbf16>
    %cst_16 = arith.constant dense<0.000000e+00> : vector<2x160xf32>
    %19 = tpu.matmul %18, %0, %cst_16 {dimension_numbers = #tpu.dot_dimension_numbers<[1], [0], [0], [1], [0, 0, 1, 1], [], []>} : vector<2x352xbf16>, vector<352x160xbf16>, vector<2x160xf32> -> vector<2x160xf32>
    %cst_17 = arith.constant dense<0.000000e+00> : vector<2x160xf32>
    %20 = tpu.matmul %18, %1, %cst_17 {dimension_numbers = #tpu.dot_dimension_numbers<[1], [0], [0], [1], [0, 0, 1, 1], [], []>} : vector<2x352xbf16>, vector<352x160xbf16>, vector<2x160xf32> -> vector<2x160xf32>
    %21 = arith.maximumf %19, %20 : vector<2x160xf32>
    %22 = arith.truncf %21 : vector<2x160xf32> to vector<2x160xbf16>
    %c0_18 = arith.constant 0 : index
    %c1_19 = arith.constant 1 : index
    %c0_20 = arith.constant 0 : index
    %23 = vector.load %arg4[%c0_18, %c1_19, %c0_20] : memref<2x5x160xbf16, #tpu.memory_space<vmem>>, vector<2x1x160xbf16>
    %24 = vector.shape_cast %23 : vector<2x1x160xbf16> to vector<2x160xbf16>
    %25 = vector.shape_cast %22 : vector<2x160xbf16> to vector<2x1x160xbf16>
    tpu.vector_store %arg4[%c0_18, %c1_19, %c0_20], %25 {strides = array<i32>} : memref<2x5x160xbf16, #tpu.memory_space<vmem>>, vector<2x1x160xbf16>,
    %c0_21 = arith.constant 0 : index
    %c4 = arith.constant 4 : index
    %c0_22 = arith.constant 0 : index
    %26 = vector.load %arg1[%c0_21, %c4, %c0_22] : memref<2x11x352xbf16, #tpu.memory_space<vmem>>, vector<2x1x352xbf16>
    %27 = vector.shape_cast %26 : vector<2x1x352xbf16> to vector<2x352xbf16>
    %c0_23 = arith.constant 0 : index
    %c5 = arith.constant 5 : index
    %c0_24 = arith.constant 0 : index
    %28 = vector.load %arg1[%c0_23, %c5, %c0_24] : memref<2x11x352xbf16, #tpu.memory_space<vmem>>, vector<2x1x352xbf16>
    %29 = vector.shape_cast %28 : vector<2x1x352xbf16> to vector<2x352xbf16>
    %30 = arith.maximumf %27, %29 : vector<2x352xbf16>
    %cst_25 = arith.constant dense<0.000000e+00> : vector<2x160xf32>
    %31 = tpu.matmul %30, %0, %cst_25 {dimension_numbers = #tpu.dot_dimension_numbers<[1], [0], [0], [1], [0, 0, 1, 1], [], []>} : vector<2x352xbf16>, vector<352x160xbf16>, vector<2x160xf32> -> vector<2x160xf32>
    %cst_26 = arith.constant dense<0.000000e+00> : vector<2x160xf32>
    %32 = tpu.matmul %30, %1, %cst_26 {dimension_numbers = #tpu.dot_dimension_numbers<[1], [0], [0], [1], [0, 0, 1, 1], [], []>} : vector<2x352xbf16>, vector<352x160xbf16>, vector<2x160xf32> -> vector<2x160xf32>
    %33 = arith.maximumf %31, %32 : vector<2x160xf32>
    %34 = arith.truncf %33 : vector<2x160xf32> to vector<2x160xbf16>
    %c0_27 = arith.constant 0 : index
    %c2_28 = arith.constant 2 : index
    %c0_29 = arith.constant 0 : index
    %35 = vector.load %arg4[%c0_27, %c2_28, %c0_29] : memref<2x5x160xbf16, #tpu.memory_space<vmem>>, vector<2x1x160xbf16>
    %36 = vector.shape_cast %35 : vector<2x1x160xbf16> to vector<2x160xbf16>
    %37 = vector.shape_cast %34 : vector<2x160xbf16> to vector<2x1x160xbf16>
    tpu.vector_store %arg4[%c0_27, %c2_28, %c0_29], %37 {strides = array<i32>} : memref<2x5x160xbf16, #tpu.memory_space<vmem>>, vector<2x1x160xbf16>,
    %c0_30 = arith.constant 0 : index
    %c6 = arith.constant 6 : index
    %c0_31 = arith.constant 0 : index
    %38 = vector.load %arg1[%c0_30, %c6, %c0_31] : memref<2x11x352xbf16, #tpu.memory_space<vmem>>, vector<2x1x352xbf16>
    %39 = vector.shape_cast %38 : vector<2x1x352xbf16> to vector<2x352xbf16>
    %c0_32 = arith.constant 0 : index
    %c7 = arith.constant 7 : index
    %c0_33 = arith.constant 0 : index
    %40 = vector.load %arg1[%c0_32, %c7, %c0_33] : memref<2x11x352xbf16, #tpu.memory_space<vmem>>, vector<2x1x352xbf16>
    %41 = vector.shape_cast %40 : vector<2x1x352xbf16> to vector<2x352xbf16>
    %42 = arith.maximumf %39, %41 : vector<2x352xbf16>
    %cst_34 = arith.constant dense<0.000000e+00> : vector<2x160xf32>
    %43 = tpu.matmul %42, %0, %cst_34 {dimension_numbers = #tpu.dot_dimension_numbers<[1], [0], [0], [1], [0, 0, 1, 1], [], []>} : vector<2x352xbf16>, vector<352x160xbf16>, vector<2x160xf32> -> vector<2x160xf32>
    %cst_35 = arith.constant dense<0.000000e+00> : vector<2x160xf32>
    %44 = tpu.matmul %42, %1, %cst_35 {dimension_numbers = #tpu.dot_dimension_numbers<[1], [0], [0], [1], [0, 0, 1, 1], [], []>} : vector<2x352xbf16>, vector<352x160xbf16>, vector<2x160xf32> -> vector<2x160xf32>
    %45 = arith.maximumf %43, %44 : vector<2x160xf32>
    %46 = arith.truncf %45 : vector<2x160xf32> to vector<2x160xbf16>
    %c0_36 = arith.constant 0 : index
    %c3_37 = arith.constant 3 : index
    %c0_38 = arith.constant 0 : index
    %47 = vector.load %arg4[%c0_36, %c3_37, %c0_38] : memref<2x5x160xbf16, #tpu.memory_space<vmem>>, vector<2x1x160xbf16>
    %48 = vector.shape_cast %47 : vector<2x1x160xbf16> to vector<2x160xbf16>
    %49 = vector.shape_cast %46 : vector<2x160xbf16> to vector<2x1x160xbf16>
    tpu.vector_store %arg4[%c0_36, %c3_37, %c0_38], %49 {strides = array<i32>} : memref<2x5x160xbf16, #tpu.memory_space<vmem>>, vector<2x1x160xbf16>,
    %c0_39 = arith.constant 0 : index
    %c8 = arith.constant 8 : index
    %c0_40 = arith.constant 0 : index
    %50 = vector.load %arg1[%c0_39, %c8, %c0_40] : memref<2x11x352xbf16, #tpu.memory_space<vmem>>, vector<2x1x352xbf16>
    %51 = vector.shape_cast %50 : vector<2x1x352xbf16> to vector<2x352xbf16>
    %c0_41 = arith.constant 0 : index
    %c9 = arith.constant 9 : index
    %c0_42 = arith.constant 0 : index
    %52 = vector.load %arg1[%c0_41, %c9, %c0_42] : memref<2x11x352xbf16, #tpu.memory_space<vmem>>, vector<2x1x352xbf16>
    %53 = vector.shape_cast %52 : vector<2x1x352xbf16> to vector<2x352xbf16>
    %54 = arith.maximumf %51, %53 : vector<2x352xbf16>
    %cst_43 = arith.constant dense<0.000000e+00> : vector<2x160xf32>
    %55 = tpu.matmul %54, %0, %cst_43 {dimension_numbers = #tpu.dot_dimension_numbers<[1], [0], [0], [1], [0, 0, 1, 1], [], []>} : vector<2x352xbf16>, vector<352x160xbf16>, vector<2x160xf32> -> vector<2x160xf32>
    %cst_44 = arith.constant dense<0.000000e+00> : vector<2x160xf32>
    %56 = tpu.matmul %54, %1, %cst_44 {dimension_numbers = #tpu.dot_dimension_numbers<[1], [0], [0], [1], [0, 0, 1, 1], [], []>} : vector<2x352xbf16>, vector<352x160xbf16>, vector<2x160xf32> -> vector<2x160xf32>
    %57 = arith.maximumf %55, %56 : vector<2x160xf32>
    %58 = arith.truncf %57 : vector<2x160xf32> to vector<2x160xbf16>
    %c0_45 = arith.constant 0 : index
    %c4_46 = arith.constant 4 : index
    %c0_47 = arith.constant 0 : index
    %59 = vector.load %arg4[%c0_45, %c4_46, %c0_47] : memref<2x5x160xbf16, #tpu.memory_space<vmem>>, vector<2x1x160xbf16>
    %60 = vector.shape_cast %59 : vector<2x1x160xbf16> to vector<2x160xbf16>
    %61 = vector.shape_cast %58 : vector<2x160xbf16> to vector<2x1x160xbf16>
    tpu.vector_store %arg4[%c0_45, %c4_46, %c0_47], %61 {strides = array<i32>} : memref<2x5x160xbf16, #tpu.memory_space<vmem>>, vector<2x1x160xbf16>,
    return
  }
  func.func @transform_0(%arg0: i32) -> (i32, i32, i32) {
    %c0_i32 = arith.constant 0 : i32
    %c0_i32_0 = arith.constant 0 : i32
    %c0_i32_1 = arith.constant 0 : i32
    return %arg0, %c0_i32, %c0_i32_0 : i32, i32, i32
  }
  func.func @transform_1(%arg0: i32) -> (i32, i32) {
    %c0_i32 = arith.constant 0 : i32
    %c0_i32_0 = arith.constant 0 : i32
    %c0_i32_1 = arith.constant 0 : i32
    return %c0_i32, %c0_i32_0 : i32, i32
  }
  func.func @transform_2(%arg0: i32) -> (i32, i32) {
    %c0_i32 = arith.constant 0 : i32
    %c0_i32_0 = arith.constant 0 : i32
    %c0_i32_1 = arith.constant 0 : i32
    return %c0_i32, %c0_i32_0 : i32, i32
  }
  func.func @transform_3(%arg0: i32) -> (i32, i32, i32) {
    %c0_i32 = arith.constant 0 : i32
    %c0_i32_0 = arith.constant 0 : i32
    %c0_i32_1 = arith.constant 0 : i32
    return %arg0, %c0_i32, %c0_i32_0 : i32, i32, i32
  }
}

module attributes {stable_mosaic.version = 11 : i64} {
  func.func @_matmul_bias_relu_kernel(%arg0: i32, %arg1: i32, %arg2: memref<8x800xbf16, #tpu.memory_space<vmem>>, %arg3: memref<800x256xbf16, #tpu.memory_space<vmem>>, %arg4: memref<1x256xf32, #tpu.memory_space<vmem>>, %arg5: memref<8x256xbf16, #tpu.memory_space<vmem>>) attributes {dimension_semantics = [#tpu.dimension_semantics<parallel>, #tpu.dimension_semantics<parallel>], iteration_bounds = array<i64: 1, 2>, scalar_prefetch = 0 : i64, scratch_operands = 0 : i64, tpu.core_type = #tpu.core_type<tc>, window_params = [{transform_indices = @transform_0, window_bounds = array<i64: 8, 800>}, {transform_indices = @transform_1, window_bounds = array<i64: 800, 256>}, {transform_indices = @transform_2, window_bounds = array<i64: 1, 256>}, {transform_indices = @transform_3, window_bounds = array<i64: 8, 256>}]} {
    %c0 = arith.constant 0 : index
    %c0_0 = arith.constant 0 : index
    %0 = vector.load %arg2[%c0, %c0_0] : memref<8x800xbf16, #tpu.memory_space<vmem>>, vector<8x800xbf16>
    %c0_1 = arith.constant 0 : index
    %c0_2 = arith.constant 0 : index
    %1 = vector.load %arg3[%c0_1, %c0_2] : memref<800x256xbf16, #tpu.memory_space<vmem>>, vector<800x256xbf16>
    %cst = arith.constant dense<0.000000e+00> : vector<8x256xf32>
    %2 = tpu.matmul %0, %1, %cst {dimension_numbers = #tpu.dot_dimension_numbers<[1], [0], [0], [1], [0, 0, 1, 1], [], []>} : vector<8x800xbf16>, vector<800x256xbf16>, vector<8x256xf32> -> vector<8x256xf32>
    %c0_3 = arith.constant 0 : index
    %c0_4 = arith.constant 0 : index
    %3 = vector.load %arg4[%c0_3, %c0_4] : memref<1x256xf32, #tpu.memory_space<vmem>>, vector<1x256xf32>
    %4 = vector.broadcast %3 : vector<1x256xf32> to vector<8x256xf32>
    %5 = arith.addf %2, %4 : vector<8x256xf32>
    %cst_5 = arith.constant 0.000000e+00 : f32
    %6 = vector.broadcast %cst_5 : f32 to vector<8x256xf32>
    %7 = arith.maximumf %5, %6 : vector<8x256xf32>
    %8 = arith.truncf %7 : vector<8x256xf32> to vector<8x256xbf16>
    %c0_6 = arith.constant 0 : index
    %c0_7 = arith.constant 0 : index
    %9 = vector.load %arg5[%c0_6, %c0_7] : memref<8x256xbf16, #tpu.memory_space<vmem>>, vector<8x256xbf16>
    tpu.vector_store %arg5[%c0_6, %c0_7], %8 {strides = array<i32>} : memref<8x256xbf16, #tpu.memory_space<vmem>>, vector<8x256xbf16>,
    return
  }
  func.func @transform_0(%arg0: i32, %arg1: i32) -> (i32, i32) {
    %c0_i32 = arith.constant 0 : i32
    %c0_i32_0 = arith.constant 0 : i32
    return %arg0, %c0_i32 : i32, i32
  }
  func.func @transform_1(%arg0: i32, %arg1: i32) -> (i32, i32) {
    %c0_i32 = arith.constant 0 : i32
    %c0_i32_0 = arith.constant 0 : i32
    return %c0_i32, %arg1 : i32, i32
  }
  func.func @transform_2(%arg0: i32, %arg1: i32) -> (i32, i32) {
    %c0_i32 = arith.constant 0 : i32
    %c0_i32_0 = arith.constant 0 : i32
    return %c0_i32, %arg1 : i32, i32
  }
  func.func @transform_3(%arg0: i32, %arg1: i32) -> (i32, i32) {
    %c0_i32 = arith.constant 0 : i32
    return %arg0, %arg1 : i32, i32
  }
}

module attributes {stable_mosaic.version = 11 : i64} {
  func.func @_matmul_bias_relu_kernel(%arg0: i32, %arg1: i32, %arg2: memref<8x512xbf16, #tpu.memory_space<vmem>>, %arg3: memref<512x10xbf16, #tpu.memory_space<vmem>>, %arg4: memref<1x10xf32, #tpu.memory_space<vmem>>, %arg5: memref<8x10xf32, #tpu.memory_space<vmem>>) attributes {dimension_semantics = [#tpu.dimension_semantics<parallel>, #tpu.dimension_semantics<parallel>], iteration_bounds = array<i64: 1, 1>, scalar_prefetch = 0 : i64, scratch_operands = 0 : i64, tpu.core_type = #tpu.core_type<tc>, window_params = [{transform_indices = @transform_0, window_bounds = array<i64: 8, 512>}, {transform_indices = @transform_1, window_bounds = array<i64: 512, 10>}, {transform_indices = @transform_2, window_bounds = array<i64: 1, 10>}, {transform_indices = @transform_3, window_bounds = array<i64: 8, 10>}]} {
    %c0 = arith.constant 0 : index
    %c0_0 = arith.constant 0 : index
    %0 = vector.load %arg2[%c0, %c0_0] : memref<8x512xbf16, #tpu.memory_space<vmem>>, vector<8x512xbf16>
    %c0_1 = arith.constant 0 : index
    %c0_2 = arith.constant 0 : index
    %1 = vector.load %arg3[%c0_1, %c0_2] : memref<512x10xbf16, #tpu.memory_space<vmem>>, vector<512x10xbf16>
    %cst = arith.constant dense<0.000000e+00> : vector<8x10xf32>
    %2 = tpu.matmul %0, %1, %cst {dimension_numbers = #tpu.dot_dimension_numbers<[1], [0], [0], [1], [0, 0, 1, 1], [], []>} : vector<8x512xbf16>, vector<512x10xbf16>, vector<8x10xf32> -> vector<8x10xf32>
    %c0_3 = arith.constant 0 : index
    %c0_4 = arith.constant 0 : index
    %3 = vector.load %arg4[%c0_3, %c0_4] : memref<1x10xf32, #tpu.memory_space<vmem>>, vector<1x10xf32>
    %4 = vector.broadcast %3 : vector<1x10xf32> to vector<8x10xf32>
    %5 = arith.addf %2, %4 : vector<8x10xf32>
    %cst_5 = arith.constant 0.000000e+00 : f32
    %6 = vector.broadcast %cst_5 : f32 to vector<8x10xf32>
    %7 = arith.maximumf %5, %6 : vector<8x10xf32>
    %c0_6 = arith.constant 0 : index
    %c0_7 = arith.constant 0 : index
    %8 = vector.load %arg5[%c0_6, %c0_7] : memref<8x10xf32, #tpu.memory_space<vmem>>, vector<8x10xf32>
    tpu.vector_store %arg5[%c0_6, %c0_7], %7 {strides = array<i32>} : memref<8x10xf32, #tpu.memory_space<vmem>>, vector<8x10xf32>,
    return
  }
  func.func @transform_0(%arg0: i32, %arg1: i32) -> (i32, i32) {
    %c0_i32 = arith.constant 0 : i32
    %c0_i32_0 = arith.constant 0 : i32
    return %arg0, %c0_i32 : i32, i32
  }
  func.func @transform_1(%arg0: i32, %arg1: i32) -> (i32, i32) {
    %c0_i32 = arith.constant 0 : i32
    %c0_i32_0 = arith.constant 0 : i32
    return %c0_i32, %arg1 : i32, i32
  }
  func.func @transform_2(%arg0: i32, %arg1: i32) -> (i32, i32) {
    %c0_i32 = arith.constant 0 : i32
    %c0_i32_0 = arith.constant 0 : i32
    return %c0_i32, %arg1 : i32, i32
  }
  func.func @transform_3(%arg0: i32, %arg1: i32) -> (i32, i32) {
    %c0_i32 = arith.constant 0 : i32
    return %arg0, %arg1 : i32, i32
  }
}

</mosaic_0001>

<llo_original>
// kernel: clasificador_conv_forward.6
$region0: #{clasificador_conv_forward.6}
  #allocation0 [shape = 'u32[]', space=smem, size = 0x4, offset = 0x4, fixed_abs, tag = 'smem constant byte address 0x4 - core index']
  #allocation1 [shape = 'u32[144,128]{1,0:T(1,128)}', space=vmem, size = 0x12000, scoped, tag = 'internal scratch']
  %s0 = inlined_call_operand.vmem [shape: bf16[1352,9], index: 0, kind: input, shape index: {}]
  %s1 = inlined_call_operand.vmem [shape: bf16[9,16], index: 1, kind: input, shape index: {}]
  %s2 = inlined_call_operand.vmem [shape: f32[1,16], index: 2, kind: input, shape index: {}]
  %s3 = inlined_call_operand.vmem [shape: bf16[1352,16], index: 3, kind: output, shape index: {}]
  %s4 = sld [smem:[#allocation0]]
  $region22: #{clasificador_conv_forward.6} parent=0
    _
  %s6 = ssub.s32 1, %s4
  %s7 = scalar_select 0, %s6, %s4
  // Predicated region
  $region2: #{clasificador_conv_forward.6} parent=0 // pred_check
    _
  $region3: #{clasificador_conv_forward.6} parent=0 // pred_check_branch
    %9 = sbr.rel (0) target = $region5
  $region4: #{clasificador_conv_forward.6} parent=0 // pred_region
    _
  $region5: #{clasificador_conv_forward.6} parent=0 // pred_fallthru
    _
  // Predicated region
  $region6: #{clasificador_conv_forward.6} parent=0 // pred_check
    _
  $region7: #{clasificador_conv_forward.6} parent=0 // pred_check_branch
    %11 = sbr.rel (0) target = $region9
  $region8: #{clasificador_conv_forward.6} parent=0 // pred_region
    _
  $region9: #{clasificador_conv_forward.6} parent=0 // pred_fallthru
    _
  // Predicated region
  $region10: #{clasificador_conv_forward.6} parent=0 // pred_check
    _
  $region11: #{clasificador_conv_forward.6} parent=0 // pred_check_branch
    %13 = sbr.rel (0) target = $region13
  $region12: #{clasificador_conv_forward.6} parent=0 // pred_region
    _
  $region13: #{clasificador_conv_forward.6} parent=0 // pred_fallthru
    _
  %v15 = vld [vmem:[%s0] sm:$0xf]
  %v16 = vld [vmem:[%s0 + $0x4] sm:$0xf]
  %v17 = vld [vmem:[%s0 + $0x8] sm:$0xf]
  %v18 = vld [vmem:[%s0 + $0xc] sm:$0xf]
  %v19 = vld [vmem:[%s0 + $0x10] sm:$0xf]
  %v20 = vld [vmem:[%s0 + $0x14] sm:$0xf]
  %v21 = vld [vmem:[%s0 + $0x18] sm:$0xf]
  %v22 = vld [vmem:[%s0 + $0x1c] sm:$0xf]
  %v23 = vld [vmem:[%s0 + $0x20] sm:$0xf]
  %v24 = vld [vmem:[%s0 + $0x24] sm:$0xf]
  %v25 = vld [vmem:[%s0 + $0x28] sm:$0xf]
  %v26 = vld [vmem:[%s0 + $0x2c] sm:$0xf]
  %v27 = vld [vmem:[%s0 + $0x30] sm:$0xf]
  %v28 = vld [vmem:[%s0 + $0x34] sm:$0xf]
  %v29 = vld [vmem:[%s0 + $0x38] sm:$0xf]
  %v30 = vld [vmem:[%s0 + $0x3c] sm:$0xf]
  %v31 = vld [vmem:[%s0 + $0x40] sm:$0xf]
  %v32 = vld [vmem:[%s0 + $0x44] sm:$0xf]
  %v33 = vld [vmem:[%s0 + $0x48] sm:$0xf]
  %v34 = vld [vmem:[%s0 + $0x4c] sm:$0xf]
  %v35 = vld [vmem:[%s0 + $0x50] sm:$0xf]
  %v36 = vld [vmem:[%s0 + $0x54] sm:$0xf]
  %v37 = vld [vmem:[%s0 + $0x58] sm:$0xf]
  %v38 = vld [vmem:[%s0 + $0x5c] sm:$0xf]
  %v39 = vld [vmem:[%s0 + $0x60] sm:$0xf]
  %v40 = vld [vmem:[%s0 + $0x64] sm:$0xf]
  %v41 = vld [vmem:[%s0 + $0x68] sm:$0xf]
  %v42 = vld [vmem:[%s0 + $0x6c] sm:$0xf]
  %v43 = vld [vmem:[%s0 + $0x70] sm:$0xf]
  %v44 = vld [vmem:[%s0 + $0x74] sm:$0xf]
  %v45 = vld [vmem:[%s0 + $0x78] sm:$0xf]
  %v46 = vld [vmem:[%s0 + $0x7c] sm:$0xf]
  %v47 = vld [vmem:[%s0 + $0x80] sm:$0xf]
  %v48 = vld [vmem:[%s0 + $0x84] sm:$0xf]
  %v49 = vld [vmem:[%s0 + $0x88] sm:$0xf]
  %v50 = vld [vmem:[%s0 + $0x8c] sm:$0xf]
  %v51 = vld [vmem:[%s0 + $0x90] sm:$0xf]
  %v52 = vld [vmem:[%s0 + $0x94] sm:$0xf]
  %v53 = vld [vmem:[%s0 + $0x98] sm:$0xf]
  %v54 = vld [vmem:[%s0 + $0x9c] sm:$0xf]
  %v55 = vld [vmem:[%s0 + $0xa0] sm:$0xf]
  %v56 = vld [vmem:[%s0 + $0xa4] sm:$0xf]
  %v57 = vld [vmem:[%s0 + $0xa8] sm:$0xf]
  %v58 = vld [vmem:[%s0 + $0xac] sm:$0xf]
  %v59 = vld [vmem:[%s0 + $0xb0] sm:$0xf]
  %v60 = vld [vmem:[%s0 + $0xb4] sm:$0xf]
  %v61 = vld [vmem:[%s0 + $0xb8] sm:$0xf]
  %v62 = vld [vmem:[%s0 + $0xbc] sm:$0xf]
  %v63 = vld [vmem:[%s0 + $0xc0] sm:$0xf]
  %v64 = vld [vmem:[%s0 + $0xc4] sm:$0xf]
  %v65 = vld [vmem:[%s0 + $0xc8] sm:$0xf]
  %v66 = vld [vmem:[%s0 + $0xcc] sm:$0xf]
  %v67 = vld [vmem:[%s0 + $0xd0] sm:$0xf]
  %v68 = vld [vmem:[%s0 + $0xd4] sm:$0xf]
  %v69 = vld [vmem:[%s0 + $0xd8] sm:$0xf]
  %v70 = vld [vmem:[%s0 + $0xdc] sm:$0xf]
  %v71 = vld [vmem:[%s0 + $0xe0] sm:$0xf]
  %v72 = vld [vmem:[%s0 + $0xe4] sm:$0xf]
  %v73 = vld [vmem:[%s0 + $0xe8] sm:$0xf]
  %v74 = vld [vmem:[%s0 + $0xec] sm:$0xf]
  %v75 = vld [vmem:[%s0 + $0xf0] sm:$0xf]
  %v76 = vld [vmem:[%s0 + $0xf4] sm:$0xf]
  %v77 = vld [vmem:[%s0 + $0xf8] sm:$0xf]
  %v78 = vld [vmem:[%s0 + $0xfc] sm:$0xf]
  %v79 = vld [vmem:[%s0 + $0x100] sm:$0xf]
  %v80 = vld [vmem:[%s0 + $0x104] sm:$0xf]
  %v81 = vld [vmem:[%s0 + $0x108] sm:$0xf]
  %v82 = vld [vmem:[%s0 + $0x10c] sm:$0xf]
  %v83 = vld [vmem:[%s0 + $0x110] sm:$0xf]
  %v84 = vld [vmem:[%s0 + $0x114] sm:$0xf]
  %v85 = vld [vmem:[%s0 + $0x118] sm:$0xf]
  %v86 = vld [vmem:[%s0 + $0x11c] sm:$0xf]
  %v87 = vld [vmem:[%s0 + $0x120] sm:$0xf]
  %v88 = vld [vmem:[%s0 + $0x124] sm:$0xf]
  %v89 = vld [vmem:[%s0 + $0x128] sm:$0xf]
  %v90 = vld [vmem:[%s0 + $0x12c] sm:$0xf]
  %v91 = vld [vmem:[%s0 + $0x130] sm:$0xf]
  %v92 = vld [vmem:[%s0 + $0x134] sm:$0xf]
  %v93 = vld [vmem:[%s0 + $0x138] sm:$0xf]
  %v94 = vld [vmem:[%s0 + $0x13c] sm:$0xf]
  %v95 = vld [vmem:[%s0 + $0x140] sm:$0xf]
  %v96 = vld [vmem:[%s0 + $0x144] sm:$0xf]
  %v97 = vld [vmem:[%s0 + $0x148] sm:$0xf]
  %v98 = vld [vmem:[%s0 + $0x14c] sm:$0xf]
  %v99 = vld [vmem:[%s0 + $0x150] sm:$0xf]
  %v100 = vld [vmem:[%s0 + $0x154] sm:$0xf]
  %v101 = vld [vmem:[%s0 + $0x158] sm:$0xf]
  %v102 = vld [vmem:[%s0 + $0x15c] sm:$0xf]
  %v103 = vld [vmem:[%s0 + $0x160] sm:$0xf]
  %v104 = vld [vmem:[%s0 + $0x164] sm:$0xf]
  %v105 = vld [vmem:[%s0 + $0x168] sm:$0xf]
  %v106 = vld [vmem:[%s0 + $0x16c] sm:$0xf]
  %v107 = vld [vmem:[%s0 + $0x170] sm:$0xf]
  %v108 = vld [vmem:[%s0 + $0x174] sm:$0xf]
  %v109 = vld [vmem:[%s0 + $0x178] sm:$0xf]
  %v110 = vld [vmem:[%s0 + $0x17c] sm:$0xf]
  %v111 = vld [vmem:[%s0 + $0x180] sm:$0xf]
  %v112 = vld [vmem:[%s0 + $0x184] sm:$0xf]
  %v113 = vld [vmem:[%s0 + $0x188] sm:$0xf]
  %v114 = vld [vmem:[%s0 + $0x18c] sm:$0xf]
  %v115 = vld [vmem:[%s0 + $0x190] sm:$0xf]
  %v116 = vld [vmem:[%s0 + $0x194] sm:$0xf]
  %v117 = vld [vmem:[%s0 + $0x198] sm:$0xf]
  %v118 = vld [vmem:[%s0 + $0x19c] sm:$0xf]
  %v119 = vld [vmem:[%s0 + $0x1a0] sm:$0xf]
  %v120 = vld [vmem:[%s0 + $0x1a4] sm:$0xf]
  %v121 = vld [vmem:[%s0 + $0x1a8] sm:$0xf]
  %v122 = vld [vmem:[%s0 + $0x1ac] sm:$0xf]
  %v123 = vld [vmem:[%s0 + $0x1b0] sm:$0xf]
  %v124 = vld [vmem:[%s0 + $0x1b4] sm:$0xf]
  %v125 = vld [vmem:[%s0 + $0x1b8] sm:$0xf]
  %v126 = vld [vmem:[%s0 + $0x1bc] sm:$0xf]
  %v127 = vld [vmem:[%s0 + $0x1c0] sm:$0xf]
  %v128 = vld [vmem:[%s0 + $0x1c4] sm:$0xf]
  %v129 = vld [vmem:[%s0 + $0x1c8] sm:$0xf]
  %v130 = vld [vmem:[%s0 + $0x1cc] sm:$0xf]
  %v131 = vld [vmem:[%s0 + $0x1d0] sm:$0xf]
  %v132 = vld [vmem:[%s0 + $0x1d4] sm:$0xf]
  %v133 = vld [vmem:[%s0 + $0x1d8] sm:$0xf]
  %v134 = vld [vmem:[%s0 + $0x1dc] sm:$0xf]
  %v135 = vld [vmem:[%s0 + $0x1e0] sm:$0xf]
  %v136 = vld [vmem:[%s0 + $0x1e4] sm:$0xf]
  %v137 = vld [vmem:[%s0 + $0x1e8] sm:$0xf]
  %v138 = vld [vmem:[%s0 + $0x1ec] sm:$0xf]
  %v139 = vld [vmem:[%s0 + $0x1f0] sm:$0xf]
  %v140 = vld [vmem:[%s0 + $0x1f4] sm:$0xf]
  %v141 = vld [vmem:[%s0 + $0x1f8] sm:$0xf]
  %v142 = vld [vmem:[%s0 + $0x1fc] sm:$0xf]
  %v143 = vld [vmem:[%s0 + $0x200] sm:$0xf]
  %v144 = vld [vmem:[%s0 + $0x204] sm:$0xf]
  %v145 = vld [vmem:[%s0 + $0x208] sm:$0xf]
  %v146 = vld [vmem:[%s0 + $0x20c] sm:$0xf]
  %v147 = vld [vmem:[%s0 + $0x210] sm:$0xf]
  %v148 = vld [vmem:[%s0 + $0x214] sm:$0xf]
  %v149 = vld [vmem:[%s0 + $0x218] sm:$0xf]
  %v150 = vld [vmem:[%s0 + $0x21c] sm:$0xf]
  %v151 = vld [vmem:[%s0 + $0x220] sm:$0xf]
  %v152 = vld [vmem:[%s0 + $0x224] sm:$0xf]
  %v153 = vld [vmem:[%s0 + $0x228] sm:$0xf]
  %v154 = vld [vmem:[%s0 + $0x22c] sm:$0xf]
  %v155 = vld [vmem:[%s0 + $0x230] sm:$0xf]
  %v156 = vld [vmem:[%s0 + $0x234] sm:$0xf]
  %v157 = vld [vmem:[%s0 + $0x238] sm:$0xf]
  %v158 = vld [vmem:[%s0 + $0x23c] sm:$0xf]
  %v159 = vld [vmem:[%s0 + $0x240] sm:$0xf]
  %v160 = vld [vmem:[%s0 + $0x244] sm:$0xf]
  %v161 = vld [vmem:[%s0 + $0x248] sm:$0xf]
  %v162 = vld [vmem:[%s0 + $0x24c] sm:$0xf]
  %v163 = vld [vmem:[%s0 + $0x250] sm:$0xf]
  %v164 = vld [vmem:[%s0 + $0x254] sm:$0xf]
  %v165 = vld [vmem:[%s0 + $0x258] sm:$0xf]
  %v166 = vld [vmem:[%s0 + $0x25c] sm:$0xf]
  %v167 = vld [vmem:[%s0 + $0x260] sm:$0xf]
  %v168 = vld [vmem:[%s0 + $0x264] sm:$0xf]
  %v169 = vld [vmem:[%s0 + $0x268] sm:$0xf]
  %v170 = vld [vmem:[%s0 + $0x26c] sm:$0xf]
  %v171 = vld [vmem:[%s0 + $0x270] sm:$0xf]
  %v172 = vld [vmem:[%s0 + $0x274] sm:$0xf]
  %v173 = vld [vmem:[%s0 + $0x278] sm:$0xf]
  %v174 = vld [vmem:[%s0 + $0x27c] sm:$0xf]
  %v175 = vld [vmem:[%s0 + $0x280] sm:$0xf]
  %v176 = vld [vmem:[%s0 + $0x284] sm:$0xf]
  %v177 = vld [vmem:[%s0 + $0x288] sm:$0xf]
  %v178 = vld [vmem:[%s0 + $0x28c] sm:$0xf]
  %v179 = vld [vmem:[%s0 + $0x290] sm:$0xf]
  %v180 = vld [vmem:[%s0 + $0x294] sm:$0xf]
  %v181 = vld [vmem:[%s0 + $0x298] sm:$0xf]
  %v182 = vld [vmem:[%s0 + $0x29c] sm:$0xf]
  %v183 = vld [vmem:[%s0 + $0x2a0] sm:$0xf]
  %v184 = vld [vmem:[%s1] sm:$0xf]
  %v185 = vld [vmem:[%s1 + $0x4] sm:$0x1]
  %v186 = vld [vmem:[%s2] sm:$0x1]
  %v188 = vlaneseq
  %v189 = vshrl.u32 %v188, 7
  %v190 = vsub.s32 0, %v189
  %v191 = vrot.slane %v186, %v190
  %v362 = vunpack.c.l.b16 %v15
  %v363 = vunpack.c.l.b16 %v16
  %v364 = vunpack.c.l.b16 %v17
  %v365 = vunpack.c.l.b16 %v18
  %v366 = vunpack.c.l.b16 %v19
  %v367 = vunpack.c.l.b16 %v20
  %v368 = vunpack.c.l.b16 %v21
  %v369 = vunpack.c.l.b16 %v22
  %v370 = vunpack.c.l.b16 %v23
  %v371 = vunpack.c.l.b16 %v24
  %v372 = vunpack.c.l.b16 %v25
  %v373 = vunpack.c.l.b16 %v26
  %v374 = vunpack.c.l.b16 %v27
  %v375 = vunpack.c.l.b16 %v28
  %v376 = vunpack.c.l.b16 %v29
  %v377 = vunpack.c.l.b16 %v30
  %v378 = vunpack.c.l.b16 %v31
  %v379 = vunpack.c.l.b16 %v32
  %v380 = vunpack.c.l.b16 %v33
  %v381 = vunpack.c.l.b16 %v34
  %v382 = vunpack.c.l.b16 %v35
  %v383 = vunpack.c.l.b16 %v36
  %v384 = vunpack.c.l.b16 %v37
  %v385 = vunpack.c.l.b16 %v38
  %v386 = vunpack.c.l.b16 %v39
  %v387 = vunpack.c.l.b16 %v40
  %v388 = vunpack.c.l.b16 %v41
  %v389 = vunpack.c.l.b16 %v42
  %v390 = vunpack.c.l.b16 %v43
  %v391 = vunpack.c.l.b16 %v44
  %v392 = vunpack.c.l.b16 %v45
  %v393 = vunpack.c.l.b16 %v46
  %v394 = vunpack.c.l.b16 %v47
  %v395 = vunpack.c.l.b16 %v48
  %v396 = vunpack.c.l.b16 %v49
  %v397 = vunpack.c.l.b16 %v50
  %v398 = vunpack.c.l.b16 %v51
  %v399 = vunpack.c.l.b16 %v52
  %v400 = vunpack.c.l.b16 %v53
  %v401 = vunpack.c.l.b16 %v54
  %v402 = vunpack.c.l.b16 %v55
  %v403 = vunpack.c.l.b16 %v56
  %v404 = vunpack.c.l.b16 %v57
  %v405 = vunpack.c.l.b16 %v58
  %v406 = vunpack.c.l.b16 %v59
  %v407 = vunpack.c.l.b16 %v60
  %v408 = vunpack.c.l.b16 %v61
  %v409 = vunpack.c.l.b16 %v62
  %v410 = vunpack.c.l.b16 %v63
  %v411 = vunpack.c.l.b16 %v64
  %v412 = vunpack.c.l.b16 %v65
  %v413 = vunpack.c.l.b16 %v66
  %v414 = vunpack.c.l.b16 %v67
  %v415 = vunpack.c.l.b16 %v68
  %v416 = vunpack.c.l.b16 %v69
  %v417 = vunpack.c.l.b16 %v70
  %v418 = vunpack.c.l.b16 %v71
  %v419 = vunpack.c.l.b16 %v72
  %v420 = vunpack.c.l.b16 %v73
  %v421 = vunpack.c.l.b16 %v74
  %v422 = vunpack.c.l.b16 %v75
  %v423 = vunpack.c.l.b16 %v76
  %v424 = vunpack.c.l.b16 %v77
  %v425 = vunpack.c.l.b16 %v78
  %v426 = vunpack.c.l.b16 %v79
  %v427 = vunpack.c.l.b16 %v80
  %v428 = vunpack.c.l.b16 %v81
  %v429 = vunpack.c.l.b16 %v82
  %v430 = vunpack.c.l.b16 %v83
  %v431 = vunpack.c.l.b16 %v84
  %v432 = vunpack.c.l.b16 %v85
  %v433 = vunpack.c.l.b16 %v86
  %v434 = vunpack.c.l.b16 %v87
  %v435 = vunpack.c.l.b16 %v88
  %v436 = vunpack.c.l.b16 %v89
  %v437 = vunpack.c.l.b16 %v90
  %v438 = vunpack.c.l.b16 %v91
  %v439 = vunpack.c.l.b16 %v92
  %v440 = vunpack.c.l.b16 %v93
  %v441 = vunpack.c.l.b16 %v94
  %v442 = vunpack.c.l.b16 %v95
  %v443 = vunpack.c.l.b16 %v96
  %v444 = vunpack.c.l.b16 %v97
  %v445 = vunpack.c.l.b16 %v98
  %v446 = vunpack.c.l.b16 %v99
  %v447 = vunpack.c.l.b16 %v100
  %v448 = vunpack.c.l.b16 %v101
  %v449 = vunpack.c.l.b16 %v102
  %v450 = vunpack.c.l.b16 %v103
  %v451 = vunpack.c.l.b16 %v104
  %v452 = vunpack.c.l.b16 %v105
  %v453 = vunpack.c.l.b16 %v106
  %v454 = vunpack.c.l.b16 %v107
  %v455 = vunpack.c.l.b16 %v108
  %v456 = vunpack.c.l.b16 %v109
  %v457 = vunpack.c.l.b16 %v110
  %v458 = vunpack.c.l.b16 %v111
  %v459 = vunpack.c.l.b16 %v112
  %v460 = vunpack.c.l.b16 %v113
  %v461 = vunpack.c.l.b16 %v114
  %v462 = vunpack.c.l.b16 %v115
  %v463 = vunpack.c.l.b16 %v116
  %v464 = vunpack.c.l.b16 %v117
  %v465 = vunpack.c.l.b16 %v118
  %v466 = vunpack.c.l.b16 %v119
  %v467 = vunpack.c.l.b16 %v120
  %v468 = vunpack.c.l.b16 %v121
  %v469 = vunpack.c.l.b16 %v122
  %v470 = vunpack.c.l.b16 %v123
  %v471 = vunpack.c.l.b16 %v124
  %v472 = vunpack.c.l.b16 %v125
  %v473 = vunpack.c.l.b16 %v126
  %v474 = vunpack.c.l.b16 %v127
  %v475 = vunpack.c.l.b16 %v128
  %v476 = vunpack.c.l.b16 %v129
  %v477 = vunpack.c.l.b16 %v130
  %v478 = vunpack.c.l.b16 %v131
  %v479 = vunpack.c.l.b16 %v132
  %v480 = vunpack.c.l.b16 %v133
  %v481 = vunpack.c.l.b16 %v134
  %v482 = vunpack.c.l.b16 %v135
  %v483 = vunpack.c.l.b16 %v136
  %v484 = vunpack.c.l.b16 %v137
  %v485 = vunpack.c.l.b16 %v138
  %v486 = vunpack.c.l.b16 %v139
  %v487 = vunpack.c.l.b16 %v140
  %v488 = vunpack.c.l.b16 %v141
  %v489 = vunpack.c.l.b16 %v142
  %v490 = vunpack.c.l.b16 %v143
  %v491 = vunpack.c.l.b16 %v144
  %v492 = vunpack.c.l.b16 %v145
  %v493 = vunpack.c.l.b16 %v146
  %v494 = vunpack.c.l.b16 %v147
  %v495 = vunpack.c.l.b16 %v148
  %v496 = vunpack.c.l.b16 %v149
  %v497 = vunpack.c.l.b16 %v150
  %v498 = vunpack.c.l.b16 %v151
  %v499 = vunpack.c.l.b16 %v152
  %v500 = vunpack.c.l.b16 %v153
  %v501 = vunpack.c.l.b16 %v154
  %v502 = vunpack.c.l.b16 %v155
  %v503 = vunpack.c.l.b16 %v156
  %v504 = vunpack.c.l.b16 %v157
  %v505 = vunpack.c.l.b16 %v158
  %v506 = vunpack.c.l.b16 %v159
  %v507 = vunpack.c.l.b16 %v160
  %v508 = vunpack.c.l.b16 %v161
  %v509 = vunpack.c.l.b16 %v162
  %v510 = vunpack.c.l.b16 %v163
  %v511 = vunpack.c.l.b16 %v164
  %v512 = vunpack.c.l.b16 %v165
  %v513 = vunpack.c.l.b16 %v166
  %v514 = vunpack.c.l.b16 %v167
  %v515 = vunpack.c.l.b16 %v168
  %v516 = vunpack.c.l.b16 %v169
  %v517 = vunpack.c.l.b16 %v170
  %v518 = vunpack.c.l.b16 %v171
  %v519 = vunpack.c.l.b16 %v172
  %v520 = vunpack.c.l.b16 %v173
  %v521 = vunpack.c.l.b16 %v174
  %v522 = vunpack.c.l.b16 %v175
  %v523 = vunpack.c.l.b16 %v176
  %v524 = vunpack.c.l.b16 %v177
  %v525 = vunpack.c.l.b16 %v178
  %v526 = vunpack.c.l.b16 %v179
  %v527 = vunpack.c.l.b16 %v180
  %v528 = vunpack.c.l.b16 %v181
  %v529 = vunpack.c.l.b16 %v182
  %v530 = vunpack.c.l.b16 %v183
  %v531 = vpack.c.b16 %v363, %v362
  %v532 = vpack.c.b16 %v365, %v364
  %v533 = vpack.c.b16 %v367, %v366
  %v534 = vpack.c.b16 %v369, %v368
  %v535 = vpack.c.b16 %v371, %v370
  %v536 = vpack.c.b16 %v373, %v372
  %v537 = vpack.c.b16 %v375, %v374
  %v538 = vpack.c.b16 %v377, %v376
  %v539 = vpack.c.b16 %v379, %v378
  %v540 = vpack.c.b16 %v381, %v380
  %v541 = vpack.c.b16 %v383, %v382
  %v542 = vpack.c.b16 %v385, %v384
  %v543 = vpack.c.b16 %v387, %v386
  %v544 = vpack.c.b16 %v389, %v388
  %v545 = vpack.c.b16 %v391, %v390
  %v546 = vpack.c.b16 %v393, %v392
  %v547 = vpack.c.b16 %v395, %v394
  %v548 = vpack.c.b16 %v397, %v396
  %v549 = vpack.c.b16 %v399, %v398
  %v550 = vpack.c.b16 %v401, %v400
  %v551 = vpack.c.b16 %v403, %v402
  %v552 = vpack.c.b16 %v405, %v404
  %v553 = vpack.c.b16 %v407, %v406
  %v554 = vpack.c.b16 %v409, %v408
  %v555 = vpack.c.b16 %v411, %v410
  %v556 = vpack.c.b16 %v413, %v412
  %v557 = vpack.c.b16 %v415, %v414
  %v558 = vpack.c.b16 %v417, %v416
  %v559 = vpack.c.b16 %v419, %v418
  %v560 = vpack.c.b16 %v421, %v420
  %v561 = vpack.c.b16 %v423, %v422
  %v562 = vpack.c.b16 %v425, %v424
  %v563 = vpack.c.b16 %v427, %v426
  %v564 = vpack.c.b16 %v429, %v428
  %v565 = vpack.c.b16 %v431, %v430
  %v566 = vpack.c.b16 %v433, %v432
  %v567 = vpack.c.b16 %v435, %v434
  %v568 = vpack.c.b16 %v437, %v436
  %v569 = vpack.c.b16 %v439, %v438
  %v570 = vpack.c.b16 %v441, %v440
  %v571 = vpack.c.b16 %v443, %v442
  %v572 = vpack.c.b16 %v445, %v444
  %v573 = vpack.c.b16 %v447, %v446
  %v574 = vpack.c.b16 %v449, %v448
  %v575 = vpack.c.b16 %v451, %v450
  %v576 = vpack.c.b16 %v453, %v452
  %v577 = vpack.c.b16 %v455, %v454
  %v578 = vpack.c.b16 %v457, %v456
  %v579 = vpack.c.b16 %v459, %v458
  %v580 = vpack.c.b16 %v461, %v460
  %v581 = vpack.c.b16 %v463, %v462
  %v582 = vpack.c.b16 %v465, %v464
  %v583 = vpack.c.b16 %v467, %v466
  %v584 = vpack.c.b16 %v469, %v468
  %v585 = vpack.c.b16 %v471, %v470
  %v586 = vpack.c.b16 %v473, %v472
  %v587 = vpack.c.b16 %v475, %v474
  %v588 = vpack.c.b16 %v477, %v476
  %v589 = vpack.c.b16 %v479, %v478
  %v590 = vpack.c.b16 %v481, %v480
  %v591 = vpack.c.b16 %v483, %v482
  %v592 = vpack.c.b16 %v485, %v484
  %v593 = vpack.c.b16 %v487, %v486
  %v594 = vpack.c.b16 %v489, %v488
  %v595 = vpack.c.b16 %v491, %v490
  %v596 = vpack.c.b16 %v493, %v492
  %v597 = vpack.c.b16 %v495, %v494
  %v598 = vpack.c.b16 %v497, %v496
  %v599 = vpack.c.b16 %v499, %v498
  %v600 = vpack.c.b16 %v501, %v500
  %v601 = vpack.c.b16 %v503, %v502
  %v602 = vpack.c.b16 %v505, %v504
  %v603 = vpack.c.b16 %v507, %v506
  %v604 = vpack.c.b16 %v509, %v508
  %v605 = vpack.c.b16 %v511, %v510
  %v606 = vpack.c.b16 %v513, %v512
  %v607 = vpack.c.b16 %v515, %v514
  %v608 = vpack.c.b16 %v517, %v516
  %v609 = vpack.c.b16 %v519, %v518
  %v610 = vpack.c.b16 %v521, %v520
  %v611 = vpack.c.b16 %v523, %v522
  %v612 = vpack.c.b16 %v525, %v524
  %v613 = vpack.c.b16 %v527, %v526
  %v614 = vpack.c.b16 %v529, %v528
  %v615 = vpack.c.b16 %v530, %v530
  %v618 = vunpack.c.l.b16 %v184
  %v619 = vunpack.c.l.b16 %v185
  %v620 = vpack.c.b16 %v619, %v618
  %vm621 = vcmask 72704
  %v623 = vsel %vm621, %v531, 0
  %v626 = vsel %vm621, %v532, 0
  %v629 = vsel %vm621, %v533, 0
  %v632 = vsel %vm621, %v534, 0
  %v635 = vsel %vm621, %v535, 0
  %v638 = vsel %vm621, %v536, 0
  %v641 = vsel %vm621, %v537, 0
  %v644 = vsel %vm621, %v538, 0
  %v647 = vsel %vm621, %v539, 0
  %v650 = vsel %vm621, %v540, 0
  %v653 = vsel %vm621, %v541, 0
  %v656 = vsel %vm621, %v542, 0
  %v659 = vsel %vm621, %v543, 0
  %v662 = vsel %vm621, %v544, 0
  %v665 = vsel %vm621, %v545, 0
  %v668 = vsel %vm621, %v546, 0
  %v671 = vsel %vm621, %v547, 0
  %v674 = vsel %vm621, %v548, 0
  %v677 = vsel %vm621, %v549, 0
  %v680 = vsel %vm621, %v550, 0
  %v683 = vsel %vm621, %v551, 0
  %v686 = vsel %vm621, %v552, 0
  %v689 = vsel %vm621, %v553, 0
  %v692 = vsel %vm621, %v554, 0
  %v695 = vsel %vm621, %v555, 0
  %v698 = vsel %vm621, %v556, 0
  %v701 = vsel %vm621, %v557, 0
  %v704 = vsel %vm621, %v558, 0
  %v707 = vsel %vm621, %v559, 0
  %v710 = vsel %vm621, %v560, 0
  %v713 = vsel %vm621, %v561, 0
  %v716 = vsel %vm621, %v562, 0
  %v719 = vsel %vm621, %v563, 0
  %v722 = vsel %vm621, %v564, 0
  %v725 = vsel %vm621, %v565, 0
  %v728 = vsel %vm621, %v566, 0
  %v731 = vsel %vm621, %v567, 0
  %v734 = vsel %vm621, %v568, 0
  %v737 = vsel %vm621, %v569, 0
  %v740 = vsel %vm621, %v570, 0
  %v743 = vsel %vm621, %v571, 0
  %v746 = vsel %vm621, %v572, 0
  %v749 = vsel %vm621, %v573, 0
  %v752 = vsel %vm621, %v574, 0
  %v755 = vsel %vm621, %v575, 0
  %v758 = vsel %vm621, %v576, 0
  %v761 = vsel %vm621, %v577, 0
  %v764 = vsel %vm621, %v578, 0
  %v767 = vsel %vm621, %v579, 0
  %v770 = vsel %vm621, %v580, 0
  %v773 = vsel %vm621, %v581, 0
  %v776 = vsel %vm621, %v582, 0
  %v779 = vsel %vm621, %v583, 0
  %v782 = vsel %vm621, %v584, 0
  %v785 = vsel %vm621, %v585, 0
  %v788 = vsel %vm621, %v586, 0
  %v791 = vsel %vm621, %v587, 0
  %v794 = vsel %vm621, %v588, 0
  %v797 = vsel %vm621, %v589, 0
  %v800 = vsel %vm621, %v590, 0
  %v803 = vsel %vm621, %v591, 0
  %v806 = vsel %vm621, %v592, 0
  %v809 = vsel %vm621, %v593, 0
  %v812 = vsel %vm621, %v594, 0
  %v815 = vsel %vm621, %v595, 0
  %v818 = vsel %vm621, %v596, 0
  %v821 = vsel %vm621, %v597, 0
  %v824 = vsel %vm621, %v598, 0
  %v827 = vsel %vm621, %v599, 0
  %v830 = vsel %vm621, %v600, 0
  %v833 = vsel %vm621, %v601, 0
  %v836 = vsel %vm621, %v602, 0
  %v839 = vsel %vm621, %v603, 0
  %v842 = vsel %vm621, %v604, 0
  %v845 = vsel %vm621, %v605, 0
  %v848 = vsel %vm621, %v606, 0
  %v851 = vsel %vm621, %v607, 0
  %v854 = vsel %vm621, %v608, 0
  %v857 = vsel %vm621, %v609, 0
  %v860 = vsel %vm621, %v610, 0
  %v863 = vsel %vm621, %v611, 0
  %v866 = vsel %vm621, %v612, 0
  %v869 = vsel %vm621, %v613, 0
  %v872 = vsel %vm621, %v614, 0
  %v875 = vsel %vm621, %v615, 0
  %vm877 = vcmask 1043456
  %vm878 = vcmask 1044480
  %v879 = vsel %vm877, 4294967295, 65535
  %v880 = vsel %vm878, %v879, 0
  %v882 = vand.u32 %v620, %v880
  %884 = vmatprep.subr.bf16.mxu0 0
  %885 = vmatpush1.bf16.msra.mxu0 0
  %886 = vmatprep.subr.bf16.mxu0 0
  %887 = vmatpush1.bf16.msra.mxu0 0
  %888 = vmatprep.subr.bf16.mxu0 0
  %889 = vmatpush1.bf16.msra.mxu0 0
  %890 = vmatprep.subr.bf16.mxu0 0
  %891 = vmatpush1.bf16.msra.mxu0 0
  %892 = vmatprep.subr.bf16.mxu0 0
  %893 = vmatpush1.bf16.msra.mxu0 0
  %894 = vmatprep.subr.bf16.mxu0 0
  %895 = vmatpush1.bf16.msra.mxu0 0
  %896 = vmatprep.subr.bf16.mxu0 0
  %897 = vmatpush1.bf16.msra.mxu0 0
  %898 = vmatprep.subr.bf16.mxu0 0
  %899 = vmatpush1.bf16.msra.mxu0 %v882
  %900 = vmatprep.subr.bf16.mxu0 0
  %901 = vmatpush2.bf16.msra.mxu0 0
  %902 = vmatprep.subr.bf16.mxu0 0
  %903 = vmatpush2.bf16.msra.mxu0 0
  %904 = vmatprep.subr.bf16.mxu0 0
  %905 = vmatpush2.bf16.msra.mxu0 0
  %906 = vmatprep.subr.bf16.mxu0 0
  %907 = vmatpush2.bf16.msra.mxu0 0
  %908 = vmatprep.subr.bf16.mxu0 0
  %909 = vmatpush2.bf16.msra.mxu0 0
  %910 = vmatprep.subr.bf16.mxu0 0
  %911 = vmatpush2.bf16.msra.mxu0 0
  %912 = vmatprep.subr.bf16.mxu0 0
  %913 = vmatpush2.bf16.msra.mxu0 0
  %914 = vmatprep.subr.bf16.mxu0 0
  %915 = vmatpush2.bf16.msra.mxu0 0
  %916 = vmatprep.mubr.bf16.mxu0 0
  %917 = vmatmul.mubr.bf16.gmra.mxu0 %v623
  %v918 = vpop.f32.mrf.mxu0
  %v919 = vadd.f32 %v191, %v918
  %v920 = vpop.f32.mrf.mxu0
  %v921 = vpop.f32.mrf.mxu0
  %v922 = vadd.f32 %v191, %v921
  %v923 = vpop.f32.mrf.mxu0
  %924 = vmatprep.mubr.bf16.mxu0 0
  %925 = vmatmul.mubr.bf16.gmra.mxu0 %v626
  %v926 = vpop.f32.mrf.mxu0
  %v927 = vadd.f32 %v191, %v926
  %v928 = vpop.f32.mrf.mxu0
  %v929 = vpop.f32.mrf.mxu0
  %v930 = vadd.f32 %v191, %v929
  %v931 = vpop.f32.mrf.mxu0
  %932 = vmatprep.mubr.bf16.mxu0 0
  %933 = vmatmul.mubr.bf16.gmra.mxu0 %v629
  %v934 = vpop.f32.mrf.mxu0
  %v935 = vadd.f32 %v191, %v934
  %v936 = vpop.f32.mrf.mxu0
  %v937 = vpop.f32.mrf.mxu0
  %v938 = vadd.f32 %v191, %v937
  %v939 = vpop.f32.mrf.mxu0
  %940 = vmatprep.mubr.bf16.mxu0 0
  %941 = vmatmul.mubr.bf16.gmra.mxu0 %v632
  %v942 = vpop.f32.mrf.mxu0
  %v943 = vadd.f32 %v191, %v942
  %v944 = vpop.f32.mrf.mxu0
  %v945 = vpop.f32.mrf.mxu0
  %v946 = vadd.f32 %v191, %v945
  %v947 = vpop.f32.mrf.mxu0
  %948 = vmatprep.mubr.bf16.mxu0 0
  %949 = vmatmul.mubr.bf16.gmra.mxu0 %v635
  %v950 = vpop.f32.mrf.mxu0
  %v951 = vadd.f32 %v191, %v950
  %v952 = vpop.f32.mrf.mxu0
  %v953 = vpop.f32.mrf.mxu0
  %v954 = vadd.f32 %v191, %v953
  %v955 = vpop.f32.mrf.mxu0
  %956 = vmatprep.mubr.bf16.mxu0 0
  %957 = vmatmul.mubr.bf16.gmra.mxu0 %v638
  %v958 = vpop.f32.mrf.mxu0
  %v959 = vadd.f32 %v191, %v958
  %v960 = vpop.f32.mrf.mxu0
  %v961 = vpop.f32.mrf.mxu0
  %v962 = vadd.f32 %v191, %v961
  %v963 = vpop.f32.mrf.mxu0
  %964 = vmatprep.mubr.bf16.mxu0 0
  %965 = vmatmul.mubr.bf16.gmra.mxu0 %v641
  %v966 = vpop.f32.mrf.mxu0
  %v967 = vadd.f32 %v191, %v966
  %v968 = vpop.f32.mrf.mxu0
  %v969 = vpop.f32.mrf.mxu0
  %v970 = vadd.f32 %v191, %v969
  %v971 = vpop.f32.mrf.mxu0
  %972 = vmatprep.mubr.bf16.mxu0 0
  %973 = vmatmul.mubr.bf16.gmra.mxu0 %v644
  %v974 = vpop.f32.mrf.mxu0
  %v975 = vadd.f32 %v191, %v974
  %v976 = vpop.f32.mrf.mxu0
  %v977 = vpop.f32.mrf.mxu0
  %v978 = vadd.f32 %v191, %v977
  %v979 = vpop.f32.mrf.mxu0
  %980 = vmatprep.mubr.bf16.mxu0 0
  %981 = vmatmul.mubr.bf16.gmra.mxu0 %v647
  %v982 = vpop.f32.mrf.mxu0
  %v983 = vadd.f32 %v191, %v982
  %v984 = vpop.f32.mrf.mxu0
  %v985 = vpop.f32.mrf.mxu0
  %v986 = vadd.f32 %v191, %v985
  %v987 = vpop.f32.mrf.mxu0
  %988 = vmatprep.mubr.bf16.mxu0 0
  %989 = vmatmul.mubr.bf16.gmra.mxu0 %v650
  %v990 = vpop.f32.mrf.mxu0
  %v991 = vadd.f32 %v191, %v990
  %v992 = vpop.f32.mrf.mxu0
  %v993 = vpop.f32.mrf.mxu0
  %v994 = vadd.f32 %v191, %v993
  %v995 = vpop.f32.mrf.mxu0
  %996 = vmatprep.mubr.bf16.mxu0 0
  %997 = vmatmul.mubr.bf16.gmra.mxu0 %v653
  %v998 = vpop.f32.mrf.mxu0
  %v999 = vadd.f32 %v191, %v998
  %v1000 = vpop.f32.mrf.mxu0
  %v1001 = vpop.f32.mrf.mxu0
  %v1002 = vadd.f32 %v191, %v1001
  %v1003 = vpop.f32.mrf.mxu0
  %1004 = vmatprep.mubr.bf16.mxu0 0
  %1005 = vmatmul.mubr.bf16.gmra.mxu0 %v656
  %v1006 = vpop.f32.mrf.mxu0
  %v1007 = vadd.f32 %v191, %v1006
  %v1008 = vpop.f32.mrf.mxu0
  %v1009 = vpop.f32.mrf.mxu0
  %v1010 = vadd.f32 %v191, %v1009
  %v1011 = vpop.f32.mrf.mxu0
  %1012 = vmatprep.mubr.bf16.mxu0 0
  %1013 = vmatmul.mubr.bf16.gmra.mxu0 %v659
  %v1014 = vpop.f32.mrf.mxu0
  %v1015 = vadd.f32 %v191, %v1014
  %v1016 = vpop.f32.mrf.mxu0
  %v1017 = vpop.f32.mrf.mxu0
  %v1018 = vadd.f32 %v191, %v1017
  %v1019 = vpop.f32.mrf.mxu0
  %1020 = vmatprep.mubr.bf16.mxu0 0
  %1021 = vmatmul.mubr.bf16.gmra.mxu0 %v662
  %v1022 = vpop.f32.mrf.mxu0
  %v1023 = vadd.f32 %v191, %v1022
  %v1024 = vpop.f32.mrf.mxu0
  %v1025 = vpop.f32.mrf.mxu0
  %v1026 = vadd.f32 %v191, %v1025
  %v1027 = vpop.f32.mrf.mxu0
  %1028 = vmatprep.mubr.bf16.mxu0 0
  %1029 = vmatmul.mubr.bf16.gmra.mxu0 %v665
  %v1030 = vpop.f32.mrf.mxu0
  %v1031 = vadd.f32 %v191, %v1030
  %v1032 = vpop.f32.mrf.mxu0
  %v1033 = vpop.f32.mrf.mxu0
  %v1034 = vadd.f32 %v191, %v1033
  %v1035 = vpop.f32.mrf.mxu0
  %1036 = vmatprep.mubr.bf16.mxu0 0
  %1037 = vmatmul.mubr.bf16.gmra.mxu0 %v668
  %v1038 = vpop.f32.mrf.mxu0
  %v1039 = vadd.f32 %v191, %v1038
  %v1040 = vpop.f32.mrf.mxu0
  %v1041 = vpop.f32.mrf.mxu0
  %v1042 = vadd.f32 %v191, %v1041
  %v1043 = vpop.f32.mrf.mxu0
  %1044 = vmatprep.mubr.bf16.mxu0 0
  %1045 = vmatmul.mubr.bf16.gmra.mxu0 %v671
  %v1046 = vpop.f32.mrf.mxu0
  %v1047 = vadd.f32 %v191, %v1046
  %v1048 = vpop.f32.mrf.mxu0
  %v1049 = vpop.f32.mrf.mxu0
  %v1050 = vadd.f32 %v191, %v1049
  %v1051 = vpop.f32.mrf.mxu0
  %1052 = vmatprep.mubr.bf16.mxu0 0
  %1053 = vmatmul.mubr.bf16.gmra.mxu0 %v674
  %v1054 = vpop.f32.mrf.mxu0
  %v1055 = vadd.f32 %v191, %v1054
  %v1056 = vpop.f32.mrf.mxu0
  %v1057 = vpop.f32.mrf.mxu0
  %v1058 = vadd.f32 %v191, %v1057
  %v1059 = vpop.f32.mrf.mxu0
  %1060 = vmatprep.mubr.bf16.mxu0 0
  %1061 = vmatmul.mubr.bf16.gmra.mxu0 %v677
  %v1062 = vpop.f32.mrf.mxu0
  %v1063 = vadd.f32 %v191, %v1062
  %v1064 = vpop.f32.mrf.mxu0
  %v1065 = vpop.f32.mrf.mxu0
  %v1066 = vadd.f32 %v191, %v1065
  %v1067 = vpop.f32.mrf.mxu0
  %1068 = vmatprep.mubr.bf16.mxu0 0
  %1069 = vmatmul.mubr.bf16.gmra.mxu0 %v680
  %v1070 = vpop.f32.mrf.mxu0
  %v1071 = vadd.f32 %v191, %v1070
  %v1072 = vpop.f32.mrf.mxu0
  %v1073 = vpop.f32.mrf.mxu0
  %v1074 = vadd.f32 %v191, %v1073
  %v1075 = vpop.f32.mrf.mxu0
  %1076 = vmatprep.mubr.bf16.mxu0 0
  %1077 = vmatmul.mubr.bf16.gmra.mxu0 %v683
  %v1078 = vpop.f32.mrf.mxu0
  %v1079 = vadd.f32 %v191, %v1078
  %v1080 = vpop.f32.mrf.mxu0
  %v1081 = vpop.f32.mrf.mxu0
  %v1082 = vadd.f32 %v191, %v1081
  %v1083 = vpop.f32.mrf.mxu0
  %1084 = vmatprep.mubr.bf16.mxu0 0
  %1085 = vmatmul.mubr.bf16.gmra.mxu0 %v686
  %v1086 = vpop.f32.mrf.mxu0
  %v1087 = vadd.f32 %v191, %v1086
  %v1088 = vpop.f32.mrf.mxu0
  %v1089 = vpop.f32.mrf.mxu0
  %v1090 = vadd.f32 %v191, %v1089
  %v1091 = vpop.f32.mrf.mxu0
  %1092 = vmatprep.mubr.bf16.mxu0 0
  %1093 = vmatmul.mubr.bf16.gmra.mxu0 %v689
  %v1094 = vpop.f32.mrf.mxu0
  %v1095 = vadd.f32 %v191, %v1094
  %v1096 = vpop.f32.mrf.mxu0
  %v1097 = vpop.f32.mrf.mxu0
  %v1098 = vadd.f32 %v191, %v1097
  %v1099 = vpop.f32.mrf.mxu0
  %1100 = vmatprep.mubr.bf16.mxu0 0
  %1101 = vmatmul.mubr.bf16.gmra.mxu0 %v692
  %v1102 = vpop.f32.mrf.mxu0
  %v1103 = vadd.f32 %v191, %v1102
  %v1104 = vpop.f32.mrf.mxu0
  %v1105 = vpop.f32.mrf.mxu0
  %v1106 = vadd.f32 %v191, %v1105
  %v1107 = vpop.f32.mrf.mxu0
  %1108 = vmatprep.mubr.bf16.mxu0 0
  %1109 = vmatmul.mubr.bf16.gmra.mxu0 %v695
  %v1110 = vpop.f32.mrf.mxu0
  %v1111 = vadd.f32 %v191, %v1110
  %v1112 = vpop.f32.mrf.mxu0
  %v1113 = vpop.f32.mrf.mxu0
  %v1114 = vadd.f32 %v191, %v1113
  %v1115 = vpop.f32.mrf.mxu0
  %1116 = vmatprep.mubr.bf16.mxu0 0
  %1117 = vmatmul.mubr.bf16.gmra.mxu0 %v698
  %v1118 = vpop.f32.mrf.mxu0
  %v1119 = vadd.f32 %v191, %v1118
  %v1120 = vpop.f32.mrf.mxu0
  %v1121 = vpop.f32.mrf.mxu0
  %v1122 = vadd.f32 %v191, %v1121
  %v1123 = vpop.f32.mrf.mxu0
  %1124 = vmatprep.mubr.bf16.mxu0 0
  %1125 = vmatmul.mubr.bf16.gmra.mxu0 %v701
  %v1126 = vpop.f32.mrf.mxu0
  %v1127 = vadd.f32 %v191, %v1126
  %v1128 = vpop.f32.mrf.mxu0
  %v1129 = vpop.f32.mrf.mxu0
  %v1130 = vadd.f32 %v191, %v1129
  %v1131 = vpop.f32.mrf.mxu0
  %1132 = vmatprep.mubr.bf16.mxu0 0
  %1133 = vmatmul.mubr.bf16.gmra.mxu0 %v704
  %v1134 = vpop.f32.mrf.mxu0
  %v1135 = vadd.f32 %v191, %v1134
  %v1136 = vpop.f32.mrf.mxu0
  %v1137 = vpop.f32.mrf.mxu0
  %v1138 = vadd.f32 %v191, %v1137
  %v1139 = vpop.f32.mrf.mxu0
  %1140 = vmatprep.mubr.bf16.mxu0 0
  %1141 = vmatmul.mubr.bf16.gmra.mxu0 %v707
  %v1142 = vpop.f32.mrf.mxu0
  %v1143 = vadd.f32 %v191, %v1142
  %v1144 = vpop.f32.mrf.mxu0
  %v1145 = vpop.f32.mrf.mxu0
  %v1146 = vadd.f32 %v191, %v1145
  %v1147 = vpop.f32.mrf.mxu0
  %1148 = vmatprep.mubr.bf16.mxu0 0
  %1149 = vmatmul.mubr.bf16.gmra.mxu0 %v710
  %v1150 = vpop.f32.mrf.mxu0
  %v1151 = vadd.f32 %v191, %v1150
  %v1152 = vpop.f32.mrf.mxu0
  %v1153 = vpop.f32.mrf.mxu0
  %v1154 = vadd.f32 %v191, %v1153
  %v1155 = vpop.f32.mrf.mxu0
  %1156 = vmatprep.mubr.bf16.mxu0 0
  %1157 = vmatmul.mubr.bf16.gmra.mxu0 %v713
  %v1158 = vpop.f32.mrf.mxu0
  %v1159 = vadd.f32 %v191, %v1158
  %v1160 = vpop.f32.mrf.mxu0
  %v1161 = vpop.f32.mrf.mxu0
  %v1162 = vadd.f32 %v191, %v1161
  %v1163 = vpop.f32.mrf.mxu0
  %1164 = vmatprep.mubr.bf16.mxu0 0
  %1165 = vmatmul.mubr.bf16.gmra.mxu0 %v716
  %v1166 = vpop.f32.mrf.mxu0
  %v1167 = vadd.f32 %v191, %v1166
  %v1168 = vpop.f32.mrf.mxu0
  %v1169 = vpop.f32.mrf.mxu0
  %v1170 = vadd.f32 %v191, %v1169
  %v1171 = vpop.f32.mrf.mxu0
  %1172 = vmatprep.mubr.bf16.mxu0 0
  %1173 = vmatmul.mubr.bf16.gmra.mxu0 %v719
  %v1174 = vpop.f32.mrf.mxu0
  %v1175 = vadd.f32 %v191, %v1174
  %v1176 = vpop.f32.mrf.mxu0
  %v1177 = vpop.f32.mrf.mxu0
  %v1178 = vadd.f32 %v191, %v1177
  %v1179 = vpop.f32.mrf.mxu0
  %1180 = vmatprep.mubr.bf16.mxu0 0
  %1181 = vmatmul.mubr.bf16.gmra.mxu0 %v722
  %v1182 = vpop.f32.mrf.mxu0
  %v1183 = vadd.f32 %v191, %v1182
  %v1184 = vpop.f32.mrf.mxu0
  %v1185 = vpop.f32.mrf.mxu0
  %v1186 = vadd.f32 %v191, %v1185
  %v1187 = vpop.f32.mrf.mxu0
  %1188 = vmatprep.mubr.bf16.mxu0 0
  %1189 = vmatmul.mubr.bf16.gmra.mxu0 %v725
  %v1190 = vpop.f32.mrf.mxu0
  %v1191 = vadd.f32 %v191, %v1190
  %v1192 = vpop.f32.mrf.mxu0
  %v1193 = vpop.f32.mrf.mxu0
  %v1194 = vadd.f32 %v191, %v1193
  %v1195 = vpop.f32.mrf.mxu0
  %1196 = vmatprep.mubr.bf16.mxu0 0
  %1197 = vmatmul.mubr.bf16.gmra.mxu0 %v728
  %v1198 = vpop.f32.mrf.mxu0
  %v1199 = vadd.f32 %v191, %v1198
  %v1200 = vpop.f32.mrf.mxu0
  %v1201 = vpop.f32.mrf.mxu0
  %v1202 = vadd.f32 %v191, %v1201
  %v1203 = vpop.f32.mrf.mxu0
  %1204 = vmatprep.mubr.bf16.mxu0 0
  %1205 = vmatmul.mubr.bf16.gmra.mxu0 %v731
  %v1206 = vpop.f32.mrf.mxu0
  %v1207 = vadd.f32 %v191, %v1206
  %v1208 = vpop.f32.mrf.mxu0
  %v1209 = vpop.f32.mrf.mxu0
  %v1210 = vadd.f32 %v191, %v1209
  %v1211 = vpop.f32.mrf.mxu0
  %1212 = vmatprep.mubr.bf16.mxu0 0
  %1213 = vmatmul.mubr.bf16.gmra.mxu0 %v734
  %v1214 = vpop.f32.mrf.mxu0
  %v1215 = vadd.f32 %v191, %v1214
  %v1216 = vpop.f32.mrf.mxu0
  %v1217 = vpop.f32.mrf.mxu0
  %v1218 = vadd.f32 %v191, %v1217
  %v1219 = vpop.f32.mrf.mxu0
  %1220 = vmatprep.mubr.bf16.mxu0 0
  %1221 = vmatmul.mubr.bf16.gmra.mxu0 %v737
  %v1222 = vpop.f32.mrf.mxu0
  %v1223 = vadd.f32 %v191, %v1222
  %v1224 = vpop.f32.mrf.mxu0
  %v1225 = vpop.f32.mrf.mxu0
  %v1226 = vadd.f32 %v191, %v1225
  %v1227 = vpop.f32.mrf.mxu0
  %1228 = vmatprep.mubr.bf16.mxu0 0
  %1229 = vmatmul.mubr.bf16.gmra.mxu0 %v740
  %v1230 = vpop.f32.mrf.mxu0
  %v1231 = vadd.f32 %v191, %v1230
  %v1232 = vpop.f32.mrf.mxu0
  %v1233 = vpop.f32.mrf.mxu0
  %v1234 = vadd.f32 %v191, %v1233
  %v1235 = vpop.f32.mrf.mxu0
  %1236 = vmatprep.mubr.bf16.mxu0 0
  %1237 = vmatmul.mubr.bf16.gmra.mxu0 %v743
  %v1238 = vpop.f32.mrf.mxu0
  %v1239 = vadd.f32 %v191, %v1238
  %v1240 = vpop.f32.mrf.mxu0
  %v1241 = vpop.f32.mrf.mxu0
  %v1242 = vadd.f32 %v191, %v1241
  %v1243 = vpop.f32.mrf.mxu0
  %1244 = vmatprep.mubr.bf16.mxu0 0
  %1245 = vmatmul.mubr.bf16.gmra.mxu0 %v746
  %v1246 = vpop.f32.mrf.mxu0
  %v1247 = vadd.f32 %v191, %v1246
  %v1248 = vpop.f32.mrf.mxu0
  %v1249 = vpop.f32.mrf.mxu0
  %v1250 = vadd.f32 %v191, %v1249
  %v1251 = vpop.f32.mrf.mxu0
  %1252 = vmatprep.mubr.bf16.mxu0 0
  %1253 = vmatmul.mubr.bf16.gmra.mxu0 %v749
  %v1254 = vpop.f32.mrf.mxu0
  %v1255 = vadd.f32 %v191, %v1254
  %v1256 = vpop.f32.mrf.mxu0
  %v1257 = vpop.f32.mrf.mxu0
  %v1258 = vadd.f32 %v191, %v1257
  %v1259 = vpop.f32.mrf.mxu0
  %1260 = vmatprep.mubr.bf16.mxu0 0
  %1261 = vmatmul.mubr.bf16.gmra.mxu0 %v752
  %v1262 = vpop.f32.mrf.mxu0
  %v1263 = vadd.f32 %v191, %v1262
  %v1264 = vpop.f32.mrf.mxu0
  %v1265 = vpop.f32.mrf.mxu0
  %v1266 = vadd.f32 %v191, %v1265
  %v1267 = vpop.f32.mrf.mxu0
  %1268 = vmatprep.mubr.bf16.mxu0 0
  %1269 = vmatmul.mubr.bf16.gmra.mxu0 %v755
  %v1270 = vpop.f32.mrf.mxu0
  %v1271 = vadd.f32 %v191, %v1270
  %v1272 = vpop.f32.mrf.mxu0
  %v1273 = vpop.f32.mrf.mxu0
  %v1274 = vadd.f32 %v191, %v1273
  %v1275 = vpop.f32.mrf.mxu0
  %1276 = vmatprep.mubr.bf16.mxu0 0
  %1277 = vmatmul.mubr.bf16.gmra.mxu0 %v758
  %v1278 = vpop.f32.mrf.mxu0
  %v1279 = vadd.f32 %v191, %v1278
  %v1280 = vpop.f32.mrf.mxu0
  %v1281 = vpop.f32.mrf.mxu0
  %v1282 = vadd.f32 %v191, %v1281
  %v1283 = vpop.f32.mrf.mxu0
  %1284 = vmatprep.mubr.bf16.mxu0 0
  %1285 = vmatmul.mubr.bf16.gmra.mxu0 %v761
  %v1286 = vpop.f32.mrf.mxu0
  %v1287 = vadd.f32 %v191, %v1286
  %v1288 = vpop.f32.mrf.mxu0
  %v1289 = vpop.f32.mrf.mxu0
  %v1290 = vadd.f32 %v191, %v1289
  %v1291 = vpop.f32.mrf.mxu0
  %1292 = vmatprep.mubr.bf16.mxu0 0
  %1293 = vmatmul.mubr.bf16.gmra.mxu0 %v764
  %v1294 = vpop.f32.mrf.mxu0
  %v1295 = vadd.f32 %v191, %v1294
  %v1296 = vpop.f32.mrf.mxu0
  %v1297 = vpop.f32.mrf.mxu0
  %v1298 = vadd.f32 %v191, %v1297
  %v1299 = vpop.f32.mrf.mxu0
  %1300 = vmatprep.mubr.bf16.mxu0 0
  %1301 = vmatmul.mubr.bf16.gmra.mxu0 %v767
  %v1302 = vpop.f32.mrf.mxu0
  %v1303 = vadd.f32 %v191, %v1302
  %v1304 = vpop.f32.mrf.mxu0
  %v1305 = vpop.f32.mrf.mxu0
  %v1306 = vadd.f32 %v191, %v1305
  %v1307 = vpop.f32.mrf.mxu0
  %1308 = vmatprep.mubr.bf16.mxu0 0
  %1309 = vmatmul.mubr.bf16.gmra.mxu0 %v770
  %v1310 = vpop.f32.mrf.mxu0
  %v1311 = vadd.f32 %v191, %v1310
  %v1312 = vpop.f32.mrf.mxu0
  %v1313 = vpop.f32.mrf.mxu0
  %v1314 = vadd.f32 %v191, %v1313
  %v1315 = vpop.f32.mrf.mxu0
  %1316 = vmatprep.mubr.bf16.mxu0 0
  %1317 = vmatmul.mubr.bf16.gmra.mxu0 %v773
  %v1318 = vpop.f32.mrf.mxu0
  %v1319 = vadd.f32 %v191, %v1318
  %v1320 = vpop.f32.mrf.mxu0
  %v1321 = vpop.f32.mrf.mxu0
  %v1322 = vadd.f32 %v191, %v1321
  %v1323 = vpop.f32.mrf.mxu0
  %1324 = vmatprep.mubr.bf16.mxu0 0
  %1325 = vmatmul.mubr.bf16.gmra.mxu0 %v776
  %v1326 = vpop.f32.mrf.mxu0
  %v1327 = vadd.f32 %v191, %v1326
  %v1328 = vpop.f32.mrf.mxu0
  %v1329 = vpop.f32.mrf.mxu0
  %v1330 = vadd.f32 %v191, %v1329
  %v1331 = vpop.f32.mrf.mxu0
  %1332 = vmatprep.mubr.bf16.mxu0 0
  %1333 = vmatmul.mubr.bf16.gmra.mxu0 %v779
  %v1334 = vpop.f32.mrf.mxu0
  %v1335 = vadd.f32 %v191, %v1334
  %v1336 = vpop.f32.mrf.mxu0
  %v1337 = vpop.f32.mrf.mxu0
  %v1338 = vadd.f32 %v191, %v1337
  %v1339 = vpop.f32.mrf.mxu0
  %1340 = vmatprep.mubr.bf16.mxu0 0
  %1341 = vmatmul.mubr.bf16.gmra.mxu0 %v782
  %v1342 = vpop.f32.mrf.mxu0
  %v1343 = vadd.f32 %v191, %v1342
  %v1344 = vpop.f32.mrf.mxu0
  %v1345 = vpop.f32.mrf.mxu0
  %v1346 = vadd.f32 %v191, %v1345
  %v1347 = vpop.f32.mrf.mxu0
  %1348 = vmatprep.mubr.bf16.mxu0 0
  %1349 = vmatmul.mubr.bf16.gmra.mxu0 %v785
  %v1350 = vpop.f32.mrf.mxu0
  %v1351 = vadd.f32 %v191, %v1350
  %v1352 = vpop.f32.mrf.mxu0
  %v1353 = vpop.f32.mrf.mxu0
  %v1354 = vadd.f32 %v191, %v1353
  %v1355 = vpop.f32.mrf.mxu0
  %1356 = vmatprep.mubr.bf16.mxu0 0
  %1357 = vmatmul.mubr.bf16.gmra.mxu0 %v788
  %v1358 = vpop.f32.mrf.mxu0
  %v1359 = vadd.f32 %v191, %v1358
  %v1360 = vpop.f32.mrf.mxu0
  %v1361 = vpop.f32.mrf.mxu0
  %v1362 = vadd.f32 %v191, %v1361
  %v1363 = vpop.f32.mrf.mxu0
  %1364 = vmatprep.mubr.bf16.mxu0 0
  %1365 = vmatmul.mubr.bf16.gmra.mxu0 %v791
  %v1366 = vpop.f32.mrf.mxu0
  %v1367 = vadd.f32 %v191, %v1366
  %v1368 = vpop.f32.mrf.mxu0
  %v1369 = vpop.f32.mrf.mxu0
  %v1370 = vadd.f32 %v191, %v1369
  %v1371 = vpop.f32.mrf.mxu0
  %1372 = vmatprep.mubr.bf16.mxu0 0
  %1373 = vmatmul.mubr.bf16.gmra.mxu0 %v794
  %v1374 = vpop.f32.mrf.mxu0
  %v1375 = vadd.f32 %v191, %v1374
  %v1376 = vpop.f32.mrf.mxu0
  %v1377 = vpop.f32.mrf.mxu0
  %v1378 = vadd.f32 %v191, %v1377
  %v1379 = vpop.f32.mrf.mxu0
  %1380 = vmatprep.mubr.bf16.mxu0 0
  %1381 = vmatmul.mubr.bf16.gmra.mxu0 %v797
  %v1382 = vpop.f32.mrf.mxu0
  %v1383 = vadd.f32 %v191, %v1382
  %v1384 = vpop.f32.mrf.mxu0
  %v1385 = vpop.f32.mrf.mxu0
  %v1386 = vadd.f32 %v191, %v1385
  %v1387 = vpop.f32.mrf.mxu0
  %1388 = vmatprep.mubr.bf16.mxu0 0
  %1389 = vmatmul.mubr.bf16.gmra.mxu0 %v800
  %v1390 = vpop.f32.mrf.mxu0
  %v1391 = vadd.f32 %v191, %v1390
  %v1392 = vpop.f32.mrf.mxu0
  %v1393 = vpop.f32.mrf.mxu0
  %v1394 = vadd.f32 %v191, %v1393
  %v1395 = vpop.f32.mrf.mxu0
  %1396 = vmatprep.mubr.bf16.mxu0 0
  %1397 = vmatmul.mubr.bf16.gmra.mxu0 %v803
  %v1398 = vpop.f32.mrf.mxu0
  %v1399 = vadd.f32 %v191, %v1398
  %v1400 = vpop.f32.mrf.mxu0
  %v1401 = vpop.f32.mrf.mxu0
  %v1402 = vadd.f32 %v191, %v1401
  %v1403 = vpop.f32.mrf.mxu0
  %1404 = vmatprep.mubr.bf16.mxu0 0
  %1405 = vmatmul.mubr.bf16.gmra.mxu0 %v806
  %v1406 = vpop.f32.mrf.mxu0
  %v1407 = vadd.f32 %v191, %v1406
  %v1408 = vpop.f32.mrf.mxu0
  %v1409 = vpop.f32.mrf.mxu0
  %v1410 = vadd.f32 %v191, %v1409
  %v1411 = vpop.f32.mrf.mxu0
  %1412 = vmatprep.mubr.bf16.mxu0 0
  %1413 = vmatmul.mubr.bf16.gmra.mxu0 %v809
  %v1414 = vpop.f32.mrf.mxu0
  %v1415 = vadd.f32 %v191, %v1414
  %v1416 = vpop.f32.mrf.mxu0
  %v1417 = vpop.f32.mrf.mxu0
  %v1418 = vadd.f32 %v191, %v1417
  %v1419 = vpop.f32.mrf.mxu0
  %1420 = vmatprep.mubr.bf16.mxu0 0
  %1421 = vmatmul.mubr.bf16.gmra.mxu0 %v812
  %v1422 = vpop.f32.mrf.mxu0
  %v1423 = vadd.f32 %v191, %v1422
  %v1424 = vpop.f32.mrf.mxu0
  %v1425 = vpop.f32.mrf.mxu0
  %v1426 = vadd.f32 %v191, %v1425
  %v1427 = vpop.f32.mrf.mxu0
  %1428 = vmatprep.mubr.bf16.mxu0 0
  %1429 = vmatmul.mubr.bf16.gmra.mxu0 %v815
  %v1430 = vpop.f32.mrf.mxu0
  %v1431 = vadd.f32 %v191, %v1430
  %v1432 = vpop.f32.mrf.mxu0
  %v1433 = vpop.f32.mrf.mxu0
  %v1434 = vadd.f32 %v191, %v1433
  %v1435 = vpop.f32.mrf.mxu0
  %1436 = vmatprep.mubr.bf16.mxu0 0
  %1437 = vmatmul.mubr.bf16.gmra.mxu0 %v818
  %v1438 = vpop.f32.mrf.mxu0
  %v1439 = vadd.f32 %v191, %v1438
  %v1440 = vpop.f32.mrf.mxu0
  %v1441 = vpop.f32.mrf.mxu0
  %v1442 = vadd.f32 %v191, %v1441
  %v1443 = vpop.f32.mrf.mxu0
  %1444 = vmatprep.mubr.bf16.mxu0 0
  %1445 = vmatmul.mubr.bf16.gmra.mxu0 %v821
  %v1446 = vpop.f32.mrf.mxu0
  %v1447 = vadd.f32 %v191, %v1446
  %v1448 = vpop.f32.mrf.mxu0
  %v1449 = vpop.f32.mrf.mxu0
  %v1450 = vadd.f32 %v191, %v1449
  %v1451 = vpop.f32.mrf.mxu0
  %1452 = vmatprep.mubr.bf16.mxu0 0
  %1453 = vmatmul.mubr.bf16.gmra.mxu0 %v824
  %v1454 = vpop.f32.mrf.mxu0
  %v1455 = vadd.f32 %v191, %v1454
  %v1456 = vpop.f32.mrf.mxu0
  %v1457 = vpop.f32.mrf.mxu0
  %v1458 = vadd.f32 %v191, %v1457
  %v1459 = vpop.f32.mrf.mxu0
  %1460 = vmatprep.mubr.bf16.mxu0 0
  %1461 = vmatmul.mubr.bf16.gmra.mxu0 %v827
  %v1462 = vpop.f32.mrf.mxu0
  %v1463 = vadd.f32 %v191, %v1462
  %v1464 = vpop.f32.mrf.mxu0
  %v1465 = vpop.f32.mrf.mxu0
  %v1466 = vadd.f32 %v191, %v1465
  %v1467 = vpop.f32.mrf.mxu0
  %1468 = vmatprep.mubr.bf16.mxu0 0
  %1469 = vmatmul.mubr.bf16.gmra.mxu0 %v830
  %v1470 = vpop.f32.mrf.mxu0
  %v1471 = vadd.f32 %v191, %v1470
  %v1472 = vpop.f32.mrf.mxu0
  %v1473 = vpop.f32.mrf.mxu0
  %v1474 = vadd.f32 %v191, %v1473
  %v1475 = vpop.f32.mrf.mxu0
  %1476 = vmatprep.mubr.bf16.mxu0 0
  %1477 = vmatmul.mubr.bf16.gmra.mxu0 %v833
  %v1478 = vpop.f32.mrf.mxu0
  %v1479 = vadd.f32 %v191, %v1478
  %v1480 = vpop.f32.mrf.mxu0
  %v1481 = vpop.f32.mrf.mxu0
  %v1482 = vadd.f32 %v191, %v1481
  %v1483 = vpop.f32.mrf.mxu0
  %1484 = vmatprep.mubr.bf16.mxu0 0
  %1485 = vmatmul.mubr.bf16.gmra.mxu0 %v836
  %v1486 = vpop.f32.mrf.mxu0
  %v1487 = vadd.f32 %v191, %v1486
  %v1488 = vpop.f32.mrf.mxu0
  %v1489 = vpop.f32.mrf.mxu0
  %v1490 = vadd.f32 %v191, %v1489
  %v1491 = vpop.f32.mrf.mxu0
  %1492 = vmatprep.mubr.bf16.mxu0 0
  %1493 = vmatmul.mubr.bf16.gmra.mxu0 %v839
  %v1494 = vpop.f32.mrf.mxu0
  %v1495 = vadd.f32 %v191, %v1494
  %v1496 = vpop.f32.mrf.mxu0
  %v1497 = vpop.f32.mrf.mxu0
  %v1498 = vadd.f32 %v191, %v1497
  %v1499 = vpop.f32.mrf.mxu0
  %1500 = vmatprep.mubr.bf16.mxu0 0
  %1501 = vmatmul.mubr.bf16.gmra.mxu0 %v842
  %v1502 = vpop.f32.mrf.mxu0
  %v1503 = vadd.f32 %v191, %v1502
  %v1504 = vpop.f32.mrf.mxu0
  %v1505 = vpop.f32.mrf.mxu0
  %v1506 = vadd.f32 %v191, %v1505
  %v1507 = vpop.f32.mrf.mxu0
  %1508 = vmatprep.mubr.bf16.mxu0 0
  %1509 = vmatmul.mubr.bf16.gmra.mxu0 %v845
  %v1510 = vpop.f32.mrf.mxu0
  %v1511 = vadd.f32 %v191, %v1510
  %v1512 = vpop.f32.mrf.mxu0
  %v1513 = vpop.f32.mrf.mxu0
  %v1514 = vadd.f32 %v191, %v1513
  %v1515 = vpop.f32.mrf.mxu0
  %1516 = vmatprep.mubr.bf16.mxu0 0
  %1517 = vmatmul.mubr.bf16.gmra.mxu0 %v848
  %v1518 = vpop.f32.mrf.mxu0
  %v1519 = vadd.f32 %v191, %v1518
  %v1520 = vpop.f32.mrf.mxu0
  %v1521 = vpop.f32.mrf.mxu0
  %v1522 = vadd.f32 %v191, %v1521
  %v1523 = vpop.f32.mrf.mxu0
  %1524 = vmatprep.mubr.bf16.mxu0 0
  %1525 = vmatmul.mubr.bf16.gmra.mxu0 %v851
  %v1526 = vpop.f32.mrf.mxu0
  %v1527 = vadd.f32 %v191, %v1526
  %v1528 = vpop.f32.mrf.mxu0
  %v1529 = vpop.f32.mrf.mxu0
  %v1530 = vadd.f32 %v191, %v1529
  %v1531 = vpop.f32.mrf.mxu0
  %1532 = vmatprep.mubr.bf16.mxu0 0
  %1533 = vmatmul.mubr.bf16.gmra.mxu0 %v854
  %v1534 = vpop.f32.mrf.mxu0
  %v1535 = vadd.f32 %v191, %v1534
  %v1536 = vpop.f32.mrf.mxu0
  %v1537 = vpop.f32.mrf.mxu0
  %v1538 = vadd.f32 %v191, %v1537
  %v1539 = vpop.f32.mrf.mxu0
  %1540 = vmatprep.mubr.bf16.mxu0 0
  %1541 = vmatmul.mubr.bf16.gmra.mxu0 %v857
  %v1542 = vpop.f32.mrf.mxu0
  %v1543 = vadd.f32 %v191, %v1542
  %v1544 = vpop.f32.mrf.mxu0
  %v1545 = vpop.f32.mrf.mxu0
  %v1546 = vadd.f32 %v191, %v1545
  %v1547 = vpop.f32.mrf.mxu0
  %1548 = vmatprep.mubr.bf16.mxu0 0
  %1549 = vmatmul.mubr.bf16.gmra.mxu0 %v860
  %v1550 = vpop.f32.mrf.mxu0
  %v1551 = vadd.f32 %v191, %v1550
  %v1552 = vpop.f32.mrf.mxu0
  %v1553 = vpop.f32.mrf.mxu0
  %v1554 = vadd.f32 %v191, %v1553
  %v1555 = vpop.f32.mrf.mxu0
  %1556 = vmatprep.mubr.bf16.mxu0 0
  %1557 = vmatmul.mubr.bf16.gmra.mxu0 %v863
  %v1558 = vpop.f32.mrf.mxu0
  %v1559 = vadd.f32 %v191, %v1558
  %v1560 = vpop.f32.mrf.mxu0
  %v1561 = vpop.f32.mrf.mxu0
  %v1562 = vadd.f32 %v191, %v1561
  %v1563 = vpop.f32.mrf.mxu0
  %1564 = vmatprep.mubr.bf16.mxu0 0
  %1565 = vmatmul.mubr.bf16.gmra.mxu0 %v866
  %v1566 = vpop.f32.mrf.mxu0
  %v1567 = vadd.f32 %v191, %v1566
  %v1568 = vpop.f32.mrf.mxu0
  %v1569 = vpop.f32.mrf.mxu0
  %v1570 = vadd.f32 %v191, %v1569
  %v1571 = vpop.f32.mrf.mxu0
  %1572 = vmatprep.mubr.bf16.mxu0 0
  %1573 = vmatmul.mubr.bf16.gmra.mxu0 %v869
  %v1574 = vpop.f32.mrf.mxu0
  %v1575 = vadd.f32 %v191, %v1574
  %v1576 = vpop.f32.mrf.mxu0
  %v1577 = vpop.f32.mrf.mxu0
  %v1578 = vadd.f32 %v191, %v1577
  %v1579 = vpop.f32.mrf.mxu0
  %1580 = vmatprep.mubr.bf16.mxu0 0
  %1581 = vmatmul.mubr.bf16.gmra.mxu0 %v872
  %v1582 = vpop.f32.mrf.mxu0
  %v1583 = vadd.f32 %v191, %v1582
  %v1584 = vpop.f32.mrf.mxu0
  %v1585 = vpop.f32.mrf.mxu0
  %v1586 = vadd.f32 %v191, %v1585
  %v1587 = vpop.f32.mrf.mxu0
  %1588 = vmatprep.mubr.bf16.mxu0 0
  %1589 = vmatmul.mubr.bf16.gmra.mxu0 %v875
  %v1590 = vpop.f32.mrf.mxu0
  %v1591 = vadd.f32 %v191, %v1590
  %v1592 = vpop.f32.mrf.mxu0
  %v1593 = vpop.f32.mrf.mxu0
  %v1594 = vpop.f32.mrf.mxu0
  %1595 = vdwg.mxu0
  %v1596 = vmax.f32 %v919, 0.0
  %v1597 = vmax.f32 %v922, 0.0
  %v1598 = vmax.f32 %v927, 0.0
  %v1599 = vmax.f32 %v930, 0.0
  %v1600 = vmax.f32 %v935, 0.0
  %v1601 = vmax.f32 %v938, 0.0
  %v1602 = vmax.f32 %v943, 0.0
  %v1603 = vmax.f32 %v946, 0.0
  %v1604 = vmax.f32 %v951, 0.0
  %v1605 = vmax.f32 %v954, 0.0
  %v1606 = vmax.f32 %v959, 0.0
  %v1607 = vmax.f32 %v962, 0.0
  %v1608 = vmax.f32 %v967, 0.0
  %v1609 = vmax.f32 %v970, 0.0
  %v1610 = vmax.f32 %v975, 0.0
  %v1611 = vmax.f32 %v978, 0.0
  %v1612 = vmax.f32 %v983, 0.0
  %v1613 = vmax.f32 %v986, 0.0
  %v1614 = vmax.f32 %v991, 0.0
  %v1615 = vmax.f32 %v994, 0.0
  %v1616 = vmax.f32 %v999, 0.0
  %v1617 = vmax.f32 %v1002, 0.0
  %v1618 = vmax.f32 %v1007, 0.0
  %v1619 = vmax.f32 %v1010, 0.0
  %v1620 = vmax.f32 %v1015, 0.0
  %v1621 = vmax.f32 %v1018, 0.0
  %v1622 = vmax.f32 %v1023, 0.0
  %v1623 = vmax.f32 %v1026, 0.0
  %v1624 = vmax.f32 %v1031, 0.0
  %v1625 = vmax.f32 %v1034, 0.0
  %v1626 = vmax.f32 %v1039, 0.0
  %v1627 = vmax.f32 %v1042, 0.0
  %v1628 = vmax.f32 %v1047, 0.0
  %v1629 = vmax.f32 %v1050, 0.0
  %v1630 = vmax.f32 %v1055, 0.0
  %v1631 = vmax.f32 %v1058, 0.0
  %v1632 = vmax.f32 %v1063, 0.0
  %v1633 = vmax.f32 %v1066, 0.0
  %v1634 = vmax.f32 %v1071, 0.0
  %v1635 = vmax.f32 %v1074, 0.0
  %v1636 = vmax.f32 %v1079, 0.0
  %v1637 = vmax.f32 %v1082, 0.0
  %v1638 = vmax.f32 %v1087, 0.0
  %v1639 = vmax.f32 %v1090, 0.0
  %v1640 = vmax.f32 %v1095, 0.0
  %v1641 = vmax.f32 %v1098, 0.0
  %v1642 = vmax.f32 %v1103, 0.0
  %v1643 = vmax.f32 %v1106, 0.0
  %v1644 = vmax.f32 %v1111, 0.0
  %v1645 = vmax.f32 %v1114, 0.0
  %v1646 = vmax.f32 %v1119, 0.0
  %v1647 = vmax.f32 %v1122, 0.0
  %v1648 = vmax.f32 %v1127, 0.0
  %v1649 = vmax.f32 %v1130, 0.0
  %v1650 = vmax.f32 %v1135, 0.0
  %v1651 = vmax.f32 %v1138, 0.0
  %v1652 = vmax.f32 %v1143, 0.0
  %v1653 = vmax.f32 %v1146, 0.0
  %v1654 = vmax.f32 %v1151, 0.0
  %v1655 = vmax.f32 %v1154, 0.0
  %v1656 = vmax.f32 %v1159, 0.0
  %v1657 = vmax.f32 %v1162, 0.0
  %v1658 = vmax.f32 %v1167, 0.0
  %v1659 = vmax.f32 %v1170, 0.0
  %v1660 = vmax.f32 %v1175, 0.0
  %v1661 = vmax.f32 %v1178, 0.0
  %v1662 = vmax.f32 %v1183, 0.0
  %v1663 = vmax.f32 %v1186, 0.0
  %v1664 = vmax.f32 %v1191, 0.0
  %v1665 = vmax.f32 %v1194, 0.0
  %v1666 = vmax.f32 %v1199, 0.0
  %v1667 = vmax.f32 %v1202, 0.0
  %v1668 = vmax.f32 %v1207, 0.0
  %v1669 = vmax.f32 %v1210, 0.0
  %v1670 = vmax.f32 %v1215, 0.0
  %v1671 = vmax.f32 %v1218, 0.0
  %v1672 = vmax.f32 %v1223, 0.0
  %v1673 = vmax.f32 %v1226, 0.0
  %v1674 = vmax.f32 %v1231, 0.0
  %v1675 = vmax.f32 %v1234, 0.0
  %v1676 = vmax.f32 %v1239, 0.0
  %v1677 = vmax.f32 %v1242, 0.0
  %v1678 = vmax.f32 %v1247, 0.0
  %v1679 = vmax.f32 %v1250, 0.0
  %v1680 = vmax.f32 %v1255, 0.0
  %v1681 = vmax.f32 %v1258, 0.0
  %v1682 = vmax.f32 %v1263, 0.0
  %v1683 = vmax.f32 %v1266, 0.0
  %v1684 = vmax.f32 %v1271, 0.0
  %v1685 = vmax.f32 %v1274, 0.0
  %v1686 = vmax.f32 %v1279, 0.0
  %v1687 = vmax.f32 %v1282, 0.0
  %v1688 = vmax.f32 %v1287, 0.0
  %v1689 = vmax.f32 %v1290, 0.0
  %v1690 = vmax.f32 %v1295, 0.0
  %v1691 = vmax.f32 %v1298, 0.0
  %v1692 = vmax.f32 %v1303, 0.0
  %v1693 = vmax.f32 %v1306, 0.0
  %v1694 = vmax.f32 %v1311, 0.0
  %v1695 = vmax.f32 %v1314, 0.0
  %v1696 = vmax.f32 %v1319, 0.0
  %v1697 = vmax.f32 %v1322, 0.0
  %v1698 = vmax.f32 %v1327, 0.0
  %v1699 = vmax.f32 %v1330, 0.0
  %v1700 = vmax.f32 %v1335, 0.0
  %v1701 = vmax.f32 %v1338, 0.0
  %v1702 = vmax.f32 %v1343, 0.0
  %v1703 = vmax.f32 %v1346, 0.0
  %v1704 = vmax.f32 %v1351, 0.0
  %v1705 = vmax.f32 %v1354, 0.0
  %v1706 = vmax.f32 %v1359, 0.0
  %v1707 = vmax.f32 %v1362, 0.0
  %v1708 = vmax.f32 %v1367, 0.0
  %v1709 = vmax.f32 %v1370, 0.0
  %v1710 = vmax.f32 %v1375, 0.0
  %v1711 = vmax.f32 %v1378, 0.0
  %v1712 = vmax.f32 %v1383, 0.0
  %v1713 = vmax.f32 %v1386, 0.0
  %v1714 = vmax.f32 %v1391, 0.0
  %v1715 = vmax.f32 %v1394, 0.0
  %v1716 = vmax.f32 %v1399, 0.0
  %v1717 = vmax.f32 %v1402, 0.0
  %v1718 = vmax.f32 %v1407, 0.0
  %v1719 = vmax.f32 %v1410, 0.0
  %v1720 = vmax.f32 %v1415, 0.0
  %v1721 = vmax.f32 %v1418, 0.0
  %v1722 = vmax.f32 %v1423, 0.0
  %v1723 = vmax.f32 %v1426, 0.0
  %v1724 = vmax.f32 %v1431, 0.0
  %v1725 = vmax.f32 %v1434, 0.0
  %v1726 = vmax.f32 %v1439, 0.0
  %v1727 = vmax.f32 %v1442, 0.0
  %v1728 = vmax.f32 %v1447, 0.0
  %v1729 = vmax.f32 %v1450, 0.0
  %v1730 = vmax.f32 %v1455, 0.0
  %v1731 = vmax.f32 %v1458, 0.0
  %v1732 = vmax.f32 %v1463, 0.0
  %v1733 = vmax.f32 %v1466, 0.0
  %v1734 = vmax.f32 %v1471, 0.0
  %v1735 = vmax.f32 %v1474, 0.0
  %v1736 = vmax.f32 %v1479, 0.0
  %v1737 = vmax.f32 %v1482, 0.0
  %v1738 = vmax.f32 %v1487, 0.0
  %v1739 = vmax.f32 %v1490, 0.0
  %v1740 = vmax.f32 %v1495, 0.0
  %v1741 = vmax.f32 %v1498, 0.0
  %v1742 = vmax.f32 %v1503, 0.0
  %v1743 = vmax.f32 %v1506, 0.0
  %v1744 = vmax.f32 %v1511, 0.0
  %v1745 = vmax.f32 %v1514, 0.0
  %v1746 = vmax.f32 %v1519, 0.0
  %v1747 = vmax.f32 %v1522, 0.0
  %v1748 = vmax.f32 %v1527, 0.0
  %v1749 = vmax.f32 %v1530, 0.0
  %v1750 = vmax.f32 %v1535, 0.0
  %v1751 = vmax.f32 %v1538, 0.0
  %v1752 = vmax.f32 %v1543, 0.0
  %v1753 = vmax.f32 %v1546, 0.0
  %v1754 = vmax.f32 %v1551, 0.0
  %v1755 = vmax.f32 %v1554, 0.0
  %v1756 = vmax.f32 %v1559, 0.0
  %v1757 = vmax.f32 %v1562, 0.0
  %v1758 = vmax.f32 %v1567, 0.0
  %v1759 = vmax.f32 %v1570, 0.0
  %v1760 = vmax.f32 %v1575, 0.0
  %v1761 = vmax.f32 %v1578, 0.0
  %v1762 = vmax.f32 %v1583, 0.0
  %v1763 = vmax.f32 %v1586, 0.0
  %v1764 = vmax.f32 %v1591, 0.0
  %v1765 = vpack.c.bf16 %v1597, %v1596
  %v1766 = vpack.c.bf16 %v1599, %v1598
  %v1767 = vpack.c.bf16 %v1601, %v1600
  %v1768 = vpack.c.bf16 %v1603, %v1602
  %v1769 = vpack.c.bf16 %v1605, %v1604
  %v1770 = vpack.c.bf16 %v1607, %v1606
  %v1771 = vpack.c.bf16 %v1609, %v1608
  %v1772 = vpack.c.bf16 %v1611, %v1610
  %v1773 = vpack.c.bf16 %v1613, %v1612
  %v1774 = vpack.c.bf16 %v1615, %v1614
  %v1775 = vpack.c.bf16 %v1617, %v1616
  %v1776 = vpack.c.bf16 %v1619, %v1618
  %v1777 = vpack.c.bf16 %v1621, %v1620
  %v1778 = vpack.c.bf16 %v1623, %v1622
  %v1779 = vpack.c.bf16 %v1625, %v1624
  %v1780 = vpack.c.bf16 %v1627, %v1626
  %v1781 = vpack.c.bf16 %v1629, %v1628
  %v1782 = vpack.c.bf16 %v1631, %v1630
  %v1783 = vpack.c.bf16 %v1633, %v1632
  %v1784 = vpack.c.bf16 %v1635, %v1634
  %v1785 = vpack.c.bf16 %v1637, %v1636
  %v1786 = vpack.c.bf16 %v1639, %v1638
  %v1787 = vpack.c.bf16 %v1641, %v1640
  %v1788 = vpack.c.bf16 %v1643, %v1642
  %v1789 = vpack.c.bf16 %v1645, %v1644
  %v1790 = vpack.c.bf16 %v1647, %v1646
  %v1791 = vpack.c.bf16 %v1649, %v1648
  %v1792 = vpack.c.bf16 %v1651, %v1650
  %v1793 = vpack.c.bf16 %v1653, %v1652
  %v1794 = vpack.c.bf16 %v1655, %v1654
  %v1795 = vpack.c.bf16 %v1657, %v1656
  %v1796 = vpack.c.bf16 %v1659, %v1658
  %v1797 = vpack.c.bf16 %v1661, %v1660
  %v1798 = vpack.c.bf16 %v1663, %v1662
  %v1799 = vpack.c.bf16 %v1665, %v1664
  %v1800 = vpack.c.bf16 %v1667, %v1666
  %v1801 = vpack.c.bf16 %v1669, %v1668
  %v1802 = vpack.c.bf16 %v1671, %v1670
  %v1803 = vpack.c.bf16 %v1673, %v1672
  %v1804 = vpack.c.bf16 %v1675, %v1674
  %v1805 = vpack.c.bf16 %v1677, %v1676
  %v1806 = vpack.c.bf16 %v1679, %v1678
  %v1807 = vpack.c.bf16 %v1681, %v1680
  %v1808 = vpack.c.bf16 %v1683, %v1682
  %v1809 = vpack.c.bf16 %v1685, %v1684
  %v1810 = vpack.c.bf16 %v1687, %v1686
  %v1811 = vpack.c.bf16 %v1689, %v1688
  %v1812 = vpack.c.bf16 %v1691, %v1690
  %v1813 = vpack.c.bf16 %v1693, %v1692
  %v1814 = vpack.c.bf16 %v1695, %v1694
  %v1815 = vpack.c.bf16 %v1697, %v1696
  %v1816 = vpack.c.bf16 %v1699, %v1698
  %v1817 = vpack.c.bf16 %v1701, %v1700
  %v1818 = vpack.c.bf16 %v1703, %v1702
  %v1819 = vpack.c.bf16 %v1705, %v1704
  %v1820 = vpack.c.bf16 %v1707, %v1706
  %v1821 = vpack.c.bf16 %v1709, %v1708
  %v1822 = vpack.c.bf16 %v1711, %v1710
  %v1823 = vpack.c.bf16 %v1713, %v1712
  %v1824 = vpack.c.bf16 %v1715, %v1714
  %v1825 = vpack.c.bf16 %v1717, %v1716
  %v1826 = vpack.c.bf16 %v1719, %v1718
  %v1827 = vpack.c.bf16 %v1721, %v1720
  %v1828 = vpack.c.bf16 %v1723, %v1722
  %v1829 = vpack.c.bf16 %v1725, %v1724
  %v1830 = vpack.c.bf16 %v1727, %v1726
  %v1831 = vpack.c.bf16 %v1729, %v1728
  %v1832 = vpack.c.bf16 %v1731, %v1730
  %v1833 = vpack.c.bf16 %v1733, %v1732
  %v1834 = vpack.c.bf16 %v1735, %v1734
  %v1835 = vpack.c.bf16 %v1737, %v1736
  %v1836 = vpack.c.bf16 %v1739, %v1738
  %v1837 = vpack.c.bf16 %v1741, %v1740
  %v1838 = vpack.c.bf16 %v1743, %v1742
  %v1839 = vpack.c.bf16 %v1745, %v1744
  %v1840 = vpack.c.bf16 %v1747, %v1746
  %v1841 = vpack.c.bf16 %v1749, %v1748
  %v1842 = vpack.c.bf16 %v1751, %v1750
  %v1843 = vpack.c.bf16 %v1753, %v1752
  %v1844 = vpack.c.bf16 %v1755, %v1754
  %v1845 = vpack.c.bf16 %v1757, %v1756
  %v1846 = vpack.c.bf16 %v1759, %v1758
  %v1847 = vpack.c.bf16 %v1761, %v1760
  %v1848 = vpack.c.bf16 %v1763, %v1762
  %v1849 = vpack.c.bf16 %v1764, %v1764
  %v1935 = vunpack.c.l.b16 %v1765
  %v1936 = vunpack.c.h.b16 %v1765
  %v1937 = vunpack.c.l.b16 %v1766
  %v1938 = vunpack.c.h.b16 %v1766
  %v1939 = vunpack.c.l.b16 %v1767
  %v1940 = vunpack.c.h.b16 %v1767
  %v1941 = vunpack.c.l.b16 %v1768
  %v1942 = vunpack.c.h.b16 %v1768
  %v1943 = vunpack.c.l.b16 %v1769
  %v1944 = vunpack.c.h.b16 %v1769
  %v1945 = vunpack.c.l.b16 %v1770
  %v1946 = vunpack.c.h.b16 %v1770
  %v1947 = vunpack.c.l.b16 %v1771
  %v1948 = vunpack.c.h.b16 %v1771
  %v1949 = vunpack.c.l.b16 %v1772
  %v1950 = vunpack.c.h.b16 %v1772
  %v1951 = vunpack.c.l.b16 %v1773
  %v1952 = vunpack.c.h.b16 %v1773
  %v1953 = vunpack.c.l.b16 %v1774
  %v1954 = vunpack.c.h.b16 %v1774
  %v1955 = vunpack.c.l.b16 %v1775
  %v1956 = vunpack.c.h.b16 %v1775
  %v1957 = vunpack.c.l.b16 %v1776
  %v1958 = vunpack.c.h.b16 %v1776
  %v1959 = vunpack.c.l.b16 %v1777
  %v1960 = vunpack.c.h.b16 %v1777
  %v1961 = vunpack.c.l.b16 %v1778
  %v1962 = vunpack.c.h.b16 %v1778
  %v1963 = vunpack.c.l.b16 %v1779
  %v1964 = vunpack.c.h.b16 %v1779
  %v1965 = vunpack.c.l.b16 %v1780
  %v1966 = vunpack.c.h.b16 %v1780
  %v1967 = vunpack.c.l.b16 %v1781
  %v1968 = vunpack.c.h.b16 %v1781
  %v1969 = vunpack.c.l.b16 %v1782
  %v1970 = vunpack.c.h.b16 %v1782
  %v1971 = vunpack.c.l.b16 %v1783
  %v1972 = vunpack.c.h.b16 %v1783
  %v1973 = vunpack.c.l.b16 %v1784
  %v1974 = vunpack.c.h.b16 %v1784
  %v1975 = vunpack.c.l.b16 %v1785
  %v1976 = vunpack.c.h.b16 %v1785
  %v1977 = vunpack.c.l.b16 %v1786
  %v1978 = vunpack.c.h.b16 %v1786
  %v1979 = vunpack.c.l.b16 %v1787
  %v1980 = vunpack.c.h.b16 %v1787
  %v1981 = vunpack.c.l.b16 %v1788
  %v1982 = vunpack.c.h.b16 %v1788
  %v1983 = vunpack.c.l.b16 %v1789
  %v1984 = vunpack.c.h.b16 %v1789
  %v1985 = vunpack.c.l.b16 %v1790
  %v1986 = vunpack.c.h.b16 %v1790
  %v1987 = vunpack.c.l.b16 %v1791
  %v1988 = vunpack.c.h.b16 %v1791
  %v1989 = vunpack.c.l.b16 %v1792
  %v1990 = vunpack.c.h.b16 %v1792
  %v1991 = vunpack.c.l.b16 %v1793
  %v1992 = vunpack.c.h.b16 %v1793
  %v1993 = vunpack.c.l.b16 %v1794
  %v1994 = vunpack.c.h.b16 %v1794
  %v1995 = vunpack.c.l.b16 %v1795
  %v1996 = vunpack.c.h.b16 %v1795
  %v1997 = vunpack.c.l.b16 %v1796
  %v1998 = vunpack.c.h.b16 %v1796
  %v1999 = vunpack.c.l.b16 %v1797
  %v2000 = vunpack.c.h.b16 %v1797
  %v2001 = vunpack.c.l.b16 %v1798
  %v2002 = vunpack.c.h.b16 %v1798
  %v2003 = vunpack.c.l.b16 %v1799
  %v2004 = vunpack.c.h.b16 %v1799
  %v2005 = vunpack.c.l.b16 %v1800
  %v2006 = vunpack.c.h.b16 %v1800
  %v2007 = vunpack.c.l.b16 %v1801
  %v2008 = vunpack.c.h.b16 %v1801
  %v2009 = vunpack.c.l.b16 %v1802
  %v2010 = vunpack.c.h.b16 %v1802
  %v2011 = vunpack.c.l.b16 %v1803
  %v2012 = vunpack.c.h.b16 %v1803
  %v2013 = vunpack.c.l.b16 %v1804
  %v2014 = vunpack.c.h.b16 %v1804
  %v2015 = vunpack.c.l.b16 %v1805
  %v2016 = vunpack.c.h.b16 %v1805
  %v2017 = vunpack.c.l.b16 %v1806
  %v2018 = vunpack.c.h.b16 %v1806
  %v2019 = vunpack.c.l.b16 %v1807
  %v2020 = vunpack.c.h.b16 %v1807
  %v2021 = vunpack.c.l.b16 %v1808
  %v2022 = vunpack.c.h.b16 %v1808
  %v2023 = vunpack.c.l.b16 %v1809
  %v2024 = vunpack.c.h.b16 %v1809
  %v2025 = vunpack.c.l.b16 %v1810
  %v2026 = vunpack.c.h.b16 %v1810
  %v2027 = vunpack.c.l.b16 %v1811
  %v2028 = vunpack.c.h.b16 %v1811
  %v2029 = vunpack.c.l.b16 %v1812
  %v2030 = vunpack.c.h.b16 %v1812
  %v2031 = vunpack.c.l.b16 %v1813
  %v2032 = vunpack.c.h.b16 %v1813
  %v2033 = vunpack.c.l.b16 %v1814
  %v2034 = vunpack.c.h.b16 %v1814
  %v2035 = vunpack.c.l.b16 %v1815
  %v2036 = vunpack.c.h.b16 %v1815
  %v2037 = vunpack.c.l.b16 %v1816
  %v2038 = vunpack.c.h.b16 %v1816
  %v2039 = vunpack.c.l.b16 %v1817
  %v2040 = vunpack.c.h.b16 %v1817
  %v2041 = vunpack.c.l.b16 %v1818
  %v2042 = vunpack.c.h.b16 %v1818
  %v2043 = vunpack.c.l.b16 %v1819
  %v2044 = vunpack.c.h.b16 %v1819
  %v2045 = vunpack.c.l.b16 %v1820
  %v2046 = vunpack.c.h.b16 %v1820
  %v2047 = vunpack.c.l.b16 %v1821
  %v2048 = vunpack.c.h.b16 %v1821
  %v2049 = vunpack.c.l.b16 %v1822
  %v2050 = vunpack.c.h.b16 %v1822
  %v2051 = vunpack.c.l.b16 %v1823
  %v2052 = vunpack.c.h.b16 %v1823
  %v2053 = vunpack.c.l.b16 %v1824
  %v2054 = vunpack.c.h.b16 %v1824
  %v2055 = vunpack.c.l.b16 %v1825
  %v2056 = vunpack.c.h.b16 %v1825
  %v2057 = vunpack.c.l.b16 %v1826
  %v2058 = vunpack.c.h.b16 %v1826
  %v2059 = vunpack.c.l.b16 %v1827
  %v2060 = vunpack.c.h.b16 %v1827
  %v2061 = vunpack.c.l.b16 %v1828
  %v2062 = vunpack.c.h.b16 %v1828
  %v2063 = vunpack.c.l.b16 %v1829
  %v2064 = vunpack.c.h.b16 %v1829
  %v2065 = vunpack.c.l.b16 %v1830
  %v2066 = vunpack.c.h.b16 %v1830
  %v2067 = vunpack.c.l.b16 %v1831
  %v2068 = vunpack.c.h.b16 %v1831
  %v2069 = vunpack.c.l.b16 %v1832
  %v2070 = vunpack.c.h.b16 %v1832
  %v2071 = vunpack.c.l.b16 %v1833
  %v2072 = vunpack.c.h.b16 %v1833
  %v2073 = vunpack.c.l.b16 %v1834
  %v2074 = vunpack.c.h.b16 %v1834
  %v2075 = vunpack.c.l.b16 %v1835
  %v2076 = vunpack.c.h.b16 %v1835
  %v2077 = vunpack.c.l.b16 %v1836
  %v2078 = vunpack.c.h.b16 %v1836
  %v2079 = vunpack.c.l.b16 %v1837
  %v2080 = vunpack.c.h.b16 %v1837
  %v2081 = vunpack.c.l.b16 %v1838
  %v2082 = vunpack.c.h.b16 %v1838
  %v2083 = vunpack.c.l.b16 %v1839
  %v2084 = vunpack.c.h.b16 %v1839
  %v2085 = vunpack.c.l.b16 %v1840
  %v2086 = vunpack.c.h.b16 %v1840
  %v2087 = vunpack.c.l.b16 %v1841
  %v2088 = vunpack.c.h.b16 %v1841
  %v2089 = vunpack.c.l.b16 %v1842
  %v2090 = vunpack.c.h.b16 %v1842
  %v2091 = vunpack.c.l.b16 %v1843
  %v2092 = vunpack.c.h.b16 %v1843
  %v2093 = vunpack.c.l.b16 %v1844
  %v2094 = vunpack.c.h.b16 %v1844
  %v2095 = vunpack.c.l.b16 %v1845
  %v2096 = vunpack.c.h.b16 %v1845
  %v2097 = vunpack.c.l.b16 %v1846
  %v2098 = vunpack.c.h.b16 %v1846
  %v2099 = vunpack.c.l.b16 %v1847
  %v2100 = vunpack.c.h.b16 %v1847
  %v2101 = vunpack.c.l.b16 %v1848
  %v2102 = vunpack.c.h.b16 %v1848
  %v2103 = vunpack.c.l.b16 %v1849
  %v2104 = vpack.c.b16 %v1935, %v1935
  %v2105 = vpack.c.b16 %v1936, %v1936
  %v2106 = vpack.c.b16 %v1937, %v1937
  %v2107 = vpack.c.b16 %v1938, %v1938
  %v2108 = vpack.c.b16 %v1939, %v1939
  %v2109 = vpack.c.b16 %v1940, %v1940
  %v2110 = vpack.c.b16 %v1941, %v1941
  %v2111 = vpack.c.b16 %v1942, %v1942
  %v2112 = vpack.c.b16 %v1943, %v1943
  %v2113 = vpack.c.b16 %v1944, %v1944
  %v2114 = vpack.c.b16 %v1945, %v1945
  %v2115 = vpack.c.b16 %v1946, %v1946
  %v2116 = vpack.c.b16 %v1947, %v1947
  %v2117 = vpack.c.b16 %v1948, %v1948
  %v2118 = vpack.c.b16 %v1949, %v1949
  %v2119 = vpack.c.b16 %v1950, %v1950
  %v2120 = vpack.c.b16 %v1951, %v1951
  %v2121 = vpack.c.b16 %v1952, %v1952
  %v2122 = vpack.c.b16 %v1953, %v1953
  %v2123 = vpack.c.b16 %v1954, %v1954
  %v2124 = vpack.c.b16 %v1955, %v1955
  %v2125 = vpack.c.b16 %v1956, %v1956
  %v2126 = vpack.c.b16 %v1957, %v1957
  %v2127 = vpack.c.b16 %v1958, %v1958
  %v2128 = vpack.c.b16 %v1959, %v1959
  %v2129 = vpack.c.b16 %v1960, %v1960
  %v2130 = vpack.c.b16 %v1961, %v1961
  %v2131 = vpack.c.b16 %v1962, %v1962
  %v2132 = vpack.c.b16 %v1963, %v1963
  %v2133 = vpack.c.b16 %v1964, %v1964
  %v2134 = vpack.c.b16 %v1965, %v1965
  %v2135 = vpack.c.b16 %v1966, %v1966
  %v2136 = vpack.c.b16 %v1967, %v1967
  %v2137 = vpack.c.b16 %v1968, %v1968
  %v2138 = vpack.c.b16 %v1969, %v1969
  %v2139 = vpack.c.b16 %v1970, %v1970
  %v2140 = vpack.c.b16 %v1971, %v1971
  %v2141 = vpack.c.b16 %v1972, %v1972
  %v2142 = vpack.c.b16 %v1973, %v1973
  %v2143 = vpack.c.b16 %v1974, %v1974
  %v2144 = vpack.c.b16 %v1975, %v1975
  %v2145 = vpack.c.b16 %v1976, %v1976
  %v2146 = vpack.c.b16 %v1977, %v1977
  %v2147 = vpack.c.b16 %v1978, %v1978
  %v2148 = vpack.c.b16 %v1979, %v1979
  %v2149 = vpack.c.b16 %v1980, %v1980
  %v2150 = vpack.c.b16 %v1981, %v1981
  %v2151 = vpack.c.b16 %v1982, %v1982
  %v2152 = vpack.c.b16 %v1983, %v1983
  %v2153 = vpack.c.b16 %v1984, %v1984
  %v2154 = vpack.c.b16 %v1985, %v1985
  %v2155 = vpack.c.b16 %v1986, %v1986
  %v2156 = vpack.c.b16 %v1987, %v1987
  %v2157 = vpack.c.b16 %v1988, %v1988
  %v2158 = vpack.c.b16 %v1989, %v1989
  %v2159 = vpack.c.b16 %v1990, %v1990
  %v2160 = vpack.c.b16 %v1991, %v1991
  %v2161 = vpack.c.b16 %v1992, %v1992
  %v2162 = vpack.c.b16 %v1993, %v1993
  %v2163 = vpack.c.b16 %v1994, %v1994
  %v2164 = vpack.c.b16 %v1995, %v1995
  %v2165 = vpack.c.b16 %v1996, %v1996
  %v2166 = vpack.c.b16 %v1997, %v1997
  %v2167 = vpack.c.b16 %v1998, %v1998
  %v2168 = vpack.c.b16 %v1999, %v1999
  %v2169 = vpack.c.b16 %v2000, %v2000
  %v2170 = vpack.c.b16 %v2001, %v2001
  %v2171 = vpack.c.b16 %v2002, %v2002
  %v2172 = vpack.c.b16 %v2003, %v2003
  %v2173 = vpack.c.b16 %v2004, %v2004
  %v2174 = vpack.c.b16 %v2005, %v2005
  %v2175 = vpack.c.b16 %v2006, %v2006
  %v2176 = vpack.c.b16 %v2007, %v2007
  %v2177 = vpack.c.b16 %v2008, %v2008
  %v2178 = vpack.c.b16 %v2009, %v2009
  %v2179 = vpack.c.b16 %v2010, %v2010
  %v2180 = vpack.c.b16 %v2011, %v2011
  %v2181 = vpack.c.b16 %v2012, %v2012
  %v2182 = vpack.c.b16 %v2013, %v2013
  %v2183 = vpack.c.b16 %v2014, %v2014
  %v2184 = vpack.c.b16 %v2015, %v2015
  %v2185 = vpack.c.b16 %v2016, %v2016
  %v2186 = vpack.c.b16 %v2017, %v2017
  %v2187 = vpack.c.b16 %v2018, %v2018
  %v2188 = vpack.c.b16 %v2019, %v2019
  %v2189 = vpack.c.b16 %v2020, %v2020
  %v2190 = vpack.c.b16 %v2021, %v2021
  %v2191 = vpack.c.b16 %v2022, %v2022
  %v2192 = vpack.c.b16 %v2023, %v2023
  %v2193 = vpack.c.b16 %v2024, %v2024
  %v2194 = vpack.c.b16 %v2025, %v2025
  %v2195 = vpack.c.b16 %v2026, %v2026
  %v2196 = vpack.c.b16 %v2027, %v2027
  %v2197 = vpack.c.b16 %v2028, %v2028
  %v2198 = vpack.c.b16 %v2029, %v2029
  %v2199 = vpack.c.b16 %v2030, %v2030
  %v2200 = vpack.c.b16 %v2031, %v2031
  %v2201 = vpack.c.b16 %v2032, %v2032
  %v2202 = vpack.c.b16 %v2033, %v2033
  %v2203 = vpack.c.b16 %v2034, %v2034
  %v2204 = vpack.c.b16 %v2035, %v2035
  %v2205 = vpack.c.b16 %v2036, %v2036
  %v2206 = vpack.c.b16 %v2037, %v2037
  %v2207 = vpack.c.b16 %v2038, %v2038
  %v2208 = vpack.c.b16 %v2039, %v2039
  %v2209 = vpack.c.b16 %v2040, %v2040
  %v2210 = vpack.c.b16 %v2041, %v2041
  %v2211 = vpack.c.b16 %v2042, %v2042
  %v2212 = vpack.c.b16 %v2043, %v2043
  %v2213 = vpack.c.b16 %v2044, %v2044
  %v2214 = vpack.c.b16 %v2045, %v2045
  %v2215 = vpack.c.b16 %v2046, %v2046
  %v2216 = vpack.c.b16 %v2047, %v2047
  %v2217 = vpack.c.b16 %v2048, %v2048
  %v2218 = vpack.c.b16 %v2049, %v2049
  %v2219 = vpack.c.b16 %v2050, %v2050
  %v2220 = vpack.c.b16 %v2051, %v2051
  %v2221 = vpack.c.b16 %v2052, %v2052
  %v2222 = vpack.c.b16 %v2053, %v2053
  %v2223 = vpack.c.b16 %v2054, %v2054
  %v2224 = vpack.c.b16 %v2055, %v2055
  %v2225 = vpack.c.b16 %v2056, %v2056
  %v2226 = vpack.c.b16 %v2057, %v2057
  %v2227 = vpack.c.b16 %v2058, %v2058
  %v2228 = vpack.c.b16 %v2059, %v2059
  %v2229 = vpack.c.b16 %v2060, %v2060
  %v2230 = vpack.c.b16 %v2061, %v2061
  %v2231 = vpack.c.b16 %v2062, %v2062
  %v2232 = vpack.c.b16 %v2063, %v2063
  %v2233 = vpack.c.b16 %v2064, %v2064
  %v2234 = vpack.c.b16 %v2065, %v2065
  %v2235 = vpack.c.b16 %v2066, %v2066
  %v2236 = vpack.c.b16 %v2067, %v2067
  %v2237 = vpack.c.b16 %v2068, %v2068
  %v2238 = vpack.c.b16 %v2069, %v2069
  %v2239 = vpack.c.b16 %v2070, %v2070
  %v2240 = vpack.c.b16 %v2071, %v2071
  %v2241 = vpack.c.b16 %v2072, %v2072
  %v2242 = vpack.c.b16 %v2073, %v2073
  %v2243 = vpack.c.b16 %v2074, %v2074
  %v2244 = vpack.c.b16 %v2075, %v2075
  %v2245 = vpack.c.b16 %v2076, %v2076
  %v2246 = vpack.c.b16 %v2077, %v2077
  %v2247 = vpack.c.b16 %v2078, %v2078
  %v2248 = vpack.c.b16 %v2079, %v2079
  %v2249 = vpack.c.b16 %v2080, %v2080
  %v2250 = vpack.c.b16 %v2081, %v2081
  %v2251 = vpack.c.b16 %v2082, %v2082
  %v2252 = vpack.c.b16 %v2083, %v2083
  %v2253 = vpack.c.b16 %v2084, %v2084
  %v2254 = vpack.c.b16 %v2085, %v2085
  %v2255 = vpack.c.b16 %v2086, %v2086
  %v2256 = vpack.c.b16 %v2087, %v2087
  %v2257 = vpack.c.b16 %v2088, %v2088
  %v2258 = vpack.c.b16 %v2089, %v2089
  %v2259 = vpack.c.b16 %v2090, %v2090
  %v2260 = vpack.c.b16 %v2091, %v2091
  %v2261 = vpack.c.b16 %v2092, %v2092
  %v2262 = vpack.c.b16 %v2093, %v2093
  %v2263 = vpack.c.b16 %v2094, %v2094
  %v2264 = vpack.c.b16 %v2095, %v2095
  %v2265 = vpack.c.b16 %v2096, %v2096
  %v2266 = vpack.c.b16 %v2097, %v2097
  %v2267 = vpack.c.b16 %v2098, %v2098
  %v2268 = vpack.c.b16 %v2099, %v2099
  %v2269 = vpack.c.b16 %v2100, %v2100
  %v2270 = vpack.c.b16 %v2101, %v2101
  %v2271 = vpack.c.b16 %v2102, %v2102
  %v2272 = vpack.c.b16 %v2103, %v2103
  %vm2442 = vcmask 125952
  %2443 = vst.msk [vmem:[%s3] sm:$0xf] %vm2442, %v2104
  %2444 = vst.msk [vmem:[%s3 + $0x4] sm:$0xf] %vm2442, %v2105
  %2445 = vst.msk [vmem:[%s3 + $0x8] sm:$0xf] %vm2442, %v2106
  %2446 = vst.msk [vmem:[%s3 + $0xc] sm:$0xf] %vm2442, %v2107
  %2447 = vst.msk [vmem:[%s3 + $0x10] sm:$0xf] %vm2442, %v2108
  %2448 = vst.msk [vmem:[%s3 + $0x14] sm:$0xf] %vm2442, %v2109
  %2449 = vst.msk [vmem:[%s3 + $0x18] sm:$0xf] %vm2442, %v2110
  %2450 = vst.msk [vmem:[%s3 + $0x1c] sm:$0xf] %vm2442, %v2111
  %2451 = vst.msk [vmem:[%s3 + $0x20] sm:$0xf] %vm2442, %v2112
  %2452 = vst.msk [vmem:[%s3 + $0x24] sm:$0xf] %vm2442, %v2113
  %2453 = vst.msk [vmem:[%s3 + $0x28] sm:$0xf] %vm2442, %v2114
  %2454 = vst.msk [vmem:[%s3 + $0x2c] sm:$0xf] %vm2442, %v2115
  %2455 = vst.msk [vmem:[%s3 + $0x30] sm:$0xf] %vm2442, %v2116
  %2456 = vst.msk [vmem:[%s3 + $0x34] sm:$0xf] %vm2442, %v2117
  %2457 = vst.msk [vmem:[%s3 + $0x38] sm:$0xf] %vm2442, %v2118
  %2458 = vst.msk [vmem:[%s3 + $0x3c] sm:$0xf] %vm2442, %v2119
  %2459 = vst.msk [vmem:[%s3 + $0x40] sm:$0xf] %vm2442, %v2120
  %2460 = vst.msk [vmem:[%s3 + $0x44] sm:$0xf] %vm2442, %v2121
  %2461 = vst.msk [vmem:[%s3 + $0x48] sm:$0xf] %vm2442, %v2122
  %2462 = vst.msk [vmem:[%s3 + $0x4c] sm:$0xf] %vm2442, %v2123
  %2463 = vst.msk [vmem:[%s3 + $0x50] sm:$0xf] %vm2442, %v2124
  %2464 = vst.msk [vmem:[%s3 + $0x54] sm:$0xf] %vm2442, %v2125
  %2465 = vst.msk [vmem:[%s3 + $0x58] sm:$0xf] %vm2442, %v2126
  %2466 = vst.msk [vmem:[%s3 + $0x5c] sm:$0xf] %vm2442, %v2127
  %2467 = vst.msk [vmem:[%s3 + $0x60] sm:$0xf] %vm2442, %v2128
  %2468 = vst.msk [vmem:[%s3 + $0x64] sm:$0xf] %vm2442, %v2129
  %2469 = vst.msk [vmem:[%s3 + $0x68] sm:$0xf] %vm2442, %v2130
  %2470 = vst.msk [vmem:[%s3 + $0x6c] sm:$0xf] %vm2442, %v2131
  %2471 = vst.msk [vmem:[%s3 + $0x70] sm:$0xf] %vm2442, %v2132
  %2472 = vst.msk [vmem:[%s3 + $0x74] sm:$0xf] %vm2442, %v2133
  %2473 = vst.msk [vmem:[%s3 + $0x78] sm:$0xf] %vm2442, %v2134
  %2474 = vst.msk [vmem:[%s3 + $0x7c] sm:$0xf] %vm2442, %v2135
  %2475 = vst.msk [vmem:[%s3 + $0x80] sm:$0xf] %vm2442, %v2136
  %2476 = vst.msk [vmem:[%s3 + $0x84] sm:$0xf] %vm2442, %v2137
  %2477 = vst.msk [vmem:[%s3 + $0x88] sm:$0xf] %vm2442, %v2138
  %2478 = vst.msk [vmem:[%s3 + $0x8c] sm:$0xf] %vm2442, %v2139
  %2479 = vst.msk [vmem:[%s3 + $0x90] sm:$0xf] %vm2442, %v2140
  %2480 = vst.msk [vmem:[%s3 + $0x94] sm:$0xf] %vm2442, %v2141
  %2481 = vst.msk [vmem:[%s3 + $0x98] sm:$0xf] %vm2442, %v2142
  %2482 = vst.msk [vmem:[%s3 + $0x9c] sm:$0xf] %vm2442, %v2143
  %2483 = vst.msk [vmem:[%s3 + $0xa0] sm:$0xf] %vm2442, %v2144
  %2484 = vst.msk [vmem:[%s3 + $0xa4] sm:$0xf] %vm2442, %v2145
  %2485 = vst.msk [vmem:[%s3 + $0xa8] sm:$0xf] %vm2442, %v2146
  %2486 = vst.msk [vmem:[%s3 + $0xac] sm:$0xf] %vm2442, %v2147
  %2487 = vst.msk [vmem:[%s3 + $0xb0] sm:$0xf] %vm2442, %v2148
  %2488 = vst.msk [vmem:[%s3 + $0xb4] sm:$0xf] %vm2442, %v2149
  %2489 = vst.msk [vmem:[%s3 + $0xb8] sm:$0xf] %vm2442, %v2150
  %2490 = vst.msk [vmem:[%s3 + $0xbc] sm:$0xf] %vm2442, %v2151
  %2491 = vst.msk [vmem:[%s3 + $0xc0] sm:$0xf] %vm2442, %v2152
  %2492 = vst.msk [vmem:[%s3 + $0xc4] sm:$0xf] %vm2442, %v2153
  %2493 = vst.msk [vmem:[%s3 + $0xc8] sm:$0xf] %vm2442, %v2154
  %2494 = vst.msk [vmem:[%s3 + $0xcc] sm:$0xf] %vm2442, %v2155
  %2495 = vst.msk [vmem:[%s3 + $0xd0] sm:$0xf] %vm2442, %v2156
  %2496 = vst.msk [vmem:[%s3 + $0xd4] sm:$0xf] %vm2442, %v2157
  %2497 = vst.msk [vmem:[%s3 + $0xd8] sm:$0xf] %vm2442, %v2158
  %2498 = vst.msk [vmem:[%s3 + $0xdc] sm:$0xf] %vm2442, %v2159
  %2499 = vst.msk [vmem:[%s3 + $0xe0] sm:$0xf] %vm2442, %v2160
  %2500 = vst.msk [vmem:[%s3 + $0xe4] sm:$0xf] %vm2442, %v2161
  %2501 = vst.msk [vmem:[%s3 + $0xe8] sm:$0xf] %vm2442, %v2162
  %2502 = vst.msk [vmem:[%s3 + $0xec] sm:$0xf] %vm2442, %v2163
  %2503 = vst.msk [vmem:[%s3 + $0xf0] sm:$0xf] %vm2442, %v2164
  %2504 = vst.msk [vmem:[%s3 + $0xf4] sm:$0xf] %vm2442, %v2165
  %2505 = vst.msk [vmem:[%s3 + $0xf8] sm:$0xf] %vm2442, %v2166
  %2506 = vst.msk [vmem:[%s3 + $0xfc] sm:$0xf] %vm2442, %v2167
  %2507 = vst.msk [vmem:[%s3 + $0x100] sm:$0xf] %vm2442, %v2168
  %2508 = vst.msk [vmem:[%s3 + $0x104] sm:$0xf] %vm2442, %v2169
  %2509 = vst.msk [vmem:[%s3 + $0x108] sm:$0xf] %vm2442, %v2170
  %2510 = vst.msk [vmem:[%s3 + $0x10c] sm:$0xf] %vm2442, %v2171
  %2511 = vst.msk [vmem:[%s3 + $0x110] sm:$0xf] %vm2442, %v2172
  %2512 = vst.msk [vmem:[%s3 + $0x114] sm:$0xf] %vm2442, %v2173
  %2513 = vst.msk [vmem:[%s3 + $0x118] sm:$0xf] %vm2442, %v2174
  %2514 = vst.msk [vmem:[%s3 + $0x11c] sm:$0xf] %vm2442, %v2175
  %2515 = vst.msk [vmem:[%s3 + $0x120] sm:$0xf] %vm2442, %v2176
  %2516 = vst.msk [vmem:[%s3 + $0x124] sm:$0xf] %vm2442, %v2177
  %2517 = vst.msk [vmem:[%s3 + $0x128] sm:$0xf] %vm2442, %v2178
  %2518 = vst.msk [vmem:[%s3 + $0x12c] sm:$0xf] %vm2442, %v2179
  %2519 = vst.msk [vmem:[%s3 + $0x130] sm:$0xf] %vm2442, %v2180
  %2520 = vst.msk [vmem:[%s3 + $0x134] sm:$0xf] %vm2442, %v2181
  %2521 = vst.msk [vmem:[%s3 + $0x138] sm:$0xf] %vm2442, %v2182
  %2522 = vst.msk [vmem:[%s3 + $0x13c] sm:$0xf] %vm2442, %v2183
  %2523 = vst.msk [vmem:[%s3 + $0x140] sm:$0xf] %vm2442, %v2184
  %2524 = vst.msk [vmem:[%s3 + $0x144] sm:$0xf] %vm2442, %v2185
  %2525 = vst.msk [vmem:[%s3 + $0x148] sm:$0xf] %vm2442, %v2186
  %2526 = vst.msk [vmem:[%s3 + $0x14c] sm:$0xf] %vm2442, %v2187
  %2527 = vst.msk [vmem:[%s3 + $0x150] sm:$0xf] %vm2442, %v2188
  %2528 = vst.msk [vmem:[%s3 + $0x154] sm:$0xf] %vm2442, %v2189
  %2529 = vst.msk [vmem:[%s3 + $0x158] sm:$0xf] %vm2442, %v2190
  %2530 = vst.msk [vmem:[%s3 + $0x15c] sm:$0xf] %vm2442, %v2191
  %2531 = vst.msk [vmem:[%s3 + $0x160] sm:$0xf] %vm2442, %v2192
  %2532 = vst.msk [vmem:[%s3 + $0x164] sm:$0xf] %vm2442, %v2193
  %2533 = vst.msk [vmem:[%s3 + $0x168] sm:$0xf] %vm2442, %v2194
  %2534 = vst.msk [vmem:[%s3 + $0x16c] sm:$0xf] %vm2442, %v2195
  %2535 = vst.msk [vmem:[%s3 + $0x170] sm:$0xf] %vm2442, %v2196
  %2536 = vst.msk [vmem:[%s3 + $0x174] sm:$0xf] %vm2442, %v2197
  %2537 = vst.msk [vmem:[%s3 + $0x178] sm:$0xf] %vm2442, %v2198
  %2538 = vst.msk [vmem:[%s3 + $0x17c] sm:$0xf] %vm2442, %v2199
  %2539 = vst.msk [vmem:[%s3 + $0x180] sm:$0xf] %vm2442, %v2200
  %2540 = vst.msk [vmem:[%s3 + $0x184] sm:$0xf] %vm2442, %v2201
  %2541 = vst.msk [vmem:[%s3 + $0x188] sm:$0xf] %vm2442, %v2202
  %2542 = vst.msk [vmem:[%s3 + $0x18c] sm:$0xf] %vm2442, %v2203
  %2543 = vst.msk [vmem:[%s3 + $0x190] sm:$0xf] %vm2442, %v2204
  %2544 = vst.msk [vmem:[%s3 + $0x194] sm:$0xf] %vm2442, %v2205
  %2545 = vst.msk [vmem:[%s3 + $0x198] sm:$0xf] %vm2442, %v2206
  %2546 = vst.msk [vmem:[%s3 + $0x19c] sm:$0xf] %vm2442, %v2207
  %2547 = vst.msk [vmem:[%s3 + $0x1a0] sm:$0xf] %vm2442, %v2208
  %2548 = vst.msk [vmem:[%s3 + $0x1a4] sm:$0xf] %vm2442, %v2209
  %2549 = vst.msk [vmem:[%s3 + $0x1a8] sm:$0xf] %vm2442, %v2210
  %2550 = vst.msk [vmem:[%s3 + $0x1ac] sm:$0xf] %vm2442, %v2211
  %2551 = vst.msk [vmem:[%s3 + $0x1b0] sm:$0xf] %vm2442, %v2212
  %2552 = vst.msk [vmem:[%s3 + $0x1b4] sm:$0xf] %vm2442, %v2213
  %2553 = vst.msk [vmem:[%s3 + $0x1b8] sm:$0xf] %vm2442, %v2214
  %2554 = vst.msk [vmem:[%s3 + $0x1bc] sm:$0xf] %vm2442, %v2215
  %2555 = vst.msk [vmem:[%s3 + $0x1c0] sm:$0xf] %vm2442, %v2216
  %2556 = vst.msk [vmem:[%s3 + $0x1c4] sm:$0xf] %vm2442, %v2217
  %2557 = vst.msk [vmem:[%s3 + $0x1c8] sm:$0xf] %vm2442, %v2218
  %2558 = vst.msk [vmem:[%s3 + $0x1cc] sm:$0xf] %vm2442, %v2219
  %2559 = vst.msk [vmem:[%s3 + $0x1d0] sm:$0xf] %vm2442, %v2220
  %2560 = vst.msk [vmem:[%s3 + $0x1d4] sm:$0xf] %vm2442, %v2221
  %2561 = vst.msk [vmem:[%s3 + $0x1d8] sm:$0xf] %vm2442, %v2222
  %2562 = vst.msk [vmem:[%s3 + $0x1dc] sm:$0xf] %vm2442, %v2223
  %2563 = vst.msk [vmem:[%s3 + $0x1e0] sm:$0xf] %vm2442, %v2224
  %2564 = vst.msk [vmem:[%s3 + $0x1e4] sm:$0xf] %vm2442, %v2225
  %2565 = vst.msk [vmem:[%s3 + $0x1e8] sm:$0xf] %vm2442, %v2226
  %2566 = vst.msk [vmem:[%s3 + $0x1ec] sm:$0xf] %vm2442, %v2227
  %2567 = vst.msk [vmem:[%s3 + $0x1f0] sm:$0xf] %vm2442, %v2228
  %2568 = vst.msk [vmem:[%s3 + $0x1f4] sm:$0xf] %vm2442, %v2229
  %2569 = vst.msk [vmem:[%s3 + $0x1f8] sm:$0xf] %vm2442, %v2230
  %2570 = vst.msk [vmem:[%s3 + $0x1fc] sm:$0xf] %vm2442, %v2231
  %2571 = vst.msk [vmem:[%s3 + $0x200] sm:$0xf] %vm2442, %v2232
  %2572 = vst.msk [vmem:[%s3 + $0x204] sm:$0xf] %vm2442, %v2233
  %2573 = vst.msk [vmem:[%s3 + $0x208] sm:$0xf] %vm2442, %v2234
  %2574 = vst.msk [vmem:[%s3 + $0x20c] sm:$0xf] %vm2442, %v2235
  %2575 = vst.msk [vmem:[%s3 + $0x210] sm:$0xf] %vm2442, %v2236
  %2576 = vst.msk [vmem:[%s3 + $0x214] sm:$0xf] %vm2442, %v2237
  %2577 = vst.msk [vmem:[%s3 + $0x218] sm:$0xf] %vm2442, %v2238
  %2578 = vst.msk [vmem:[%s3 + $0x21c] sm:$0xf] %vm2442, %v2239
  %2579 = vst.msk [vmem:[%s3 + $0x220] sm:$0xf] %vm2442, %v2240
  %2580 = vst.msk [vmem:[%s3 + $0x224] sm:$0xf] %vm2442, %v2241
  %2581 = vst.msk [vmem:[%s3 + $0x228] sm:$0xf] %vm2442, %v2242
  %2582 = vst.msk [vmem:[%s3 + $0x22c] sm:$0xf] %vm2442, %v2243
  %2583 = vst.msk [vmem:[%s3 + $0x230] sm:$0xf] %vm2442, %v2244
  %2584 = vst.msk [vmem:[%s3 + $0x234] sm:$0xf] %vm2442, %v2245
  %2585 = vst.msk [vmem:[%s3 + $0x238] sm:$0xf] %vm2442, %v2246
  %2586 = vst.msk [vmem:[%s3 + $0x23c] sm:$0xf] %vm2442, %v2247
  %2587 = vst.msk [vmem:[%s3 + $0x240] sm:$0xf] %vm2442, %v2248
  %2588 = vst.msk [vmem:[%s3 + $0x244] sm:$0xf] %vm2442, %v2249
  %2589 = vst.msk [vmem:[%s3 + $0x248] sm:$0xf] %vm2442, %v2250
  %2590 = vst.msk [vmem:[%s3 + $0x24c] sm:$0xf] %vm2442, %v2251
  %2591 = vst.msk [vmem:[%s3 + $0x250] sm:$0xf] %vm2442, %v2252
  %2592 = vst.msk [vmem:[%s3 + $0x254] sm:$0xf] %vm2442, %v2253
  %2593 = vst.msk [vmem:[%s3 + $0x258] sm:$0xf] %vm2442, %v2254
  %2594 = vst.msk [vmem:[%s3 + $0x25c] sm:$0xf] %vm2442, %v2255
  %2595 = vst.msk [vmem:[%s3 + $0x260] sm:$0xf] %vm2442, %v2256
  %2596 = vst.msk [vmem:[%s3 + $0x264] sm:$0xf] %vm2442, %v2257
  %2597 = vst.msk [vmem:[%s3 + $0x268] sm:$0xf] %vm2442, %v2258
  %2598 = vst.msk [vmem:[%s3 + $0x26c] sm:$0xf] %vm2442, %v2259
  %2599 = vst.msk [vmem:[%s3 + $0x270] sm:$0xf] %vm2442, %v2260
  %2600 = vst.msk [vmem:[%s3 + $0x274] sm:$0xf] %vm2442, %v2261
  %2601 = vst.msk [vmem:[%s3 + $0x278] sm:$0xf] %vm2442, %v2262
  %2602 = vst.msk [vmem:[%s3 + $0x27c] sm:$0xf] %vm2442, %v2263
  %2603 = vst.msk [vmem:[%s3 + $0x280] sm:$0xf] %vm2442, %v2264
  %2604 = vst.msk [vmem:[%s3 + $0x284] sm:$0xf] %vm2442, %v2265
  %2605 = vst.msk [vmem:[%s3 + $0x288] sm:$0xf] %vm2442, %v2266
  %2606 = vst.msk [vmem:[%s3 + $0x28c] sm:$0xf] %vm2442, %v2267
  %2607 = vst.msk [vmem:[%s3 + $0x290] sm:$0xf] %vm2442, %v2268
  %2608 = vst.msk [vmem:[%s3 + $0x294] sm:$0xf] %vm2442, %v2269
  %2609 = vst.msk [vmem:[%s3 + $0x298] sm:$0xf] %vm2442, %v2270
  %2610 = vst.msk [vmem:[%s3 + $0x29c] sm:$0xf] %vm2442, %v2271
  %2611 = vst.msk [vmem:[%s3 + $0x2a0] sm:$0xf] %vm2442, %v2272
  // Predicated region
  $region14: #{clasificador_conv_forward.6} parent=0 // pred_check
    _
  $region15: #{clasificador_conv_forward.6} parent=0 // pred_check_branch
    %2613 = sbr.rel (0) target = $region17
  $region16: #{clasificador_conv_forward.6} parent=0 // pred_region
    _
  $region17: #{clasificador_conv_forward.6} parent=0 // pred_fallthru
    _
  // Predicated region
  $region18: #{clasificador_conv_forward.6} parent=0 // pred_check
    _
  $region19: #{clasificador_conv_forward.6} parent=0 // pred_check_branch
    %2615 = sbr.rel (0) target = $region21
  $region20: #{clasificador_conv_forward.6} parent=0 // pred_region
    _
  $region21: #{clasificador_conv_forward.6} parent=0 // pred_fallthru
    _

// kernel: clasificador_conv_forward.8
$region0: #{clasificador_conv_forward.8}
  #allocation0 [shape = 'u32[]', space=smem, size = 0x4, offset = 0x4, fixed_abs, tag = 'smem constant byte address 0x4 - core index']
  #allocation1 [shape = 'u32[144,128]{1,0:T(1,128)}', space=vmem, size = 0x12000, scoped, tag = 'internal scratch']
  %s0 = inlined_call_operand.vmem [shape: bf16[248,144], index: 0, kind: input, shape index: {}]
  %s1 = inlined_call_operand.vmem [shape: bf16[144,32], index: 1, kind: input, shape index: {}]
  %s2 = inlined_call_operand.vmem [shape: f32[1,32], index: 2, kind: input, shape index: {}]
  %s3 = inlined_call_operand.vmem [shape: bf16[248,32], index: 3, kind: output, shape index: {}]
  %s4 = sld [smem:[#allocation0]]
  $region22: #{clasificador_conv_forward.8} parent=0
    _
  %s6 = ssub.s32 1, %s4
  %s7 = scalar_select 0, %s6, %s4
  // Predicated region
  $region2: #{clasificador_conv_forward.8} parent=0 // pred_check
    _
  $region3: #{clasificador_conv_forward.8} parent=0 // pred_check_branch
    %9 = sbr.rel (0) target = $region5
  $region4: #{clasificador_conv_forward.8} parent=0 // pred_region
    _
  $region5: #{clasificador_conv_forward.8} parent=0 // pred_fallthru
    _
  // Predicated region
  $region6: #{clasificador_conv_forward.8} parent=0 // pred_check
    _
  $region7: #{clasificador_conv_forward.8} parent=0 // pred_check_branch
    %11 = sbr.rel (0) target = $region9
  $region8: #{clasificador_conv_forward.8} parent=0 // pred_region
    _
  $region9: #{clasificador_conv_forward.8} parent=0 // pred_fallthru
    _
  // Predicated region
  $region10: #{clasificador_conv_forward.8} parent=0 // pred_check
    _
  $region11: #{clasificador_conv_forward.8} parent=0 // pred_check_branch
    %13 = sbr.rel (0) target = $region13
  $region12: #{clasificador_conv_forward.8} parent=0 // pred_region
    _
  $region13: #{clasificador_conv_forward.8} parent=0 // pred_fallthru
    _
  %v15 = vld [vmem:[%s0] sm:$0xff]
  %v16 = vld [vmem:[%s0 + $0x8] sm:$0xff]
  %v17 = vld [vmem:[%s0 + $0x10] sm:$0xff]
  %v18 = vld [vmem:[%s0 + $0x18] sm:$0xff]
  %v19 = vld [vmem:[%s0 + $0x20] sm:$0xff]
  %v20 = vld [vmem:[%s0 + $0x28] sm:$0xff]
  %v21 = vld [vmem:[%s0 + $0x30] sm:$0xff]
  %v22 = vld [vmem:[%s0 + $0x38] sm:$0xff]
  %v23 = vld [vmem:[%s0 + $0x40] sm:$0xff]
  %v24 = vld [vmem:[%s0 + $0x48] sm:$0xff]
  %v25 = vld [vmem:[%s0 + $0x50] sm:$0xff]
  %v26 = vld [vmem:[%s0 + $0x58] sm:$0xff]
  %v27 = vld [vmem:[%s0 + $0x60] sm:$0xff]
  %v28 = vld [vmem:[%s0 + $0x68] sm:$0xff]
  %v29 = vld [vmem:[%s0 + $0x70] sm:$0xff]
  %v30 = vld [vmem:[%s0 + $0x78] sm:$0xff]
  %v31 = vld [vmem:[%s0 + $0x80] sm:$0xff]
  %v32 = vld [vmem:[%s0 + $0x88] sm:$0xff]
  %v33 = vld [vmem:[%s0 + $0x90] sm:$0xff]
  %v34 = vld [vmem:[%s0 + $0x98] sm:$0xff]
  %v35 = vld [vmem:[%s0 + $0xa0] sm:$0xff]
  %v36 = vld [vmem:[%s0 + $0xa8] sm:$0xff]
  %v37 = vld [vmem:[%s0 + $0xb0] sm:$0xff]
  %v38 = vld [vmem:[%s0 + $0xb8] sm:$0xff]
  %v39 = vld [vmem:[%s0 + $0xc0] sm:$0xff]
  %v40 = vld [vmem:[%s0 + $0xc8] sm:$0xff]
  %v41 = vld [vmem:[%s0 + $0xd0] sm:$0xff]
  %v42 = vld [vmem:[%s0 + $0xd8] sm:$0xff]
  %v43 = vld [vmem:[%s0 + $0xe0] sm:$0xff]
  %v44 = vld [vmem:[%s0 + $0xe8] sm:$0xff]
  %v45 = vld [vmem:[%s0 + $0xf0] sm:$0xff]
  %v46 = vld [vmem:[%s1] sm:$0xf]
  %v47 = vld [vmem:[%s1 + $0x4] sm:$0xf]
  %v48 = vld [vmem:[%s1 + $0x8] sm:$0xf]
  %v49 = vld [vmem:[%s1 + $0xc] sm:$0xf]
  %v50 = vld [vmem:[%s1 + $0x10] sm:$0xf]
  %v51 = vld [vmem:[%s1 + $0x14] sm:$0xf]
  %v52 = vld [vmem:[%s1 + $0x18] sm:$0xf]
  %v53 = vld [vmem:[%s1 + $0x1c] sm:$0xf]
  %v54 = vld [vmem:[%s1 + $0x20] sm:$0xf]
  %v55 = vld [vmem:[%s1 + $0x24] sm:$0xf]
  %v56 = vld [vmem:[%s1 + $0x28] sm:$0xf]
  %v57 = vld [vmem:[%s1 + $0x2c] sm:$0xf]
  %v58 = vld [vmem:[%s1 + $0x30] sm:$0xf]
  %v59 = vld [vmem:[%s1 + $0x34] sm:$0xf]
  %v60 = vld [vmem:[%s1 + $0x38] sm:$0xf]
  %v61 = vld [vmem:[%s1 + $0x3c] sm:$0xf]
  %v62 = vld [vmem:[%s1 + $0x40] sm:$0xf]
  %v63 = vld [vmem:[%s1 + $0x44] sm:$0xf]
  %v64 = vld [vmem:[%s2] sm:$0x1]
  %v66 = vlaneseq
  %v67 = vshrl.u32 %v66, 7
  %v68 = vsub.s32 0, %v67
  %v69 = vrot.slane %v64, %v68
  %v102 = vunpack.c.l.b16 %v15
  %v103 = vunpack.c.h.b16 %v15
  %v104 = vunpack.c.l.b16 %v16
  %v105 = vunpack.c.h.b16 %v16
  %v106 = vunpack.c.l.b16 %v17
  %v107 = vunpack.c.h.b16 %v17
  %v108 = vunpack.c.l.b16 %v18
  %v109 = vunpack.c.h.b16 %v18
  %v110 = vunpack.c.l.b16 %v19
  %v111 = vunpack.c.h.b16 %v19
  %v112 = vunpack.c.l.b16 %v20
  %v113 = vunpack.c.h.b16 %v20
  %v114 = vunpack.c.l.b16 %v21
  %v115 = vunpack.c.h.b16 %v21
  %v116 = vunpack.c.l.b16 %v22
  %v117 = vunpack.c.h.b16 %v22
  %v118 = vunpack.c.l.b16 %v23
  %v119 = vunpack.c.h.b16 %v23
  %v120 = vunpack.c.l.b16 %v24
  %v121 = vunpack.c.h.b16 %v24
  %v122 = vunpack.c.l.b16 %v25
  %v123 = vunpack.c.h.b16 %v25
  %v124 = vunpack.c.l.b16 %v26
  %v125 = vunpack.c.h.b16 %v26
  %v126 = vunpack.c.l.b16 %v27
  %v127 = vunpack.c.h.b16 %v27
  %v128 = vunpack.c.l.b16 %v28
  %v129 = vunpack.c.h.b16 %v28
  %v130 = vunpack.c.l.b16 %v29
  %v131 = vunpack.c.h.b16 %v29
  %v132 = vunpack.c.l.b16 %v30
  %v133 = vunpack.c.h.b16 %v30
  %v134 = vunpack.c.l.b16 %v31
  %v135 = vunpack.c.h.b16 %v31
  %v136 = vunpack.c.l.b16 %v32
  %v137 = vunpack.c.h.b16 %v32
  %v138 = vunpack.c.l.b16 %v33
  %v139 = vunpack.c.h.b16 %v33
  %v140 = vunpack.c.l.b16 %v34
  %v141 = vunpack.c.h.b16 %v34
  %v142 = vunpack.c.l.b16 %v35
  %v143 = vunpack.c.h.b16 %v35
  %v144 = vunpack.c.l.b16 %v36
  %v145 = vunpack.c.h.b16 %v36
  %v146 = vunpack.c.l.b16 %v37
  %v147 = vunpack.c.h.b16 %v37
  %v148 = vunpack.c.l.b16 %v38
  %v149 = vunpack.c.h.b16 %v38
  %v150 = vunpack.c.l.b16 %v39
  %v151 = vunpack.c.h.b16 %v39
  %v152 = vunpack.c.l.b16 %v40
  %v153 = vunpack.c.h.b16 %v40
  %v154 = vunpack.c.l.b16 %v41
  %v155 = vunpack.c.h.b16 %v41
  %v156 = vunpack.c.l.b16 %v42
  %v157 = vunpack.c.h.b16 %v42
  %v158 = vunpack.c.l.b16 %v43
  %v159 = vunpack.c.h.b16 %v43
  %v160 = vunpack.c.l.b16 %v44
  %v161 = vunpack.c.h.b16 %v44
  %v162 = vunpack.c.l.b16 %v45
  %v163 = vunpack.c.h.b16 %v45
  %v164 = vpack.c.b16 %v104, %v102
  %v165 = vpack.c.b16 %v105, %v103
  %v166 = vpack.c.b16 %v108, %v106
  %v167 = vpack.c.b16 %v109, %v107
  %v168 = vpack.c.b16 %v112, %v110
  %v169 = vpack.c.b16 %v113, %v111
  %v170 = vpack.c.b16 %v116, %v114
  %v171 = vpack.c.b16 %v117, %v115
  %v172 = vpack.c.b16 %v120, %v118
  %v173 = vpack.c.b16 %v121, %v119
  %v174 = vpack.c.b16 %v124, %v122
  %v175 = vpack.c.b16 %v125, %v123
  %v176 = vpack.c.b16 %v128, %v126
  %v177 = vpack.c.b16 %v129, %v127
  %v178 = vpack.c.b16 %v132, %v130
  %v179 = vpack.c.b16 %v133, %v131
  %v180 = vpack.c.b16 %v136, %v134
  %v181 = vpack.c.b16 %v137, %v135
  %v182 = vpack.c.b16 %v140, %v138
  %v183 = vpack.c.b16 %v141, %v139
  %v184 = vpack.c.b16 %v144, %v142
  %v185 = vpack.c.b16 %v145, %v143
  %v186 = vpack.c.b16 %v148, %v146
  %v187 = vpack.c.b16 %v149, %v147
  %v188 = vpack.c.b16 %v152, %v150
  %v189 = vpack.c.b16 %v153, %v151
  %v190 = vpack.c.b16 %v156, %v154
  %v191 = vpack.c.b16 %v157, %v155
  %v192 = vpack.c.b16 %v160, %v158
  %v193 = vpack.c.b16 %v161, %v159
  %v194 = vpack.c.b16 %v162, %v162
  %v195 = vpack.c.b16 %v163, %v163
  %v230 = vunpack.c.l.b16 %v46
  %v231 = vunpack.c.l.b16 %v47
  %v232 = vunpack.c.l.b16 %v48
  %v233 = vunpack.c.l.b16 %v49
  %v234 = vunpack.c.l.b16 %v50
  %v235 = vunpack.c.l.b16 %v51
  %v236 = vunpack.c.l.b16 %v52
  %v237 = vunpack.c.l.b16 %v53
  %v238 = vunpack.c.l.b16 %v54
  %v239 = vunpack.c.l.b16 %v55
  %v240 = vunpack.c.l.b16 %v56
  %v241 = vunpack.c.l.b16 %v57
  %v242 = vunpack.c.l.b16 %v58
  %v243 = vunpack.c.l.b16 %v59
  %v244 = vunpack.c.l.b16 %v60
  %v245 = vunpack.c.l.b16 %v61
  %v246 = vunpack.c.l.b16 %v62
  %v247 = vunpack.c.l.b16 %v63
  %v248 = vpack.c.b16 %v231, %v230
  %v249 = vpack.c.b16 %v233, %v232
  %v250 = vpack.c.b16 %v235, %v234
  %v251 = vpack.c.b16 %v237, %v236
  %v252 = vpack.c.b16 %v239, %v238
  %v253 = vpack.c.b16 %v241, %v240
  %v254 = vpack.c.b16 %v243, %v242
  %v255 = vpack.c.b16 %v245, %v244
  %v256 = vpack.c.b16 %v247, %v246
  %vm266 = vcmask 130048
  %v268 = vsel %vm266, %v165, 0
  %v271 = vsel %vm266, %v167, 0
  %v274 = vsel %vm266, %v169, 0
  %v277 = vsel %vm266, %v171, 0
  %v280 = vsel %vm266, %v173, 0
  %v283 = vsel %vm266, %v175, 0
  %v286 = vsel %vm266, %v177, 0
  %v289 = vsel %vm266, %v179, 0
  %v292 = vsel %vm266, %v181, 0
  %v295 = vsel %vm266, %v183, 0
  %v298 = vsel %vm266, %v185, 0
  %v301 = vsel %vm266, %v187, 0
  %v304 = vsel %vm266, %v189, 0
  %v307 = vsel %vm266, %v191, 0
  %v310 = vsel %vm266, %v193, 0
  %v313 = vsel %vm266, %v195, 0
  %315 = vmatprep.subr.bf16.mxu0 0
  %316 = vmatpush1.bf16.msra.mxu0 %v255
  %317 = vmatprep.subr.bf16.mxu0 0
  %318 = vmatpush1.bf16.msra.mxu0 %v254
  %319 = vmatprep.subr.bf16.mxu0 0
  %320 = vmatpush1.bf16.msra.mxu0 %v253
  %321 = vmatprep.subr.bf16.mxu0 0
  %322 = vmatpush1.bf16.msra.mxu0 %v252
  %323 = vmatprep.subr.bf16.mxu0 0
  %324 = vmatpush1.bf16.msra.mxu0 %v251
  %325 = vmatprep.subr.bf16.mxu0 0
  %326 = vmatpush1.bf16.msra.mxu0 %v250
  %327 = vmatprep.subr.bf16.mxu0 0
  %328 = vmatpush1.bf16.msra.mxu0 %v249
  %329 = vmatprep.subr.bf16.mxu0 0
  %330 = vmatpush1.bf16.msra.mxu0 %v248
  %331 = vmatprep.subr.bf16.mxu0 0
  %332 = vmatpush2.bf16.msra.mxu0 0
  %333 = vmatprep.subr.bf16.mxu0 0
  %334 = vmatpush2.bf16.msra.mxu0 0
  %335 = vmatprep.subr.bf16.mxu0 0
  %336 = vmatpush2.bf16.msra.mxu0 0
  %337 = vmatprep.subr.bf16.mxu0 0
  %338 = vmatpush2.bf16.msra.mxu0 0
  %339 = vmatprep.subr.bf16.mxu0 0
  %340 = vmatpush2.bf16.msra.mxu0 0
  %341 = vmatprep.subr.bf16.mxu0 0
  %342 = vmatpush2.bf16.msra.mxu0 0
  %343 = vmatprep.subr.bf16.mxu0 0
  %344 = vmatpush2.bf16.msra.mxu0 0
  %345 = vmatprep.subr.bf16.mxu0 0
  %346 = vmatpush2.bf16.msra.mxu0 %v256
  %347 = vmatprep.mubr.bf16.mxu0 %v268
  %348 = vmatmul.mubr.bf16.gmra.mxu0 %v164
  %v349 = vpop.f32.mrf.mxu0
  %v350 = vadd.f32 %v69, %v349
  %v351 = vpop.f32.mrf.mxu0
  %v352 = vpop.f32.mrf.mxu0
  %v353 = vadd.f32 %v69, %v352
  %v354 = vpop.f32.mrf.mxu0
  %355 = vmatprep.mubr.bf16.mxu0 %v271
  %356 = vmatmul.mubr.bf16.gmra.mxu0 %v166
  %v357 = vpop.f32.mrf.mxu0
  %v358 = vadd.f32 %v69, %v357
  %v359 = vpop.f32.mrf.mxu0
  %v360 = vpop.f32.mrf.mxu0
  %v361 = vadd.f32 %v69, %v360
  %v362 = vpop.f32.mrf.mxu0
  %363 = vmatprep.mubr.bf16.mxu0 %v274
  %364 = vmatmul.mubr.bf16.gmra.mxu0 %v168
  %v365 = vpop.f32.mrf.mxu0
  %v366 = vadd.f32 %v69, %v365
  %v367 = vpop.f32.mrf.mxu0
  %v368 = vpop.f32.mrf.mxu0
  %v369 = vadd.f32 %v69, %v368
  %v370 = vpop.f32.mrf.mxu0
  %371 = vmatprep.mubr.bf16.mxu0 %v277
  %372 = vmatmul.mubr.bf16.gmra.mxu0 %v170
  %v373 = vpop.f32.mrf.mxu0
  %v374 = vadd.f32 %v69, %v373
  %v375 = vpop.f32.mrf.mxu0
  %v376 = vpop.f32.mrf.mxu0
  %v377 = vadd.f32 %v69, %v376
  %v378 = vpop.f32.mrf.mxu0
  %379 = vmatprep.mubr.bf16.mxu0 %v280
  %380 = vmatmul.mubr.bf16.gmra.mxu0 %v172
  %v381 = vpop.f32.mrf.mxu0
  %v382 = vadd.f32 %v69, %v381
  %v383 = vpop.f32.mrf.mxu0
  %v384 = vpop.f32.mrf.mxu0
  %v385 = vadd.f32 %v69, %v384
  %v386 = vpop.f32.mrf.mxu0
  %387 = vmatprep.mubr.bf16.mxu0 %v283
  %388 = vmatmul.mubr.bf16.gmra.mxu0 %v174
  %v389 = vpop.f32.mrf.mxu0
  %v390 = vadd.f32 %v69, %v389
  %v391 = vpop.f32.mrf.mxu0
  %v392 = vpop.f32.mrf.mxu0
  %v393 = vadd.f32 %v69, %v392
  %v394 = vpop.f32.mrf.mxu0
  %395 = vmatprep.mubr.bf16.mxu0 %v286
  %396 = vmatmul.mubr.bf16.gmra.mxu0 %v176
  %v397 = vpop.f32.mrf.mxu0
  %v398 = vadd.f32 %v69, %v397
  %v399 = vpop.f32.mrf.mxu0
  %v400 = vpop.f32.mrf.mxu0
  %v401 = vadd.f32 %v69, %v400
  %v402 = vpop.f32.mrf.mxu0
  %403 = vmatprep.mubr.bf16.mxu0 %v289
  %404 = vmatmul.mubr.bf16.gmra.mxu0 %v178
  %v405 = vpop.f32.mrf.mxu0
  %v406 = vadd.f32 %v69, %v405
  %v407 = vpop.f32.mrf.mxu0
  %v408 = vpop.f32.mrf.mxu0
  %v409 = vadd.f32 %v69, %v408
  %v410 = vpop.f32.mrf.mxu0
  %411 = vmatprep.mubr.bf16.mxu0 %v292
  %412 = vmatmul.mubr.bf16.gmra.mxu0 %v180
  %v413 = vpop.f32.mrf.mxu0
  %v414 = vadd.f32 %v69, %v413
  %v415 = vpop.f32.mrf.mxu0
  %v416 = vpop.f32.mrf.mxu0
  %v417 = vadd.f32 %v69, %v416
  %v418 = vpop.f32.mrf.mxu0
  %419 = vmatprep.mubr.bf16.mxu0 %v295
  %420 = vmatmul.mubr.bf16.gmra.mxu0 %v182
  %v421 = vpop.f32.mrf.mxu0
  %v422 = vadd.f32 %v69, %v421
  %v423 = vpop.f32.mrf.mxu0
  %v424 = vpop.f32.mrf.mxu0
  %v425 = vadd.f32 %v69, %v424
  %v426 = vpop.f32.mrf.mxu0
  %427 = vmatprep.mubr.bf16.mxu0 %v298
  %428 = vmatmul.mubr.bf16.gmra.mxu0 %v184
  %v429 = vpop.f32.mrf.mxu0
  %v430 = vadd.f32 %v69, %v429
  %v431 = vpop.f32.mrf.mxu0
  %v432 = vpop.f32.mrf.mxu0
  %v433 = vadd.f32 %v69, %v432
  %v434 = vpop.f32.mrf.mxu0
  %435 = vmatprep.mubr.bf16.mxu0 %v301
  %436 = vmatmul.mubr.bf16.gmra.mxu0 %v186
  %v437 = vpop.f32.mrf.mxu0
  %v438 = vadd.f32 %v69, %v437
  %v439 = vpop.f32.mrf.mxu0
  %v440 = vpop.f32.mrf.mxu0
  %v441 = vadd.f32 %v69, %v440
  %v442 = vpop.f32.mrf.mxu0
  %443 = vmatprep.mubr.bf16.mxu0 %v304
  %444 = vmatmul.mubr.bf16.gmra.mxu0 %v188
  %v445 = vpop.f32.mrf.mxu0
  %v446 = vadd.f32 %v69, %v445
  %v447 = vpop.f32.mrf.mxu0
  %v448 = vpop.f32.mrf.mxu0
  %v449 = vadd.f32 %v69, %v448
  %v450 = vpop.f32.mrf.mxu0
  %451 = vmatprep.mubr.bf16.mxu0 %v307
  %452 = vmatmul.mubr.bf16.gmra.mxu0 %v190
  %v453 = vpop.f32.mrf.mxu0
  %v454 = vadd.f32 %v69, %v453
  %v455 = vpop.f32.mrf.mxu0
  %v456 = vpop.f32.mrf.mxu0
  %v457 = vadd.f32 %v69, %v456
  %v458 = vpop.f32.mrf.mxu0
  %459 = vmatprep.mubr.bf16.mxu0 %v310
  %460 = vmatmul.mubr.bf16.gmra.mxu0 %v192
  %v461 = vpop.f32.mrf.mxu0
  %v462 = vadd.f32 %v69, %v461
  %v463 = vpop.f32.mrf.mxu0
  %v464 = vpop.f32.mrf.mxu0
  %v465 = vadd.f32 %v69, %v464
  %v466 = vpop.f32.mrf.mxu0
  %467 = vmatprep.mubr.bf16.mxu0 %v313
  %468 = vmatmul.mubr.bf16.gmra.mxu0 %v194
  %v469 = vpop.f32.mrf.mxu0
  %v470 = vadd.f32 %v69, %v469
  %v471 = vpop.f32.mrf.mxu0
  %v472 = vpop.f32.mrf.mxu0
  %v473 = vpop.f32.mrf.mxu0
  %474 = vdwg.mxu0
  %v475 = vmax.f32 %v350, 0.0
  %v476 = vmax.f32 %v353, 0.0
  %v477 = vmax.f32 %v358, 0.0
  %v478 = vmax.f32 %v361, 0.0
  %v479 = vmax.f32 %v366, 0.0
  %v480 = vmax.f32 %v369, 0.0
  %v481 = vmax.f32 %v374, 0.0
  %v482 = vmax.f32 %v377, 0.0
  %v483 = vmax.f32 %v382, 0.0
  %v484 = vmax.f32 %v385, 0.0
  %v485 = vmax.f32 %v390, 0.0
  %v486 = vmax.f32 %v393, 0.0
  %v487 = vmax.f32 %v398, 0.0
  %v488 = vmax.f32 %v401, 0.0
  %v489 = vmax.f32 %v406, 0.0
  %v490 = vmax.f32 %v409, 0.0
  %v491 = vmax.f32 %v414, 0.0
  %v492 = vmax.f32 %v417, 0.0
  %v493 = vmax.f32 %v422, 0.0
  %v494 = vmax.f32 %v425, 0.0
  %v495 = vmax.f32 %v430, 0.0
  %v496 = vmax.f32 %v433, 0.0
  %v497 = vmax.f32 %v438, 0.0
  %v498 = vmax.f32 %v441, 0.0
  %v499 = vmax.f32 %v446, 0.0
  %v500 = vmax.f32 %v449, 0.0
  %v501 = vmax.f32 %v454, 0.0
  %v502 = vmax.f32 %v457, 0.0
  %v503 = vmax.f32 %v462, 0.0
  %v504 = vmax.f32 %v465, 0.0
  %v505 = vmax.f32 %v470, 0.0
  %v506 = vpack.c.bf16 %v476, %v475
  %v507 = vpack.c.bf16 %v478, %v477
  %v508 = vpack.c.bf16 %v480, %v479
  %v509 = vpack.c.bf16 %v482, %v481
  %v510 = vpack.c.bf16 %v484, %v483
  %v511 = vpack.c.bf16 %v486, %v485
  %v512 = vpack.c.bf16 %v488, %v487
  %v513 = vpack.c.bf16 %v490, %v489
  %v514 = vpack.c.bf16 %v492, %v491
  %v515 = vpack.c.bf16 %v494, %v493
  %v516 = vpack.c.bf16 %v496, %v495
  %v517 = vpack.c.bf16 %v498, %v497
  %v518 = vpack.c.bf16 %v500, %v499
  %v519 = vpack.c.bf16 %v502, %v501
  %v520 = vpack.c.bf16 %v504, %v503
  %v521 = vpack.c.bf16 %v505, %v505
  %v538 = vunpack.c.l.b16 %v506
  %v539 = vunpack.c.h.b16 %v506
  %v540 = vunpack.c.l.b16 %v507
  %v541 = vunpack.c.h.b16 %v507
  %v542 = vunpack.c.l.b16 %v508
  %v543 = vunpack.c.h.b16 %v508
  %v544 = vunpack.c.l.b16 %v509
  %v545 = vunpack.c.h.b16 %v509
  %v546 = vunpack.c.l.b16 %v510
  %v547 = vunpack.c.h.b16 %v510
  %v548 = vunpack.c.l.b16 %v511
  %v549 = vunpack.c.h.b16 %v511
  %v550 = vunpack.c.l.b16 %v512
  %v551 = vunpack.c.h.b16 %v512
  %v552 = vunpack.c.l.b16 %v513
  %v553 = vunpack.c.h.b16 %v513
  %v554 = vunpack.c.l.b16 %v514
  %v555 = vunpack.c.h.b16 %v514
  %v556 = vunpack.c.l.b16 %v515
  %v557 = vunpack.c.h.b16 %v515
  %v558 = vunpack.c.l.b16 %v516
  %v559 = vunpack.c.h.b16 %v516
  %v560 = vunpack.c.l.b16 %v517
  %v561 = vunpack.c.h.b16 %v517
  %v562 = vunpack.c.l.b16 %v518
  %v563 = vunpack.c.h.b16 %v518
  %v564 = vunpack.c.l.b16 %v519
  %v565 = vunpack.c.h.b16 %v519
  %v566 = vunpack.c.l.b16 %v520
  %v567 = vunpack.c.h.b16 %v520
  %v568 = vunpack.c.l.b16 %v521
  %v569 = vpack.c.b16 %v538, %v538
  %v570 = vpack.c.b16 %v539, %v539
  %v571 = vpack.c.b16 %v540, %v540
  %v572 = vpack.c.b16 %v541, %v541
  %v573 = vpack.c.b16 %v542, %v542
  %v574 = vpack.c.b16 %v543, %v543
  %v575 = vpack.c.b16 %v544, %v544
  %v576 = vpack.c.b16 %v545, %v545
  %v577 = vpack.c.b16 %v546, %v546
  %v578 = vpack.c.b16 %v547, %v547
  %v579 = vpack.c.b16 %v548, %v548
  %v580 = vpack.c.b16 %v549, %v549
  %v581 = vpack.c.b16 %v550, %v550
  %v582 = vpack.c.b16 %v551, %v551
  %v583 = vpack.c.b16 %v552, %v552
  %v584 = vpack.c.b16 %v553, %v553
  %v585 = vpack.c.b16 %v554, %v554
  %v586 = vpack.c.b16 %v555, %v555
  %v587 = vpack.c.b16 %v556, %v556
  %v588 = vpack.c.b16 %v557, %v557
  %v589 = vpack.c.b16 %v558, %v558
  %v590 = vpack.c.b16 %v559, %v559
  %v591 = vpack.c.b16 %v560, %v560
  %v592 = vpack.c.b16 %v561, %v561
  %v593 = vpack.c.b16 %v562, %v562
  %v594 = vpack.c.b16 %v563, %v563
  %v595 = vpack.c.b16 %v564, %v564
  %v596 = vpack.c.b16 %v565, %v565
  %v597 = vpack.c.b16 %v566, %v566
  %v598 = vpack.c.b16 %v567, %v567
  %v599 = vpack.c.b16 %v568, %v568
  %vm631 = vcmask 257024
  %632 = vst.msk [vmem:[%s3] sm:$0xf] %vm631, %v569
  %633 = vst.msk [vmem:[%s3 + $0x4] sm:$0xf] %vm631, %v570
  %634 = vst.msk [vmem:[%s3 + $0x8] sm:$0xf] %vm631, %v571
  %635 = vst.msk [vmem:[%s3 + $0xc] sm:$0xf] %vm631, %v572
  %636 = vst.msk [vmem:[%s3 + $0x10] sm:$0xf] %vm631, %v573
  %637 = vst.msk [vmem:[%s3 + $0x14] sm:$0xf] %vm631, %v574
  %638 = vst.msk [vmem:[%s3 + $0x18] sm:$0xf] %vm631, %v575
  %639 = vst.msk [vmem:[%s3 + $0x1c] sm:$0xf] %vm631, %v576
  %640 = vst.msk [vmem:[%s3 + $0x20] sm:$0xf] %vm631, %v577
  %641 = vst.msk [vmem:[%s3 + $0x24] sm:$0xf] %vm631, %v578
  %642 = vst.msk [vmem:[%s3 + $0x28] sm:$0xf] %vm631, %v579
  %643 = vst.msk [vmem:[%s3 + $0x2c] sm:$0xf] %vm631, %v580
  %644 = vst.msk [vmem:[%s3 + $0x30] sm:$0xf] %vm631, %v581
  %645 = vst.msk [vmem:[%s3 + $0x34] sm:$0xf] %vm631, %v582
  %646 = vst.msk [vmem:[%s3 + $0x38] sm:$0xf] %vm631, %v583
  %647 = vst.msk [vmem:[%s3 + $0x3c] sm:$0xf] %vm631, %v584
  %648 = vst.msk [vmem:[%s3 + $0x40] sm:$0xf] %vm631, %v585
  %649 = vst.msk [vmem:[%s3 + $0x44] sm:$0xf] %vm631, %v586
  %650 = vst.msk [vmem:[%s3 + $0x48] sm:$0xf] %vm631, %v587
  %651 = vst.msk [vmem:[%s3 + $0x4c] sm:$0xf] %vm631, %v588
  %652 = vst.msk [vmem:[%s3 + $0x50] sm:$0xf] %vm631, %v589
  %653 = vst.msk [vmem:[%s3 + $0x54] sm:$0xf] %vm631, %v590
  %654 = vst.msk [vmem:[%s3 + $0x58] sm:$0xf] %vm631, %v591
  %655 = vst.msk [vmem:[%s3 + $0x5c] sm:$0xf] %vm631, %v592
  %656 = vst.msk [vmem:[%s3 + $0x60] sm:$0xf] %vm631, %v593
  %657 = vst.msk [vmem:[%s3 + $0x64] sm:$0xf] %vm631, %v594
  %658 = vst.msk [vmem:[%s3 + $0x68] sm:$0xf] %vm631, %v595
  %659 = vst.msk [vmem:[%s3 + $0x6c] sm:$0xf] %vm631, %v596
  %660 = vst.msk [vmem:[%s3 + $0x70] sm:$0xf] %vm631, %v597
  %661 = vst.msk [vmem:[%s3 + $0x74] sm:$0xf] %vm631, %v598
  %662 = vst.msk [vmem:[%s3 + $0x78] sm:$0xf] %vm631, %v599
  // Predicated region
  $region14: #{clasificador_conv_forward.8} parent=0 // pred_check
    _
  $region15: #{clasificador_conv_forward.8} parent=0 // pred_check_branch
    %664 = sbr.rel (0) target = $region17
  $region16: #{clasificador_conv_forward.8} parent=0 // pred_region
    _
  $region17: #{clasificador_conv_forward.8} parent=0 // pred_fallthru
    _
  // Predicated region
  $region18: #{clasificador_conv_forward.8} parent=0 // pred_check
    _
  $region19: #{clasificador_conv_forward.8} parent=0 // pred_check_branch
    %666 = sbr.rel (0) target = $region21
  $region20: #{clasificador_conv_forward.8} parent=0 // pred_region
    _
  $region21: #{clasificador_conv_forward.8} parent=0 // pred_fallthru
    _

// kernel: clasificador_conv_forward.7
$region0: #{clasificador_conv_forward.7}
  #allocation0 [shape = 'u32[]', space=smem, size = 0x4, offset = 0x4, fixed_abs, tag = 'smem constant byte address 0x4 - core index']
  #allocation1 [shape = 'u32[144,128]{1,0:T(1,128)}', space=vmem, size = 0x12000, scoped, tag = 'internal scratch']
  %s0 = inlined_call_operand.vmem [shape: bf16[2,26,416], index: 0, kind: input, shape index: {}]
  %s1 = inlined_call_operand.vmem [shape: bf16[416,208], index: 1, kind: input, shape index: {}]
  %s2 = inlined_call_operand.vmem [shape: bf16[416,208], index: 2, kind: input, shape index: {}]
  %s3 = inlined_call_operand.vmem [shape: bf16[2,13,208], index: 3, kind: output, shape index: {}]
  %s4 = sld [smem:[#allocation0]]
  $region22: #{clasificador_conv_forward.7} parent=0
    _
  %s6 = ssub.s32 1, %s4
  %s7 = scalar_select 0, %s6, %s4
  // Predicated region
  $region2: #{clasificador_conv_forward.7} parent=0 // pred_check
    _
  $region3: #{clasificador_conv_forward.7} parent=0 // pred_check_branch
    %9 = sbr.rel (0) target = $region5
  $region4: #{clasificador_conv_forward.7} parent=0 // pred_region
    _
  $region5: #{clasificador_conv_forward.7} parent=0 // pred_fallthru
    _
  // Predicated region
  $region6: #{clasificador_conv_forward.7} parent=0 // pred_check
    _
  $region7: #{clasificador_conv_forward.7} parent=0 // pred_check_branch
    %11 = sbr.rel (0) target = $region9
  $region8: #{clasificador_conv_forward.7} parent=0 // pred_region
    _
  $region9: #{clasificador_conv_forward.7} parent=0 // pred_fallthru
    _
  // Predicated region
  $region10: #{clasificador_conv_forward.7} parent=0 // pred_check
    _
  $region11: #{clasificador_conv_forward.7} parent=0 // pred_check_branch
    %13 = sbr.rel (0) target = $region13
  $region12: #{clasificador_conv_forward.7} parent=0 // pred_region
    _
  $region13: #{clasificador_conv_forward.7} parent=0 // pred_fallthru
    _
  %v15 = vld [vmem:[%s1] sm:$0xff]
  %v16 = vld [vmem:[%s1 + $0x8] sm:$0xff]
  %v17 = vld [vmem:[%s1 + $0x10] sm:$0xff]
  %v18 = vld [vmem:[%s1 + $0x18] sm:$0xff]
  %v19 = vld [vmem:[%s1 + $0x20] sm:$0xff]
  %v20 = vld [vmem:[%s1 + $0x28] sm:$0xff]
  %v21 = vld [vmem:[%s1 + $0x30] sm:$0xff]
  %v22 = vld [vmem:[%s1 + $0x38] sm:$0xff]
  %v23 = vld [vmem:[%s1 + $0x40] sm:$0xff]
  %v24 = vld [vmem:[%s1 + $0x48] sm:$0xff]
  %v25 = vld [vmem:[%s1 + $0x50] sm:$0xff]
  %v26 = vld [vmem:[%s1 + $0x58] sm:$0xff]
  %v27 = vld [vmem:[%s1 + $0x60] sm:$0xff]
  %v28 = vld [vmem:[%s1 + $0x68] sm:$0xff]
  %v29 = vld [vmem:[%s1 + $0x70] sm:$0xff]
  %v30 = vld [vmem:[%s1 + $0x78] sm:$0xff]
  %v31 = vld [vmem:[%s1 + $0x80] sm:$0xff]
  %v32 = vld [vmem:[%s1 + $0x88] sm:$0xff]
  %v33 = vld [vmem:[%s1 + $0x90] sm:$0xff]
  %v34 = vld [vmem:[%s1 + $0x98] sm:$0xff]
  %v35 = vld [vmem:[%s1 + $0xa0] sm:$0xff]
  %v36 = vld [vmem:[%s1 + $0xa8] sm:$0xff]
  %v37 = vld [vmem:[%s1 + $0xb0] sm:$0xff]
  %v38 = vld [vmem:[%s1 + $0xb8] sm:$0xff]
  %v39 = vld [vmem:[%s1 + $0xc0] sm:$0xff]
  %v40 = vld [vmem:[%s1 + $0xc8] sm:$0xff]
  %v41 = vld [vmem:[%s1 + $0xd0] sm:$0xff]
  %v42 = vld [vmem:[%s1 + $0xd8] sm:$0xff]
  %v43 = vld [vmem:[%s1 + $0xe0] sm:$0xff]
  %v44 = vld [vmem:[%s1 + $0xe8] sm:$0xff]
  %v45 = vld [vmem:[%s1 + $0xf0] sm:$0xff]
  %v46 = vld [vmem:[%s1 + $0xf8] sm:$0xff]
  %v47 = vld [vmem:[%s1 + $0x100] sm:$0xff]
  %v48 = vld [vmem:[%s1 + $0x108] sm:$0xff]
  %v49 = vld [vmem:[%s1 + $0x110] sm:$0xff]
  %v50 = vld [vmem:[%s1 + $0x118] sm:$0xff]
  %v51 = vld [vmem:[%s1 + $0x120] sm:$0xff]
  %v52 = vld [vmem:[%s1 + $0x128] sm:$0xff]
  %v53 = vld [vmem:[%s1 + $0x130] sm:$0xff]
  %v54 = vld [vmem:[%s1 + $0x138] sm:$0xff]
  %v55 = vld [vmem:[%s1 + $0x140] sm:$0xff]
  %v56 = vld [vmem:[%s1 + $0x148] sm:$0xff]
  %v57 = vld [vmem:[%s1 + $0x150] sm:$0xff]
  %v58 = vld [vmem:[%s1 + $0x158] sm:$0xff]
  %v59 = vld [vmem:[%s1 + $0x160] sm:$0xff]
  %v60 = vld [vmem:[%s1 + $0x168] sm:$0xff]
  %v61 = vld [vmem:[%s1 + $0x170] sm:$0xff]
  %v62 = vld [vmem:[%s1 + $0x178] sm:$0xff]
  %v63 = vld [vmem:[%s1 + $0x180] sm:$0xff]
  %v64 = vld [vmem:[%s1 + $0x188] sm:$0xff]
  %v65 = vld [vmem:[%s1 + $0x190] sm:$0xff]
  %v66 = vld [vmem:[%s1 + $0x198] sm:$0xff]
  %v67 = vld [vmem:[%s2] sm:$0xff]
  %v68 = vld [vmem:[%s2 + $0x8] sm:$0xff]
  %v69 = vld [vmem:[%s2 + $0x10] sm:$0xff]
  %v70 = vld [vmem:[%s2 + $0x18] sm:$0xff]
  %v71 = vld [vmem:[%s2 + $0x20] sm:$0xff]
  %v72 = vld [vmem:[%s2 + $0x28] sm:$0xff]
  %v73 = vld [vmem:[%s2 + $0x30] sm:$0xff]
  %v74 = vld [vmem:[%s2 + $0x38] sm:$0xff]
  %v75 = vld [vmem:[%s2 + $0x40] sm:$0xff]
  %v76 = vld [vmem:[%s2 + $0x48] sm:$0xff]
  %v77 = vld [vmem:[%s2 + $0x50] sm:$0xff]
  %v78 = vld [vmem:[%s2 + $0x58] sm:$0xff]
  %v79 = vld [vmem:[%s2 + $0x60] sm:$0xff]
  %v80 = vld [vmem:[%s2 + $0x68] sm:$0xff]
  %v81 = vld [vmem:[%s2 + $0x70] sm:$0xff]
  %v82 = vld [vmem:[%s2 + $0x78] sm:$0xff]
  %v83 = vld [vmem:[%s2 + $0x80] sm:$0xff]
  %v84 = vld [vmem:[%s2 + $0x88] sm:$0xff]
  %v85 = vld [vmem:[%s2 + $0x90] sm:$0xff]
  %v86 = vld [vmem:[%s2 + $0x98] sm:$0xff]
  %v87 = vld [vmem:[%s2 + $0xa0] sm:$0xff]
  %v88 = vld [vmem:[%s2 + $0xa8] sm:$0xff]
  %v89 = vld [vmem:[%s2 + $0xb0] sm:$0xff]
  %v90 = vld [vmem:[%s2 + $0xb8] sm:$0xff]
  %v91 = vld [vmem:[%s2 + $0xc0] sm:$0xff]
  %v92 = vld [vmem:[%s2 + $0xc8] sm:$0xff]
  %v93 = vld [vmem:[%s2 + $0xd0] sm:$0xff]
  %v94 = vld [vmem:[%s2 + $0xd8] sm:$0xff]
  %v95 = vld [vmem:[%s2 + $0xe0] sm:$0xff]
  %v96 = vld [vmem:[%s2 + $0xe8] sm:$0xff]
  %v97 = vld [vmem:[%s2 + $0xf0] sm:$0xff]
  %v98 = vld [vmem:[%s2 + $0xf8] sm:$0xff]
  %v99 = vld [vmem:[%s2 + $0x100] sm:$0xff]
  %v100 = vld [vmem:[%s2 + $0x108] sm:$0xff]
  %v101 = vld [vmem:[%s2 + $0x110] sm:$0xff]
  %v102 = vld [vmem:[%s2 + $0x118] sm:$0xff]
  %v103 = vld [vmem:[%s2 + $0x120] sm:$0xff]
  %v104 = vld [vmem:[%s2 + $0x128] sm:$0xff]
  %v105 = vld [vmem:[%s2 + $0x130] sm:$0xff]
  %v106 = vld [vmem:[%s2 + $0x138] sm:$0xff]
  %v107 = vld [vmem:[%s2 + $0x140] sm:$0xff]
  %v108 = vld [vmem:[%s2 + $0x148] sm:$0xff]
  %v109 = vld [vmem:[%s2 + $0x150] sm:$0xff]
  %v110 = vld [vmem:[%s2 + $0x158] sm:$0xff]
  %v111 = vld [vmem:[%s2 + $0x160] sm:$0xff]
  %v112 = vld [vmem:[%s2 + $0x168] sm:$0xff]
  %v113 = vld [vmem:[%s2 + $0x170] sm:$0xff]
  %v114 = vld [vmem:[%s2 + $0x178] sm:$0xff]
  %v115 = vld [vmem:[%s2 + $0x180] sm:$0xff]
  %v116 = vld [vmem:[%s2 + $0x188] sm:$0xff]
  %v117 = vld [vmem:[%s2 + $0x190] sm:$0xff]
  %v118 = vld [vmem:[%s2 + $0x198] sm:$0xff]
  %v119 = vld [vmem:[%s0] sm:$0x11]
  %v120 = vld [vmem:[%s0 + $0x8] sm:$0x11]
  %v121 = vld [vmem:[%s0 + $0x40] sm:$0x11]
  %v122 = vld [vmem:[%s0 + $0x48] sm:$0x11]
  %v124 = vshrl.u32 %v119, 16
  %v126 = vrot.slane %v124, 4
  %v127 = vrot.slane %v126, 4
  %v129 = vshrl.u32 %v120, 16
  %v131 = vrot.slane %v129, 4
  %v132 = vrot.slane %v131, 4
  %v134 = vshrl.u32 %v121, 16
  %v136 = vrot.slane %v134, 4
  %v137 = vrot.slane %v136, 4
  %v139 = vshrl.u32 %v122, 16
  %v141 = vrot.slane %v139, 4
  %v142 = vrot.slane %v141, 4
  %v147 = vmax.bf16 %v119, %v127
  %v148 = vmax.bf16 %v120, %v132
  %v149 = vmax.bf16 %v121, %v137
  %v150 = vmax.bf16 %v122, %v142
  %v155 = vunpack.c.l.b16 %v147
  %v156 = vunpack.c.h.b16 %v147
  %v157 = vunpack.c.l.b16 %v148
  %v158 = vunpack.c.h.b16 %v148
  %v159 = vunpack.c.l.b16 %v149
  %v160 = vunpack.c.h.b16 %v149
  %v161 = vunpack.c.l.b16 %v150
  %v162 = vunpack.c.h.b16 %v150
  %v163 = vpack.c.b16 %v155, %v155
  %v164 = vpack.c.b16 %v156, %v156
  %v165 = vpack.c.b16 %v157, %v157
  %v166 = vpack.c.b16 %v158, %v158
  %v167 = vpack.c.b16 %v159, %v159
  %v168 = vpack.c.b16 %v160, %v160
  %v169 = vpack.c.b16 %v161, %v161
  %v170 = vpack.c.b16 %v162, %v162
  %v171 = vunpack.c.l.b16 %v163
  %v172 = vunpack.c.l.b16 %v164
  %v173 = vunpack.c.l.b16 %v165
  %v174 = vunpack.c.l.b16 %v166
  %v175 = vunpack.c.l.b16 %v167
  %v176 = vunpack.c.l.b16 %v168
  %v177 = vunpack.c.l.b16 %v169
  %v178 = vunpack.c.l.b16 %v170
  %v179 = vrot.slane %v175, 7
  %vm180 = vcmask 1041409
  %v181 = vsel %vm180, %v179, %v171
  %v182 = vrot.slane %v176, 7
  %v183 = vsel %vm180, %v182, %v172
  %v184 = vrot.slane %v177, 7
  %v185 = vsel %vm180, %v184, %v173
  %v186 = vrot.slane %v178, 7
  %v187 = vsel %vm180, %v186, %v174
  %v188 = vpack.c.b16 %v181, %v181
  %v189 = vpack.c.b16 %v183, %v183
  %v190 = vpack.c.b16 %v185, %v185
  %v191 = vpack.c.b16 %v187, %v187
  %v247 = vunpack.c.l.b16 %v15
  %v248 = vunpack.c.h.b16 %v15
  %v249 = vunpack.c.l.b16 %v16
  %v250 = vunpack.c.h.b16 %v16
  %v251 = vunpack.c.l.b16 %v17
  %v252 = vunpack.c.h.b16 %v17
  %v253 = vunpack.c.l.b16 %v18
  %v254 = vunpack.c.h.b16 %v18
  %v255 = vunpack.c.l.b16 %v19
  %v256 = vunpack.c.h.b16 %v19
  %v257 = vunpack.c.l.b16 %v20
  %v258 = vunpack.c.h.b16 %v20
  %v259 = vunpack.c.l.b16 %v21
  %v260 = vunpack.c.h.b16 %v21
  %v261 = vunpack.c.l.b16 %v22
  %v262 = vunpack.c.h.b16 %v22
  %v263 = vunpack.c.l.b16 %v23
  %v264 = vunpack.c.h.b16 %v23
  %v265 = vunpack.c.l.b16 %v24
  %v266 = vunpack.c.h.b16 %v24
  %v267 = vunpack.c.l.b16 %v25
  %v268 = vunpack.c.h.b16 %v25
  %v269 = vunpack.c.l.b16 %v26
  %v270 = vunpack.c.h.b16 %v26
  %v271 = vunpack.c.l.b16 %v27
  %v272 = vunpack.c.h.b16 %v27
  %v273 = vunpack.c.l.b16 %v28
  %v274 = vunpack.c.h.b16 %v28
  %v275 = vunpack.c.l.b16 %v29
  %v276 = vunpack.c.h.b16 %v29
  %v277 = vunpack.c.l.b16 %v30
  %v278 = vunpack.c.h.b16 %v30
  %v279 = vunpack.c.l.b16 %v31
  %v280 = vunpack.c.h.b16 %v31
  %v281 = vunpack.c.l.b16 %v32
  %v282 = vunpack.c.h.b16 %v32
  %v283 = vunpack.c.l.b16 %v33
  %v284 = vunpack.c.h.b16 %v33
  %v285 = vunpack.c.l.b16 %v34
  %v286 = vunpack.c.h.b16 %v34
  %v287 = vunpack.c.l.b16 %v35
  %v288 = vunpack.c.h.b16 %v35
  %v289 = vunpack.c.l.b16 %v36
  %v290 = vunpack.c.h.b16 %v36
  %v291 = vunpack.c.l.b16 %v37
  %v292 = vunpack.c.h.b16 %v37
  %v293 = vunpack.c.l.b16 %v38
  %v294 = vunpack.c.h.b16 %v38
  %v295 = vunpack.c.l.b16 %v39
  %v296 = vunpack.c.h.b16 %v39
  %v297 = vunpack.c.l.b16 %v40
  %v298 = vunpack.c.h.b16 %v40
  %v299 = vunpack.c.l.b16 %v41
  %v300 = vunpack.c.h.b16 %v41
  %v301 = vunpack.c.l.b16 %v42
  %v302 = vunpack.c.h.b16 %v42
  %v303 = vunpack.c.l.b16 %v43
  %v304 = vunpack.c.h.b16 %v43
  %v305 = vunpack.c.l.b16 %v44
  %v306 = vunpack.c.h.b16 %v44
  %v307 = vunpack.c.l.b16 %v45
  %v308 = vunpack.c.h.b16 %v45
  %v309 = vunpack.c.l.b16 %v46
  %v310 = vunpack.c.h.b16 %v46
  %v311 = vunpack.c.l.b16 %v47
  %v312 = vunpack.c.h.b16 %v47
  %v313 = vunpack.c.l.b16 %v48
  %v314 = vunpack.c.h.b16 %v48
  %v315 = vunpack.c.l.b16 %v49
  %v316 = vunpack.c.h.b16 %v49
  %v317 = vunpack.c.l.b16 %v50
  %v318 = vunpack.c.h.b16 %v50
  %v319 = vunpack.c.l.b16 %v51
  %v320 = vunpack.c.h.b16 %v51
  %v321 = vunpack.c.l.b16 %v52
  %v322 = vunpack.c.h.b16 %v52
  %v323 = vunpack.c.l.b16 %v53
  %v324 = vunpack.c.h.b16 %v53
  %v325 = vunpack.c.l.b16 %v54
  %v326 = vunpack.c.h.b16 %v54
  %v327 = vunpack.c.l.b16 %v55
  %v328 = vunpack.c.h.b16 %v55
  %v329 = vunpack.c.l.b16 %v56
  %v330 = vunpack.c.h.b16 %v56
  %v331 = vunpack.c.l.b16 %v57
  %v332 = vunpack.c.h.b16 %v57
  %v333 = vunpack.c.l.b16 %v58
  %v334 = vunpack.c.h.b16 %v58
  %v335 = vunpack.c.l.b16 %v59
  %v336 = vunpack.c.h.b16 %v59
  %v337 = vunpack.c.l.b16 %v60
  %v338 = vunpack.c.h.b16 %v60
  %v339 = vunpack.c.l.b16 %v61
  %v340 = vunpack.c.h.b16 %v61
  %v341 = vunpack.c.l.b16 %v62
  %v342 = vunpack.c.h.b16 %v62
  %v343 = vunpack.c.l.b16 %v63
  %v344 = vunpack.c.h.b16 %v63
  %v345 = vunpack.c.l.b16 %v64
  %v346 = vunpack.c.h.b16 %v64
  %v347 = vunpack.c.l.b16 %v65
  %v348 = vunpack.c.h.b16 %v65
  %v349 = vunpack.c.l.b16 %v66
  %v350 = vunpack.c.h.b16 %v66
  %v351 = vpack.c.b16 %v249, %v247
  %v352 = vpack.c.b16 %v250, %v248
  %v353 = vpack.c.b16 %v253, %v251
  %v354 = vpack.c.b16 %v254, %v252
  %v355 = vpack.c.b16 %v257, %v255
  %v356 = vpack.c.b16 %v258, %v256
  %v357 = vpack.c.b16 %v261, %v259
  %v358 = vpack.c.b16 %v262, %v260
  %v359 = vpack.c.b16 %v265, %v263
  %v360 = vpack.c.b16 %v266, %v264
  %v361 = vpack.c.b16 %v269, %v267
  %v362 = vpack.c.b16 %v270, %v268
  %v363 = vpack.c.b16 %v273, %v271
  %v364 = vpack.c.b16 %v274, %v272
  %v365 = vpack.c.b16 %v277, %v275
  %v366 = vpack.c.b16 %v278, %v276
  %v367 = vpack.c.b16 %v281, %v279
  %v368 = vpack.c.b16 %v282, %v280
  %v369 = vpack.c.b16 %v285, %v283
  %v370 = vpack.c.b16 %v286, %v284
  %v371 = vpack.c.b16 %v289, %v287
  %v372 = vpack.c.b16 %v290, %v288
  %v373 = vpack.c.b16 %v293, %v291
  %v374 = vpack.c.b16 %v294, %v292
  %v375 = vpack.c.b16 %v297, %v295
  %v376 = vpack.c.b16 %v298, %v296
  %v377 = vpack.c.b16 %v301, %v299
  %v378 = vpack.c.b16 %v302, %v300
  %v379 = vpack.c.b16 %v305, %v303
  %v380 = vpack.c.b16 %v306, %v304
  %v381 = vpack.c.b16 %v309, %v307
  %v382 = vpack.c.b16 %v310, %v308
  %v383 = vpack.c.b16 %v313, %v311
  %v384 = vpack.c.b16 %v314, %v312
  %v385 = vpack.c.b16 %v317, %v315
  %v386 = vpack.c.b16 %v318, %v316
  %v387 = vpack.c.b16 %v321, %v319
  %v388 = vpack.c.b16 %v322, %v320
  %v389 = vpack.c.b16 %v325, %v323
  %v390 = vpack.c.b16 %v326, %v324
  %v391 = vpack.c.b16 %v329, %v327
  %v392 = vpack.c.b16 %v330, %v328
  %v393 = vpack.c.b16 %v333, %v331
  %v394 = vpack.c.b16 %v334, %v332
  %v395 = vpack.c.b16 %v337, %v335
  %v396 = vpack.c.b16 %v338, %v336
  %v397 = vpack.c.b16 %v341, %v339
  %v398 = vpack.c.b16 %v342, %v340
  %v399 = vpack.c.b16 %v345, %v343
  %v400 = vpack.c.b16 %v346, %v344
  %v401 = vpack.c.b16 %v349, %v347
  %v402 = vpack.c.b16 %v350, %v348
  %vm455 = vcmask 261120
  %v457 = vsel %vm455, %v191, 0
  %459 = vmatprep.subr.bf16.mxu0 %v366
  %460 = vmatpush1.bf16.msra.mxu0 %v365
  %461 = vmatprep.subr.bf16.mxu0 %v364
  %462 = vmatpush1.bf16.msra.mxu0 %v363
  %463 = vmatprep.subr.bf16.mxu0 %v362
  %464 = vmatpush1.bf16.msra.mxu0 %v361
  %465 = vmatprep.subr.bf16.mxu0 %v360
  %466 = vmatpush1.bf16.msra.mxu0 %v359
  %467 = vmatprep.subr.bf16.mxu0 %v358
  %468 = vmatpush1.bf16.msra.mxu0 %v357
  %469 = vmatprep.subr.bf16.mxu0 %v356
  %470 = vmatpush1.bf16.msra.mxu0 %v355
  %471 = vmatprep.subr.bf16.mxu0 %v354
  %472 = vmatpush1.bf16.msra.mxu0 %v353
  %473 = vmatprep.subr.bf16.mxu0 %v352
  %474 = vmatpush1.bf16.msra.mxu0 %v351
  %475 = vmatprep.subr.bf16.mxu0 %v382
  %476 = vmatpush2.bf16.msra.mxu0 %v381
  %477 = vmatprep.subr.bf16.mxu0 %v380
  %478 = vmatpush2.bf16.msra.mxu0 %v379
  %479 = vmatprep.subr.bf16.mxu0 %v378
  %480 = vmatpush2.bf16.msra.mxu0 %v377
  %481 = vmatprep.subr.bf16.mxu0 %v376
  %482 = vmatpush2.bf16.msra.mxu0 %v375
  %483 = vmatprep.subr.bf16.mxu0 %v374
  %484 = vmatpush2.bf16.msra.mxu0 %v373
  %485 = vmatprep.subr.bf16.mxu0 %v372
  %486 = vmatpush2.bf16.msra.mxu0 %v371
  %487 = vmatprep.subr.bf16.mxu0 %v370
  %488 = vmatpush2.bf16.msra.mxu0 %v369
  %489 = vmatprep.subr.bf16.mxu0 %v368
  %490 = vmatpush2.bf16.msra.mxu0 %v367
  %491 = vmatprep.mubr.bf16.mxu0 %v189
  %492 = vmatmul.mubr.bf16.gmra.mxu0 %v188
  %v493 = vpop.f32.mrf.mxu0
  %v494 = vadd.f32 0.0, %v493
  %v495 = vpop.f32.mrf.mxu0
  %v496 = vadd.f32 0.0, %v495
  %v497 = vpop.f32.mrf.mxu0
  %v498 = vpop.f32.mrf.mxu0
  %499 = vdwg.mxu0
  %500 = vmatprep.subr.bf16.mxu0 %v398
  %501 = vmatpush1.bf16.msra.mxu0 %v397
  %502 = vmatprep.subr.bf16.mxu0 %v396
  %503 = vmatpush1.bf16.msra.mxu0 %v395
  %504 = vmatprep.subr.bf16.mxu0 %v394
  %505 = vmatpush1.bf16.msra.mxu0 %v393
  %506 = vmatprep.subr.bf16.mxu0 %v392
  %507 = vmatpush1.bf16.msra.mxu0 %v391
  %508 = vmatprep.subr.bf16.mxu0 %v390
  %509 = vmatpush1.bf16.msra.mxu0 %v389
  %510 = vmatprep.subr.bf16.mxu0 %v388
  %511 = vmatpush1.bf16.msra.mxu0 %v387
  %512 = vmatprep.subr.bf16.mxu0 %v386
  %513 = vmatpush1.bf16.msra.mxu0 %v385
  %514 = vmatprep.subr.bf16.mxu0 %v384
  %515 = vmatpush1.bf16.msra.mxu0 %v383
  %516 = vmatprep.subr.bf16.mxu0 0
  %517 = vmatpush2.bf16.msra.mxu0 0
  %518 = vmatprep.subr.bf16.mxu0 0
  %519 = vmatpush2.bf16.msra.mxu0 0
  %520 = vmatprep.subr.bf16.mxu0 0
  %521 = vmatpush2.bf16.msra.mxu0 0
  %522 = vmatprep.subr.bf16.mxu0 0
  %523 = vmatpush2.bf16.msra.mxu0 0
  %524 = vmatprep.subr.bf16.mxu0 0
  %525 = vmatpush2.bf16.msra.mxu0 0
  %526 = vmatprep.subr.bf16.mxu0 0
  %527 = vmatpush2.bf16.msra.mxu0 0
  %528 = vmatprep.subr.bf16.mxu0 %v402
  %529 = vmatpush2.bf16.msra.mxu0 %v401
  %530 = vmatprep.subr.bf16.mxu0 %v400
  %531 = vmatpush2.bf16.msra.mxu0 %v399
  %532 = vmatprep.mubr.bf16.mxu0 %v457
  %533 = vmatmul.mubr.bf16.gmra.mxu0 %v190
  %v534 = vpop.f32.mrf.mxu0
  %v535 = vadd.f32 %v494, %v534
  %v536 = vpop.f32.mrf.mxu0
  %v537 = vadd.f32 %v496, %v536
  %v538 = vpop.f32.mrf.mxu0
  %v539 = vpop.f32.mrf.mxu0
  %540 = vdwg.mxu0
  %v593 = vunpack.c.l.b16 %v67
  %v594 = vunpack.c.h.b16 %v67
  %v595 = vunpack.c.l.b16 %v68
  %v596 = vunpack.c.h.b16 %v68
  %v597 = vunpack.c.l.b16 %v69
  %v598 = vunpack.c.h.b16 %v69
  %v599 = vunpack.c.l.b16 %v70
  %v600 = vunpack.c.h.b16 %v70
  %v601 = vunpack.c.l.b16 %v71
  %v602 = vunpack.c.h.b16 %v71
  %v603 = vunpack.c.l.b16 %v72
  %v604 = vunpack.c.h.b16 %v72
  %v605 = vunpack.c.l.b16 %v73
  %v606 = vunpack.c.h.b16 %v73
  %v607 = vunpack.c.l.b16 %v74
  %v608 = vunpack.c.h.b16 %v74
  %v609 = vunpack.c.l.b16 %v75
  %v610 = vunpack.c.h.b16 %v75
  %v611 = vunpack.c.l.b16 %v76
  %v612 = vunpack.c.h.b16 %v76
  %v613 = vunpack.c.l.b16 %v77
  %v614 = vunpack.c.h.b16 %v77
  %v615 = vunpack.c.l.b16 %v78
  %v616 = vunpack.c.h.b16 %v78
  %v617 = vunpack.c.l.b16 %v79
  %v618 = vunpack.c.h.b16 %v79
  %v619 = vunpack.c.l.b16 %v80
  %v620 = vunpack.c.h.b16 %v80
  %v621 = vunpack.c.l.b16 %v81
  %v622 = vunpack.c.h.b16 %v81
  %v623 = vunpack.c.l.b16 %v82
  %v624 = vunpack.c.h.b16 %v82
  %v625 = vunpack.c.l.b16 %v83
  %v626 = vunpack.c.h.b16 %v83
  %v627 = vunpack.c.l.b16 %v84
  %v628 = vunpack.c.h.b16 %v84
  %v629 = vunpack.c.l.b16 %v85
  %v630 = vunpack.c.h.b16 %v85
  %v631 = vunpack.c.l.b16 %v86
  %v632 = vunpack.c.h.b16 %v86
  %v633 = vunpack.c.l.b16 %v87
  %v634 = vunpack.c.h.b16 %v87
  %v635 = vunpack.c.l.b16 %v88
  %v636 = vunpack.c.h.b16 %v88
  %v637 = vunpack.c.l.b16 %v89
  %v638 = vunpack.c.h.b16 %v89
  %v639 = vunpack.c.l.b16 %v90
  %v640 = vunpack.c.h.b16 %v90
  %v641 = vunpack.c.l.b16 %v91
  %v642 = vunpack.c.h.b16 %v91
  %v643 = vunpack.c.l.b16 %v92
  %v644 = vunpack.c.h.b16 %v92
  %v645 = vunpack.c.l.b16 %v93
  %v646 = vunpack.c.h.b16 %v93
  %v647 = vunpack.c.l.b16 %v94
  %v648 = vunpack.c.h.b16 %v94
  %v649 = vunpack.c.l.b16 %v95
  %v650 = vunpack.c.h.b16 %v95
  %v651 = vunpack.c.l.b16 %v96
  %v652 = vunpack.c.h.b16 %v96
  %v653 = vunpack.c.l.b16 %v97
  %v654 = vunpack.c.h.b16 %v97
  %v655 = vunpack.c.l.b16 %v98
  %v656 = vunpack.c.h.b16 %v98
  %v657 = vunpack.c.l.b16 %v99
  %v658 = vunpack.c.h.b16 %v99
  %v659 = vunpack.c.l.b16 %v100
  %v660 = vunpack.c.h.b16 %v100
  %v661 = vunpack.c.l.b16 %v101
  %v662 = vunpack.c.h.b16 %v101
  %v663 = vunpack.c.l.b16 %v102
  %v664 = vunpack.c.h.b16 %v102
  %v665 = vunpack.c.l.b16 %v103
  %v666 = vunpack.c.h.b16 %v103
  %v667 = vunpack.c.l.b16 %v104
  %v668 = vunpack.c.h.b16 %v104
  %v669 = vunpack.c.l.b16 %v105
  %v670 = vunpack.c.h.b16 %v105
  %v671 = vunpack.c.l.b16 %v106
  %v672 = vunpack.c.h.b16 %v106
  %v673 = vunpack.c.l.b16 %v107
  %v674 = vunpack.c.h.b16 %v107
  %v675 = vunpack.c.l.b16 %v108
  %v676 = vunpack.c.h.b16 %v108
  %v677 = vunpack.c.l.b16 %v109
  %v678 = vunpack.c.h.b16 %v109
  %v679 = vunpack.c.l.b16 %v110
  %v680 = vunpack.c.h.b16 %v110
  %v681 = vunpack.c.l.b16 %v111
  %v682 = vunpack.c.h.b16 %v111
  %v683 = vunpack.c.l.b16 %v112
  %v684 = vunpack.c.h.b16 %v112
  %v685 = vunpack.c.l.b16 %v113
  %v686 = vunpack.c.h.b16 %v113
  %v687 = vunpack.c.l.b16 %v114
  %v688 = vunpack.c.h.b16 %v114
  %v689 = vunpack.c.l.b16 %v115
  %v690 = vunpack.c.h.b16 %v115
  %v691 = vunpack.c.l.b16 %v116
  %v692 = vunpack.c.h.b16 %v116
  %v693 = vunpack.c.l.b16 %v117
  %v694 = vunpack.c.h.b16 %v117
  %v695 = vunpack.c.l.b16 %v118
  %v696 = vunpack.c.h.b16 %v118
  %v697 = vpack.c.b16 %v595, %v593
  %v698 = vpack.c.b16 %v596, %v594
  %v699 = vpack.c.b16 %v599, %v597
  %v700 = vpack.c.b16 %v600, %v598
  %v701 = vpack.c.b16 %v603, %v601
  %v702 = vpack.c.b16 %v604, %v602
  %v703 = vpack.c.b16 %v607, %v605
  %v704 = vpack.c.b16 %v608, %v606
  %v705 = vpack.c.b16 %v611, %v609
  %v706 = vpack.c.b16 %v612, %v610
  %v707 = vpack.c.b16 %v615, %v613
  %v708 = vpack.c.b16 %v616, %v614
  %v709 = vpack.c.b16 %v619, %v617
  %v710 = vpack.c.b16 %v620, %v618
  %v711 = vpack.c.b16 %v623, %v621
  %v712 = vpack.c.b16 %v624, %v622
  %v713 = vpack.c.b16 %v627, %v625
  %v714 = vpack.c.b16 %v628, %v626
  %v715 = vpack.c.b16 %v631, %v629
  %v716 = vpack.c.b16 %v632, %v630
  %v717 = vpack.c.b16 %v635, %v633
  %v718 = vpack.c.b16 %v636, %v634
  %v719 = vpack.c.b16 %v639, %v637
  %v720 = vpack.c.b16 %v640, %v638
  %v721 = vpack.c.b16 %v643, %v641
  %v722 = vpack.c.b16 %v644, %v642
  %v723 = vpack.c.b16 %v647, %v645
  %v724 = vpack.c.b16 %v648, %v646
  %v725 = vpack.c.b16 %v651, %v649
  %v726 = vpack.c.b16 %v652, %v650
  %v727 = vpack.c.b16 %v655, %v653
  %v728 = vpack.c.b16 %v656, %v654
  %v729 = vpack.c.b16 %v659, %v657
  %v730 = vpack.c.b16 %v660, %v658
  %v731 = vpack.c.b16 %v663, %v661
  %v732 = vpack.c.b16 %v664, %v662
  %v733 = vpack.c.b16 %v667, %v665
  %v734 = vpack.c.b16 %v668, %v666
  %v735 = vpack.c.b16 %v671, %v669
  %v736 = vpack.c.b16 %v672, %v670
  %v737 = vpack.c.b16 %v675, %v673
  %v738 = vpack.c.b16 %v676, %v674
  %v739 = vpack.c.b16 %v679, %v677
  %v740 = vpack.c.b16 %v680, %v678
  %v741 = vpack.c.b16 %v683, %v681
  %v742 = vpack.c.b16 %v684, %v682
  %v743 = vpack.c.b16 %v687, %v685
  %v744 = vpack.c.b16 %v688, %v686
  %v745 = vpack.c.b16 %v691, %v689
  %v746 = vpack.c.b16 %v692, %v690
  %v747 = vpack.c.b16 %v695, %v693
  %v748 = vpack.c.b16 %v696, %v694
  %801 = vmatprep.subr.bf16.mxu0 %v712
  %802 = vmatpush1.bf16.msra.mxu0 %v711
  %803 = vmatprep.subr.bf16.mxu0 %v710
  %804 = vmatpush1.bf16.msra.mxu0 %v709
  %805 = vmatprep.subr.bf16.mxu0 %v708
  %806 = vmatpush1.bf16.msra.mxu0 %v707
  %807 = vmatprep.subr.bf16.mxu0 %v706
  %808 = vmatpush1.bf16.msra.mxu0 %v705
  %809 = vmatprep.subr.bf16.mxu0 %v704
  %810 = vmatpush1.bf16.msra.mxu0 %v703
  %811 = vmatprep.subr.bf16.mxu0 %v702
  %812 = vmatpush1.bf16.msra.mxu0 %v701
  %813 = vmatprep.subr.bf16.mxu0 %v700
  %814 = vmatpush1.bf16.msra.mxu0 %v699
  %815 = vmatprep.subr.bf16.mxu0 %v698
  %816 = vmatpush1.bf16.msra.mxu0 %v697
  %817 = vmatprep.subr.bf16.mxu0 %v728
  %818 = vmatpush2.bf16.msra.mxu0 %v727
  %819 = vmatprep.subr.bf16.mxu0 %v726
  %820 = vmatpush2.bf16.msra.mxu0 %v725
  %821 = vmatprep.subr.bf16.mxu0 %v724
  %822 = vmatpush2.bf16.msra.mxu0 %v723
  %823 = vmatprep.subr.bf16.mxu0 %v722
  %824 = vmatpush2.bf16.msra.mxu0 %v721
  %825 = vmatprep.subr.bf16.mxu0 %v720
  %826 = vmatpush2.bf16.msra.mxu0 %v719
  %827 = vmatprep.subr.bf16.mxu0 %v718
  %828 = vmatpush2.bf16.msra.mxu0 %v717
  %829 = vmatprep.subr.bf16.mxu0 %v716
  %830 = vmatpush2.bf16.msra.mxu0 %v715
  %831 = vmatprep.subr.bf16.mxu0 %v714
  %832 = vmatpush2.bf16.msra.mxu0 %v713
  %833 = vmatprep.mubr.bf16.mxu0 %v189
  %834 = vmatmul.mubr.bf16.gmra.mxu0 %v188
  %v835 = vpop.f32.mrf.mxu0
  %v836 = vadd.f32 0.0, %v835
  %v837 = vpop.f32.mrf.mxu0
  %v838 = vadd.f32 0.0, %v837
  %v839 = vpop.f32.mrf.mxu0
  %v840 = vpop.f32.mrf.mxu0
  %841 = vdwg.mxu0
  %842 = vmatprep.subr.bf16.mxu0 %v744
  %843 = vmatpush1.bf16.msra.mxu0 %v743
  %844 = vmatprep.subr.bf16.mxu0 %v742
  %845 = vmatpush1.bf16.msra.mxu0 %v741
  %846 = vmatprep.subr.bf16.mxu0 %v740
  %847 = vmatpush1.bf16.msra.mxu0 %v739
  %848 = vmatprep.subr.bf16.mxu0 %v738
  %849 = vmatpush1.bf16.msra.mxu0 %v737
  %850 = vmatprep.subr.bf16.mxu0 %v736
  %851 = vmatpush1.bf16.msra.mxu0 %v735
  %852 = vmatprep.subr.bf16.mxu0 %v734
  %853 = vmatpush1.bf16.msra.mxu0 %v733
  %854 = vmatprep.subr.bf16.mxu0 %v732
  %855 = vmatpush1.bf16.msra.mxu0 %v731
  %856 = vmatprep.subr.bf16.mxu0 %v730
  %857 = vmatpush1.bf16.msra.mxu0 %v729
  %858 = vmatprep.subr.bf16.mxu0 0
  %859 = vmatpush2.bf16.msra.mxu0 0
  %860 = vmatprep.subr.bf16.mxu0 0
  %861 = vmatpush2.bf16.msra.mxu0 0
  %862 = vmatprep.subr.bf16.mxu0 0
  %863 = vmatpush2.bf16.msra.mxu0 0
  %864 = vmatprep.subr.bf16.mxu0 0
  %865 = vmatpush2.bf16.msra.mxu0 0
  %866 = vmatprep.subr.bf16.mxu0 0
  %867 = vmatpush2.bf16.msra.mxu0 0
  %868 = vmatprep.subr.bf16.mxu0 0
  %869 = vmatpush2.bf16.msra.mxu0 0
  %870 = vmatprep.subr.bf16.mxu0 %v748
  %871 = vmatpush2.bf16.msra.mxu0 %v747
  %872 = vmatprep.subr.bf16.mxu0 %v746
  %873 = vmatpush2.bf16.msra.mxu0 %v745
  %874 = vmatprep.mubr.bf16.mxu0 %v457
  %875 = vmatmul.mubr.bf16.gmra.mxu0 %v190
  %v876 = vpop.f32.mrf.mxu0
  %v877 = vadd.f32 %v836, %v876
  %v878 = vpop.f32.mrf.mxu0
  %v879 = vadd.f32 %v838, %v878
  %v880 = vpop.f32.mrf.mxu0
  %v881 = vpop.f32.mrf.mxu0
  %882 = vdwg.mxu0
  %v883 = vmax.f32 %v535, %v877
  %v884 = vmax.f32 %v537, %v879
  %v885 = vpack.c.bf16 %v883, %v883
  %v886 = vpack.c.bf16 %v884, %v884
  %v889 = vcombine.low %v885, %v886
  %v891 = vunpack.c.l.s4 1966171168
  %v892 = vunpack.c.0.s8 %v891
  %v893 = vlaneseq
  %v894 = vshrl.u32 %v893, 7
  %v895 = vsub.s32 %v892, %v894
  %v896 = vrot.slane %v889, %v895
  %v898 = vunpack.c.l.s4 1966171168
  %v899 = vunpack.c.0.s8 %v898
  %v900 = vlaneseq
  %v901 = vshrl.u32 %v900, 7
  %v902 = vsub.s32 %v899, %v901
  %v903 = vrot.slane %v896, %v902
  %v904 = vunpack.i.l.s16 %v903
  %v905 = vunpack.i.h.s16 %v903
  %v906 = vpack.i.b16 %v904, %v904
  %v907 = vpack.i.b16 %v905, %v905
  %v909 = vunpack.c.l.s4 286326784
  %v910 = vunpack.c.0.s8 %v909
  %v911 = vlaneseq
  %v912 = vshrl.u32 %v911, 7
  %v913 = vsub.s32 %v910, %v912
  %v914 = vrot.slane %v906, %v913
  %v916 = vunpack.c.l.s4 286326784
  %v917 = vunpack.c.0.s8 %v916
  %v918 = vlaneseq
  %v919 = vshrl.u32 %v918, 7
  %v920 = vsub.s32 %v917, %v919
  %v921 = vrot.slane %v907, %v920
  %vm924 = vcmask 1040384
  %vm925 = vsmask.f32 256
  %vm926 = vmand %vm924, %vm925
  %vm927 = vcmask 651268
  %vm928 = vsmask.f32 4352
  %vm929 = vmand %vm927, %vm928
  %vm930 = vmor %vm929, %vm926
  %v931 = vld [vmem:[%s3] sm:$0x11]
  %v932 = vsel %vm930, %v914, %v931
  %933 = vst [vmem:[%s3] sm:$0x11] %v932
  %v934 = vld [vmem:[%s3 + $0x10] sm:$0x11]
  %v935 = vsel %vm930, %v921, %v934
  %936 = vst [vmem:[%s3 + $0x10] sm:$0x11] %v935
  %v937 = vld [vmem:[%s0] sm:$0x22]
  %v938 = vld [vmem:[%s0 + $0x8] sm:$0x22]
  %v939 = vld [vmem:[%s0 + $0x40] sm:$0x22]
  %v940 = vld [vmem:[%s0 + $0x48] sm:$0x22]
  %v942 = vshrl.u32 %v937, 16
  %v944 = vrot.slane %v942, 4
  %v945 = vrot.slane %v944, 4
  %v947 = vshrl.u32 %v938, 16
  %v949 = vrot.slane %v947, 4
  %v950 = vrot.slane %v949, 4
  %v952 = vshrl.u32 %v939, 16
  %v954 = vrot.slane %v952, 4
  %v955 = vrot.slane %v954, 4
  %v957 = vshrl.u32 %v940, 16
  %v959 = vrot.slane %v957, 4
  %v960 = vrot.slane %v959, 4
  %v965 = vmax.bf16 %v937, %v945
  %v966 = vmax.bf16 %v938, %v950
  %v967 = vmax.bf16 %v939, %v955
  %v968 = vmax.bf16 %v940, %v960
  %v973 = vunpack.c.l.b16 %v965
  %v974 = vunpack.c.h.b16 %v965
  %v975 = vunpack.c.l.b16 %v966
  %v976 = vunpack.c.h.b16 %v966
  %v977 = vunpack.c.l.b16 %v967
  %v978 = vunpack.c.h.b16 %v967
  %v979 = vunpack.c.l.b16 %v968
  %v980 = vunpack.c.h.b16 %v968
  %v981 = vpack.c.b16 %v973, %v973
  %v982 = vpack.c.b16 %v974, %v974
  %v983 = vpack.c.b16 %v975, %v975
  %v984 = vpack.c.b16 %v976, %v976
  %v985 = vpack.c.b16 %v977, %v977
  %v986 = vpack.c.b16 %v978, %v978
  %v987 = vpack.c.b16 %v979, %v979
  %v988 = vpack.c.b16 %v980, %v980
  %v989 = vunpack.c.l.b16 %v981
  %v990 = vunpack.c.l.b16 %v982
  %v991 = vunpack.c.l.b16 %v983
  %v992 = vunpack.c.l.b16 %v984
  %v993 = vunpack.c.l.b16 %v985
  %v994 = vunpack.c.l.b16 %v986
  %v995 = vunpack.c.l.b16 %v987
  %v996 = vunpack.c.l.b16 %v988
  %v997 = vrot.slane %v989, 2
  %v998 = vrot.slane %v993, 1
  %v999 = vsel %vm180, %v998, %v997
  %v1000 = vrot.slane %v990, 2
  %v1001 = vrot.slane %v994, 1
  %v1002 = vsel %vm180, %v1001, %v1000
  %v1003 = vrot.slane %v991, 2
  %v1004 = vrot.slane %v995, 1
  %v1005 = vsel %vm180, %v1004, %v1003
  %v1006 = vrot.slane %v992, 2
  %v1007 = vrot.slane %v996, 1
  %v1008 = vsel %vm180, %v1007, %v1006
  %v1009 = vpack.c.b16 %v999, %v999
  %v1010 = vpack.c.b16 %v1002, %v1002
  %v1011 = vpack.c.b16 %v1005, %v1005
  %v1012 = vpack.c.b16 %v1008, %v1008
  %v1017 = vsel %vm455, %v1012, 0
  %1019 = vmatprep.subr.bf16.mxu0 %v366
  %1020 = vmatpush1.bf16.msra.mxu0 %v365
  %1021 = vmatprep.subr.bf16.mxu0 %v364
  %1022 = vmatpush1.bf16.msra.mxu0 %v363
  %1023 = vmatprep.subr.bf16.mxu0 %v362
  %1024 = vmatpush1.bf16.msra.mxu0 %v361
  %1025 = vmatprep.subr.bf16.mxu0 %v360
  %1026 = vmatpush1.bf16.msra.mxu0 %v359
  %1027 = vmatprep.subr.bf16.mxu0 %v358
  %1028 = vmatpush1.bf16.msra.mxu0 %v357
  %1029 = vmatprep.subr.bf16.mxu0 %v356
  %1030 = vmatpush1.bf16.msra.mxu0 %v355
  %1031 = vmatprep.subr.bf16.mxu0 %v354
  %1032 = vmatpush1.bf16.msra.mxu0 %v353
  %1033 = vmatprep.subr.bf16.mxu0 %v352
  %1034 = vmatpush1.bf16.msra.mxu0 %v351
  %1035 = vmatprep.subr.bf16.mxu0 %v382
  %1036 = vmatpush2.bf16.msra.mxu0 %v381
  %1037 = vmatprep.subr.bf16.mxu0 %v380
  %1038 = vmatpush2.bf16.msra.mxu0 %v379
  %1039 = vmatprep.subr.bf16.mxu0 %v378
  %1040 = vmatpush2.bf16.msra.mxu0 %v377
  %1041 = vmatprep.subr.bf16.mxu0 %v376
  %1042 = vmatpush2.bf16.msra.mxu0 %v375
  %1043 = vmatprep.subr.bf16.mxu0 %v374
  %1044 = vmatpush2.bf16.msra.mxu0 %v373
  %1045 = vmatprep.subr.bf16.mxu0 %v372
  %1046 = vmatpush2.bf16.msra.mxu0 %v371
  %1047 = vmatprep.subr.bf16.mxu0 %v370
  %1048 = vmatpush2.bf16.msra.mxu0 %v369
  %1049 = vmatprep.subr.bf16.mxu0 %v368
  %1050 = vmatpush2.bf16.msra.mxu0 %v367
  %1051 = vmatprep.mubr.bf16.mxu0 %v1010
  %1052 = vmatmul.mubr.bf16.gmra.mxu0 %v1009
  %v1053 = vpop.f32.mrf.mxu0
  %v1054 = vadd.f32 0.0, %v1053
  %v1055 = vpop.f32.mrf.mxu0
  %v1056 = vadd.f32 0.0, %v1055
  %v1057 = vpop.f32.mrf.mxu0
  %v1058 = vpop.f32.mrf.mxu0
  %1059 = vdwg.mxu0
  %1060 = vmatprep.subr.bf16.mxu0 %v398
  %1061 = vmatpush1.bf16.msra.mxu0 %v397
  %1062 = vmatprep.subr.bf16.mxu0 %v396
  %1063 = vmatpush1.bf16.msra.mxu0 %v395
  %1064 = vmatprep.subr.bf16.mxu0 %v394
  %1065 = vmatpush1.bf16.msra.mxu0 %v393
  %1066 = vmatprep.subr.bf16.mxu0 %v392
  %1067 = vmatpush1.bf16.msra.mxu0 %v391
  %1068 = vmatprep.subr.bf16.mxu0 %v390
  %1069 = vmatpush1.bf16.msra.mxu0 %v389
  %1070 = vmatprep.subr.bf16.mxu0 %v388
  %1071 = vmatpush1.bf16.msra.mxu0 %v387
  %1072 = vmatprep.subr.bf16.mxu0 %v386
  %1073 = vmatpush1.bf16.msra.mxu0 %v385
  %1074 = vmatprep.subr.bf16.mxu0 %v384
  %1075 = vmatpush1.bf16.msra.mxu0 %v383
  %1076 = vmatprep.subr.bf16.mxu0 0
  %1077 = vmatpush2.bf16.msra.mxu0 0
  %1078 = vmatprep.subr.bf16.mxu0 0
  %1079 = vmatpush2.bf16.msra.mxu0 0
  %1080 = vmatprep.subr.bf16.mxu0 0
  %1081 = vmatpush2.bf16.msra.mxu0 0
  %1082 = vmatprep.subr.bf16.mxu0 0
  %1083 = vmatpush2.bf16.msra.mxu0 0
  %1084 = vmatprep.subr.bf16.mxu0 0
  %1085 = vmatpush2.bf16.msra.mxu0 0
  %1086 = vmatprep.subr.bf16.mxu0 0
  %1087 = vmatpush2.bf16.msra.mxu0 0
  %1088 = vmatprep.subr.bf16.mxu0 %v402
  %1089 = vmatpush2.bf16.msra.mxu0 %v401
  %1090 = vmatprep.subr.bf16.mxu0 %v400
  %1091 = vmatpush2.bf16.msra.mxu0 %v399
  %1092 = vmatprep.mubr.bf16.mxu0 %v1017
  %1093 = vmatmul.mubr.bf16.gmra.mxu0 %v1011
  %v1094 = vpop.f32.mrf.mxu0
  %v1095 = vadd.f32 %v1054, %v1094
  %v1096 = vpop.f32.mrf.mxu0
  %v1097 = vadd.f32 %v1056, %v1096
  %v1098 = vpop.f32.mrf.mxu0
  %v1099 = vpop.f32.mrf.mxu0
  %1100 = vdwg.mxu0
  %1101 = vmatprep.subr.bf16.mxu0 %v712
  %1102 = vmatpush1.bf16.msra.mxu0 %v711
  %1103 = vmatprep.subr.bf16.mxu0 %v710
  %1104 = vmatpush1.bf16.msra.mxu0 %v709
  %1105 = vmatprep.subr.bf16.mxu0 %v708
  %1106 = vmatpush1.bf16.msra.mxu0 %v707
  %1107 = vmatprep.subr.bf16.mxu0 %v706
  %1108 = vmatpush1.bf16.msra.mxu0 %v705
  %1109 = vmatprep.subr.bf16.mxu0 %v704
  %1110 = vmatpush1.bf16.msra.mxu0 %v703
  %1111 = vmatprep.subr.bf16.mxu0 %v702
  %1112 = vmatpush1.bf16.msra.mxu0 %v701
  %1113 = vmatprep.subr.bf16.mxu0 %v700
  %1114 = vmatpush1.bf16.msra.mxu0 %v699
  %1115 = vmatprep.subr.bf16.mxu0 %v698
  %1116 = vmatpush1.bf16.msra.mxu0 %v697
  %1117 = vmatprep.subr.bf16.mxu0 %v728
  %1118 = vmatpush2.bf16.msra.mxu0 %v727
  %1119 = vmatprep.subr.bf16.mxu0 %v726
  %1120 = vmatpush2.bf16.msra.mxu0 %v725
  %1121 = vmatprep.subr.bf16.mxu0 %v724
  %1122 = vmatpush2.bf16.msra.mxu0 %v723
  %1123 = vmatprep.subr.bf16.mxu0 %v722
  %1124 = vmatpush2.bf16.msra.mxu0 %v721
  %1125 = vmatprep.subr.bf16.mxu0 %v720
  %1126 = vmatpush2.bf16.msra.mxu0 %v719
  %1127 = vmatprep.subr.bf16.mxu0 %v718
  %1128 = vmatpush2.bf16.msra.mxu0 %v717
  %1129 = vmatprep.subr.bf16.mxu0 %v716
  %1130 = vmatpush2.bf16.msra.mxu0 %v715
  %1131 = vmatprep.subr.bf16.mxu0 %v714
  %1132 = vmatpush2.bf16.msra.mxu0 %v713
  %1133 = vmatprep.mubr.bf16.mxu0 %v1010
  %1134 = vmatmul.mubr.bf16.gmra.mxu0 %v1009
  %v1135 = vpop.f32.mrf.mxu0
  %v1136 = vadd.f32 0.0, %v1135
  %v1137 = vpop.f32.mrf.mxu0
  %v1138 = vadd.f32 0.0, %v1137
  %v1139 = vpop.f32.mrf.mxu0
  %v1140 = vpop.f32.mrf.mxu0
  %1141 = vdwg.mxu0
  %1142 = vmatprep.subr.bf16.mxu0 %v744
  %1143 = vmatpush1.bf16.msra.mxu0 %v743
  %1144 = vmatprep.subr.bf16.mxu0 %v742
  %1145 = vmatpush1.bf16.msra.mxu0 %v741
  %1146 = vmatprep.subr.bf16.mxu0 %v740
  %1147 = vmatpush1.bf16.msra.mxu0 %v739
  %1148 = vmatprep.subr.bf16.mxu0 %v738
  %1149 = vmatpush1.bf16.msra.mxu0 %v737
  %1150 = vmatprep.subr.bf16.mxu0 %v736
  %1151 = vmatpush1.bf16.msra.mxu0 %v735
  %1152 = vmatprep.subr.bf16.mxu0 %v734
  %1153 = vmatpush1.bf16.msra.mxu0 %v733
  %1154 = vmatprep.subr.bf16.mxu0 %v732
  %1155 = vmatpush1.bf16.msra.mxu0 %v731
  %1156 = vmatprep.subr.bf16.mxu0 %v730
  %1157 = vmatpush1.bf16.msra.mxu0 %v729
  %1158 = vmatprep.subr.bf16.mxu0 0
  %1159 = vmatpush2.bf16.msra.mxu0 0
  %1160 = vmatprep.subr.bf16.mxu0 0
  %1161 = vmatpush2.bf16.msra.mxu0 0
  %1162 = vmatprep.subr.bf16.mxu0 0
  %1163 = vmatpush2.bf16.msra.mxu0 0
  %1164 = vmatprep.subr.bf16.mxu0 0
  %1165 = vmatpush2.bf16.msra.mxu0 0
  %1166 = vmatprep.subr.bf16.mxu0 0
  %1167 = vmatpush2.bf16.msra.mxu0 0
  %1168 = vmatprep.subr.bf16.mxu0 0
  %1169 = vmatpush2.bf16.msra.mxu0 0
  %1170 = vmatprep.subr.bf16.mxu0 %v748
  %1171 = vmatpush2.bf16.msra.mxu0 %v747
  %1172 = vmatprep.subr.bf16.mxu0 %v746
  %1173 = vmatpush2.bf16.msra.mxu0 %v745
  %1174 = vmatprep.mubr.bf16.mxu0 %v1017
  %1175 = vmatmul.mubr.bf16.gmra.mxu0 %v1011
  %v1176 = vpop.f32.mrf.mxu0
  %v1177 = vadd.f32 %v1136, %v1176
  %v1178 = vpop.f32.mrf.mxu0
  %v1179 = vadd.f32 %v1138, %v1178
  %v1180 = vpop.f32.mrf.mxu0
  %v1181 = vpop.f32.mrf.mxu0
  %1182 = vdwg.mxu0
  %v1183 = vmax.f32 %v1095, %v1177
  %v1184 = vmax.f32 %v1097, %v1179
  %v1185 = vpack.c.bf16 %v1183, %v1183
  %v1186 = vpack.c.bf16 %v1184, %v1184
  %v1189 = vcombine.low %v1185, %v1186
  %v1191 = vunpack.c.l.s4 1966171168
  %v1192 = vunpack.c.0.s8 %v1191
  %v1193 = vlaneseq
  %v1194 = vshrl.u32 %v1193, 7
  %v1195 = vsub.s32 %v1192, %v1194
  %v1196 = vrot.slane %v1189, %v1195
  %v1198 = vunpack.c.l.s4 1966171168
  %v1199 = vunpack.c.0.s8 %v1198
  %v1200 = vlaneseq
  %v1201 = vshrl.u32 %v1200, 7
  %v1202 = vsub.s32 %v1199, %v1201
  %v1203 = vrot.slane %v1196, %v1202
  %v1204 = vunpack.i.l.s16 %v1203
  %v1205 = vunpack.i.h.s16 %v1203
  %v1206 = vpack.i.b16 %v1204, %v1204
  %v1207 = vpack.i.b16 %v1205, %v1205
  %v1209 = vunpack.c.l.s4 286326784
  %v1210 = vunpack.c.0.s8 %v1209
  %v1211 = vlaneseq
  %v1212 = vshrl.u32 %v1211, 7
  %v1213 = vsub.s32 %v1210, %v1212
  %v1214 = vrot.slane %v1206, %v1213
  %v1216 = vunpack.c.l.s4 286326784
  %v1217 = vunpack.c.0.s8 %v1216
  %v1218 = vlaneseq
  %v1219 = vshrl.u32 %v1218, 7
  %v1220 = vsub.s32 %v1217, %v1219
  %v1221 = vrot.slane %v1207, %v1220
  %vm1224 = vsmask.f32 7938
  %vm1225 = vmand %vm924, %vm1224
  %vm1226 = vsmask.f32 7954
  %vm1227 = vmand %vm927, %vm1226
  %vm1228 = vmor %vm1227, %vm1225
  %v1229 = vld [vmem:[%s3] sm:$0x11]
  %v1230 = vsel %vm1228, %v1214, %v1229
  %1231 = vst [vmem:[%s3] sm:$0x11] %v1230
  %v1232 = vld [vmem:[%s3 + $0x10] sm:$0x11]
  %v1233 = vsel %vm1228, %v1221, %v1232
  %1234 = vst [vmem:[%s3 + $0x10] sm:$0x11] %v1233
  %v1235 = vld [vmem:[%s0] sm:$0x44]
  %v1236 = vld [vmem:[%s0 + $0x8] sm:$0x44]
  %v1237 = vld [vmem:[%s0 + $0x40] sm:$0x44]
  %v1238 = vld [vmem:[%s0 + $0x48] sm:$0x44]
  %v1240 = vshrl.u32 %v1235, 16
  %v1242 = vrot.slane %v1240, 4
  %v1243 = vrot.slane %v1242, 4
  %v1245 = vshrl.u32 %v1236, 16
  %v1247 = vrot.slane %v1245, 4
  %v1248 = vrot.slane %v1247, 4
  %v1250 = vshrl.u32 %v1237, 16
  %v1252 = vrot.slane %v1250, 4
  %v1253 = vrot.slane %v1252, 4
  %v1255 = vshrl.u32 %v1238, 16
  %v1257 = vrot.slane %v1255, 4
  %v1258 = vrot.slane %v1257, 4
  %v1263 = vmax.bf16 %v1235, %v1243
  %v1264 = vmax.bf16 %v1236, %v1248
  %v1265 = vmax.bf16 %v1237, %v1253
  %v1266 = vmax.bf16 %v1238, %v1258
  %v1271 = vunpack.c.l.b16 %v1263
  %v1272 = vunpack.c.h.b16 %v1263
  %v1273 = vunpack.c.l.b16 %v1264
  %v1274 = vunpack.c.h.b16 %v1264
  %v1275 = vunpack.c.l.b16 %v1265
  %v1276 = vunpack.c.h.b16 %v1265
  %v1277 = vunpack.c.l.b16 %v1266
  %v1278 = vunpack.c.h.b16 %v1266
  %v1279 = vpack.c.b16 %v1271, %v1271
  %v1280 = vpack.c.b16 %v1272, %v1272
  %v1281 = vpack.c.b16 %v1273, %v1273
  %v1282 = vpack.c.b16 %v1274, %v1274
  %v1283 = vpack.c.b16 %v1275, %v1275
  %v1284 = vpack.c.b16 %v1276, %v1276
  %v1285 = vpack.c.b16 %v1277, %v1277
  %v1286 = vpack.c.b16 %v1278, %v1278
  %v1287 = vunpack.c.l.b16 %v1279
  %v1288 = vunpack.c.l.b16 %v1280
  %v1289 = vunpack.c.l.b16 %v1281
  %v1290 = vunpack.c.l.b16 %v1282
  %v1291 = vunpack.c.l.b16 %v1283
  %v1292 = vunpack.c.l.b16 %v1284
  %v1293 = vunpack.c.l.b16 %v1285
  %v1294 = vunpack.c.l.b16 %v1286
  %v1295 = vrot.slane %v1287, 4
  %v1296 = vrot.slane %v1291, 3
  %v1297 = vsel %vm180, %v1296, %v1295
  %v1298 = vrot.slane %v1288, 4
  %v1299 = vrot.slane %v1292, 3
  %v1300 = vsel %vm180, %v1299, %v1298
  %v1301 = vrot.slane %v1289, 4
  %v1302 = vrot.slane %v1293, 3
  %v1303 = vsel %vm180, %v1302, %v1301
  %v1304 = vrot.slane %v1290, 4
  %v1305 = vrot.slane %v1294, 3
  %v1306 = vsel %vm180, %v1305, %v1304
  %v1307 = vpack.c.b16 %v1297, %v1297
  %v1308 = vpack.c.b16 %v1300, %v1300
  %v1309 = vpack.c.b16 %v1303, %v1303
  %v1310 = vpack.c.b16 %v1306, %v1306
  %v1315 = vsel %vm455, %v1310, 0
  %1317 = vmatprep.subr.bf16.mxu0 %v366
  %1318 = vmatpush1.bf16.msra.mxu0 %v365
  %1319 = vmatprep.subr.bf16.mxu0 %v364
  %1320 = vmatpush1.bf16.msra.mxu0 %v363
  %1321 = vmatprep.subr.bf16.mxu0 %v362
  %1322 = vmatpush1.bf16.msra.mxu0 %v361
  %1323 = vmatprep.subr.bf16.mxu0 %v360
  %1324 = vmatpush1.bf16.msra.mxu0 %v359
  %1325 = vmatprep.subr.bf16.mxu0 %v358
  %1326 = vmatpush1.bf16.msra.mxu0 %v357
  %1327 = vmatprep.subr.bf16.mxu0 %v356
  %1328 = vmatpush1.bf16.msra.mxu0 %v355
  %1329 = vmatprep.subr.bf16.mxu0 %v354
  %1330 = vmatpush1.bf16.msra.mxu0 %v353
  %1331 = vmatprep.subr.bf16.mxu0 %v352
  %1332 = vmatpush1.bf16.msra.mxu0 %v351
  %1333 = vmatprep.subr.bf16.mxu0 %v382
  %1334 = vmatpush2.bf16.msra.mxu0 %v381
  %1335 = vmatprep.subr.bf16.mxu0 %v380
  %1336 = vmatpush2.bf16.msra.mxu0 %v379
  %1337 = vmatprep.subr.bf16.mxu0 %v378
  %1338 = vmatpush2.bf16.msra.mxu0 %v377
  %1339 = vmatprep.subr.bf16.mxu0 %v376
  %1340 = vmatpush2.bf16.msra.mxu0 %v375
  %1341 = vmatprep.subr.bf16.mxu0 %v374
  %1342 = vmatpush2.bf16.msra.mxu0 %v373
  %1343 = vmatprep.subr.bf16.mxu0 %v372
  %1344 = vmatpush2.bf16.msra.mxu0 %v371
  %1345 = vmatprep.subr.bf16.mxu0 %v370
  %1346 = vmatpush2.bf16.msra.mxu0 %v369
  %1347 = vmatprep.subr.bf16.mxu0 %v368
  %1348 = vmatpush2.bf16.msra.mxu0 %v367
  %1349 = vmatprep.mubr.bf16.mxu0 %v1308
  %1350 = vmatmul.mubr.bf16.gmra.mxu0 %v1307
  %v1351 = vpop.f32.mrf.mxu0
  %v1352 = vadd.f32 0.0, %v1351
  %v1353 = vpop.f32.mrf.mxu0
  %v1354 = vadd.f32 0.0, %v1353
  %v1355 = vpop.f32.mrf.mxu0
  %v1356 = vpop.f32.mrf.mxu0
  %1357 = vdwg.mxu0
  %1358 = vmatprep.subr.bf16.mxu0 %v398
  %1359 = vmatpush1.bf16.msra.mxu0 %v397
  %1360 = vmatprep.subr.bf16.mxu0 %v396
  %1361 = vmatpush1.bf16.msra.mxu0 %v395
  %1362 = vmatprep.subr.bf16.mxu0 %v394
  %1363 = vmatpush1.bf16.msra.mxu0 %v393
  %1364 = vmatprep.subr.bf16.mxu0 %v392
  %1365 = vmatpush1.bf16.msra.mxu0 %v391
  %1366 = vmatprep.subr.bf16.mxu0 %v390
  %1367 = vmatpush1.bf16.msra.mxu0 %v389
  %1368 = vmatprep.subr.bf16.mxu0 %v388
  %1369 = vmatpush1.bf16.msra.mxu0 %v387
  %1370 = vmatprep.subr.bf16.mxu0 %v386
  %1371 = vmatpush1.bf16.msra.mxu0 %v385
  %1372 = vmatprep.subr.bf16.mxu0 %v384
  %1373 = vmatpush1.bf16.msra.mxu0 %v383
  %1374 = vmatprep.subr.bf16.mxu0 0
  %1375 = vmatpush2.bf16.msra.mxu0 0
  %1376 = vmatprep.subr.bf16.mxu0 0
  %1377 = vmatpush2.bf16.msra.mxu0 0
  %1378 = vmatprep.subr.bf16.mxu0 0
  %1379 = vmatpush2.bf16.msra.mxu0 0
  %1380 = vmatprep.subr.bf16.mxu0 0
  %1381 = vmatpush2.bf16.msra.mxu0 0
  %1382 = vmatprep.subr.bf16.mxu0 0
  %1383 = vmatpush2.bf16.msra.mxu0 0
  %1384 = vmatprep.subr.bf16.mxu0 0
  %1385 = vmatpush2.bf16.msra.mxu0 0
  %1386 = vmatprep.subr.bf16.mxu0 %v402
  %1387 = vmatpush2.bf16.msra.mxu0 %v401
  %1388 = vmatprep.subr.bf16.mxu0 %v400
  %1389 = vmatpush2.bf16.msra.mxu0 %v399
  %1390 = vmatprep.mubr.bf16.mxu0 %v1315
  %1391 = vmatmul.mubr.bf16.gmra.mxu0 %v1309
  %v1392 = vpop.f32.mrf.mxu0
  %v1393 = vadd.f32 %v1352, %v1392
  %v1394 = vpop.f32.mrf.mxu0
  %v1395 = vadd.f32 %v1354, %v1394
  %v1396 = vpop.f32.mrf.mxu0
  %v1397 = vpop.f32.mrf.mxu0
  %1398 = vdwg.mxu0
  %1399 = vmatprep.subr.bf16.mxu0 %v712
  %1400 = vmatpush1.bf16.msra.mxu0 %v711
  %1401 = vmatprep.subr.bf16.mxu0 %v710
  %1402 = vmatpush1.bf16.msra.mxu0 %v709
  %1403 = vmatprep.subr.bf16.mxu0 %v708
  %1404 = vmatpush1.bf16.msra.mxu0 %v707
  %1405 = vmatprep.subr.bf16.mxu0 %v706
  %1406 = vmatpush1.bf16.msra.mxu0 %v705
  %1407 = vmatprep.subr.bf16.mxu0 %v704
  %1408 = vmatpush1.bf16.msra.mxu0 %v703
  %1409 = vmatprep.subr.bf16.mxu0 %v702
  %1410 = vmatpush1.bf16.msra.mxu0 %v701
  %1411 = vmatprep.subr.bf16.mxu0 %v700
  %1412 = vmatpush1.bf16.msra.mxu0 %v699
  %1413 = vmatprep.subr.bf16.mxu0 %v698
  %1414 = vmatpush1.bf16.msra.mxu0 %v697
  %1415 = vmatprep.subr.bf16.mxu0 %v728
  %1416 = vmatpush2.bf16.msra.mxu0 %v727
  %1417 = vmatprep.subr.bf16.mxu0 %v726
  %1418 = vmatpush2.bf16.msra.mxu0 %v725
  %1419 = vmatprep.subr.bf16.mxu0 %v724
  %1420 = vmatpush2.bf16.msra.mxu0 %v723
  %1421 = vmatprep.subr.bf16.mxu0 %v722
  %1422 = vmatpush2.bf16.msra.mxu0 %v721
  %1423 = vmatprep.subr.bf16.mxu0 %v720
  %1424 = vmatpush2.bf16.msra.mxu0 %v719
  %1425 = vmatprep.subr.bf16.mxu0 %v718
  %1426 = vmatpush2.bf16.msra.mxu0 %v717
  %1427 = vmatprep.subr.bf16.mxu0 %v716
  %1428 = vmatpush2.bf16.msra.mxu0 %v715
  %1429 = vmatprep.subr.bf16.mxu0 %v714
  %1430 = vmatpush2.bf16.msra.mxu0 %v713
  %1431 = vmatprep.mubr.bf16.mxu0 %v1308
  %1432 = vmatmul.mubr.bf16.gmra.mxu0 %v1307
  %v1433 = vpop.f32.mrf.mxu0
  %v1434 = vadd.f32 0.0, %v1433
  %v1435 = vpop.f32.mrf.mxu0
  %v1436 = vadd.f32 0.0, %v1435
  %v1437 = vpop.f32.mrf.mxu0
  %v1438 = vpop.f32.mrf.mxu0
  %1439 = vdwg.mxu0
  %1440 = vmatprep.subr.bf16.mxu0 %v744
  %1441 = vmatpush1.bf16.msra.mxu0 %v743
  %1442 = vmatprep.subr.bf16.mxu0 %v742
  %1443 = vmatpush1.bf16.msra.mxu0 %v741
  %1444 = vmatprep.subr.bf16.mxu0 %v740
  %1445 = vmatpush1.bf16.msra.mxu0 %v739
  %1446 = vmatprep.subr.bf16.mxu0 %v738
  %1447 = vmatpush1.bf16.msra.mxu0 %v737
  %1448 = vmatprep.subr.bf16.mxu0 %v736
  %1449 = vmatpush1.bf16.msra.mxu0 %v735
  %1450 = vmatprep.subr.bf16.mxu0 %v734
  %1451 = vmatpush1.bf16.msra.mxu0 %v733
  %1452 = vmatprep.subr.bf16.mxu0 %v732
  %1453 = vmatpush1.bf16.msra.mxu0 %v731
  %1454 = vmatprep.subr.bf16.mxu0 %v730
  %1455 = vmatpush1.bf16.msra.mxu0 %v729
  %1456 = vmatprep.subr.bf16.mxu0 0
  %1457 = vmatpush2.bf16.msra.mxu0 0
  %1458 = vmatprep.subr.bf16.mxu0 0
  %1459 = vmatpush2.bf16.msra.mxu0 0
  %1460 = vmatprep.subr.bf16.mxu0 0
  %1461 = vmatpush2.bf16.msra.mxu0 0
  %1462 = vmatprep.subr.bf16.mxu0 0
  %1463 = vmatpush2.bf16.msra.mxu0 0
  %1464 = vmatprep.subr.bf16.mxu0 0
  %1465 = vmatpush2.bf16.msra.mxu0 0
  %1466 = vmatprep.subr.bf16.mxu0 0
  %1467 = vmatpush2.bf16.msra.mxu0 0
  %1468 = vmatprep.subr.bf16.mxu0 %v748
  %1469 = vmatpush2.bf16.msra.mxu0 %v747
  %1470 = vmatprep.subr.bf16.mxu0 %v746
  %1471 = vmatpush2.bf16.msra.mxu0 %v745
  %1472 = vmatprep.mubr.bf16.mxu0 %v1315
  %1473 = vmatmul.mubr.bf16.gmra.mxu0 %v1309
  %v1474 = vpop.f32.mrf.mxu0
  %v1475 = vadd.f32 %v1434, %v1474
  %v1476 = vpop.f32.mrf.mxu0
  %v1477 = vadd.f32 %v1436, %v1476
  %v1478 = vpop.f32.mrf.mxu0
  %v1479 = vpop.f32.mrf.mxu0
  %1480 = vdwg.mxu0
  %v1481 = vmax.f32 %v1393, %v1475
  %v1482 = vmax.f32 %v1395, %v1477
  %v1483 = vpack.c.bf16 %v1481, %v1481
  %v1484 = vpack.c.bf16 %v1482, %v1482
  %v1487 = vcombine.low %v1483, %v1484
  %v1489 = vunpack.c.l.s4 1966171168
  %v1490 = vunpack.c.0.s8 %v1489
  %v1491 = vlaneseq
  %v1492 = vshrl.u32 %v1491, 7
  %v1493 = vsub.s32 %v1490, %v1492
  %v1494 = vrot.slane %v1487, %v1493
  %v1496 = vunpack.c.l.s4 1966171168
  %v1497 = vunpack.c.0.s8 %v1496
  %v1498 = vlaneseq
  %v1499 = vshrl.u32 %v1498, 7
  %v1500 = vsub.s32 %v1497, %v1499
  %v1501 = vrot.slane %v1494, %v1500
  %v1502 = vunpack.i.l.s16 %v1501
  %v1503 = vunpack.i.h.s16 %v1501
  %v1504 = vpack.i.b16 %v1502, %v1502
  %v1505 = vpack.i.b16 %v1503, %v1503
  %v1507 = vunpack.c.l.s4 286326784
  %v1508 = vunpack.c.0.s8 %v1507
  %v1509 = vlaneseq
  %v1510 = vshrl.u32 %v1509, 7
  %v1511 = vsub.s32 %v1508, %v1510
  %v1512 = vrot.slane %v1504, %v1511
  %v1514 = vunpack.c.l.s4 286326784
  %v1515 = vunpack.c.0.s8 %v1514
  %v1516 = vlaneseq
  %v1517 = vshrl.u32 %v1516, 7
  %v1518 = vsub.s32 %v1515, %v1517
  %v1519 = vrot.slane %v1505, %v1518
  %vm1522 = vcmask 1041409
  %vm1523 = vsmask.f32 1280
  %vm1524 = vmand %vm1522, %vm1523
  %vm1525 = vcmask 652293
  %vm1526 = vsmask.f32 5376
  %vm1527 = vmand %vm1525, %vm1526
  %vm1528 = vmor %vm1527, %vm1524
  %v1529 = vld [vmem:[%s3] sm:$0x22]
  %v1530 = vsel %vm1528, %v1512, %v1529
  %1531 = vst [vmem:[%s3] sm:$0x22] %v1530
  %v1532 = vld [vmem:[%s3 + $0x10] sm:$0x22]
  %v1533 = vsel %vm1528, %v1519, %v1532
  %1534 = vst [vmem:[%s3 + $0x10] sm:$0x22] %v1533
  %v1535 = vld [vmem:[%s0] sm:$0x88]
  %v1536 = vld [vmem:[%s0 + $0x8] sm:$0x88]
  %v1537 = vld [vmem:[%s0 + $0x40] sm:$0x88]
  %v1538 = vld [vmem:[%s0 + $0x48] sm:$0x88]
  %v1540 = vshrl.u32 %v1535, 16
  %v1542 = vrot.slane %v1540, 4
  %v1543 = vrot.slane %v1542, 4
  %v1545 = vshrl.u32 %v1536, 16
  %v1547 = vrot.slane %v1545, 4
  %v1548 = vrot.slane %v1547, 4
  %v1550 = vshrl.u32 %v1537, 16
  %v1552 = vrot.slane %v1550, 4
  %v1553 = vrot.slane %v1552, 4
  %v1555 = vshrl.u32 %v1538, 16
  %v1557 = vrot.slane %v1555, 4
  %v1558 = vrot.slane %v1557, 4
  %v1563 = vmax.bf16 %v1535, %v1543
  %v1564 = vmax.bf16 %v1536, %v1548
  %v1565 = vmax.bf16 %v1537, %v1553
  %v1566 = vmax.bf16 %v1538, %v1558
  %v1571 = vunpack.c.l.b16 %v1563
  %v1572 = vunpack.c.h.b16 %v1563
  %v1573 = vunpack.c.l.b16 %v1564
  %v1574 = vunpack.c.h.b16 %v1564
  %v1575 = vunpack.c.l.b16 %v1565
  %v1576 = vunpack.c.h.b16 %v1565
  %v1577 = vunpack.c.l.b16 %v1566
  %v1578 = vunpack.c.h.b16 %v1566
  %v1579 = vpack.c.b16 %v1571, %v1571
  %v1580 = vpack.c.b16 %v1572, %v1572
  %v1581 = vpack.c.b16 %v1573, %v1573
  %v1582 = vpack.c.b16 %v1574, %v1574
  %v1583 = vpack.c.b16 %v1575, %v1575
  %v1584 = vpack.c.b16 %v1576, %v1576
  %v1585 = vpack.c.b16 %v1577, %v1577
  %v1586 = vpack.c.b16 %v1578, %v1578
  %v1587 = vunpack.c.l.b16 %v1579
  %v1588 = vunpack.c.l.b16 %v1580
  %v1589 = vunpack.c.l.b16 %v1581
  %v1590 = vunpack.c.l.b16 %v1582
  %v1591 = vunpack.c.l.b16 %v1583
  %v1592 = vunpack.c.l.b16 %v1584
  %v1593 = vunpack.c.l.b16 %v1585
  %v1594 = vunpack.c.l.b16 %v1586
  %v1595 = vrot.slane %v1587, 6
  %v1596 = vrot.slane %v1591, 5
  %v1597 = vsel %vm180, %v1596, %v1595
  %v1598 = vrot.slane %v1588, 6
  %v1599 = vrot.slane %v1592, 5
  %v1600 = vsel %vm180, %v1599, %v1598
  %v1601 = vrot.slane %v1589, 6
  %v1602 = vrot.slane %v1593, 5
  %v1603 = vsel %vm180, %v1602, %v1601
  %v1604 = vrot.slane %v1590, 6
  %v1605 = vrot.slane %v1594, 5
  %v1606 = vsel %vm180, %v1605, %v1604
  %v1607 = vpack.c.b16 %v1597, %v1597
  %v1608 = vpack.c.b16 %v1600, %v1600
  %v1609 = vpack.c.b16 %v1603, %v1603
  %v1610 = vpack.c.b16 %v1606, %v1606
  %v1615 = vsel %vm455, %v1610, 0
  %1617 = vmatprep.subr.bf16.mxu0 %v366
  %1618 = vmatpush1.bf16.msra.mxu0 %v365
  %1619 = vmatprep.subr.bf16.mxu0 %v364
  %1620 = vmatpush1.bf16.msra.mxu0 %v363
  %1621 = vmatprep.subr.bf16.mxu0 %v362
  %1622 = vmatpush1.bf16.msra.mxu0 %v361
  %1623 = vmatprep.subr.bf16.mxu0 %v360
  %1624 = vmatpush1.bf16.msra.mxu0 %v359
  %1625 = vmatprep.subr.bf16.mxu0 %v358
  %1626 = vmatpush1.bf16.msra.mxu0 %v357
  %1627 = vmatprep.subr.bf16.mxu0 %v356
  %1628 = vmatpush1.bf16.msra.mxu0 %v355
  %1629 = vmatprep.subr.bf16.mxu0 %v354
  %1630 = vmatpush1.bf16.msra.mxu0 %v353
  %1631 = vmatprep.subr.bf16.mxu0 %v352
  %1632 = vmatpush1.bf16.msra.mxu0 %v351
  %1633 = vmatprep.subr.bf16.mxu0 %v382
  %1634 = vmatpush2.bf16.msra.mxu0 %v381
  %1635 = vmatprep.subr.bf16.mxu0 %v380
  %1636 = vmatpush2.bf16.msra.mxu0 %v379
  %1637 = vmatprep.subr.bf16.mxu0 %v378
  %1638 = vmatpush2.bf16.msra.mxu0 %v377
  %1639 = vmatprep.subr.bf16.mxu0 %v376
  %1640 = vmatpush2.bf16.msra.mxu0 %v375
  %1641 = vmatprep.subr.bf16.mxu0 %v374
  %1642 = vmatpush2.bf16.msra.mxu0 %v373
  %1643 = vmatprep.subr.bf16.mxu0 %v372
  %1644 = vmatpush2.bf16.msra.mxu0 %v371
  %1645 = vmatprep.subr.bf16.mxu0 %v370
  %1646 = vmatpush2.bf16.msra.mxu0 %v369
  %1647 = vmatprep.subr.bf16.mxu0 %v368
  %1648 = vmatpush2.bf16.msra.mxu0 %v367
  %1649 = vmatprep.mubr.bf16.mxu0 %v1608
  %1650 = vmatmul.mubr.bf16.gmra.mxu0 %v1607
  %v1651 = vpop.f32.mrf.mxu0
  %v1652 = vadd.f32 0.0, %v1651
  %v1653 = vpop.f32.mrf.mxu0
  %v1654 = vadd.f32 0.0, %v1653
  %v1655 = vpop.f32.mrf.mxu0
  %v1656 = vpop.f32.mrf.mxu0
  %1657 = vdwg.mxu0
  %1658 = vmatprep.subr.bf16.mxu0 %v398
  %1659 = vmatpush1.bf16.msra.mxu0 %v397
  %1660 = vmatprep.subr.bf16.mxu0 %v396
  %1661 = vmatpush1.bf16.msra.mxu0 %v395
  %1662 = vmatprep.subr.bf16.mxu0 %v394
  %1663 = vmatpush1.bf16.msra.mxu0 %v393
  %1664 = vmatprep.subr.bf16.mxu0 %v392
  %1665 = vmatpush1.bf16.msra.mxu0 %v391
  %1666 = vmatprep.subr.bf16.mxu0 %v390
  %1667 = vmatpush1.bf16.msra.mxu0 %v389
  %1668 = vmatprep.subr.bf16.mxu0 %v388
  %1669 = vmatpush1.bf16.msra.mxu0 %v387
  %1670 = vmatprep.subr.bf16.mxu0 %v386
  %1671 = vmatpush1.bf16.msra.mxu0 %v385
  %1672 = vmatprep.subr.bf16.mxu0 %v384
  %1673 = vmatpush1.bf16.msra.mxu0 %v383
  %1674 = vmatprep.subr.bf16.mxu0 0
  %1675 = vmatpush2.bf16.msra.mxu0 0
  %1676 = vmatprep.subr.bf16.mxu0 0
  %1677 = vmatpush2.bf16.msra.mxu0 0
  %1678 = vmatprep.subr.bf16.mxu0 0
  %1679 = vmatpush2.bf16.msra.mxu0 0
  %1680 = vmatprep.subr.bf16.mxu0 0
  %1681 = vmatpush2.bf16.msra.mxu0 0
  %1682 = vmatprep.subr.bf16.mxu0 0
  %1683 = vmatpush2.bf16.msra.mxu0 0
  %1684 = vmatprep.subr.bf16.mxu0 0
  %1685 = vmatpush2.bf16.msra.mxu0 0
  %1686 = vmatprep.subr.bf16.mxu0 %v402
  %1687 = vmatpush2.bf16.msra.mxu0 %v401
  %1688 = vmatprep.subr.bf16.mxu0 %v400
  %1689 = vmatpush2.bf16.msra.mxu0 %v399
  %1690 = vmatprep.mubr.bf16.mxu0 %v1615
  %1691 = vmatmul.mubr.bf16.gmra.mxu0 %v1609
  %v1692 = vpop.f32.mrf.mxu0
  %v1693 = vadd.f32 %v1652, %v1692
  %v1694 = vpop.f32.mrf.mxu0
  %v1695 = vadd.f32 %v1654, %v1694
  %v1696 = vpop.f32.mrf.mxu0
  %v1697 = vpop.f32.mrf.mxu0
  %1698 = vdwg.mxu0
  %1699 = vmatprep.subr.bf16.mxu0 %v712
  %1700 = vmatpush1.bf16.msra.mxu0 %v711
  %1701 = vmatprep.subr.bf16.mxu0 %v710
  %1702 = vmatpush1.bf16.msra.mxu0 %v709
  %1703 = vmatprep.subr.bf16.mxu0 %v708
  %1704 = vmatpush1.bf16.msra.mxu0 %v707
  %1705 = vmatprep.subr.bf16.mxu0 %v706
  %1706 = vmatpush1.bf16.msra.mxu0 %v705
  %1707 = vmatprep.subr.bf16.mxu0 %v704
  %1708 = vmatpush1.bf16.msra.mxu0 %v703
  %1709 = vmatprep.subr.bf16.mxu0 %v702
  %1710 = vmatpush1.bf16.msra.mxu0 %v701
  %1711 = vmatprep.subr.bf16.mxu0 %v700
  %1712 = vmatpush1.bf16.msra.mxu0 %v699
  %1713 = vmatprep.subr.bf16.mxu0 %v698
  %1714 = vmatpush1.bf16.msra.mxu0 %v697
  %1715 = vmatprep.subr.bf16.mxu0 %v728
  %1716 = vmatpush2.bf16.msra.mxu0 %v727
  %1717 = vmatprep.subr.bf16.mxu0 %v726
  %1718 = vmatpush2.bf16.msra.mxu0 %v725
  %1719 = vmatprep.subr.bf16.mxu0 %v724
  %1720 = vmatpush2.bf16.msra.mxu0 %v723
  %1721 = vmatprep.subr.bf16.mxu0 %v722
  %1722 = vmatpush2.bf16.msra.mxu0 %v721
  %1723 = vmatprep.subr.bf16.mxu0 %v720
  %1724 = vmatpush2.bf16.msra.mxu0 %v719
  %1725 = vmatprep.subr.bf16.mxu0 %v718
  %1726 = vmatpush2.bf16.msra.mxu0 %v717
  %1727 = vmatprep.subr.bf16.mxu0 %v716
  %1728 = vmatpush2.bf16.msra.mxu0 %v715
  %1729 = vmatprep.subr.bf16.mxu0 %v714
  %1730 = vmatpush2.bf16.msra.mxu0 %v713
  %1731 = vmatprep.mubr.bf16.mxu0 %v1608
  %1732 = vmatmul.mubr.bf16.gmra.mxu0 %v1607
  %v1733 = vpop.f32.mrf.mxu0
  %v1734 = vadd.f32 0.0, %v1733
  %v1735 = vpop.f32.mrf.mxu0
  %v1736 = vadd.f32 0.0, %v1735
  %v1737 = vpop.f32.mrf.mxu0
  %v1738 = vpop.f32.mrf.mxu0
  %1739 = vdwg.mxu0
  %1740 = vmatprep.subr.bf16.mxu0 %v744
  %1741 = vmatpush1.bf16.msra.mxu0 %v743
  %1742 = vmatprep.subr.bf16.mxu0 %v742
  %1743 = vmatpush1.bf16.msra.mxu0 %v741
  %1744 = vmatprep.subr.bf16.mxu0 %v740
  %1745 = vmatpush1.bf16.msra.mxu0 %v739
  %1746 = vmatprep.subr.bf16.mxu0 %v738
  %1747 = vmatpush1.bf16.msra.mxu0 %v737
  %1748 = vmatprep.subr.bf16.mxu0 %v736
  %1749 = vmatpush1.bf16.msra.mxu0 %v735
  %1750 = vmatprep.subr.bf16.mxu0 %v734
  %1751 = vmatpush1.bf16.msra.mxu0 %v733
  %1752 = vmatprep.subr.bf16.mxu0 %v732
  %1753 = vmatpush1.bf16.msra.mxu0 %v731
  %1754 = vmatprep.subr.bf16.mxu0 %v730
  %1755 = vmatpush1.bf16.msra.mxu0 %v729
  %1756 = vmatprep.subr.bf16.mxu0 0
  %1757 = vmatpush2.bf16.msra.mxu0 0
  %1758 = vmatprep.subr.bf16.mxu0 0
  %1759 = vmatpush2.bf16.msra.mxu0 0
  %1760 = vmatprep.subr.bf16.mxu0 0
  %1761 = vmatpush2.bf16.msra.mxu0 0
  %1762 = vmatprep.subr.bf16.mxu0 0
  %1763 = vmatpush2.bf16.msra.mxu0 0
  %1764 = vmatprep.subr.bf16.mxu0 0
  %1765 = vmatpush2.bf16.msra.mxu0 0
  %1766 = vmatprep.subr.bf16.mxu0 0
  %1767 = vmatpush2.bf16.msra.mxu0 0
  %1768 = vmatprep.subr.bf16.mxu0 %v748
  %1769 = vmatpush2.bf16.msra.mxu0 %v747
  %1770 = vmatprep.subr.bf16.mxu0 %v746
  %1771 = vmatpush2.bf16.msra.mxu0 %v745
  %1772 = vmatprep.mubr.bf16.mxu0 %v1615
  %1773 = vmatmul.mubr.bf16.gmra.mxu0 %v1609
  %v1774 = vpop.f32.mrf.mxu0
  %v1775 = vadd.f32 %v1734, %v1774
  %v1776 = vpop.f32.mrf.mxu0
  %v1777 = vadd.f32 %v1736, %v1776
  %v1778 = vpop.f32.mrf.mxu0
  %v1779 = vpop.f32.mrf.mxu0
  %1780 = vdwg.mxu0
  %v1781 = vmax.f32 %v1693, %v1775
  %v1782 = vmax.f32 %v1695, %v1777
  %v1783 = vpack.c.bf16 %v1781, %v1781
  %v1784 = vpack.c.bf16 %v1782, %v1782
  %v1787 = vcombine.low %v1783, %v1784
  %v1789 = vunpack.c.l.s4 1966171168
  %v1790 = vunpack.c.0.s8 %v1789
  %v1791 = vlaneseq
  %v1792 = vshrl.u32 %v1791, 7
  %v1793 = vsub.s32 %v1790, %v1792
  %v1794 = vrot.slane %v1787, %v1793
  %v1796 = vunpack.c.l.s4 1966171168
  %v1797 = vunpack.c.0.s8 %v1796
  %v1798 = vlaneseq
  %v1799 = vshrl.u32 %v1798, 7
  %v1800 = vsub.s32 %v1797, %v1799
  %v1801 = vrot.slane %v1794, %v1800
  %v1802 = vunpack.i.l.s16 %v1801
  %v1803 = vunpack.i.h.s16 %v1801
  %v1804 = vpack.i.b16 %v1802, %v1802
  %v1805 = vpack.i.b16 %v1803, %v1803
  %v1807 = vunpack.c.l.s4 286326784
  %v1808 = vunpack.c.0.s8 %v1807
  %v1809 = vlaneseq
  %v1810 = vshrl.u32 %v1809, 7
  %v1811 = vsub.s32 %v1808, %v1810
  %v1812 = vrot.slane %v1804, %v1811
  %v1814 = vunpack.c.l.s4 286326784
  %v1815 = vunpack.c.0.s8 %v1814
  %v1816 = vlaneseq
  %v1817 = vshrl.u32 %v1816, 7
  %v1818 = vsub.s32 %v1815, %v1817
  %v1819 = vrot.slane %v1805, %v1818
  %vm1822 = vsmask.f32 7942
  %vm1823 = vmand %vm1522, %vm1822
  %vm1824 = vsmask.f32 7958
  %vm1825 = vmand %vm1525, %vm1824
  %vm1826 = vmor %vm1825, %vm1823
  %v1827 = vld [vmem:[%s3] sm:$0x22]
  %v1828 = vsel %vm1826, %v1812, %v1827
  %1829 = vst [vmem:[%s3] sm:$0x22] %v1828
  %v1830 = vld [vmem:[%s3 + $0x10] sm:$0x22]
  %v1831 = vsel %vm1826, %v1819, %v1830
  %1832 = vst [vmem:[%s3 + $0x10] sm:$0x22] %v1831
  %v1833 = vld [vmem:[%s0 + $0x10] sm:$0x11]
  %v1834 = vld [vmem:[%s0 + $0x18] sm:$0x11]
  %v1835 = vld [vmem:[%s0 + $0x50] sm:$0x11]
  %v1836 = vld [vmem:[%s0 + $0x58] sm:$0x11]
  %v1838 = vshrl.u32 %v1833, 16
  %v1840 = vrot.slane %v1838, 4
  %v1841 = vrot.slane %v1840, 4
  %v1843 = vshrl.u32 %v1834, 16
  %v1845 = vrot.slane %v1843, 4
  %v1846 = vrot.slane %v1845, 4
  %v1848 = vshrl.u32 %v1835, 16
  %v1850 = vrot.slane %v1848, 4
  %v1851 = vrot.slane %v1850, 4
  %v1853 = vshrl.u32 %v1836, 16
  %v1855 = vrot.slane %v1853, 4
  %v1856 = vrot.slane %v1855, 4
  %v1861 = vmax.bf16 %v1833, %v1841
  %v1862 = vmax.bf16 %v1834, %v1846
  %v1863 = vmax.bf16 %v1835, %v1851
  %v1864 = vmax.bf16 %v1836, %v1856
  %v1869 = vunpack.c.l.b16 %v1861
  %v1870 = vunpack.c.h.b16 %v1861
  %v1871 = vunpack.c.l.b16 %v1862
  %v1872 = vunpack.c.h.b16 %v1862
  %v1873 = vunpack.c.l.b16 %v1863
  %v1874 = vunpack.c.h.b16 %v1863
  %v1875 = vunpack.c.l.b16 %v1864
  %v1876 = vunpack.c.h.b16 %v1864
  %v1877 = vpack.c.b16 %v1869, %v1869
  %v1878 = vpack.c.b16 %v1870, %v1870
  %v1879 = vpack.c.b16 %v1871, %v1871
  %v1880 = vpack.c.b16 %v1872, %v1872
  %v1881 = vpack.c.b16 %v1873, %v1873
  %v1882 = vpack.c.b16 %v1874, %v1874
  %v1883 = vpack.c.b16 %v1875, %v1875
  %v1884 = vpack.c.b16 %v1876, %v1876
  %v1885 = vunpack.c.l.b16 %v1877
  %v1886 = vunpack.c.l.b16 %v1878
  %v1887 = vunpack.c.l.b16 %v1879
  %v1888 = vunpack.c.l.b16 %v1880
  %v1889 = vunpack.c.l.b16 %v1881
  %v1890 = vunpack.c.l.b16 %v1882
  %v1891 = vunpack.c.l.b16 %v1883
  %v1892 = vunpack.c.l.b16 %v1884
  %v1893 = vrot.slane %v1889, 7
  %v1894 = vsel %vm180, %v1893, %v1885
  %v1895 = vrot.slane %v1890, 7
  %v1896 = vsel %vm180, %v1895, %v1886
  %v1897 = vrot.slane %v1891, 7
  %v1898 = vsel %vm180, %v1897, %v1887
  %v1899 = vrot.slane %v1892, 7
  %v1900 = vsel %vm180, %v1899, %v1888
  %v1901 = vpack.c.b16 %v1894, %v1894
  %v1902 = vpack.c.b16 %v1896, %v1896
  %v1903 = vpack.c.b16 %v1898, %v1898
  %v1904 = vpack.c.b16 %v1900, %v1900
  %v1909 = vsel %vm455, %v1904, 0
  %1911 = vmatprep.subr.bf16.mxu0 %v366
  %1912 = vmatpush1.bf16.msra.mxu0 %v365
  %1913 = vmatprep.subr.bf16.mxu0 %v364
  %1914 = vmatpush1.bf16.msra.mxu0 %v363
  %1915 = vmatprep.subr.bf16.mxu0 %v362
  %1916 = vmatpush1.bf16.msra.mxu0 %v361
  %1917 = vmatprep.subr.bf16.mxu0 %v360
  %1918 = vmatpush1.bf16.msra.mxu0 %v359
  %1919 = vmatprep.subr.bf16.mxu0 %v358
  %1920 = vmatpush1.bf16.msra.mxu0 %v357
  %1921 = vmatprep.subr.bf16.mxu0 %v356
  %1922 = vmatpush1.bf16.msra.mxu0 %v355
  %1923 = vmatprep.subr.bf16.mxu0 %v354
  %1924 = vmatpush1.bf16.msra.mxu0 %v353
  %1925 = vmatprep.subr.bf16.mxu0 %v352
  %1926 = vmatpush1.bf16.msra.mxu0 %v351
  %1927 = vmatprep.subr.bf16.mxu0 %v382
  %1928 = vmatpush2.bf16.msra.mxu0 %v381
  %1929 = vmatprep.subr.bf16.mxu0 %v380
  %1930 = vmatpush2.bf16.msra.mxu0 %v379
  %1931 = vmatprep.subr.bf16.mxu0 %v378
  %1932 = vmatpush2.bf16.msra.mxu0 %v377
  %1933 = vmatprep.subr.bf16.mxu0 %v376
  %1934 = vmatpush2.bf16.msra.mxu0 %v375
  %1935 = vmatprep.subr.bf16.mxu0 %v374
  %1936 = vmatpush2.bf16.msra.mxu0 %v373
  %1937 = vmatprep.subr.bf16.mxu0 %v372
  %1938 = vmatpush2.bf16.msra.mxu0 %v371
  %1939 = vmatprep.subr.bf16.mxu0 %v370
  %1940 = vmatpush2.bf16.msra.mxu0 %v369
  %1941 = vmatprep.subr.bf16.mxu0 %v368
  %1942 = vmatpush2.bf16.msra.mxu0 %v367
  %1943 = vmatprep.mubr.bf16.mxu0 %v1902
  %1944 = vmatmul.mubr.bf16.gmra.mxu0 %v1901
  %v1945 = vpop.f32.mrf.mxu0
  %v1946 = vadd.f32 0.0, %v1945
  %v1947 = vpop.f32.mrf.mxu0
  %v1948 = vadd.f32 0.0, %v1947
  %v1949 = vpop.f32.mrf.mxu0
  %v1950 = vpop.f32.mrf.mxu0
  %1951 = vdwg.mxu0
  %1952 = vmatprep.subr.bf16.mxu0 %v398
  %1953 = vmatpush1.bf16.msra.mxu0 %v397
  %1954 = vmatprep.subr.bf16.mxu0 %v396
  %1955 = vmatpush1.bf16.msra.mxu0 %v395
  %1956 = vmatprep.subr.bf16.mxu0 %v394
  %1957 = vmatpush1.bf16.msra.mxu0 %v393
  %1958 = vmatprep.subr.bf16.mxu0 %v392
  %1959 = vmatpush1.bf16.msra.mxu0 %v391
  %1960 = vmatprep.subr.bf16.mxu0 %v390
  %1961 = vmatpush1.bf16.msra.mxu0 %v389
  %1962 = vmatprep.subr.bf16.mxu0 %v388
  %1963 = vmatpush1.bf16.msra.mxu0 %v387
  %1964 = vmatprep.subr.bf16.mxu0 %v386
  %1965 = vmatpush1.bf16.msra.mxu0 %v385
  %1966 = vmatprep.subr.bf16.mxu0 %v384
  %1967 = vmatpush1.bf16.msra.mxu0 %v383
  %1968 = vmatprep.subr.bf16.mxu0 0
  %1969 = vmatpush2.bf16.msra.mxu0 0
  %1970 = vmatprep.subr.bf16.mxu0 0
  %1971 = vmatpush2.bf16.msra.mxu0 0
  %1972 = vmatprep.subr.bf16.mxu0 0
  %1973 = vmatpush2.bf16.msra.mxu0 0
  %1974 = vmatprep.subr.bf16.mxu0 0
  %1975 = vmatpush2.bf16.msra.mxu0 0
  %1976 = vmatprep.subr.bf16.mxu0 0
  %1977 = vmatpush2.bf16.msra.mxu0 0
  %1978 = vmatprep.subr.bf16.mxu0 0
  %1979 = vmatpush2.bf16.msra.mxu0 0
  %1980 = vmatprep.subr.bf16.mxu0 %v402
  %1981 = vmatpush2.bf16.msra.mxu0 %v401
  %1982 = vmatprep.subr.bf16.mxu0 %v400
  %1983 = vmatpush2.bf16.msra.mxu0 %v399
  %1984 = vmatprep.mubr.bf16.mxu0 %v1909
  %1985 = vmatmul.mubr.bf16.gmra.mxu0 %v1903
  %v1986 = vpop.f32.mrf.mxu0
  %v1987 = vadd.f32 %v1946, %v1986
  %v1988 = vpop.f32.mrf.mxu0
  %v1989 = vadd.f32 %v1948, %v1988
  %v1990 = vpop.f32.mrf.mxu0
  %v1991 = vpop.f32.mrf.mxu0
  %1992 = vdwg.mxu0
  %1993 = vmatprep.subr.bf16.mxu0 %v712
  %1994 = vmatpush1.bf16.msra.mxu0 %v711
  %1995 = vmatprep.subr.bf16.mxu0 %v710
  %1996 = vmatpush1.bf16.msra.mxu0 %v709
  %1997 = vmatprep.subr.bf16.mxu0 %v708
  %1998 = vmatpush1.bf16.msra.mxu0 %v707
  %1999 = vmatprep.subr.bf16.mxu0 %v706
  %2000 = vmatpush1.bf16.msra.mxu0 %v705
  %2001 = vmatprep.subr.bf16.mxu0 %v704
  %2002 = vmatpush1.bf16.msra.mxu0 %v703
  %2003 = vmatprep.subr.bf16.mxu0 %v702
  %2004 = vmatpush1.bf16.msra.mxu0 %v701
  %2005 = vmatprep.subr.bf16.mxu0 %v700
  %2006 = vmatpush1.bf16.msra.mxu0 %v699
  %2007 = vmatprep.subr.bf16.mxu0 %v698
  %2008 = vmatpush1.bf16.msra.mxu0 %v697
  %2009 = vmatprep.subr.bf16.mxu0 %v728
  %2010 = vmatpush2.bf16.msra.mxu0 %v727
  %2011 = vmatprep.subr.bf16.mxu0 %v726
  %2012 = vmatpush2.bf16.msra.mxu0 %v725
  %2013 = vmatprep.subr.bf16.mxu0 %v724
  %2014 = vmatpush2.bf16.msra.mxu0 %v723
  %2015 = vmatprep.subr.bf16.mxu0 %v722
  %2016 = vmatpush2.bf16.msra.mxu0 %v721
  %2017 = vmatprep.subr.bf16.mxu0 %v720
  %2018 = vmatpush2.bf16.msra.mxu0 %v719
  %2019 = vmatprep.subr.bf16.mxu0 %v718
  %2020 = vmatpush2.bf16.msra.mxu0 %v717
  %2021 = vmatprep.subr.bf16.mxu0 %v716
  %2022 = vmatpush2.bf16.msra.mxu0 %v715
  %2023 = vmatprep.subr.bf16.mxu0 %v714
  %2024 = vmatpush2.bf16.msra.mxu0 %v713
  %2025 = vmatprep.mubr.bf16.mxu0 %v1902
  %2026 = vmatmul.mubr.bf16.gmra.mxu0 %v1901
  %v2027 = vpop.f32.mrf.mxu0
  %v2028 = vadd.f32 0.0, %v2027
  %v2029 = vpop.f32.mrf.mxu0
  %v2030 = vadd.f32 0.0, %v2029
  %v2031 = vpop.f32.mrf.mxu0
  %v2032 = vpop.f32.mrf.mxu0
  %2033 = vdwg.mxu0
  %2034 = vmatprep.subr.bf16.mxu0 %v744
  %2035 = vmatpush1.bf16.msra.mxu0 %v743
  %2036 = vmatprep.subr.bf16.mxu0 %v742
  %2037 = vmatpush1.bf16.msra.mxu0 %v741
  %2038 = vmatprep.subr.bf16.mxu0 %v740
  %2039 = vmatpush1.bf16.msra.mxu0 %v739
  %2040 = vmatprep.subr.bf16.mxu0 %v738
  %2041 = vmatpush1.bf16.msra.mxu0 %v737
  %2042 = vmatprep.subr.bf16.mxu0 %v736
  %2043 = vmatpush1.bf16.msra.mxu0 %v735
  %2044 = vmatprep.subr.bf16.mxu0 %v734
  %2045 = vmatpush1.bf16.msra.mxu0 %v733
  %2046 = vmatprep.subr.bf16.mxu0 %v732
  %2047 = vmatpush1.bf16.msra.mxu0 %v731
  %2048 = vmatprep.subr.bf16.mxu0 %v730
  %2049 = vmatpush1.bf16.msra.mxu0 %v729
  %2050 = vmatprep.subr.bf16.mxu0 0
  %2051 = vmatpush2.bf16.msra.mxu0 0
  %2052 = vmatprep.subr.bf16.mxu0 0
  %2053 = vmatpush2.bf16.msra.mxu0 0
  %2054 = vmatprep.subr.bf16.mxu0 0
  %2055 = vmatpush2.bf16.msra.mxu0 0
  %2056 = vmatprep.subr.bf16.mxu0 0
  %2057 = vmatpush2.bf16.msra.mxu0 0
  %2058 = vmatprep.subr.bf16.mxu0 0
  %2059 = vmatpush2.bf16.msra.mxu0 0
  %2060 = vmatprep.subr.bf16.mxu0 0
  %2061 = vmatpush2.bf16.msra.mxu0 0
  %2062 = vmatprep.subr.bf16.mxu0 %v748
  %2063 = vmatpush2.bf16.msra.mxu0 %v747
  %2064 = vmatprep.subr.bf16.mxu0 %v746
  %2065 = vmatpush2.bf16.msra.mxu0 %v745
  %2066 = vmatprep.mubr.bf16.mxu0 %v1909
  %2067 = vmatmul.mubr.bf16.gmra.mxu0 %v1903
  %v2068 = vpop.f32.mrf.mxu0
  %v2069 = vadd.f32 %v2028, %v2068
  %v2070 = vpop.f32.mrf.mxu0
  %v2071 = vadd.f32 %v2030, %v2070
  %v2072 = vpop.f32.mrf.mxu0
  %v2073 = vpop.f32.mrf.mxu0
  %2074 = vdwg.mxu0
  %v2075 = vmax.f32 %v1987, %v2069
  %v2076 = vmax.f32 %v1989, %v2071
  %v2077 = vpack.c.bf16 %v2075, %v2075
  %v2078 = vpack.c.bf16 %v2076, %v2076
  %v2081 = vcombine.low %v2077, %v2078
  %v2083 = vunpack.c.l.s4 1966171168
  %v2084 = vunpack.c.0.s8 %v2083
  %v2085 = vlaneseq
  %v2086 = vshrl.u32 %v2085, 7
  %v2087 = vsub.s32 %v2084, %v2086
  %v2088 = vrot.slane %v2081, %v2087
  %v2090 = vunpack.c.l.s4 1966171168
  %v2091 = vunpack.c.0.s8 %v2090
  %v2092 = vlaneseq
  %v2093 = vshrl.u32 %v2092, 7
  %v2094 = vsub.s32 %v2091, %v2093
  %v2095 = vrot.slane %v2088, %v2094
  %v2096 = vunpack.i.l.s16 %v2095
  %v2097 = vunpack.i.h.s16 %v2095
  %v2098 = vpack.i.b16 %v2096, %v2096
  %v2099 = vpack.i.b16 %v2097, %v2097
  %v2101 = vunpack.c.l.s4 286326784
  %v2102 = vunpack.c.0.s8 %v2101
  %v2103 = vlaneseq
  %v2104 = vshrl.u32 %v2103, 7
  %v2105 = vsub.s32 %v2102, %v2104
  %v2106 = vrot.slane %v2098, %v2105
  %v2108 = vunpack.c.l.s4 286326784
  %v2109 = vunpack.c.0.s8 %v2108
  %v2110 = vlaneseq
  %v2111 = vshrl.u32 %v2110, 7
  %v2112 = vsub.s32 %v2109, %v2111
  %v2113 = vrot.slane %v2099, %v2112
  %vm2116 = vcmask 1042434
  %vm2117 = vsmask.f32 2304
  %vm2118 = vmand %vm2116, %vm2117
  %vm2119 = vcmask 653318
  %vm2120 = vsmask.f32 6400
  %vm2121 = vmand %vm2119, %vm2120
  %vm2122 = vmor %vm2121, %vm2118
  %v2123 = vld [vmem:[%s3] sm:$0x44]
  %v2124 = vsel %vm2122, %v2106, %v2123
  %2125 = vst [vmem:[%s3] sm:$0x44] %v2124
  %v2126 = vld [vmem:[%s3 + $0x10] sm:$0x44]
  %v2127 = vsel %vm2122, %v2113, %v2126
  %2128 = vst [vmem:[%s3 + $0x10] sm:$0x44] %v2127
  %v2129 = vld [vmem:[%s0 + $0x10] sm:$0x22]
  %v2130 = vld [vmem:[%s0 + $0x18] sm:$0x22]
  %v2131 = vld [vmem:[%s0 + $0x50] sm:$0x22]
  %v2132 = vld [vmem:[%s0 + $0x58] sm:$0x22]
  %v2134 = vshrl.u32 %v2129, 16
  %v2136 = vrot.slane %v2134, 4
  %v2137 = vrot.slane %v2136, 4
  %v2139 = vshrl.u32 %v2130, 16
  %v2141 = vrot.slane %v2139, 4
  %v2142 = vrot.slane %v2141, 4
  %v2144 = vshrl.u32 %v2131, 16
  %v2146 = vrot.slane %v2144, 4
  %v2147 = vrot.slane %v2146, 4
  %v2149 = vshrl.u32 %v2132, 16
  %v2151 = vrot.slane %v2149, 4
  %v2152 = vrot.slane %v2151, 4
  %v2157 = vmax.bf16 %v2129, %v2137
  %v2158 = vmax.bf16 %v2130, %v2142
  %v2159 = vmax.bf16 %v2131, %v2147
  %v2160 = vmax.bf16 %v2132, %v2152
  %v2165 = vunpack.c.l.b16 %v2157
  %v2166 = vunpack.c.h.b16 %v2157
  %v2167 = vunpack.c.l.b16 %v2158
  %v2168 = vunpack.c.h.b16 %v2158
  %v2169 = vunpack.c.l.b16 %v2159
  %v2170 = vunpack.c.h.b16 %v2159
  %v2171 = vunpack.c.l.b16 %v2160
  %v2172 = vunpack.c.h.b16 %v2160
  %v2173 = vpack.c.b16 %v2165, %v2165
  %v2174 = vpack.c.b16 %v2166, %v2166
  %v2175 = vpack.c.b16 %v2167, %v2167
  %v2176 = vpack.c.b16 %v2168, %v2168
  %v2177 = vpack.c.b16 %v2169, %v2169
  %v2178 = vpack.c.b16 %v2170, %v2170
  %v2179 = vpack.c.b16 %v2171, %v2171
  %v2180 = vpack.c.b16 %v2172, %v2172
  %v2181 = vunpack.c.l.b16 %v2173
  %v2182 = vunpack.c.l.b16 %v2174
  %v2183 = vunpack.c.l.b16 %v2175
  %v2184 = vunpack.c.l.b16 %v2176
  %v2185 = vunpack.c.l.b16 %v2177
  %v2186 = vunpack.c.l.b16 %v2178
  %v2187 = vunpack.c.l.b16 %v2179
  %v2188 = vunpack.c.l.b16 %v2180
  %v2189 = vrot.slane %v2181, 2
  %v2190 = vrot.slane %v2185, 1
  %v2191 = vsel %vm180, %v2190, %v2189
  %v2192 = vrot.slane %v2182, 2
  %v2193 = vrot.slane %v2186, 1
  %v2194 = vsel %vm180, %v2193, %v2192
  %v2195 = vrot.slane %v2183, 2
  %v2196 = vrot.slane %v2187, 1
  %v2197 = vsel %vm180, %v2196, %v2195
  %v2198 = vrot.slane %v2184, 2
  %v2199 = vrot.slane %v2188, 1
  %v2200 = vsel %vm180, %v2199, %v2198
  %v2201 = vpack.c.b16 %v2191, %v2191
  %v2202 = vpack.c.b16 %v2194, %v2194
  %v2203 = vpack.c.b16 %v2197, %v2197
  %v2204 = vpack.c.b16 %v2200, %v2200
  %v2209 = vsel %vm455, %v2204, 0
  %2211 = vmatprep.subr.bf16.mxu0 %v366
  %2212 = vmatpush1.bf16.msra.mxu0 %v365
  %2213 = vmatprep.subr.bf16.mxu0 %v364
  %2214 = vmatpush1.bf16.msra.mxu0 %v363
  %2215 = vmatprep.subr.bf16.mxu0 %v362
  %2216 = vmatpush1.bf16.msra.mxu0 %v361
  %2217 = vmatprep.subr.bf16.mxu0 %v360
  %2218 = vmatpush1.bf16.msra.mxu0 %v359
  %2219 = vmatprep.subr.bf16.mxu0 %v358
  %2220 = vmatpush1.bf16.msra.mxu0 %v357
  %2221 = vmatprep.subr.bf16.mxu0 %v356
  %2222 = vmatpush1.bf16.msra.mxu0 %v355
  %2223 = vmatprep.subr.bf16.mxu0 %v354
  %2224 = vmatpush1.bf16.msra.mxu0 %v353
  %2225 = vmatprep.subr.bf16.mxu0 %v352
  %2226 = vmatpush1.bf16.msra.mxu0 %v351
  %2227 = vmatprep.subr.bf16.mxu0 %v382
  %2228 = vmatpush2.bf16.msra.mxu0 %v381
  %2229 = vmatprep.subr.bf16.mxu0 %v380
  %2230 = vmatpush2.bf16.msra.mxu0 %v379
  %2231 = vmatprep.subr.bf16.mxu0 %v378
  %2232 = vmatpush2.bf16.msra.mxu0 %v377
  %2233 = vmatprep.subr.bf16.mxu0 %v376
  %2234 = vmatpush2.bf16.msra.mxu0 %v375
  %2235 = vmatprep.subr.bf16.mxu0 %v374
  %2236 = vmatpush2.bf16.msra.mxu0 %v373
  %2237 = vmatprep.subr.bf16.mxu0 %v372
  %2238 = vmatpush2.bf16.msra.mxu0 %v371
  %2239 = vmatprep.subr.bf16.mxu0 %v370
  %2240 = vmatpush2.bf16.msra.mxu0 %v369
  %2241 = vmatprep.subr.bf16.mxu0 %v368
  %2242 = vmatpush2.bf16.msra.mxu0 %v367
  %2243 = vmatprep.mubr.bf16.mxu0 %v2202
  %2244 = vmatmul.mubr.bf16.gmra.mxu0 %v2201
  %v2245 = vpop.f32.mrf.mxu0
  %v2246 = vadd.f32 0.0, %v2245
  %v2247 = vpop.f32.mrf.mxu0
  %v2248 = vadd.f32 0.0, %v2247
  %v2249 = vpop.f32.mrf.mxu0
  %v2250 = vpop.f32.mrf.mxu0
  %2251 = vdwg.mxu0
  %2252 = vmatprep.subr.bf16.mxu0 %v398
  %2253 = vmatpush1.bf16.msra.mxu0 %v397
  %2254 = vmatprep.subr.bf16.mxu0 %v396
  %2255 = vmatpush1.bf16.msra.mxu0 %v395
  %2256 = vmatprep.subr.bf16.mxu0 %v394
  %2257 = vmatpush1.bf16.msra.mxu0 %v393
  %2258 = vmatprep.subr.bf16.mxu0 %v392
  %2259 = vmatpush1.bf16.msra.mxu0 %v391
  %2260 = vmatprep.subr.bf16.mxu0 %v390
  %2261 = vmatpush1.bf16.msra.mxu0 %v389
  %2262 = vmatprep.subr.bf16.mxu0 %v388
  %2263 = vmatpush1.bf16.msra.mxu0 %v387
  %2264 = vmatprep.subr.bf16.mxu0 %v386
  %2265 = vmatpush1.bf16.msra.mxu0 %v385
  %2266 = vmatprep.subr.bf16.mxu0 %v384
  %2267 = vmatpush1.bf16.msra.mxu0 %v383
  %2268 = vmatprep.subr.bf16.mxu0 0
  %2269 = vmatpush2.bf16.msra.mxu0 0
  %2270 = vmatprep.subr.bf16.mxu0 0
  %2271 = vmatpush2.bf16.msra.mxu0 0
  %2272 = vmatprep.subr.bf16.mxu0 0
  %2273 = vmatpush2.bf16.msra.mxu0 0
  %2274 = vmatprep.subr.bf16.mxu0 0
  %2275 = vmatpush2.bf16.msra.mxu0 0
  %2276 = vmatprep.subr.bf16.mxu0 0
  %2277 = vmatpush2.bf16.msra.mxu0 0
  %2278 = vmatprep.subr.bf16.mxu0 0
  %2279 = vmatpush2.bf16.msra.mxu0 0
  %2280 = vmatprep.subr.bf16.mxu0 %v402
  %2281 = vmatpush2.bf16.msra.mxu0 %v401
  %2282 = vmatprep.subr.bf16.mxu0 %v400
  %2283 = vmatpush2.bf16.msra.mxu0 %v399
  %2284 = vmatprep.mubr.bf16.mxu0 %v2209
  %2285 = vmatmul.mubr.bf16.gmra.mxu0 %v2203
  %v2286 = vpop.f32.mrf.mxu0
  %v2287 = vadd.f32 %v2246, %v2286
  %v2288 = vpop.f32.mrf.mxu0
  %v2289 = vadd.f32 %v2248, %v2288
  %v2290 = vpop.f32.mrf.mxu0
  %v2291 = vpop.f32.mrf.mxu0
  %2292 = vdwg.mxu0
  %2293 = vmatprep.subr.bf16.mxu0 %v712
  %2294 = vmatpush1.bf16.msra.mxu0 %v711
  %2295 = vmatprep.subr.bf16.mxu0 %v710
  %2296 = vmatpush1.bf16.msra.mxu0 %v709
  %2297 = vmatprep.subr.bf16.mxu0 %v708
  %2298 = vmatpush1.bf16.msra.mxu0 %v707
  %2299 = vmatprep.subr.bf16.mxu0 %v706
  %2300 = vmatpush1.bf16.msra.mxu0 %v705
  %2301 = vmatprep.subr.bf16.mxu0 %v704
  %2302 = vmatpush1.bf16.msra.mxu0 %v703
  %2303 = vmatprep.subr.bf16.mxu0 %v702
  %2304 = vmatpush1.bf16.msra.mxu0 %v701
  %2305 = vmatprep.subr.bf16.mxu0 %v700
  %2306 = vmatpush1.bf16.msra.mxu0 %v699
  %2307 = vmatprep.subr.bf16.mxu0 %v698
  %2308 = vmatpush1.bf16.msra.mxu0 %v697
  %2309 = vmatprep.subr.bf16.mxu0 %v728
  %2310 = vmatpush2.bf16.msra.mxu0 %v727
  %2311 = vmatprep.subr.bf16.mxu0 %v726
  %2312 = vmatpush2.bf16.msra.mxu0 %v725
  %2313 = vmatprep.subr.bf16.mxu0 %v724
  %2314 = vmatpush2.bf16.msra.mxu0 %v723
  %2315 = vmatprep.subr.bf16.mxu0 %v722
  %2316 = vmatpush2.bf16.msra.mxu0 %v721
  %2317 = vmatprep.subr.bf16.mxu0 %v720
  %2318 = vmatpush2.bf16.msra.mxu0 %v719
  %2319 = vmatprep.subr.bf16.mxu0 %v718
  %2320 = vmatpush2.bf16.msra.mxu0 %v717
  %2321 = vmatprep.subr.bf16.mxu0 %v716
  %2322 = vmatpush2.bf16.msra.mxu0 %v715
  %2323 = vmatprep.subr.bf16.mxu0 %v714
  %2324 = vmatpush2.bf16.msra.mxu0 %v713
  %2325 = vmatprep.mubr.bf16.mxu0 %v2202
  %2326 = vmatmul.mubr.bf16.gmra.mxu0 %v2201
  %v2327 = vpop.f32.mrf.mxu0
  %v2328 = vadd.f32 0.0, %v2327
  %v2329 = vpop.f32.mrf.mxu0
  %v2330 = vadd.f32 0.0, %v2329
  %v2331 = vpop.f32.mrf.mxu0
  %v2332 = vpop.f32.mrf.mxu0
  %2333 = vdwg.mxu0
  %2334 = vmatprep.subr.bf16.mxu0 %v744
  %2335 = vmatpush1.bf16.msra.mxu0 %v743
  %2336 = vmatprep.subr.bf16.mxu0 %v742
  %2337 = vmatpush1.bf16.msra.mxu0 %v741
  %2338 = vmatprep.subr.bf16.mxu0 %v740
  %2339 = vmatpush1.bf16.msra.mxu0 %v739
  %2340 = vmatprep.subr.bf16.mxu0 %v738
  %2341 = vmatpush1.bf16.msra.mxu0 %v737
  %2342 = vmatprep.subr.bf16.mxu0 %v736
  %2343 = vmatpush1.bf16.msra.mxu0 %v735
  %2344 = vmatprep.subr.bf16.mxu0 %v734
  %2345 = vmatpush1.bf16.msra.mxu0 %v733
  %2346 = vmatprep.subr.bf16.mxu0 %v732
  %2347 = vmatpush1.bf16.msra.mxu0 %v731
  %2348 = vmatprep.subr.bf16.mxu0 %v730
  %2349 = vmatpush1.bf16.msra.mxu0 %v729
  %2350 = vmatprep.subr.bf16.mxu0 0
  %2351 = vmatpush2.bf16.msra.mxu0 0
  %2352 = vmatprep.subr.bf16.mxu0 0
  %2353 = vmatpush2.bf16.msra.mxu0 0
  %2354 = vmatprep.subr.bf16.mxu0 0
  %2355 = vmatpush2.bf16.msra.mxu0 0
  %2356 = vmatprep.subr.bf16.mxu0 0
  %2357 = vmatpush2.bf16.msra.mxu0 0
  %2358 = vmatprep.subr.bf16.mxu0 0
  %2359 = vmatpush2.bf16.msra.mxu0 0
  %2360 = vmatprep.subr.bf16.mxu0 0
  %2361 = vmatpush2.bf16.msra.mxu0 0
  %2362 = vmatprep.subr.bf16.mxu0 %v748
  %2363 = vmatpush2.bf16.msra.mxu0 %v747
  %2364 = vmatprep.subr.bf16.mxu0 %v746
  %2365 = vmatpush2.bf16.msra.mxu0 %v745
  %2366 = vmatprep.mubr.bf16.mxu0 %v2209
  %2367 = vmatmul.mubr.bf16.gmra.mxu0 %v2203
  %v2368 = vpop.f32.mrf.mxu0
  %v2369 = vadd.f32 %v2328, %v2368
  %v2370 = vpop.f32.mrf.mxu0
  %v2371 = vadd.f32 %v2330, %v2370
  %v2372 = vpop.f32.mrf.mxu0
  %v2373 = vpop.f32.mrf.mxu0
  %2374 = vdwg.mxu0
  %v2375 = vmax.f32 %v2287, %v2369
  %v2376 = vmax.f32 %v2289, %v2371
  %v2377 = vpack.c.bf16 %v2375, %v2375
  %v2378 = vpack.c.bf16 %v2376, %v2376
  %v2381 = vcombine.low %v2377, %v2378
  %v2383 = vunpack.c.l.s4 1966171168
  %v2384 = vunpack.c.0.s8 %v2383
  %v2385 = vlaneseq
  %v2386 = vshrl.u32 %v2385, 7
  %v2387 = vsub.s32 %v2384, %v2386
  %v2388 = vrot.slane %v2381, %v2387
  %v2390 = vunpack.c.l.s4 1966171168
  %v2391 = vunpack.c.0.s8 %v2390
  %v2392 = vlaneseq
  %v2393 = vshrl.u32 %v2392, 7
  %v2394 = vsub.s32 %v2391, %v2393
  %v2395 = vrot.slane %v2388, %v2394
  %v2396 = vunpack.i.l.s16 %v2395
  %v2397 = vunpack.i.h.s16 %v2395
  %v2398 = vpack.i.b16 %v2396, %v2396
  %v2399 = vpack.i.b16 %v2397, %v2397
  %v2401 = vunpack.c.l.s4 286326784
  %v2402 = vunpack.c.0.s8 %v2401
  %v2403 = vlaneseq
  %v2404 = vshrl.u32 %v2403, 7
  %v2405 = vsub.s32 %v2402, %v2404
  %v2406 = vrot.slane %v2398, %v2405
  %v2408 = vunpack.c.l.s4 286326784
  %v2409 = vunpack.c.0.s8 %v2408
  %v2410 = vlaneseq
  %v2411 = vshrl.u32 %v2410, 7
  %v2412 = vsub.s32 %v2409, %v2411
  %v2413 = vrot.slane %v2399, %v2412
  %vm2416 = vsmask.f32 7946
  %vm2417 = vmand %vm2116, %vm2416
  %vm2418 = vsmask.f32 7962
  %vm2419 = vmand %vm2119, %vm2418
  %vm2420 = vmor %vm2419, %vm2417
  %v2421 = vld [vmem:[%s3] sm:$0x44]
  %v2422 = vsel %vm2420, %v2406, %v2421
  %2423 = vst [vmem:[%s3] sm:$0x44] %v2422
  %v2424 = vld [vmem:[%s3 + $0x10] sm:$0x44]
  %v2425 = vsel %vm2420, %v2413, %v2424
  %2426 = vst [vmem:[%s3 + $0x10] sm:$0x44] %v2425
  %v2427 = vld [vmem:[%s0 + $0x10] sm:$0x44]
  %v2428 = vld [vmem:[%s0 + $0x18] sm:$0x44]
  %v2429 = vld [vmem:[%s0 + $0x50] sm:$0x44]
  %v2430 = vld [vmem:[%s0 + $0x58] sm:$0x44]
  %v2432 = vshrl.u32 %v2427, 16
  %v2434 = vrot.slane %v2432, 4
  %v2435 = vrot.slane %v2434, 4
  %v2437 = vshrl.u32 %v2428, 16
  %v2439 = vrot.slane %v2437, 4
  %v2440 = vrot.slane %v2439, 4
  %v2442 = vshrl.u32 %v2429, 16
  %v2444 = vrot.slane %v2442, 4
  %v2445 = vrot.slane %v2444, 4
  %v2447 = vshrl.u32 %v2430, 16
  %v2449 = vrot.slane %v2447, 4
  %v2450 = vrot.slane %v2449, 4
  %v2455 = vmax.bf16 %v2427, %v2435
  %v2456 = vmax.bf16 %v2428, %v2440
  %v2457 = vmax.bf16 %v2429, %v2445
  %v2458 = vmax.bf16 %v2430, %v2450
  %v2463 = vunpack.c.l.b16 %v2455
  %v2464 = vunpack.c.h.b16 %v2455
  %v2465 = vunpack.c.l.b16 %v2456
  %v2466 = vunpack.c.h.b16 %v2456
  %v2467 = vunpack.c.l.b16 %v2457
  %v2468 = vunpack.c.h.b16 %v2457
  %v2469 = vunpack.c.l.b16 %v2458
  %v2470 = vunpack.c.h.b16 %v2458
  %v2471 = vpack.c.b16 %v2463, %v2463
  %v2472 = vpack.c.b16 %v2464, %v2464
  %v2473 = vpack.c.b16 %v2465, %v2465
  %v2474 = vpack.c.b16 %v2466, %v2466
  %v2475 = vpack.c.b16 %v2467, %v2467
  %v2476 = vpack.c.b16 %v2468, %v2468
  %v2477 = vpack.c.b16 %v2469, %v2469
  %v2478 = vpack.c.b16 %v2470, %v2470
  %v2479 = vunpack.c.l.b16 %v2471
  %v2480 = vunpack.c.l.b16 %v2472
  %v2481 = vunpack.c.l.b16 %v2473
  %v2482 = vunpack.c.l.b16 %v2474
  %v2483 = vunpack.c.l.b16 %v2475
  %v2484 = vunpack.c.l.b16 %v2476
  %v2485 = vunpack.c.l.b16 %v2477
  %v2486 = vunpack.c.l.b16 %v2478
  %v2487 = vrot.slane %v2479, 4
  %v2488 = vrot.slane %v2483, 3
  %v2489 = vsel %vm180, %v2488, %v2487
  %v2490 = vrot.slane %v2480, 4
  %v2491 = vrot.slane %v2484, 3
  %v2492 = vsel %vm180, %v2491, %v2490
  %v2493 = vrot.slane %v2481, 4
  %v2494 = vrot.slane %v2485, 3
  %v2495 = vsel %vm180, %v2494, %v2493
  %v2496 = vrot.slane %v2482, 4
  %v2497 = vrot.slane %v2486, 3
  %v2498 = vsel %vm180, %v2497, %v2496
  %v2499 = vpack.c.b16 %v2489, %v2489
  %v2500 = vpack.c.b16 %v2492, %v2492
  %v2501 = vpack.c.b16 %v2495, %v2495
  %v2502 = vpack.c.b16 %v2498, %v2498
  %v2507 = vsel %vm455, %v2502, 0
  %2509 = vmatprep.subr.bf16.mxu0 %v366
  %2510 = vmatpush1.bf16.msra.mxu0 %v365
  %2511 = vmatprep.subr.bf16.mxu0 %v364
  %2512 = vmatpush1.bf16.msra.mxu0 %v363
  %2513 = vmatprep.subr.bf16.mxu0 %v362
  %2514 = vmatpush1.bf16.msra.mxu0 %v361
  %2515 = vmatprep.subr.bf16.mxu0 %v360
  %2516 = vmatpush1.bf16.msra.mxu0 %v359
  %2517 = vmatprep.subr.bf16.mxu0 %v358
  %2518 = vmatpush1.bf16.msra.mxu0 %v357
  %2519 = vmatprep.subr.bf16.mxu0 %v356
  %2520 = vmatpush1.bf16.msra.mxu0 %v355
  %2521 = vmatprep.subr.bf16.mxu0 %v354
  %2522 = vmatpush1.bf16.msra.mxu0 %v353
  %2523 = vmatprep.subr.bf16.mxu0 %v352
  %2524 = vmatpush1.bf16.msra.mxu0 %v351
  %2525 = vmatprep.subr.bf16.mxu0 %v382
  %2526 = vmatpush2.bf16.msra.mxu0 %v381
  %2527 = vmatprep.subr.bf16.mxu0 %v380
  %2528 = vmatpush2.bf16.msra.mxu0 %v379
  %2529 = vmatprep.subr.bf16.mxu0 %v378
  %2530 = vmatpush2.bf16.msra.mxu0 %v377
  %2531 = vmatprep.subr.bf16.mxu0 %v376
  %2532 = vmatpush2.bf16.msra.mxu0 %v375
  %2533 = vmatprep.subr.bf16.mxu0 %v374
  %2534 = vmatpush2.bf16.msra.mxu0 %v373
  %2535 = vmatprep.subr.bf16.mxu0 %v372
  %2536 = vmatpush2.bf16.msra.mxu0 %v371
  %2537 = vmatprep.subr.bf16.mxu0 %v370
  %2538 = vmatpush2.bf16.msra.mxu0 %v369
  %2539 = vmatprep.subr.bf16.mxu0 %v368
  %2540 = vmatpush2.bf16.msra.mxu0 %v367
  %2541 = vmatprep.mubr.bf16.mxu0 %v2500
  %2542 = vmatmul.mubr.bf16.gmra.mxu0 %v2499
  %v2543 = vpop.f32.mrf.mxu0
  %v2544 = vadd.f32 0.0, %v2543
  %v2545 = vpop.f32.mrf.mxu0
  %v2546 = vadd.f32 0.0, %v2545
  %v2547 = vpop.f32.mrf.mxu0
  %v2548 = vpop.f32.mrf.mxu0
  %2549 = vdwg.mxu0
  %2550 = vmatprep.subr.bf16.mxu0 %v398
  %2551 = vmatpush1.bf16.msra.mxu0 %v397
  %2552 = vmatprep.subr.bf16.mxu0 %v396
  %2553 = vmatpush1.bf16.msra.mxu0 %v395
  %2554 = vmatprep.subr.bf16.mxu0 %v394
  %2555 = vmatpush1.bf16.msra.mxu0 %v393
  %2556 = vmatprep.subr.bf16.mxu0 %v392
  %2557 = vmatpush1.bf16.msra.mxu0 %v391
  %2558 = vmatprep.subr.bf16.mxu0 %v390
  %2559 = vmatpush1.bf16.msra.mxu0 %v389
  %2560 = vmatprep.subr.bf16.mxu0 %v388
  %2561 = vmatpush1.bf16.msra.mxu0 %v387
  %2562 = vmatprep.subr.bf16.mxu0 %v386
  %2563 = vmatpush1.bf16.msra.mxu0 %v385
  %2564 = vmatprep.subr.bf16.mxu0 %v384
  %2565 = vmatpush1.bf16.msra.mxu0 %v383
  %2566 = vmatprep.subr.bf16.mxu0 0
  %2567 = vmatpush2.bf16.msra.mxu0 0
  %2568 = vmatprep.subr.bf16.mxu0 0
  %2569 = vmatpush2.bf16.msra.mxu0 0
  %2570 = vmatprep.subr.bf16.mxu0 0
  %2571 = vmatpush2.bf16.msra.mxu0 0
  %2572 = vmatprep.subr.bf16.mxu0 0
  %2573 = vmatpush2.bf16.msra.mxu0 0
  %2574 = vmatprep.subr.bf16.mxu0 0
  %2575 = vmatpush2.bf16.msra.mxu0 0
  %2576 = vmatprep.subr.bf16.mxu0 0
  %2577 = vmatpush2.bf16.msra.mxu0 0
  %2578 = vmatprep.subr.bf16.mxu0 %v402
  %2579 = vmatpush2.bf16.msra.mxu0 %v401
  %2580 = vmatprep.subr.bf16.mxu0 %v400
  %2581 = vmatpush2.bf16.msra.mxu0 %v399
  %2582 = vmatprep.mubr.bf16.mxu0 %v2507
  %2583 = vmatmul.mubr.bf16.gmra.mxu0 %v2501
  %v2584 = vpop.f32.mrf.mxu0
  %v2585 = vadd.f32 %v2544, %v2584
  %v2586 = vpop.f32.mrf.mxu0
  %v2587 = vadd.f32 %v2546, %v2586
  %v2588 = vpop.f32.mrf.mxu0
  %v2589 = vpop.f32.mrf.mxu0
  %2590 = vdwg.mxu0
  %2591 = vmatprep.subr.bf16.mxu0 %v712
  %2592 = vmatpush1.bf16.msra.mxu0 %v711
  %2593 = vmatprep.subr.bf16.mxu0 %v710
  %2594 = vmatpush1.bf16.msra.mxu0 %v709
  %2595 = vmatprep.subr.bf16.mxu0 %v708
  %2596 = vmatpush1.bf16.msra.mxu0 %v707
  %2597 = vmatprep.subr.bf16.mxu0 %v706
  %2598 = vmatpush1.bf16.msra.mxu0 %v705
  %2599 = vmatprep.subr.bf16.mxu0 %v704
  %2600 = vmatpush1.bf16.msra.mxu0 %v703
  %2601 = vmatprep.subr.bf16.mxu0 %v702
  %2602 = vmatpush1.bf16.msra.mxu0 %v701
  %2603 = vmatprep.subr.bf16.mxu0 %v700
  %2604 = vmatpush1.bf16.msra.mxu0 %v699
  %2605 = vmatprep.subr.bf16.mxu0 %v698
  %2606 = vmatpush1.bf16.msra.mxu0 %v697
  %2607 = vmatprep.subr.bf16.mxu0 %v728
  %2608 = vmatpush2.bf16.msra.mxu0 %v727
  %2609 = vmatprep.subr.bf16.mxu0 %v726
  %2610 = vmatpush2.bf16.msra.mxu0 %v725
  %2611 = vmatprep.subr.bf16.mxu0 %v724
  %2612 = vmatpush2.bf16.msra.mxu0 %v723
  %2613 = vmatprep.subr.bf16.mxu0 %v722
  %2614 = vmatpush2.bf16.msra.mxu0 %v721
  %2615 = vmatprep.subr.bf16.mxu0 %v720
  %2616 = vmatpush2.bf16.msra.mxu0 %v719
  %2617 = vmatprep.subr.bf16.mxu0 %v718
  %2618 = vmatpush2.bf16.msra.mxu0 %v717
  %2619 = vmatprep.subr.bf16.mxu0 %v716
  %2620 = vmatpush2.bf16.msra.mxu0 %v715
  %2621 = vmatprep.subr.bf16.mxu0 %v714
  %2622 = vmatpush2.bf16.msra.mxu0 %v713
  %2623 = vmatprep.mubr.bf16.mxu0 %v2500
  %2624 = vmatmul.mubr.bf16.gmra.mxu0 %v2499
  %v2625 = vpop.f32.mrf.mxu0
  %v2626 = vadd.f32 0.0, %v2625
  %v2627 = vpop.f32.mrf.mxu0
  %v2628 = vadd.f32 0.0, %v2627
  %v2629 = vpop.f32.mrf.mxu0
  %v2630 = vpop.f32.mrf.mxu0
  %2631 = vdwg.mxu0
  %2632 = vmatprep.subr.bf16.mxu0 %v744
  %2633 = vmatpush1.bf16.msra.mxu0 %v743
  %2634 = vmatprep.subr.bf16.mxu0 %v742
  %2635 = vmatpush1.bf16.msra.mxu0 %v741
  %2636 = vmatprep.subr.bf16.mxu0 %v740
  %2637 = vmatpush1.bf16.msra.mxu0 %v739
  %2638 = vmatprep.subr.bf16.mxu0 %v738
  %2639 = vmatpush1.bf16.msra.mxu0 %v737
  %2640 = vmatprep.subr.bf16.mxu0 %v736
  %2641 = vmatpush1.bf16.msra.mxu0 %v735
  %2642 = vmatprep.subr.bf16.mxu0 %v734
  %2643 = vmatpush1.bf16.msra.mxu0 %v733
  %2644 = vmatprep.subr.bf16.mxu0 %v732
  %2645 = vmatpush1.bf16.msra.mxu0 %v731
  %2646 = vmatprep.subr.bf16.mxu0 %v730
  %2647 = vmatpush1.bf16.msra.mxu0 %v729
  %2648 = vmatprep.subr.bf16.mxu0 0
  %2649 = vmatpush2.bf16.msra.mxu0 0
  %2650 = vmatprep.subr.bf16.mxu0 0
  %2651 = vmatpush2.bf16.msra.mxu0 0
  %2652 = vmatprep.subr.bf16.mxu0 0
  %2653 = vmatpush2.bf16.msra.mxu0 0
  %2654 = vmatprep.subr.bf16.mxu0 0
  %2655 = vmatpush2.bf16.msra.mxu0 0
  %2656 = vmatprep.subr.bf16.mxu0 0
  %2657 = vmatpush2.bf16.msra.mxu0 0
  %2658 = vmatprep.subr.bf16.mxu0 0
  %2659 = vmatpush2.bf16.msra.mxu0 0
  %2660 = vmatprep.subr.bf16.mxu0 %v748
  %2661 = vmatpush2.bf16.msra.mxu0 %v747
  %2662 = vmatprep.subr.bf16.mxu0 %v746
  %2663 = vmatpush2.bf16.msra.mxu0 %v745
  %2664 = vmatprep.mubr.bf16.mxu0 %v2507
  %2665 = vmatmul.mubr.bf16.gmra.mxu0 %v2501
  %v2666 = vpop.f32.mrf.mxu0
  %v2667 = vadd.f32 %v2626, %v2666
  %v2668 = vpop.f32.mrf.mxu0
  %v2669 = vadd.f32 %v2628, %v2668
  %v2670 = vpop.f32.mrf.mxu0
  %v2671 = vpop.f32.mrf.mxu0
  %2672 = vdwg.mxu0
  %v2673 = vmax.f32 %v2585, %v2667
  %v2674 = vmax.f32 %v2587, %v2669
  %v2675 = vpack.c.bf16 %v2673, %v2673
  %v2676 = vpack.c.bf16 %v2674, %v2674
  %v2679 = vcombine.low %v2675, %v2676
  %v2681 = vunpack.c.l.s4 1966171168
  %v2682 = vunpack.c.0.s8 %v2681
  %v2683 = vlaneseq
  %v2684 = vshrl.u32 %v2683, 7
  %v2685 = vsub.s32 %v2682, %v2684
  %v2686 = vrot.slane %v2679, %v2685
  %v2688 = vunpack.c.l.s4 1966171168
  %v2689 = vunpack.c.0.s8 %v2688
  %v2690 = vlaneseq
  %v2691 = vshrl.u32 %v2690, 7
  %v2692 = vsub.s32 %v2689, %v2691
  %v2693 = vrot.slane %v2686, %v2692
  %v2694 = vunpack.i.l.s16 %v2693
  %v2695 = vunpack.i.h.s16 %v2693
  %v2696 = vpack.i.b16 %v2694, %v2694
  %v2697 = vpack.i.b16 %v2695, %v2695
  %v2699 = vunpack.c.l.s4 286326784
  %v2700 = vunpack.c.0.s8 %v2699
  %v2701 = vlaneseq
  %v2702 = vshrl.u32 %v2701, 7
  %v2703 = vsub.s32 %v2700, %v2702
  %v2704 = vrot.slane %v2696, %v2703
  %v2706 = vunpack.c.l.s4 286326784
  %v2707 = vunpack.c.0.s8 %v2706
  %v2708 = vlaneseq
  %v2709 = vshrl.u32 %v2708, 7
  %v2710 = vsub.s32 %v2707, %v2709
  %v2711 = vrot.slane %v2697, %v2710
  %vm2714 = vcmask 1043459
  %vm2715 = vsmask.f32 3328
  %vm2716 = vmand %vm2714, %vm2715
  %vm2717 = vcmask 654343
  %vm2718 = vsmask.f32 7424
  %vm2719 = vmand %vm2717, %vm2718
  %vm2720 = vmor %vm2719, %vm2716
  %v2721 = vld [vmem:[%s3] sm:$0x88]
  %v2722 = vsel %vm2720, %v2704, %v2721
  %2723 = vst [vmem:[%s3] sm:$0x88] %v2722
  %v2724 = vld [vmem:[%s3 + $0x10] sm:$0x88]
  %v2725 = vsel %vm2720, %v2711, %v2724
  %2726 = vst [vmem:[%s3 + $0x10] sm:$0x88] %v2725
  %v2727 = vld [vmem:[%s0 + $0x10] sm:$0x88]
  %v2728 = vld [vmem:[%s0 + $0x18] sm:$0x88]
  %v2729 = vld [vmem:[%s0 + $0x50] sm:$0x88]
  %v2730 = vld [vmem:[%s0 + $0x58] sm:$0x88]
  %v2732 = vshrl.u32 %v2727, 16
  %v2734 = vrot.slane %v2732, 4
  %v2735 = vrot.slane %v2734, 4
  %v2737 = vshrl.u32 %v2728, 16
  %v2739 = vrot.slane %v2737, 4
  %v2740 = vrot.slane %v2739, 4
  %v2742 = vshrl.u32 %v2729, 16
  %v2744 = vrot.slane %v2742, 4
  %v2745 = vrot.slane %v2744, 4
  %v2747 = vshrl.u32 %v2730, 16
  %v2749 = vrot.slane %v2747, 4
  %v2750 = vrot.slane %v2749, 4
  %v2755 = vmax.bf16 %v2727, %v2735
  %v2756 = vmax.bf16 %v2728, %v2740
  %v2757 = vmax.bf16 %v2729, %v2745
  %v2758 = vmax.bf16 %v2730, %v2750
  %v2763 = vunpack.c.l.b16 %v2755
  %v2764 = vunpack.c.h.b16 %v2755
  %v2765 = vunpack.c.l.b16 %v2756
  %v2766 = vunpack.c.h.b16 %v2756
  %v2767 = vunpack.c.l.b16 %v2757
  %v2768 = vunpack.c.h.b16 %v2757
  %v2769 = vunpack.c.l.b16 %v2758
  %v2770 = vunpack.c.h.b16 %v2758
  %v2771 = vpack.c.b16 %v2763, %v2763
  %v2772 = vpack.c.b16 %v2764, %v2764
  %v2773 = vpack.c.b16 %v2765, %v2765
  %v2774 = vpack.c.b16 %v2766, %v2766
  %v2775 = vpack.c.b16 %v2767, %v2767
  %v2776 = vpack.c.b16 %v2768, %v2768
  %v2777 = vpack.c.b16 %v2769, %v2769
  %v2778 = vpack.c.b16 %v2770, %v2770
  %v2779 = vunpack.c.l.b16 %v2771
  %v2780 = vunpack.c.l.b16 %v2772
  %v2781 = vunpack.c.l.b16 %v2773
  %v2782 = vunpack.c.l.b16 %v2774
  %v2783 = vunpack.c.l.b16 %v2775
  %v2784 = vunpack.c.l.b16 %v2776
  %v2785 = vunpack.c.l.b16 %v2777
  %v2786 = vunpack.c.l.b16 %v2778
  %v2787 = vrot.slane %v2779, 6
  %v2788 = vrot.slane %v2783, 5
  %v2789 = vsel %vm180, %v2788, %v2787
  %v2790 = vrot.slane %v2780, 6
  %v2791 = vrot.slane %v2784, 5
  %v2792 = vsel %vm180, %v2791, %v2790
  %v2793 = vrot.slane %v2781, 6
  %v2794 = vrot.slane %v2785, 5
  %v2795 = vsel %vm180, %v2794, %v2793
  %v2796 = vrot.slane %v2782, 6
  %v2797 = vrot.slane %v2786, 5
  %v2798 = vsel %vm180, %v2797, %v2796
  %v2799 = vpack.c.b16 %v2789, %v2789
  %v2800 = vpack.c.b16 %v2792, %v2792
  %v2801 = vpack.c.b16 %v2795, %v2795
  %v2802 = vpack.c.b16 %v2798, %v2798
  %v2807 = vsel %vm455, %v2802, 0
  %2809 = vmatprep.subr.bf16.mxu0 %v366
  %2810 = vmatpush1.bf16.msra.mxu0 %v365
  %2811 = vmatprep.subr.bf16.mxu0 %v364
  %2812 = vmatpush1.bf16.msra.mxu0 %v363
  %2813 = vmatprep.subr.bf16.mxu0 %v362
  %2814 = vmatpush1.bf16.msra.mxu0 %v361
  %2815 = vmatprep.subr.bf16.mxu0 %v360
  %2816 = vmatpush1.bf16.msra.mxu0 %v359
  %2817 = vmatprep.subr.bf16.mxu0 %v358
  %2818 = vmatpush1.bf16.msra.mxu0 %v357
  %2819 = vmatprep.subr.bf16.mxu0 %v356
  %2820 = vmatpush1.bf16.msra.mxu0 %v355
  %2821 = vmatprep.subr.bf16.mxu0 %v354
  %2822 = vmatpush1.bf16.msra.mxu0 %v353
  %2823 = vmatprep.subr.bf16.mxu0 %v352
  %2824 = vmatpush1.bf16.msra.mxu0 %v351
  %2825 = vmatprep.subr.bf16.mxu0 %v382
  %2826 = vmatpush2.bf16.msra.mxu0 %v381
  %2827 = vmatprep.subr.bf16.mxu0 %v380
  %2828 = vmatpush2.bf16.msra.mxu0 %v379
  %2829 = vmatprep.subr.bf16.mxu0 %v378
  %2830 = vmatpush2.bf16.msra.mxu0 %v377
  %2831 = vmatprep.subr.bf16.mxu0 %v376
  %2832 = vmatpush2.bf16.msra.mxu0 %v375
  %2833 = vmatprep.subr.bf16.mxu0 %v374
  %2834 = vmatpush2.bf16.msra.mxu0 %v373
  %2835 = vmatprep.subr.bf16.mxu0 %v372
  %2836 = vmatpush2.bf16.msra.mxu0 %v371
  %2837 = vmatprep.subr.bf16.mxu0 %v370
  %2838 = vmatpush2.bf16.msra.mxu0 %v369
  %2839 = vmatprep.subr.bf16.mxu0 %v368
  %2840 = vmatpush2.bf16.msra.mxu0 %v367
  %2841 = vmatprep.mubr.bf16.mxu0 %v2800
  %2842 = vmatmul.mubr.bf16.gmra.mxu0 %v2799
  %v2843 = vpop.f32.mrf.mxu0
  %v2844 = vadd.f32 0.0, %v2843
  %v2845 = vpop.f32.mrf.mxu0
  %v2846 = vadd.f32 0.0, %v2845
  %v2847 = vpop.f32.mrf.mxu0
  %v2848 = vpop.f32.mrf.mxu0
  %2849 = vdwg.mxu0
  %2850 = vmatprep.subr.bf16.mxu0 %v398
  %2851 = vmatpush1.bf16.msra.mxu0 %v397
  %2852 = vmatprep.subr.bf16.mxu0 %v396
  %2853 = vmatpush1.bf16.msra.mxu0 %v395
  %2854 = vmatprep.subr.bf16.mxu0 %v394
  %2855 = vmatpush1.bf16.msra.mxu0 %v393
  %2856 = vmatprep.subr.bf16.mxu0 %v392
  %2857 = vmatpush1.bf16.msra.mxu0 %v391
  %2858 = vmatprep.subr.bf16.mxu0 %v390
  %2859 = vmatpush1.bf16.msra.mxu0 %v389
  %2860 = vmatprep.subr.bf16.mxu0 %v388
  %2861 = vmatpush1.bf16.msra.mxu0 %v387
  %2862 = vmatprep.subr.bf16.mxu0 %v386
  %2863 = vmatpush1.bf16.msra.mxu0 %v385
  %2864 = vmatprep.subr.bf16.mxu0 %v384
  %2865 = vmatpush1.bf16.msra.mxu0 %v383
  %2866 = vmatprep.subr.bf16.mxu0 0
  %2867 = vmatpush2.bf16.msra.mxu0 0
  %2868 = vmatprep.subr.bf16.mxu0 0
  %2869 = vmatpush2.bf16.msra.mxu0 0
  %2870 = vmatprep.subr.bf16.mxu0 0
  %2871 = vmatpush2.bf16.msra.mxu0 0
  %2872 = vmatprep.subr.bf16.mxu0 0
  %2873 = vmatpush2.bf16.msra.mxu0 0
  %2874 = vmatprep.subr.bf16.mxu0 0
  %2875 = vmatpush2.bf16.msra.mxu0 0
  %2876 = vmatprep.subr.bf16.mxu0 0
  %2877 = vmatpush2.bf16.msra.mxu0 0
  %2878 = vmatprep.subr.bf16.mxu0 %v402
  %2879 = vmatpush2.bf16.msra.mxu0 %v401
  %2880 = vmatprep.subr.bf16.mxu0 %v400
  %2881 = vmatpush2.bf16.msra.mxu0 %v399
  %2882 = vmatprep.mubr.bf16.mxu0 %v2807
  %2883 = vmatmul.mubr.bf16.gmra.mxu0 %v2801
  %v2884 = vpop.f32.mrf.mxu0
  %v2885 = vadd.f32 %v2844, %v2884
  %v2886 = vpop.f32.mrf.mxu0
  %v2887 = vadd.f32 %v2846, %v2886
  %v2888 = vpop.f32.mrf.mxu0
  %v2889 = vpop.f32.mrf.mxu0
  %2890 = vdwg.mxu0
  %2891 = vmatprep.subr.bf16.mxu0 %v712
  %2892 = vmatpush1.bf16.msra.mxu0 %v711
  %2893 = vmatprep.subr.bf16.mxu0 %v710
  %2894 = vmatpush1.bf16.msra.mxu0 %v709
  %2895 = vmatprep.subr.bf16.mxu0 %v708
  %2896 = vmatpush1.bf16.msra.mxu0 %v707
  %2897 = vmatprep.subr.bf16.mxu0 %v706
  %2898 = vmatpush1.bf16.msra.mxu0 %v705
  %2899 = vmatprep.subr.bf16.mxu0 %v704
  %2900 = vmatpush1.bf16.msra.mxu0 %v703
  %2901 = vmatprep.subr.bf16.mxu0 %v702
  %2902 = vmatpush1.bf16.msra.mxu0 %v701
  %2903 = vmatprep.subr.bf16.mxu0 %v700
  %2904 = vmatpush1.bf16.msra.mxu0 %v699
  %2905 = vmatprep.subr.bf16.mxu0 %v698
  %2906 = vmatpush1.bf16.msra.mxu0 %v697
  %2907 = vmatprep.subr.bf16.mxu0 %v728
  %2908 = vmatpush2.bf16.msra.mxu0 %v727
  %2909 = vmatprep.subr.bf16.mxu0 %v726
  %2910 = vmatpush2.bf16.msra.mxu0 %v725
  %2911 = vmatprep.subr.bf16.mxu0 %v724
  %2912 = vmatpush2.bf16.msra.mxu0 %v723
  %2913 = vmatprep.subr.bf16.mxu0 %v722
  %2914 = vmatpush2.bf16.msra.mxu0 %v721
  %2915 = vmatprep.subr.bf16.mxu0 %v720
  %2916 = vmatpush2.bf16.msra.mxu0 %v719
  %2917 = vmatprep.subr.bf16.mxu0 %v718
  %2918 = vmatpush2.bf16.msra.mxu0 %v717
  %2919 = vmatprep.subr.bf16.mxu0 %v716
  %2920 = vmatpush2.bf16.msra.mxu0 %v715
  %2921 = vmatprep.subr.bf16.mxu0 %v714
  %2922 = vmatpush2.bf16.msra.mxu0 %v713
  %2923 = vmatprep.mubr.bf16.mxu0 %v2800
  %2924 = vmatmul.mubr.bf16.gmra.mxu0 %v2799
  %v2925 = vpop.f32.mrf.mxu0
  %v2926 = vadd.f32 0.0, %v2925
  %v2927 = vpop.f32.mrf.mxu0
  %v2928 = vadd.f32 0.0, %v2927
  %v2929 = vpop.f32.mrf.mxu0
  %v2930 = vpop.f32.mrf.mxu0
  %2931 = vdwg.mxu0
  %2932 = vmatprep.subr.bf16.mxu0 %v744
  %2933 = vmatpush1.bf16.msra.mxu0 %v743
  %2934 = vmatprep.subr.bf16.mxu0 %v742
  %2935 = vmatpush1.bf16.msra.mxu0 %v741
  %2936 = vmatprep.subr.bf16.mxu0 %v740
  %2937 = vmatpush1.bf16.msra.mxu0 %v739
  %2938 = vmatprep.subr.bf16.mxu0 %v738
  %2939 = vmatpush1.bf16.msra.mxu0 %v737
  %2940 = vmatprep.subr.bf16.mxu0 %v736
  %2941 = vmatpush1.bf16.msra.mxu0 %v735
  %2942 = vmatprep.subr.bf16.mxu0 %v734
  %2943 = vmatpush1.bf16.msra.mxu0 %v733
  %2944 = vmatprep.subr.bf16.mxu0 %v732
  %2945 = vmatpush1.bf16.msra.mxu0 %v731
  %2946 = vmatprep.subr.bf16.mxu0 %v730
  %2947 = vmatpush1.bf16.msra.mxu0 %v729
  %2948 = vmatprep.subr.bf16.mxu0 0
  %2949 = vmatpush2.bf16.msra.mxu0 0
  %2950 = vmatprep.subr.bf16.mxu0 0
  %2951 = vmatpush2.bf16.msra.mxu0 0
  %2952 = vmatprep.subr.bf16.mxu0 0
  %2953 = vmatpush2.bf16.msra.mxu0 0
  %2954 = vmatprep.subr.bf16.mxu0 0
  %2955 = vmatpush2.bf16.msra.mxu0 0
  %2956 = vmatprep.subr.bf16.mxu0 0
  %2957 = vmatpush2.bf16.msra.mxu0 0
  %2958 = vmatprep.subr.bf16.mxu0 0
  %2959 = vmatpush2.bf16.msra.mxu0 0
  %2960 = vmatprep.subr.bf16.mxu0 %v748
  %2961 = vmatpush2.bf16.msra.mxu0 %v747
  %2962 = vmatprep.subr.bf16.mxu0 %v746
  %2963 = vmatpush2.bf16.msra.mxu0 %v745
  %2964 = vmatprep.mubr.bf16.mxu0 %v2807
  %2965 = vmatmul.mubr.bf16.gmra.mxu0 %v2801
  %v2966 = vpop.f32.mrf.mxu0
  %v2967 = vadd.f32 %v2926, %v2966
  %v2968 = vpop.f32.mrf.mxu0
  %v2969 = vadd.f32 %v2928, %v2968
  %v2970 = vpop.f32.mrf.mxu0
  %v2971 = vpop.f32.mrf.mxu0
  %2972 = vdwg.mxu0
  %v2973 = vmax.f32 %v2885, %v2967
  %v2974 = vmax.f32 %v2887, %v2969
  %v2975 = vpack.c.bf16 %v2973, %v2973
  %v2976 = vpack.c.bf16 %v2974, %v2974
  %v2979 = vcombine.low %v2975, %v2976
  %v2981 = vunpack.c.l.s4 1966171168
  %v2982 = vunpack.c.0.s8 %v2981
  %v2983 = vlaneseq
  %v2984 = vshrl.u32 %v2983, 7
  %v2985 = vsub.s32 %v2982, %v2984
  %v2986 = vrot.slane %v2979, %v2985
  %v2988 = vunpack.c.l.s4 1966171168
  %v2989 = vunpack.c.0.s8 %v2988
  %v2990 = vlaneseq
  %v2991 = vshrl.u32 %v2990, 7
  %v2992 = vsub.s32 %v2989, %v2991
  %v2993 = vrot.slane %v2986, %v2992
  %v2994 = vunpack.i.l.s16 %v2993
  %v2995 = vunpack.i.h.s16 %v2993
  %v2996 = vpack.i.b16 %v2994, %v2994
  %v2997 = vpack.i.b16 %v2995, %v2995
  %v2999 = vunpack.c.l.s4 286326784
  %v3000 = vunpack.c.0.s8 %v2999
  %v3001 = vlaneseq
  %v3002 = vshrl.u32 %v3001, 7
  %v3003 = vsub.s32 %v3000, %v3002
  %v3004 = vrot.slane %v2996, %v3003
  %v3006 = vunpack.c.l.s4 286326784
  %v3007 = vunpack.c.0.s8 %v3006
  %v3008 = vlaneseq
  %v3009 = vshrl.u32 %v3008, 7
  %v3010 = vsub.s32 %v3007, %v3009
  %v3011 = vrot.slane %v2997, %v3010
  %vm3014 = vsmask.f32 7950
  %vm3015 = vmand %vm2714, %vm3014
  %vm3016 = vsmask.f32 7966
  %vm3017 = vmand %vm2717, %vm3016
  %vm3018 = vmor %vm3017, %vm3015
  %v3019 = vld [vmem:[%s3] sm:$0x88]
  %v3020 = vsel %vm3018, %v3004, %v3019
  %3021 = vst [vmem:[%s3] sm:$0x88] %v3020
  %v3022 = vld [vmem:[%s3 + $0x10] sm:$0x88]
  %v3023 = vsel %vm3018, %v3011, %v3022
  %3024 = vst [vmem:[%s3 + $0x10] sm:$0x88] %v3023
  %v3025 = vld [vmem:[%s0 + $0x20] sm:$0x11]
  %v3026 = vld [vmem:[%s0 + $0x28] sm:$0x11]
  %v3027 = vld [vmem:[%s0 + $0x60] sm:$0x11]
  %v3028 = vld [vmem:[%s0 + $0x68] sm:$0x11]
  %v3030 = vshrl.u32 %v3025, 16
  %v3032 = vrot.slane %v3030, 4
  %v3033 = vrot.slane %v3032, 4
  %v3035 = vshrl.u32 %v3026, 16
  %v3037 = vrot.slane %v3035, 4
  %v3038 = vrot.slane %v3037, 4
  %v3040 = vshrl.u32 %v3027, 16
  %v3042 = vrot.slane %v3040, 4
  %v3043 = vrot.slane %v3042, 4
  %v3045 = vshrl.u32 %v3028, 16
  %v3047 = vrot.slane %v3045, 4
  %v3048 = vrot.slane %v3047, 4
  %v3053 = vmax.bf16 %v3025, %v3033
  %v3054 = vmax.bf16 %v3026, %v3038
  %v3055 = vmax.bf16 %v3027, %v3043
  %v3056 = vmax.bf16 %v3028, %v3048
  %v3061 = vunpack.c.l.b16 %v3053
  %v3062 = vunpack.c.h.b16 %v3053
  %v3063 = vunpack.c.l.b16 %v3054
  %v3064 = vunpack.c.h.b16 %v3054
  %v3065 = vunpack.c.l.b16 %v3055
  %v3066 = vunpack.c.h.b16 %v3055
  %v3067 = vunpack.c.l.b16 %v3056
  %v3068 = vunpack.c.h.b16 %v3056
  %v3069 = vpack.c.b16 %v3061, %v3061
  %v3070 = vpack.c.b16 %v3062, %v3062
  %v3071 = vpack.c.b16 %v3063, %v3063
  %v3072 = vpack.c.b16 %v3064, %v3064
  %v3073 = vpack.c.b16 %v3065, %v3065
  %v3074 = vpack.c.b16 %v3066, %v3066
  %v3075 = vpack.c.b16 %v3067, %v3067
  %v3076 = vpack.c.b16 %v3068, %v3068
  %v3077 = vunpack.c.l.b16 %v3069
  %v3078 = vunpack.c.l.b16 %v3070
  %v3079 = vunpack.c.l.b16 %v3071
  %v3080 = vunpack.c.l.b16 %v3072
  %v3081 = vunpack.c.l.b16 %v3073
  %v3082 = vunpack.c.l.b16 %v3074
  %v3083 = vunpack.c.l.b16 %v3075
  %v3084 = vunpack.c.l.b16 %v3076
  %v3085 = vrot.slane %v3081, 7
  %v3086 = vsel %vm180, %v3085, %v3077
  %v3087 = vrot.slane %v3082, 7
  %v3088 = vsel %vm180, %v3087, %v3078
  %v3089 = vrot.slane %v3083, 7
  %v3090 = vsel %vm180, %v3089, %v3079
  %v3091 = vrot.slane %v3084, 7
  %v3092 = vsel %vm180, %v3091, %v3080
  %v3093 = vpack.c.b16 %v3086, %v3086
  %v3094 = vpack.c.b16 %v3088, %v3088
  %v3095 = vpack.c.b16 %v3090, %v3090
  %v3096 = vpack.c.b16 %v3092, %v3092
  %v3101 = vsel %vm455, %v3096, 0
  %3103 = vmatprep.subr.bf16.mxu0 %v366
  %3104 = vmatpush1.bf16.msra.mxu0 %v365
  %3105 = vmatprep.subr.bf16.mxu0 %v364
  %3106 = vmatpush1.bf16.msra.mxu0 %v363
  %3107 = vmatprep.subr.bf16.mxu0 %v362
  %3108 = vmatpush1.bf16.msra.mxu0 %v361
  %3109 = vmatprep.subr.bf16.mxu0 %v360
  %3110 = vmatpush1.bf16.msra.mxu0 %v359
  %3111 = vmatprep.subr.bf16.mxu0 %v358
  %3112 = vmatpush1.bf16.msra.mxu0 %v357
  %3113 = vmatprep.subr.bf16.mxu0 %v356
  %3114 = vmatpush1.bf16.msra.mxu0 %v355
  %3115 = vmatprep.subr.bf16.mxu0 %v354
  %3116 = vmatpush1.bf16.msra.mxu0 %v353
  %3117 = vmatprep.subr.bf16.mxu0 %v352
  %3118 = vmatpush1.bf16.msra.mxu0 %v351
  %3119 = vmatprep.subr.bf16.mxu0 %v382
  %3120 = vmatpush2.bf16.msra.mxu0 %v381
  %3121 = vmatprep.subr.bf16.mxu0 %v380
  %3122 = vmatpush2.bf16.msra.mxu0 %v379
  %3123 = vmatprep.subr.bf16.mxu0 %v378
  %3124 = vmatpush2.bf16.msra.mxu0 %v377
  %3125 = vmatprep.subr.bf16.mxu0 %v376
  %3126 = vmatpush2.bf16.msra.mxu0 %v375
  %3127 = vmatprep.subr.bf16.mxu0 %v374
  %3128 = vmatpush2.bf16.msra.mxu0 %v373
  %3129 = vmatprep.subr.bf16.mxu0 %v372
  %3130 = vmatpush2.bf16.msra.mxu0 %v371
  %3131 = vmatprep.subr.bf16.mxu0 %v370
  %3132 = vmatpush2.bf16.msra.mxu0 %v369
  %3133 = vmatprep.subr.bf16.mxu0 %v368
  %3134 = vmatpush2.bf16.msra.mxu0 %v367
  %3135 = vmatprep.mubr.bf16.mxu0 %v3094
  %3136 = vmatmul.mubr.bf16.gmra.mxu0 %v3093
  %v3137 = vpop.f32.mrf.mxu0
  %v3138 = vadd.f32 0.0, %v3137
  %v3139 = vpop.f32.mrf.mxu0
  %v3140 = vadd.f32 0.0, %v3139
  %v3141 = vpop.f32.mrf.mxu0
  %v3142 = vpop.f32.mrf.mxu0
  %3143 = vdwg.mxu0
  %3144 = vmatprep.subr.bf16.mxu0 %v398
  %3145 = vmatpush1.bf16.msra.mxu0 %v397
  %3146 = vmatprep.subr.bf16.mxu0 %v396
  %3147 = vmatpush1.bf16.msra.mxu0 %v395
  %3148 = vmatprep.subr.bf16.mxu0 %v394
  %3149 = vmatpush1.bf16.msra.mxu0 %v393
  %3150 = vmatprep.subr.bf16.mxu0 %v392
  %3151 = vmatpush1.bf16.msra.mxu0 %v391
  %3152 = vmatprep.subr.bf16.mxu0 %v390
  %3153 = vmatpush1.bf16.msra.mxu0 %v389
  %3154 = vmatprep.subr.bf16.mxu0 %v388
  %3155 = vmatpush1.bf16.msra.mxu0 %v387
  %3156 = vmatprep.subr.bf16.mxu0 %v386
  %3157 = vmatpush1.bf16.msra.mxu0 %v385
  %3158 = vmatprep.subr.bf16.mxu0 %v384
  %3159 = vmatpush1.bf16.msra.mxu0 %v383
  %3160 = vmatprep.subr.bf16.mxu0 0
  %3161 = vmatpush2.bf16.msra.mxu0 0
  %3162 = vmatprep.subr.bf16.mxu0 0
  %3163 = vmatpush2.bf16.msra.mxu0 0
  %3164 = vmatprep.subr.bf16.mxu0 0
  %3165 = vmatpush2.bf16.msra.mxu0 0
  %3166 = vmatprep.subr.bf16.mxu0 0
  %3167 = vmatpush2.bf16.msra.mxu0 0
  %3168 = vmatprep.subr.bf16.mxu0 0
  %3169 = vmatpush2.bf16.msra.mxu0 0
  %3170 = vmatprep.subr.bf16.mxu0 0
  %3171 = vmatpush2.bf16.msra.mxu0 0
  %3172 = vmatprep.subr.bf16.mxu0 %v402
  %3173 = vmatpush2.bf16.msra.mxu0 %v401
  %3174 = vmatprep.subr.bf16.mxu0 %v400
  %3175 = vmatpush2.bf16.msra.mxu0 %v399
  %3176 = vmatprep.mubr.bf16.mxu0 %v3101
  %3177 = vmatmul.mubr.bf16.gmra.mxu0 %v3095
  %v3178 = vpop.f32.mrf.mxu0
  %v3179 = vadd.f32 %v3138, %v3178
  %v3180 = vpop.f32.mrf.mxu0
  %v3181 = vadd.f32 %v3140, %v3180
  %v3182 = vpop.f32.mrf.mxu0
  %v3183 = vpop.f32.mrf.mxu0
  %3184 = vdwg.mxu0
  %3185 = vmatprep.subr.bf16.mxu0 %v712
  %3186 = vmatpush1.bf16.msra.mxu0 %v711
  %3187 = vmatprep.subr.bf16.mxu0 %v710
  %3188 = vmatpush1.bf16.msra.mxu0 %v709
  %3189 = vmatprep.subr.bf16.mxu0 %v708
  %3190 = vmatpush1.bf16.msra.mxu0 %v707
  %3191 = vmatprep.subr.bf16.mxu0 %v706
  %3192 = vmatpush1.bf16.msra.mxu0 %v705
  %3193 = vmatprep.subr.bf16.mxu0 %v704
  %3194 = vmatpush1.bf16.msra.mxu0 %v703
  %3195 = vmatprep.subr.bf16.mxu0 %v702
  %3196 = vmatpush1.bf16.msra.mxu0 %v701
  %3197 = vmatprep.subr.bf16.mxu0 %v700
  %3198 = vmatpush1.bf16.msra.mxu0 %v699
  %3199 = vmatprep.subr.bf16.mxu0 %v698
  %3200 = vmatpush1.bf16.msra.mxu0 %v697
  %3201 = vmatprep.subr.bf16.mxu0 %v728
  %3202 = vmatpush2.bf16.msra.mxu0 %v727
  %3203 = vmatprep.subr.bf16.mxu0 %v726
  %3204 = vmatpush2.bf16.msra.mxu0 %v725
  %3205 = vmatprep.subr.bf16.mxu0 %v724
  %3206 = vmatpush2.bf16.msra.mxu0 %v723
  %3207 = vmatprep.subr.bf16.mxu0 %v722
  %3208 = vmatpush2.bf16.msra.mxu0 %v721
  %3209 = vmatprep.subr.bf16.mxu0 %v720
  %3210 = vmatpush2.bf16.msra.mxu0 %v719
  %3211 = vmatprep.subr.bf16.mxu0 %v718
  %3212 = vmatpush2.bf16.msra.mxu0 %v717
  %3213 = vmatprep.subr.bf16.mxu0 %v716
  %3214 = vmatpush2.bf16.msra.mxu0 %v715
  %3215 = vmatprep.subr.bf16.mxu0 %v714
  %3216 = vmatpush2.bf16.msra.mxu0 %v713
  %3217 = vmatprep.mubr.bf16.mxu0 %v3094
  %3218 = vmatmul.mubr.bf16.gmra.mxu0 %v3093
  %v3219 = vpop.f32.mrf.mxu0
  %v3220 = vadd.f32 0.0, %v3219
  %v3221 = vpop.f32.mrf.mxu0
  %v3222 = vadd.f32 0.0, %v3221
  %v3223 = vpop.f32.mrf.mxu0
  %v3224 = vpop.f32.mrf.mxu0
  %3225 = vdwg.mxu0
  %3226 = vmatprep.subr.bf16.mxu0 %v744
  %3227 = vmatpush1.bf16.msra.mxu0 %v743
  %3228 = vmatprep.subr.bf16.mxu0 %v742
  %3229 = vmatpush1.bf16.msra.mxu0 %v741
  %3230 = vmatprep.subr.bf16.mxu0 %v740
  %3231 = vmatpush1.bf16.msra.mxu0 %v739
  %3232 = vmatprep.subr.bf16.mxu0 %v738
  %3233 = vmatpush1.bf16.msra.mxu0 %v737
  %3234 = vmatprep.subr.bf16.mxu0 %v736
  %3235 = vmatpush1.bf16.msra.mxu0 %v735
  %3236 = vmatprep.subr.bf16.mxu0 %v734
  %3237 = vmatpush1.bf16.msra.mxu0 %v733
  %3238 = vmatprep.subr.bf16.mxu0 %v732
  %3239 = vmatpush1.bf16.msra.mxu0 %v731
  %3240 = vmatprep.subr.bf16.mxu0 %v730
  %3241 = vmatpush1.bf16.msra.mxu0 %v729
  %3242 = vmatprep.subr.bf16.mxu0 0
  %3243 = vmatpush2.bf16.msra.mxu0 0
  %3244 = vmatprep.subr.bf16.mxu0 0
  %3245 = vmatpush2.bf16.msra.mxu0 0
  %3246 = vmatprep.subr.bf16.mxu0 0
  %3247 = vmatpush2.bf16.msra.mxu0 0
  %3248 = vmatprep.subr.bf16.mxu0 0
  %3249 = vmatpush2.bf16.msra.mxu0 0
  %3250 = vmatprep.subr.bf16.mxu0 0
  %3251 = vmatpush2.bf16.msra.mxu0 0
  %3252 = vmatprep.subr.bf16.mxu0 0
  %3253 = vmatpush2.bf16.msra.mxu0 0
  %3254 = vmatprep.subr.bf16.mxu0 %v748
  %3255 = vmatpush2.bf16.msra.mxu0 %v747
  %3256 = vmatprep.subr.bf16.mxu0 %v746
  %3257 = vmatpush2.bf16.msra.mxu0 %v745
  %3258 = vmatprep.mubr.bf16.mxu0 %v3101
  %3259 = vmatmul.mubr.bf16.gmra.mxu0 %v3095
  %v3260 = vpop.f32.mrf.mxu0
  %v3261 = vadd.f32 %v3220, %v3260
  %v3262 = vpop.f32.mrf.mxu0
  %v3263 = vadd.f32 %v3222, %v3262
  %v3264 = vpop.f32.mrf.mxu0
  %v3265 = vpop.f32.mrf.mxu0
  %3266 = vdwg.mxu0
  %v3267 = vmax.f32 %v3179, %v3261
  %v3268 = vmax.f32 %v3181, %v3263
  %v3269 = vpack.c.bf16 %v3267, %v3267
  %v3270 = vpack.c.bf16 %v3268, %v3268
  %v3273 = vcombine.low %v3269, %v3270
  %v3275 = vunpack.c.l.s4 1966171168
  %v3276 = vunpack.c.0.s8 %v3275
  %v3277 = vlaneseq
  %v3278 = vshrl.u32 %v3277, 7
  %v3279 = vsub.s32 %v3276, %v3278
  %v3280 = vrot.slane %v3273, %v3279
  %v3282 = vunpack.c.l.s4 1966171168
  %v3283 = vunpack.c.0.s8 %v3282
  %v3284 = vlaneseq
  %v3285 = vshrl.u32 %v3284, 7
  %v3286 = vsub.s32 %v3283, %v3285
  %v3287 = vrot.slane %v3280, %v3286
  %v3288 = vunpack.i.l.s16 %v3287
  %v3289 = vunpack.i.h.s16 %v3287
  %v3290 = vpack.i.b16 %v3288, %v3288
  %v3291 = vpack.i.b16 %v3289, %v3289
  %v3293 = vunpack.c.l.s4 286326784
  %v3294 = vunpack.c.0.s8 %v3293
  %v3295 = vlaneseq
  %v3296 = vshrl.u32 %v3295, 7
  %v3297 = vsub.s32 %v3294, %v3296
  %v3298 = vrot.slane %v3290, %v3297
  %v3300 = vunpack.c.l.s4 286326784
  %v3301 = vunpack.c.0.s8 %v3300
  %v3302 = vlaneseq
  %v3303 = vshrl.u32 %v3302, 7
  %v3304 = vsub.s32 %v3301, %v3303
  %v3305 = vrot.slane %v3291, %v3304
  %v3308 = vld [vmem:[%s3 + $0x8] sm:$0x11]
  %v3309 = vsel %vm930, %v3298, %v3308
  %3310 = vst [vmem:[%s3 + $0x8] sm:$0x11] %v3309
  %v3311 = vld [vmem:[%s3 + $0x18] sm:$0x11]
  %v3312 = vsel %vm930, %v3305, %v3311
  %3313 = vst [vmem:[%s3 + $0x18] sm:$0x11] %v3312
  %v3314 = vld [vmem:[%s0 + $0x20] sm:$0x22]
  %v3315 = vld [vmem:[%s0 + $0x28] sm:$0x22]
  %v3316 = vld [vmem:[%s0 + $0x60] sm:$0x22]
  %v3317 = vld [vmem:[%s0 + $0x68] sm:$0x22]
  %v3319 = vshrl.u32 %v3314, 16
  %v3321 = vrot.slane %v3319, 4
  %v3322 = vrot.slane %v3321, 4
  %v3324 = vshrl.u32 %v3315, 16
  %v3326 = vrot.slane %v3324, 4
  %v3327 = vrot.slane %v3326, 4
  %v3329 = vshrl.u32 %v3316, 16
  %v3331 = vrot.slane %v3329, 4
  %v3332 = vrot.slane %v3331, 4
  %v3334 = vshrl.u32 %v3317, 16
  %v3336 = vrot.slane %v3334, 4
  %v3337 = vrot.slane %v3336, 4
  %v3342 = vmax.bf16 %v3314, %v3322
  %v3343 = vmax.bf16 %v3315, %v3327
  %v3344 = vmax.bf16 %v3316, %v3332
  %v3345 = vmax.bf16 %v3317, %v3337
  %v3350 = vunpack.c.l.b16 %v3342
  %v3351 = vunpack.c.h.b16 %v3342
  %v3352 = vunpack.c.l.b16 %v3343
  %v3353 = vunpack.c.h.b16 %v3343
  %v3354 = vunpack.c.l.b16 %v3344
  %v3355 = vunpack.c.h.b16 %v3344
  %v3356 = vunpack.c.l.b16 %v3345
  %v3357 = vunpack.c.h.b16 %v3345
  %v3358 = vpack.c.b16 %v3350, %v3350
  %v3359 = vpack.c.b16 %v3351, %v3351
  %v3360 = vpack.c.b16 %v3352, %v3352
  %v3361 = vpack.c.b16 %v3353, %v3353
  %v3362 = vpack.c.b16 %v3354, %v3354
  %v3363 = vpack.c.b16 %v3355, %v3355
  %v3364 = vpack.c.b16 %v3356, %v3356
  %v3365 = vpack.c.b16 %v3357, %v3357
  %v3366 = vunpack.c.l.b16 %v3358
  %v3367 = vunpack.c.l.b16 %v3359
  %v3368 = vunpack.c.l.b16 %v3360
  %v3369 = vunpack.c.l.b16 %v3361
  %v3370 = vunpack.c.l.b16 %v3362
  %v3371 = vunpack.c.l.b16 %v3363
  %v3372 = vunpack.c.l.b16 %v3364
  %v3373 = vunpack.c.l.b16 %v3365
  %v3374 = vrot.slane %v3366, 2
  %v3375 = vrot.slane %v3370, 1
  %v3376 = vsel %vm180, %v3375, %v3374
  %v3377 = vrot.slane %v3367, 2
  %v3378 = vrot.slane %v3371, 1
  %v3379 = vsel %vm180, %v3378, %v3377
  %v3380 = vrot.slane %v3368, 2
  %v3381 = vrot.slane %v3372, 1
  %v3382 = vsel %vm180, %v3381, %v3380
  %v3383 = vrot.slane %v3369, 2
  %v3384 = vrot.slane %v3373, 1
  %v3385 = vsel %vm180, %v3384, %v3383
  %v3386 = vpack.c.b16 %v3376, %v3376
  %v3387 = vpack.c.b16 %v3379, %v3379
  %v3388 = vpack.c.b16 %v3382, %v3382
  %v3389 = vpack.c.b16 %v3385, %v3385
  %v3394 = vsel %vm455, %v3389, 0
  %3396 = vmatprep.subr.bf16.mxu0 %v366
  %3397 = vmatpush1.bf16.msra.mxu0 %v365
  %3398 = vmatprep.subr.bf16.mxu0 %v364
  %3399 = vmatpush1.bf16.msra.mxu0 %v363
  %3400 = vmatprep.subr.bf16.mxu0 %v362
  %3401 = vmatpush1.bf16.msra.mxu0 %v361
  %3402 = vmatprep.subr.bf16.mxu0 %v360
  %3403 = vmatpush1.bf16.msra.mxu0 %v359
  %3404 = vmatprep.subr.bf16.mxu0 %v358
  %3405 = vmatpush1.bf16.msra.mxu0 %v357
  %3406 = vmatprep.subr.bf16.mxu0 %v356
  %3407 = vmatpush1.bf16.msra.mxu0 %v355
  %3408 = vmatprep.subr.bf16.mxu0 %v354
  %3409 = vmatpush1.bf16.msra.mxu0 %v353
  %3410 = vmatprep.subr.bf16.mxu0 %v352
  %3411 = vmatpush1.bf16.msra.mxu0 %v351
  %3412 = vmatprep.subr.bf16.mxu0 %v382
  %3413 = vmatpush2.bf16.msra.mxu0 %v381
  %3414 = vmatprep.subr.bf16.mxu0 %v380
  %3415 = vmatpush2.bf16.msra.mxu0 %v379
  %3416 = vmatprep.subr.bf16.mxu0 %v378
  %3417 = vmatpush2.bf16.msra.mxu0 %v377
  %3418 = vmatprep.subr.bf16.mxu0 %v376
  %3419 = vmatpush2.bf16.msra.mxu0 %v375
  %3420 = vmatprep.subr.bf16.mxu0 %v374
  %3421 = vmatpush2.bf16.msra.mxu0 %v373
  %3422 = vmatprep.subr.bf16.mxu0 %v372
  %3423 = vmatpush2.bf16.msra.mxu0 %v371
  %3424 = vmatprep.subr.bf16.mxu0 %v370
  %3425 = vmatpush2.bf16.msra.mxu0 %v369
  %3426 = vmatprep.subr.bf16.mxu0 %v368
  %3427 = vmatpush2.bf16.msra.mxu0 %v367
  %3428 = vmatprep.mubr.bf16.mxu0 %v3387
  %3429 = vmatmul.mubr.bf16.gmra.mxu0 %v3386
  %v3430 = vpop.f32.mrf.mxu0
  %v3431 = vadd.f32 0.0, %v3430
  %v3432 = vpop.f32.mrf.mxu0
  %v3433 = vadd.f32 0.0, %v3432
  %v3434 = vpop.f32.mrf.mxu0
  %v3435 = vpop.f32.mrf.mxu0
  %3436 = vdwg.mxu0
  %3437 = vmatprep.subr.bf16.mxu0 %v398
  %3438 = vmatpush1.bf16.msra.mxu0 %v397
  %3439 = vmatprep.subr.bf16.mxu0 %v396
  %3440 = vmatpush1.bf16.msra.mxu0 %v395
  %3441 = vmatprep.subr.bf16.mxu0 %v394
  %3442 = vmatpush1.bf16.msra.mxu0 %v393
  %3443 = vmatprep.subr.bf16.mxu0 %v392
  %3444 = vmatpush1.bf16.msra.mxu0 %v391
  %3445 = vmatprep.subr.bf16.mxu0 %v390
  %3446 = vmatpush1.bf16.msra.mxu0 %v389
  %3447 = vmatprep.subr.bf16.mxu0 %v388
  %3448 = vmatpush1.bf16.msra.mxu0 %v387
  %3449 = vmatprep.subr.bf16.mxu0 %v386
  %3450 = vmatpush1.bf16.msra.mxu0 %v385
  %3451 = vmatprep.subr.bf16.mxu0 %v384
  %3452 = vmatpush1.bf16.msra.mxu0 %v383
  %3453 = vmatprep.subr.bf16.mxu0 0
  %3454 = vmatpush2.bf16.msra.mxu0 0
  %3455 = vmatprep.subr.bf16.mxu0 0
  %3456 = vmatpush2.bf16.msra.mxu0 0
  %3457 = vmatprep.subr.bf16.mxu0 0
  %3458 = vmatpush2.bf16.msra.mxu0 0
  %3459 = vmatprep.subr.bf16.mxu0 0
  %3460 = vmatpush2.bf16.msra.mxu0 0
  %3461 = vmatprep.subr.bf16.mxu0 0
  %3462 = vmatpush2.bf16.msra.mxu0 0
  %3463 = vmatprep.subr.bf16.mxu0 0
  %3464 = vmatpush2.bf16.msra.mxu0 0
  %3465 = vmatprep.subr.bf16.mxu0 %v402
  %3466 = vmatpush2.bf16.msra.mxu0 %v401
  %3467 = vmatprep.subr.bf16.mxu0 %v400
  %3468 = vmatpush2.bf16.msra.mxu0 %v399
  %3469 = vmatprep.mubr.bf16.mxu0 %v3394
  %3470 = vmatmul.mubr.bf16.gmra.mxu0 %v3388
  %v3471 = vpop.f32.mrf.mxu0
  %v3472 = vadd.f32 %v3431, %v3471
  %v3473 = vpop.f32.mrf.mxu0
  %v3474 = vadd.f32 %v3433, %v3473
  %v3475 = vpop.f32.mrf.mxu0
  %v3476 = vpop.f32.mrf.mxu0
  %3477 = vdwg.mxu0
  %3478 = vmatprep.subr.bf16.mxu0 %v712
  %3479 = vmatpush1.bf16.msra.mxu0 %v711
  %3480 = vmatprep.subr.bf16.mxu0 %v710
  %3481 = vmatpush1.bf16.msra.mxu0 %v709
  %3482 = vmatprep.subr.bf16.mxu0 %v708
  %3483 = vmatpush1.bf16.msra.mxu0 %v707
  %3484 = vmatprep.subr.bf16.mxu0 %v706
  %3485 = vmatpush1.bf16.msra.mxu0 %v705
  %3486 = vmatprep.subr.bf16.mxu0 %v704
  %3487 = vmatpush1.bf16.msra.mxu0 %v703
  %3488 = vmatprep.subr.bf16.mxu0 %v702
  %3489 = vmatpush1.bf16.msra.mxu0 %v701
  %3490 = vmatprep.subr.bf16.mxu0 %v700
  %3491 = vmatpush1.bf16.msra.mxu0 %v699
  %3492 = vmatprep.subr.bf16.mxu0 %v698
  %3493 = vmatpush1.bf16.msra.mxu0 %v697
  %3494 = vmatprep.subr.bf16.mxu0 %v728
  %3495 = vmatpush2.bf16.msra.mxu0 %v727
  %3496 = vmatprep.subr.bf16.mxu0 %v726
  %3497 = vmatpush2.bf16.msra.mxu0 %v725
  %3498 = vmatprep.subr.bf16.mxu0 %v724
  %3499 = vmatpush2.bf16.msra.mxu0 %v723
  %3500 = vmatprep.subr.bf16.mxu0 %v722
  %3501 = vmatpush2.bf16.msra.mxu0 %v721
  %3502 = vmatprep.subr.bf16.mxu0 %v720
  %3503 = vmatpush2.bf16.msra.mxu0 %v719
  %3504 = vmatprep.subr.bf16.mxu0 %v718
  %3505 = vmatpush2.bf16.msra.mxu0 %v717
  %3506 = vmatprep.subr.bf16.mxu0 %v716
  %3507 = vmatpush2.bf16.msra.mxu0 %v715
  %3508 = vmatprep.subr.bf16.mxu0 %v714
  %3509 = vmatpush2.bf16.msra.mxu0 %v713
  %3510 = vmatprep.mubr.bf16.mxu0 %v3387
  %3511 = vmatmul.mubr.bf16.gmra.mxu0 %v3386
  %v3512 = vpop.f32.mrf.mxu0
  %v3513 = vadd.f32 0.0, %v3512
  %v3514 = vpop.f32.mrf.mxu0
  %v3515 = vadd.f32 0.0, %v3514
  %v3516 = vpop.f32.mrf.mxu0
  %v3517 = vpop.f32.mrf.mxu0
  %3518 = vdwg.mxu0
  %3519 = vmatprep.subr.bf16.mxu0 %v744
  %3520 = vmatpush1.bf16.msra.mxu0 %v743
  %3521 = vmatprep.subr.bf16.mxu0 %v742
  %3522 = vmatpush1.bf16.msra.mxu0 %v741
  %3523 = vmatprep.subr.bf16.mxu0 %v740
  %3524 = vmatpush1.bf16.msra.mxu0 %v739
  %3525 = vmatprep.subr.bf16.mxu0 %v738
  %3526 = vmatpush1.bf16.msra.mxu0 %v737
  %3527 = vmatprep.subr.bf16.mxu0 %v736
  %3528 = vmatpush1.bf16.msra.mxu0 %v735
  %3529 = vmatprep.subr.bf16.mxu0 %v734
  %3530 = vmatpush1.bf16.msra.mxu0 %v733
  %3531 = vmatprep.subr.bf16.mxu0 %v732
  %3532 = vmatpush1.bf16.msra.mxu0 %v731
  %3533 = vmatprep.subr.bf16.mxu0 %v730
  %3534 = vmatpush1.bf16.msra.mxu0 %v729
  %3535 = vmatprep.subr.bf16.mxu0 0
  %3536 = vmatpush2.bf16.msra.mxu0 0
  %3537 = vmatprep.subr.bf16.mxu0 0
  %3538 = vmatpush2.bf16.msra.mxu0 0
  %3539 = vmatprep.subr.bf16.mxu0 0
  %3540 = vmatpush2.bf16.msra.mxu0 0
  %3541 = vmatprep.subr.bf16.mxu0 0
  %3542 = vmatpush2.bf16.msra.mxu0 0
  %3543 = vmatprep.subr.bf16.mxu0 0
  %3544 = vmatpush2.bf16.msra.mxu0 0
  %3545 = vmatprep.subr.bf16.mxu0 0
  %3546 = vmatpush2.bf16.msra.mxu0 0
  %3547 = vmatprep.subr.bf16.mxu0 %v748
  %3548 = vmatpush2.bf16.msra.mxu0 %v747
  %3549 = vmatprep.subr.bf16.mxu0 %v746
  %3550 = vmatpush2.bf16.msra.mxu0 %v745
  %3551 = vmatprep.mubr.bf16.mxu0 %v3394
  %3552 = vmatmul.mubr.bf16.gmra.mxu0 %v3388
  %v3553 = vpop.f32.mrf.mxu0
  %v3554 = vadd.f32 %v3513, %v3553
  %v3555 = vpop.f32.mrf.mxu0
  %v3556 = vadd.f32 %v3515, %v3555
  %v3557 = vpop.f32.mrf.mxu0
  %v3558 = vpop.f32.mrf.mxu0
  %3559 = vdwg.mxu0
  %v3560 = vmax.f32 %v3472, %v3554
  %v3561 = vmax.f32 %v3474, %v3556
  %v3562 = vpack.c.bf16 %v3560, %v3560
  %v3563 = vpack.c.bf16 %v3561, %v3561
  %v3566 = vcombine.low %v3562, %v3563
  %v3568 = vunpack.c.l.s4 1966171168
  %v3569 = vunpack.c.0.s8 %v3568
  %v3570 = vlaneseq
  %v3571 = vshrl.u32 %v3570, 7
  %v3572 = vsub.s32 %v3569, %v3571
  %v3573 = vrot.slane %v3566, %v3572
  %v3575 = vunpack.c.l.s4 1966171168
  %v3576 = vunpack.c.0.s8 %v3575
  %v3577 = vlaneseq
  %v3578 = vshrl.u32 %v3577, 7
  %v3579 = vsub.s32 %v3576, %v3578
  %v3580 = vrot.slane %v3573, %v3579
  %v3581 = vunpack.i.l.s16 %v3580
  %v3582 = vunpack.i.h.s16 %v3580
  %v3583 = vpack.i.b16 %v3581, %v3581
  %v3584 = vpack.i.b16 %v3582, %v3582
  %v3586 = vunpack.c.l.s4 286326784
  %v3587 = vunpack.c.0.s8 %v3586
  %v3588 = vlaneseq
  %v3589 = vshrl.u32 %v3588, 7
  %v3590 = vsub.s32 %v3587, %v3589
  %v3591 = vrot.slane %v3583, %v3590
  %v3593 = vunpack.c.l.s4 286326784
  %v3594 = vunpack.c.0.s8 %v3593
  %v3595 = vlaneseq
  %v3596 = vshrl.u32 %v3595, 7
  %v3597 = vsub.s32 %v3594, %v3596
  %v3598 = vrot.slane %v3584, %v3597
  %v3601 = vld [vmem:[%s3 + $0x8] sm:$0x11]
  %v3602 = vsel %vm1228, %v3591, %v3601
  %3603 = vst [vmem:[%s3 + $0x8] sm:$0x11] %v3602
  %v3604 = vld [vmem:[%s3 + $0x18] sm:$0x11]
  %v3605 = vsel %vm1228, %v3598, %v3604
  %3606 = vst [vmem:[%s3 + $0x18] sm:$0x11] %v3605
  %v3607 = vld [vmem:[%s0 + $0x20] sm:$0x44]
  %v3608 = vld [vmem:[%s0 + $0x28] sm:$0x44]
  %v3609 = vld [vmem:[%s0 + $0x60] sm:$0x44]
  %v3610 = vld [vmem:[%s0 + $0x68] sm:$0x44]
  %v3612 = vshrl.u32 %v3607, 16
  %v3614 = vrot.slane %v3612, 4
  %v3615 = vrot.slane %v3614, 4
  %v3617 = vshrl.u32 %v3608, 16
  %v3619 = vrot.slane %v3617, 4
  %v3620 = vrot.slane %v3619, 4
  %v3622 = vshrl.u32 %v3609, 16
  %v3624 = vrot.slane %v3622, 4
  %v3625 = vrot.slane %v3624, 4
  %v3627 = vshrl.u32 %v3610, 16
  %v3629 = vrot.slane %v3627, 4
  %v3630 = vrot.slane %v3629, 4
  %v3635 = vmax.bf16 %v3607, %v3615
  %v3636 = vmax.bf16 %v3608, %v3620
  %v3637 = vmax.bf16 %v3609, %v3625
  %v3638 = vmax.bf16 %v3610, %v3630
  %v3643 = vunpack.c.l.b16 %v3635
  %v3644 = vunpack.c.h.b16 %v3635
  %v3645 = vunpack.c.l.b16 %v3636
  %v3646 = vunpack.c.h.b16 %v3636
  %v3647 = vunpack.c.l.b16 %v3637
  %v3648 = vunpack.c.h.b16 %v3637
  %v3649 = vunpack.c.l.b16 %v3638
  %v3650 = vunpack.c.h.b16 %v3638
  %v3651 = vpack.c.b16 %v3643, %v3643
  %v3652 = vpack.c.b16 %v3644, %v3644
  %v3653 = vpack.c.b16 %v3645, %v3645
  %v3654 = vpack.c.b16 %v3646, %v3646
  %v3655 = vpack.c.b16 %v3647, %v3647
  %v3656 = vpack.c.b16 %v3648, %v3648
  %v3657 = vpack.c.b16 %v3649, %v3649
  %v3658 = vpack.c.b16 %v3650, %v3650
  %v3659 = vunpack.c.l.b16 %v3651
  %v3660 = vunpack.c.l.b16 %v3652
  %v3661 = vunpack.c.l.b16 %v3653
  %v3662 = vunpack.c.l.b16 %v3654
  %v3663 = vunpack.c.l.b16 %v3655
  %v3664 = vunpack.c.l.b16 %v3656
  %v3665 = vunpack.c.l.b16 %v3657
  %v3666 = vunpack.c.l.b16 %v3658
  %v3667 = vrot.slane %v3659, 4
  %v3668 = vrot.slane %v3663, 3
  %v3669 = vsel %vm180, %v3668, %v3667
  %v3670 = vrot.slane %v3660, 4
  %v3671 = vrot.slane %v3664, 3
  %v3672 = vsel %vm180, %v3671, %v3670
  %v3673 = vrot.slane %v3661, 4
  %v3674 = vrot.slane %v3665, 3
  %v3675 = vsel %vm180, %v3674, %v3673
  %v3676 = vrot.slane %v3662, 4
  %v3677 = vrot.slane %v3666, 3
  %v3678 = vsel %vm180, %v3677, %v3676
  %v3679 = vpack.c.b16 %v3669, %v3669
  %v3680 = vpack.c.b16 %v3672, %v3672
  %v3681 = vpack.c.b16 %v3675, %v3675
  %v3682 = vpack.c.b16 %v3678, %v3678
  %v3687 = vsel %vm455, %v3682, 0
  %3689 = vmatprep.subr.bf16.mxu0 %v366
  %3690 = vmatpush1.bf16.msra.mxu0 %v365
  %3691 = vmatprep.subr.bf16.mxu0 %v364
  %3692 = vmatpush1.bf16.msra.mxu0 %v363
  %3693 = vmatprep.subr.bf16.mxu0 %v362
  %3694 = vmatpush1.bf16.msra.mxu0 %v361
  %3695 = vmatprep.subr.bf16.mxu0 %v360
  %3696 = vmatpush1.bf16.msra.mxu0 %v359
  %3697 = vmatprep.subr.bf16.mxu0 %v358
  %3698 = vmatpush1.bf16.msra.mxu0 %v357
  %3699 = vmatprep.subr.bf16.mxu0 %v356
  %3700 = vmatpush1.bf16.msra.mxu0 %v355
  %3701 = vmatprep.subr.bf16.mxu0 %v354
  %3702 = vmatpush1.bf16.msra.mxu0 %v353
  %3703 = vmatprep.subr.bf16.mxu0 %v352
  %3704 = vmatpush1.bf16.msra.mxu0 %v351
  %3705 = vmatprep.subr.bf16.mxu0 %v382
  %3706 = vmatpush2.bf16.msra.mxu0 %v381
  %3707 = vmatprep.subr.bf16.mxu0 %v380
  %3708 = vmatpush2.bf16.msra.mxu0 %v379
  %3709 = vmatprep.subr.bf16.mxu0 %v378
  %3710 = vmatpush2.bf16.msra.mxu0 %v377
  %3711 = vmatprep.subr.bf16.mxu0 %v376
  %3712 = vmatpush2.bf16.msra.mxu0 %v375
  %3713 = vmatprep.subr.bf16.mxu0 %v374
  %3714 = vmatpush2.bf16.msra.mxu0 %v373
  %3715 = vmatprep.subr.bf16.mxu0 %v372
  %3716 = vmatpush2.bf16.msra.mxu0 %v371
  %3717 = vmatprep.subr.bf16.mxu0 %v370
  %3718 = vmatpush2.bf16.msra.mxu0 %v369
  %3719 = vmatprep.subr.bf16.mxu0 %v368
  %3720 = vmatpush2.bf16.msra.mxu0 %v367
  %3721 = vmatprep.mubr.bf16.mxu0 %v3680
  %3722 = vmatmul.mubr.bf16.gmra.mxu0 %v3679
  %v3723 = vpop.f32.mrf.mxu0
  %v3724 = vadd.f32 0.0, %v3723
  %v3725 = vpop.f32.mrf.mxu0
  %v3726 = vadd.f32 0.0, %v3725
  %v3727 = vpop.f32.mrf.mxu0
  %v3728 = vpop.f32.mrf.mxu0
  %3729 = vdwg.mxu0
  %3730 = vmatprep.subr.bf16.mxu0 %v398
  %3731 = vmatpush1.bf16.msra.mxu0 %v397
  %3732 = vmatprep.subr.bf16.mxu0 %v396
  %3733 = vmatpush1.bf16.msra.mxu0 %v395
  %3734 = vmatprep.subr.bf16.mxu0 %v394
  %3735 = vmatpush1.bf16.msra.mxu0 %v393
  %3736 = vmatprep.subr.bf16.mxu0 %v392
  %3737 = vmatpush1.bf16.msra.mxu0 %v391
  %3738 = vmatprep.subr.bf16.mxu0 %v390
  %3739 = vmatpush1.bf16.msra.mxu0 %v389
  %3740 = vmatprep.subr.bf16.mxu0 %v388
  %3741 = vmatpush1.bf16.msra.mxu0 %v387
  %3742 = vmatprep.subr.bf16.mxu0 %v386
  %3743 = vmatpush1.bf16.msra.mxu0 %v385
  %3744 = vmatprep.subr.bf16.mxu0 %v384
  %3745 = vmatpush1.bf16.msra.mxu0 %v383
  %3746 = vmatprep.subr.bf16.mxu0 0
  %3747 = vmatpush2.bf16.msra.mxu0 0
  %3748 = vmatprep.subr.bf16.mxu0 0
  %3749 = vmatpush2.bf16.msra.mxu0 0
  %3750 = vmatprep.subr.bf16.mxu0 0
  %3751 = vmatpush2.bf16.msra.mxu0 0
  %3752 = vmatprep.subr.bf16.mxu0 0
  %3753 = vmatpush2.bf16.msra.mxu0 0
  %3754 = vmatprep.subr.bf16.mxu0 0
  %3755 = vmatpush2.bf16.msra.mxu0 0
  %3756 = vmatprep.subr.bf16.mxu0 0
  %3757 = vmatpush2.bf16.msra.mxu0 0
  %3758 = vmatprep.subr.bf16.mxu0 %v402
  %3759 = vmatpush2.bf16.msra.mxu0 %v401
  %3760 = vmatprep.subr.bf16.mxu0 %v400
  %3761 = vmatpush2.bf16.msra.mxu0 %v399
  %3762 = vmatprep.mubr.bf16.mxu0 %v3687
  %3763 = vmatmul.mubr.bf16.gmra.mxu0 %v3681
  %v3764 = vpop.f32.mrf.mxu0
  %v3765 = vadd.f32 %v3724, %v3764
  %v3766 = vpop.f32.mrf.mxu0
  %v3767 = vadd.f32 %v3726, %v3766
  %v3768 = vpop.f32.mrf.mxu0
  %v3769 = vpop.f32.mrf.mxu0
  %3770 = vdwg.mxu0
  %3771 = vmatprep.subr.bf16.mxu0 %v712
  %3772 = vmatpush1.bf16.msra.mxu0 %v711
  %3773 = vmatprep.subr.bf16.mxu0 %v710
  %3774 = vmatpush1.bf16.msra.mxu0 %v709
  %3775 = vmatprep.subr.bf16.mxu0 %v708
  %3776 = vmatpush1.bf16.msra.mxu0 %v707
  %3777 = vmatprep.subr.bf16.mxu0 %v706
  %3778 = vmatpush1.bf16.msra.mxu0 %v705
  %3779 = vmatprep.subr.bf16.mxu0 %v704
  %3780 = vmatpush1.bf16.msra.mxu0 %v703
  %3781 = vmatprep.subr.bf16.mxu0 %v702
  %3782 = vmatpush1.bf16.msra.mxu0 %v701
  %3783 = vmatprep.subr.bf16.mxu0 %v700
  %3784 = vmatpush1.bf16.msra.mxu0 %v699
  %3785 = vmatprep.subr.bf16.mxu0 %v698
  %3786 = vmatpush1.bf16.msra.mxu0 %v697
  %3787 = vmatprep.subr.bf16.mxu0 %v728
  %3788 = vmatpush2.bf16.msra.mxu0 %v727
  %3789 = vmatprep.subr.bf16.mxu0 %v726
  %3790 = vmatpush2.bf16.msra.mxu0 %v725
  %3791 = vmatprep.subr.bf16.mxu0 %v724
  %3792 = vmatpush2.bf16.msra.mxu0 %v723
  %3793 = vmatprep.subr.bf16.mxu0 %v722
  %3794 = vmatpush2.bf16.msra.mxu0 %v721
  %3795 = vmatprep.subr.bf16.mxu0 %v720
  %3796 = vmatpush2.bf16.msra.mxu0 %v719
  %3797 = vmatprep.subr.bf16.mxu0 %v718
  %3798 = vmatpush2.bf16.msra.mxu0 %v717
  %3799 = vmatprep.subr.bf16.mxu0 %v716
  %3800 = vmatpush2.bf16.msra.mxu0 %v715
  %3801 = vmatprep.subr.bf16.mxu0 %v714
  %3802 = vmatpush2.bf16.msra.mxu0 %v713
  %3803 = vmatprep.mubr.bf16.mxu0 %v3680
  %3804 = vmatmul.mubr.bf16.gmra.mxu0 %v3679
  %v3805 = vpop.f32.mrf.mxu0
  %v3806 = vadd.f32 0.0, %v3805
  %v3807 = vpop.f32.mrf.mxu0
  %v3808 = vadd.f32 0.0, %v3807
  %v3809 = vpop.f32.mrf.mxu0
  %v3810 = vpop.f32.mrf.mxu0
  %3811 = vdwg.mxu0
  %3812 = vmatprep.subr.bf16.mxu0 %v744
  %3813 = vmatpush1.bf16.msra.mxu0 %v743
  %3814 = vmatprep.subr.bf16.mxu0 %v742
  %3815 = vmatpush1.bf16.msra.mxu0 %v741
  %3816 = vmatprep.subr.bf16.mxu0 %v740
  %3817 = vmatpush1.bf16.msra.mxu0 %v739
  %3818 = vmatprep.subr.bf16.mxu0 %v738
  %3819 = vmatpush1.bf16.msra.mxu0 %v737
  %3820 = vmatprep.subr.bf16.mxu0 %v736
  %3821 = vmatpush1.bf16.msra.mxu0 %v735
  %3822 = vmatprep.subr.bf16.mxu0 %v734
  %3823 = vmatpush1.bf16.msra.mxu0 %v733
  %3824 = vmatprep.subr.bf16.mxu0 %v732
  %3825 = vmatpush1.bf16.msra.mxu0 %v731
  %3826 = vmatprep.subr.bf16.mxu0 %v730
  %3827 = vmatpush1.bf16.msra.mxu0 %v729
  %3828 = vmatprep.subr.bf16.mxu0 0
  %3829 = vmatpush2.bf16.msra.mxu0 0
  %3830 = vmatprep.subr.bf16.mxu0 0
  %3831 = vmatpush2.bf16.msra.mxu0 0
  %3832 = vmatprep.subr.bf16.mxu0 0
  %3833 = vmatpush2.bf16.msra.mxu0 0
  %3834 = vmatprep.subr.bf16.mxu0 0
  %3835 = vmatpush2.bf16.msra.mxu0 0
  %3836 = vmatprep.subr.bf16.mxu0 0
  %3837 = vmatpush2.bf16.msra.mxu0 0
  %3838 = vmatprep.subr.bf16.mxu0 0
  %3839 = vmatpush2.bf16.msra.mxu0 0
  %3840 = vmatprep.subr.bf16.mxu0 %v748
  %3841 = vmatpush2.bf16.msra.mxu0 %v747
  %3842 = vmatprep.subr.bf16.mxu0 %v746
  %3843 = vmatpush2.bf16.msra.mxu0 %v745
  %3844 = vmatprep.mubr.bf16.mxu0 %v3687
  %3845 = vmatmul.mubr.bf16.gmra.mxu0 %v3681
  %v3846 = vpop.f32.mrf.mxu0
  %v3847 = vadd.f32 %v3806, %v3846
  %v3848 = vpop.f32.mrf.mxu0
  %v3849 = vadd.f32 %v3808, %v3848
  %v3850 = vpop.f32.mrf.mxu0
  %v3851 = vpop.f32.mrf.mxu0
  %3852 = vdwg.mxu0
  %v3853 = vmax.f32 %v3765, %v3847
  %v3854 = vmax.f32 %v3767, %v3849
  %v3855 = vpack.c.bf16 %v3853, %v3853
  %v3856 = vpack.c.bf16 %v3854, %v3854
  %v3859 = vcombine.low %v3855, %v3856
  %v3861 = vunpack.c.l.s4 1966171168
  %v3862 = vunpack.c.0.s8 %v3861
  %v3863 = vlaneseq
  %v3864 = vshrl.u32 %v3863, 7
  %v3865 = vsub.s32 %v3862, %v3864
  %v3866 = vrot.slane %v3859, %v3865
  %v3868 = vunpack.c.l.s4 1966171168
  %v3869 = vunpack.c.0.s8 %v3868
  %v3870 = vlaneseq
  %v3871 = vshrl.u32 %v3870, 7
  %v3872 = vsub.s32 %v3869, %v3871
  %v3873 = vrot.slane %v3866, %v3872
  %v3874 = vunpack.i.l.s16 %v3873
  %v3875 = vunpack.i.h.s16 %v3873
  %v3876 = vpack.i.b16 %v3874, %v3874
  %v3877 = vpack.i.b16 %v3875, %v3875
  %v3879 = vunpack.c.l.s4 286326784
  %v3880 = vunpack.c.0.s8 %v3879
  %v3881 = vlaneseq
  %v3882 = vshrl.u32 %v3881, 7
  %v3883 = vsub.s32 %v3880, %v3882
  %v3884 = vrot.slane %v3876, %v3883
  %v3886 = vunpack.c.l.s4 286326784
  %v3887 = vunpack.c.0.s8 %v3886
  %v3888 = vlaneseq
  %v3889 = vshrl.u32 %v3888, 7
  %v3890 = vsub.s32 %v3887, %v3889
  %v3891 = vrot.slane %v3877, %v3890
  %v3894 = vld [vmem:[%s3 + $0x8] sm:$0x22]
  %v3895 = vsel %vm1528, %v3884, %v3894
  %3896 = vst [vmem:[%s3 + $0x8] sm:$0x22] %v3895
  %v3897 = vld [vmem:[%s3 + $0x18] sm:$0x22]
  %v3898 = vsel %vm1528, %v3891, %v3897
  %3899 = vst [vmem:[%s3 + $0x18] sm:$0x22] %v3898
  %v3900 = vld [vmem:[%s0 + $0x20] sm:$0x88]
  %v3901 = vld [vmem:[%s0 + $0x28] sm:$0x88]
  %v3902 = vld [vmem:[%s0 + $0x60] sm:$0x88]
  %v3903 = vld [vmem:[%s0 + $0x68] sm:$0x88]
  %v3905 = vshrl.u32 %v3900, 16
  %v3907 = vrot.slane %v3905, 4
  %v3908 = vrot.slane %v3907, 4
  %v3910 = vshrl.u32 %v3901, 16
  %v3912 = vrot.slane %v3910, 4
  %v3913 = vrot.slane %v3912, 4
  %v3915 = vshrl.u32 %v3902, 16
  %v3917 = vrot.slane %v3915, 4
  %v3918 = vrot.slane %v3917, 4
  %v3920 = vshrl.u32 %v3903, 16
  %v3922 = vrot.slane %v3920, 4
  %v3923 = vrot.slane %v3922, 4
  %v3928 = vmax.bf16 %v3900, %v3908
  %v3929 = vmax.bf16 %v3901, %v3913
  %v3930 = vmax.bf16 %v3902, %v3918
  %v3931 = vmax.bf16 %v3903, %v3923
  %v3936 = vunpack.c.l.b16 %v3928
  %v3937 = vunpack.c.h.b16 %v3928
  %v3938 = vunpack.c.l.b16 %v3929
  %v3939 = vunpack.c.h.b16 %v3929
  %v3940 = vunpack.c.l.b16 %v3930
  %v3941 = vunpack.c.h.b16 %v3930
  %v3942 = vunpack.c.l.b16 %v3931
  %v3943 = vunpack.c.h.b16 %v3931
  %v3944 = vpack.c.b16 %v3936, %v3936
  %v3945 = vpack.c.b16 %v3937, %v3937
  %v3946 = vpack.c.b16 %v3938, %v3938
  %v3947 = vpack.c.b16 %v3939, %v3939
  %v3948 = vpack.c.b16 %v3940, %v3940
  %v3949 = vpack.c.b16 %v3941, %v3941
  %v3950 = vpack.c.b16 %v3942, %v3942
  %v3951 = vpack.c.b16 %v3943, %v3943
  %v3952 = vunpack.c.l.b16 %v3944
  %v3953 = vunpack.c.l.b16 %v3945
  %v3954 = vunpack.c.l.b16 %v3946
  %v3955 = vunpack.c.l.b16 %v3947
  %v3956 = vunpack.c.l.b16 %v3948
  %v3957 = vunpack.c.l.b16 %v3949
  %v3958 = vunpack.c.l.b16 %v3950
  %v3959 = vunpack.c.l.b16 %v3951
  %v3960 = vrot.slane %v3952, 6
  %v3961 = vrot.slane %v3956, 5
  %v3962 = vsel %vm180, %v3961, %v3960
  %v3963 = vrot.slane %v3953, 6
  %v3964 = vrot.slane %v3957, 5
  %v3965 = vsel %vm180, %v3964, %v3963
  %v3966 = vrot.slane %v3954, 6
  %v3967 = vrot.slane %v3958, 5
  %v3968 = vsel %vm180, %v3967, %v3966
  %v3969 = vrot.slane %v3955, 6
  %v3970 = vrot.slane %v3959, 5
  %v3971 = vsel %vm180, %v3970, %v3969
  %v3972 = vpack.c.b16 %v3962, %v3962
  %v3973 = vpack.c.b16 %v3965, %v3965
  %v3974 = vpack.c.b16 %v3968, %v3968
  %v3975 = vpack.c.b16 %v3971, %v3971
  %v3980 = vsel %vm455, %v3975, 0
  %3982 = vmatprep.subr.bf16.mxu0 %v366
  %3983 = vmatpush1.bf16.msra.mxu0 %v365
  %3984 = vmatprep.subr.bf16.mxu0 %v364
  %3985 = vmatpush1.bf16.msra.mxu0 %v363
  %3986 = vmatprep.subr.bf16.mxu0 %v362
  %3987 = vmatpush1.bf16.msra.mxu0 %v361
  %3988 = vmatprep.subr.bf16.mxu0 %v360
  %3989 = vmatpush1.bf16.msra.mxu0 %v359
  %3990 = vmatprep.subr.bf16.mxu0 %v358
  %3991 = vmatpush1.bf16.msra.mxu0 %v357
  %3992 = vmatprep.subr.bf16.mxu0 %v356
  %3993 = vmatpush1.bf16.msra.mxu0 %v355
  %3994 = vmatprep.subr.bf16.mxu0 %v354
  %3995 = vmatpush1.bf16.msra.mxu0 %v353
  %3996 = vmatprep.subr.bf16.mxu0 %v352
  %3997 = vmatpush1.bf16.msra.mxu0 %v351
  %3998 = vmatprep.subr.bf16.mxu0 %v382
  %3999 = vmatpush2.bf16.msra.mxu0 %v381
  %4000 = vmatprep.subr.bf16.mxu0 %v380
  %4001 = vmatpush2.bf16.msra.mxu0 %v379
  %4002 = vmatprep.subr.bf16.mxu0 %v378
  %4003 = vmatpush2.bf16.msra.mxu0 %v377
  %4004 = vmatprep.subr.bf16.mxu0 %v376
  %4005 = vmatpush2.bf16.msra.mxu0 %v375
  %4006 = vmatprep.subr.bf16.mxu0 %v374
  %4007 = vmatpush2.bf16.msra.mxu0 %v373
  %4008 = vmatprep.subr.bf16.mxu0 %v372
  %4009 = vmatpush2.bf16.msra.mxu0 %v371
  %4010 = vmatprep.subr.bf16.mxu0 %v370
  %4011 = vmatpush2.bf16.msra.mxu0 %v369
  %4012 = vmatprep.subr.bf16.mxu0 %v368
  %4013 = vmatpush2.bf16.msra.mxu0 %v367
  %4014 = vmatprep.mubr.bf16.mxu0 %v3973
  %4015 = vmatmul.mubr.bf16.gmra.mxu0 %v3972
  %v4016 = vpop.f32.mrf.mxu0
  %v4017 = vadd.f32 0.0, %v4016
  %v4018 = vpop.f32.mrf.mxu0
  %v4019 = vadd.f32 0.0, %v4018
  %v4020 = vpop.f32.mrf.mxu0
  %v4021 = vpop.f32.mrf.mxu0
  %4022 = vdwg.mxu0
  %4023 = vmatprep.subr.bf16.mxu0 %v398
  %4024 = vmatpush1.bf16.msra.mxu0 %v397
  %4025 = vmatprep.subr.bf16.mxu0 %v396
  %4026 = vmatpush1.bf16.msra.mxu0 %v395
  %4027 = vmatprep.subr.bf16.mxu0 %v394
  %4028 = vmatpush1.bf16.msra.mxu0 %v393
  %4029 = vmatprep.subr.bf16.mxu0 %v392
  %4030 = vmatpush1.bf16.msra.mxu0 %v391
  %4031 = vmatprep.subr.bf16.mxu0 %v390
  %4032 = vmatpush1.bf16.msra.mxu0 %v389
  %4033 = vmatprep.subr.bf16.mxu0 %v388
  %4034 = vmatpush1.bf16.msra.mxu0 %v387
  %4035 = vmatprep.subr.bf16.mxu0 %v386
  %4036 = vmatpush1.bf16.msra.mxu0 %v385
  %4037 = vmatprep.subr.bf16.mxu0 %v384
  %4038 = vmatpush1.bf16.msra.mxu0 %v383
  %4039 = vmatprep.subr.bf16.mxu0 0
  %4040 = vmatpush2.bf16.msra.mxu0 0
  %4041 = vmatprep.subr.bf16.mxu0 0
  %4042 = vmatpush2.bf16.msra.mxu0 0
  %4043 = vmatprep.subr.bf16.mxu0 0
  %4044 = vmatpush2.bf16.msra.mxu0 0
  %4045 = vmatprep.subr.bf16.mxu0 0
  %4046 = vmatpush2.bf16.msra.mxu0 0
  %4047 = vmatprep.subr.bf16.mxu0 0
  %4048 = vmatpush2.bf16.msra.mxu0 0
  %4049 = vmatprep.subr.bf16.mxu0 0
  %4050 = vmatpush2.bf16.msra.mxu0 0
  %4051 = vmatprep.subr.bf16.mxu0 %v402
  %4052 = vmatpush2.bf16.msra.mxu0 %v401
  %4053 = vmatprep.subr.bf16.mxu0 %v400
  %4054 = vmatpush2.bf16.msra.mxu0 %v399
  %4055 = vmatprep.mubr.bf16.mxu0 %v3980
  %4056 = vmatmul.mubr.bf16.gmra.mxu0 %v3974
  %v4057 = vpop.f32.mrf.mxu0
  %v4058 = vadd.f32 %v4017, %v4057
  %v4059 = vpop.f32.mrf.mxu0
  %v4060 = vadd.f32 %v4019, %v4059
  %v4061 = vpop.f32.mrf.mxu0
  %v4062 = vpop.f32.mrf.mxu0
  %4063 = vdwg.mxu0
  %4064 = vmatprep.subr.bf16.mxu0 %v712
  %4065 = vmatpush1.bf16.msra.mxu0 %v711
  %4066 = vmatprep.subr.bf16.mxu0 %v710
  %4067 = vmatpush1.bf16.msra.mxu0 %v709
  %4068 = vmatprep.subr.bf16.mxu0 %v708
  %4069 = vmatpush1.bf16.msra.mxu0 %v707
  %4070 = vmatprep.subr.bf16.mxu0 %v706
  %4071 = vmatpush1.bf16.msra.mxu0 %v705
  %4072 = vmatprep.subr.bf16.mxu0 %v704
  %4073 = vmatpush1.bf16.msra.mxu0 %v703
  %4074 = vmatprep.subr.bf16.mxu0 %v702
  %4075 = vmatpush1.bf16.msra.mxu0 %v701
  %4076 = vmatprep.subr.bf16.mxu0 %v700
  %4077 = vmatpush1.bf16.msra.mxu0 %v699
  %4078 = vmatprep.subr.bf16.mxu0 %v698
  %4079 = vmatpush1.bf16.msra.mxu0 %v697
  %4080 = vmatprep.subr.bf16.mxu0 %v728
  %4081 = vmatpush2.bf16.msra.mxu0 %v727
  %4082 = vmatprep.subr.bf16.mxu0 %v726
  %4083 = vmatpush2.bf16.msra.mxu0 %v725
  %4084 = vmatprep.subr.bf16.mxu0 %v724
  %4085 = vmatpush2.bf16.msra.mxu0 %v723
  %4086 = vmatprep.subr.bf16.mxu0 %v722
  %4087 = vmatpush2.bf16.msra.mxu0 %v721
  %4088 = vmatprep.subr.bf16.mxu0 %v720
  %4089 = vmatpush2.bf16.msra.mxu0 %v719
  %4090 = vmatprep.subr.bf16.mxu0 %v718
  %4091 = vmatpush2.bf16.msra.mxu0 %v717
  %4092 = vmatprep.subr.bf16.mxu0 %v716
  %4093 = vmatpush2.bf16.msra.mxu0 %v715
  %4094 = vmatprep.subr.bf16.mxu0 %v714
  %4095 = vmatpush2.bf16.msra.mxu0 %v713
  %4096 = vmatprep.mubr.bf16.mxu0 %v3973
  %4097 = vmatmul.mubr.bf16.gmra.mxu0 %v3972
  %v4098 = vpop.f32.mrf.mxu0
  %v4099 = vadd.f32 0.0, %v4098
  %v4100 = vpop.f32.mrf.mxu0
  %v4101 = vadd.f32 0.0, %v4100
  %v4102 = vpop.f32.mrf.mxu0
  %v4103 = vpop.f32.mrf.mxu0
  %4104 = vdwg.mxu0
  %4105 = vmatprep.subr.bf16.mxu0 %v744
  %4106 = vmatpush1.bf16.msra.mxu0 %v743
  %4107 = vmatprep.subr.bf16.mxu0 %v742
  %4108 = vmatpush1.bf16.msra.mxu0 %v741
  %4109 = vmatprep.subr.bf16.mxu0 %v740
  %4110 = vmatpush1.bf16.msra.mxu0 %v739
  %4111 = vmatprep.subr.bf16.mxu0 %v738
  %4112 = vmatpush1.bf16.msra.mxu0 %v737
  %4113 = vmatprep.subr.bf16.mxu0 %v736
  %4114 = vmatpush1.bf16.msra.mxu0 %v735
  %4115 = vmatprep.subr.bf16.mxu0 %v734
  %4116 = vmatpush1.bf16.msra.mxu0 %v733
  %4117 = vmatprep.subr.bf16.mxu0 %v732
  %4118 = vmatpush1.bf16.msra.mxu0 %v731
  %4119 = vmatprep.subr.bf16.mxu0 %v730
  %4120 = vmatpush1.bf16.msra.mxu0 %v729
  %4121 = vmatprep.subr.bf16.mxu0 0
  %4122 = vmatpush2.bf16.msra.mxu0 0
  %4123 = vmatprep.subr.bf16.mxu0 0
  %4124 = vmatpush2.bf16.msra.mxu0 0
  %4125 = vmatprep.subr.bf16.mxu0 0
  %4126 = vmatpush2.bf16.msra.mxu0 0
  %4127 = vmatprep.subr.bf16.mxu0 0
  %4128 = vmatpush2.bf16.msra.mxu0 0
  %4129 = vmatprep.subr.bf16.mxu0 0
  %4130 = vmatpush2.bf16.msra.mxu0 0
  %4131 = vmatprep.subr.bf16.mxu0 0
  %4132 = vmatpush2.bf16.msra.mxu0 0
  %4133 = vmatprep.subr.bf16.mxu0 %v748
  %4134 = vmatpush2.bf16.msra.mxu0 %v747
  %4135 = vmatprep.subr.bf16.mxu0 %v746
  %4136 = vmatpush2.bf16.msra.mxu0 %v745
  %4137 = vmatprep.mubr.bf16.mxu0 %v3980
  %4138 = vmatmul.mubr.bf16.gmra.mxu0 %v3974
  %v4139 = vpop.f32.mrf.mxu0
  %v4140 = vadd.f32 %v4099, %v4139
  %v4141 = vpop.f32.mrf.mxu0
  %v4142 = vadd.f32 %v4101, %v4141
  %v4143 = vpop.f32.mrf.mxu0
  %v4144 = vpop.f32.mrf.mxu0
  %4145 = vdwg.mxu0
  %v4146 = vmax.f32 %v4058, %v4140
  %v4147 = vmax.f32 %v4060, %v4142
  %v4148 = vpack.c.bf16 %v4146, %v4146
  %v4149 = vpack.c.bf16 %v4147, %v4147
  %v4152 = vcombine.low %v4148, %v4149
  %v4154 = vunpack.c.l.s4 1966171168
  %v4155 = vunpack.c.0.s8 %v4154
  %v4156 = vlaneseq
  %v4157 = vshrl.u32 %v4156, 7
  %v4158 = vsub.s32 %v4155, %v4157
  %v4159 = vrot.slane %v4152, %v4158
  %v4161 = vunpack.c.l.s4 1966171168
  %v4162 = vunpack.c.0.s8 %v4161
  %v4163 = vlaneseq
  %v4164 = vshrl.u32 %v4163, 7
  %v4165 = vsub.s32 %v4162, %v4164
  %v4166 = vrot.slane %v4159, %v4165
  %v4167 = vunpack.i.l.s16 %v4166
  %v4168 = vunpack.i.h.s16 %v4166
  %v4169 = vpack.i.b16 %v4167, %v4167
  %v4170 = vpack.i.b16 %v4168, %v4168
  %v4172 = vunpack.c.l.s4 286326784
  %v4173 = vunpack.c.0.s8 %v4172
  %v4174 = vlaneseq
  %v4175 = vshrl.u32 %v4174, 7
  %v4176 = vsub.s32 %v4173, %v4175
  %v4177 = vrot.slane %v4169, %v4176
  %v4179 = vunpack.c.l.s4 286326784
  %v4180 = vunpack.c.0.s8 %v4179
  %v4181 = vlaneseq
  %v4182 = vshrl.u32 %v4181, 7
  %v4183 = vsub.s32 %v4180, %v4182
  %v4184 = vrot.slane %v4170, %v4183
  %v4187 = vld [vmem:[%s3 + $0x8] sm:$0x22]
  %v4188 = vsel %vm1826, %v4177, %v4187
  %4189 = vst [vmem:[%s3 + $0x8] sm:$0x22] %v4188
  %v4190 = vld [vmem:[%s3 + $0x18] sm:$0x22]
  %v4191 = vsel %vm1826, %v4184, %v4190
  %4192 = vst [vmem:[%s3 + $0x18] sm:$0x22] %v4191
  %v4193 = vld [vmem:[%s0 + $0x30] sm:$0x11]
  %v4194 = vld [vmem:[%s0 + $0x38] sm:$0x11]
  %v4195 = vld [vmem:[%s0 + $0x70] sm:$0x11]
  %v4196 = vld [vmem:[%s0 + $0x78] sm:$0x11]
  %v4198 = vshrl.u32 %v4193, 16
  %v4200 = vrot.slane %v4198, 4
  %v4201 = vrot.slane %v4200, 4
  %v4203 = vshrl.u32 %v4194, 16
  %v4205 = vrot.slane %v4203, 4
  %v4206 = vrot.slane %v4205, 4
  %v4208 = vshrl.u32 %v4195, 16
  %v4210 = vrot.slane %v4208, 4
  %v4211 = vrot.slane %v4210, 4
  %v4213 = vshrl.u32 %v4196, 16
  %v4215 = vrot.slane %v4213, 4
  %v4216 = vrot.slane %v4215, 4
  %v4221 = vmax.bf16 %v4193, %v4201
  %v4222 = vmax.bf16 %v4194, %v4206
  %v4223 = vmax.bf16 %v4195, %v4211
  %v4224 = vmax.bf16 %v4196, %v4216
  %v4229 = vunpack.c.l.b16 %v4221
  %v4230 = vunpack.c.h.b16 %v4221
  %v4231 = vunpack.c.l.b16 %v4222
  %v4232 = vunpack.c.h.b16 %v4222
  %v4233 = vunpack.c.l.b16 %v4223
  %v4234 = vunpack.c.h.b16 %v4223
  %v4235 = vunpack.c.l.b16 %v4224
  %v4236 = vunpack.c.h.b16 %v4224
  %v4237 = vpack.c.b16 %v4229, %v4229
  %v4238 = vpack.c.b16 %v4230, %v4230
  %v4239 = vpack.c.b16 %v4231, %v4231
  %v4240 = vpack.c.b16 %v4232, %v4232
  %v4241 = vpack.c.b16 %v4233, %v4233
  %v4242 = vpack.c.b16 %v4234, %v4234
  %v4243 = vpack.c.b16 %v4235, %v4235
  %v4244 = vpack.c.b16 %v4236, %v4236
  %v4245 = vunpack.c.l.b16 %v4237
  %v4246 = vunpack.c.l.b16 %v4238
  %v4247 = vunpack.c.l.b16 %v4239
  %v4248 = vunpack.c.l.b16 %v4240
  %v4249 = vunpack.c.l.b16 %v4241
  %v4250 = vunpack.c.l.b16 %v4242
  %v4251 = vunpack.c.l.b16 %v4243
  %v4252 = vunpack.c.l.b16 %v4244
  %v4253 = vrot.slane %v4249, 7
  %v4254 = vsel %vm180, %v4253, %v4245
  %v4255 = vrot.slane %v4250, 7
  %v4256 = vsel %vm180, %v4255, %v4246
  %v4257 = vrot.slane %v4251, 7
  %v4258 = vsel %vm180, %v4257, %v4247
  %v4259 = vrot.slane %v4252, 7
  %v4260 = vsel %vm180, %v4259, %v4248
  %v4261 = vpack.c.b16 %v4254, %v4254
  %v4262 = vpack.c.b16 %v4256, %v4256
  %v4263 = vpack.c.b16 %v4258, %v4258
  %v4264 = vpack.c.b16 %v4260, %v4260
  %v4269 = vsel %vm455, %v4264, 0
  %4271 = vmatprep.subr.bf16.mxu0 %v366
  %4272 = vmatpush1.bf16.msra.mxu0 %v365
  %4273 = vmatprep.subr.bf16.mxu0 %v364
  %4274 = vmatpush1.bf16.msra.mxu0 %v363
  %4275 = vmatprep.subr.bf16.mxu0 %v362
  %4276 = vmatpush1.bf16.msra.mxu0 %v361
  %4277 = vmatprep.subr.bf16.mxu0 %v360
  %4278 = vmatpush1.bf16.msra.mxu0 %v359
  %4279 = vmatprep.subr.bf16.mxu0 %v358
  %4280 = vmatpush1.bf16.msra.mxu0 %v357
  %4281 = vmatprep.subr.bf16.mxu0 %v356
  %4282 = vmatpush1.bf16.msra.mxu0 %v355
  %4283 = vmatprep.subr.bf16.mxu0 %v354
  %4284 = vmatpush1.bf16.msra.mxu0 %v353
  %4285 = vmatprep.subr.bf16.mxu0 %v352
  %4286 = vmatpush1.bf16.msra.mxu0 %v351
  %4287 = vmatprep.subr.bf16.mxu0 %v382
  %4288 = vmatpush2.bf16.msra.mxu0 %v381
  %4289 = vmatprep.subr.bf16.mxu0 %v380
  %4290 = vmatpush2.bf16.msra.mxu0 %v379
  %4291 = vmatprep.subr.bf16.mxu0 %v378
  %4292 = vmatpush2.bf16.msra.mxu0 %v377
  %4293 = vmatprep.subr.bf16.mxu0 %v376
  %4294 = vmatpush2.bf16.msra.mxu0 %v375
  %4295 = vmatprep.subr.bf16.mxu0 %v374
  %4296 = vmatpush2.bf16.msra.mxu0 %v373
  %4297 = vmatprep.subr.bf16.mxu0 %v372
  %4298 = vmatpush2.bf16.msra.mxu0 %v371
  %4299 = vmatprep.subr.bf16.mxu0 %v370
  %4300 = vmatpush2.bf16.msra.mxu0 %v369
  %4301 = vmatprep.subr.bf16.mxu0 %v368
  %4302 = vmatpush2.bf16.msra.mxu0 %v367
  %4303 = vmatprep.mubr.bf16.mxu0 %v4262
  %4304 = vmatmul.mubr.bf16.gmra.mxu0 %v4261
  %v4305 = vpop.f32.mrf.mxu0
  %v4306 = vadd.f32 0.0, %v4305
  %v4307 = vpop.f32.mrf.mxu0
  %v4308 = vadd.f32 0.0, %v4307
  %v4309 = vpop.f32.mrf.mxu0
  %v4310 = vpop.f32.mrf.mxu0
  %4311 = vdwg.mxu0
  %4312 = vmatprep.subr.bf16.mxu0 %v398
  %4313 = vmatpush1.bf16.msra.mxu0 %v397
  %4314 = vmatprep.subr.bf16.mxu0 %v396
  %4315 = vmatpush1.bf16.msra.mxu0 %v395
  %4316 = vmatprep.subr.bf16.mxu0 %v394
  %4317 = vmatpush1.bf16.msra.mxu0 %v393
  %4318 = vmatprep.subr.bf16.mxu0 %v392
  %4319 = vmatpush1.bf16.msra.mxu0 %v391
  %4320 = vmatprep.subr.bf16.mxu0 %v390
  %4321 = vmatpush1.bf16.msra.mxu0 %v389
  %4322 = vmatprep.subr.bf16.mxu0 %v388
  %4323 = vmatpush1.bf16.msra.mxu0 %v387
  %4324 = vmatprep.subr.bf16.mxu0 %v386
  %4325 = vmatpush1.bf16.msra.mxu0 %v385
  %4326 = vmatprep.subr.bf16.mxu0 %v384
  %4327 = vmatpush1.bf16.msra.mxu0 %v383
  %4328 = vmatprep.subr.bf16.mxu0 0
  %4329 = vmatpush2.bf16.msra.mxu0 0
  %4330 = vmatprep.subr.bf16.mxu0 0
  %4331 = vmatpush2.bf16.msra.mxu0 0
  %4332 = vmatprep.subr.bf16.mxu0 0
  %4333 = vmatpush2.bf16.msra.mxu0 0
  %4334 = vmatprep.subr.bf16.mxu0 0
  %4335 = vmatpush2.bf16.msra.mxu0 0
  %4336 = vmatprep.subr.bf16.mxu0 0
  %4337 = vmatpush2.bf16.msra.mxu0 0
  %4338 = vmatprep.subr.bf16.mxu0 0
  %4339 = vmatpush2.bf16.msra.mxu0 0
  %4340 = vmatprep.subr.bf16.mxu0 %v402
  %4341 = vmatpush2.bf16.msra.mxu0 %v401
  %4342 = vmatprep.subr.bf16.mxu0 %v400
  %4343 = vmatpush2.bf16.msra.mxu0 %v399
  %4344 = vmatprep.mubr.bf16.mxu0 %v4269
  %4345 = vmatmul.mubr.bf16.gmra.mxu0 %v4263
  %v4346 = vpop.f32.mrf.mxu0
  %v4347 = vadd.f32 %v4306, %v4346
  %v4348 = vpop.f32.mrf.mxu0
  %v4349 = vadd.f32 %v4308, %v4348
  %v4350 = vpop.f32.mrf.mxu0
  %v4351 = vpop.f32.mrf.mxu0
  %4352 = vdwg.mxu0
  %4353 = vmatprep.subr.bf16.mxu0 %v712
  %4354 = vmatpush1.bf16.msra.mxu0 %v711
  %4355 = vmatprep.subr.bf16.mxu0 %v710
  %4356 = vmatpush1.bf16.msra.mxu0 %v709
  %4357 = vmatprep.subr.bf16.mxu0 %v708
  %4358 = vmatpush1.bf16.msra.mxu0 %v707
  %4359 = vmatprep.subr.bf16.mxu0 %v706
  %4360 = vmatpush1.bf16.msra.mxu0 %v705
  %4361 = vmatprep.subr.bf16.mxu0 %v704
  %4362 = vmatpush1.bf16.msra.mxu0 %v703
  %4363 = vmatprep.subr.bf16.mxu0 %v702
  %4364 = vmatpush1.bf16.msra.mxu0 %v701
  %4365 = vmatprep.subr.bf16.mxu0 %v700
  %4366 = vmatpush1.bf16.msra.mxu0 %v699
  %4367 = vmatprep.subr.bf16.mxu0 %v698
  %4368 = vmatpush1.bf16.msra.mxu0 %v697
  %4369 = vmatprep.subr.bf16.mxu0 %v728
  %4370 = vmatpush2.bf16.msra.mxu0 %v727
  %4371 = vmatprep.subr.bf16.mxu0 %v726
  %4372 = vmatpush2.bf16.msra.mxu0 %v725
  %4373 = vmatprep.subr.bf16.mxu0 %v724
  %4374 = vmatpush2.bf16.msra.mxu0 %v723
  %4375 = vmatprep.subr.bf16.mxu0 %v722
  %4376 = vmatpush2.bf16.msra.mxu0 %v721
  %4377 = vmatprep.subr.bf16.mxu0 %v720
  %4378 = vmatpush2.bf16.msra.mxu0 %v719
  %4379 = vmatprep.subr.bf16.mxu0 %v718
  %4380 = vmatpush2.bf16.msra.mxu0 %v717
  %4381 = vmatprep.subr.bf16.mxu0 %v716
  %4382 = vmatpush2.bf16.msra.mxu0 %v715
  %4383 = vmatprep.subr.bf16.mxu0 %v714
  %4384 = vmatpush2.bf16.msra.mxu0 %v713
  %4385 = vmatprep.mubr.bf16.mxu0 %v4262
  %4386 = vmatmul.mubr.bf16.gmra.mxu0 %v4261
  %v4387 = vpop.f32.mrf.mxu0
  %v4388 = vadd.f32 0.0, %v4387
  %v4389 = vpop.f32.mrf.mxu0
  %v4390 = vadd.f32 0.0, %v4389
  %v4391 = vpop.f32.mrf.mxu0
  %v4392 = vpop.f32.mrf.mxu0
  %4393 = vdwg.mxu0
  %4394 = vmatprep.subr.bf16.mxu0 %v744
  %4395 = vmatpush1.bf16.msra.mxu0 %v743
  %4396 = vmatprep.subr.bf16.mxu0 %v742
  %4397 = vmatpush1.bf16.msra.mxu0 %v741
  %4398 = vmatprep.subr.bf16.mxu0 %v740
  %4399 = vmatpush1.bf16.msra.mxu0 %v739
  %4400 = vmatprep.subr.bf16.mxu0 %v738
  %4401 = vmatpush1.bf16.msra.mxu0 %v737
  %4402 = vmatprep.subr.bf16.mxu0 %v736
  %4403 = vmatpush1.bf16.msra.mxu0 %v735
  %4404 = vmatprep.subr.bf16.mxu0 %v734
  %4405 = vmatpush1.bf16.msra.mxu0 %v733
  %4406 = vmatprep.subr.bf16.mxu0 %v732
  %4407 = vmatpush1.bf16.msra.mxu0 %v731
  %4408 = vmatprep.subr.bf16.mxu0 %v730
  %4409 = vmatpush1.bf16.msra.mxu0 %v729
  %4410 = vmatprep.subr.bf16.mxu0 0
  %4411 = vmatpush2.bf16.msra.mxu0 0
  %4412 = vmatprep.subr.bf16.mxu0 0
  %4413 = vmatpush2.bf16.msra.mxu0 0
  %4414 = vmatprep.subr.bf16.mxu0 0
  %4415 = vmatpush2.bf16.msra.mxu0 0
  %4416 = vmatprep.subr.bf16.mxu0 0
  %4417 = vmatpush2.bf16.msra.mxu0 0
  %4418 = vmatprep.subr.bf16.mxu0 0
  %4419 = vmatpush2.bf16.msra.mxu0 0
  %4420 = vmatprep.subr.bf16.mxu0 0
  %4421 = vmatpush2.bf16.msra.mxu0 0
  %4422 = vmatprep.subr.bf16.mxu0 %v748
  %4423 = vmatpush2.bf16.msra.mxu0 %v747
  %4424 = vmatprep.subr.bf16.mxu0 %v746
  %4425 = vmatpush2.bf16.msra.mxu0 %v745
  %4426 = vmatprep.mubr.bf16.mxu0 %v4269
  %4427 = vmatmul.mubr.bf16.gmra.mxu0 %v4263
  %v4428 = vpop.f32.mrf.mxu0
  %v4429 = vadd.f32 %v4388, %v4428
  %v4430 = vpop.f32.mrf.mxu0
  %v4431 = vadd.f32 %v4390, %v4430
  %v4432 = vpop.f32.mrf.mxu0
  %v4433 = vpop.f32.mrf.mxu0
  %4434 = vdwg.mxu0
  %v4435 = vmax.f32 %v4347, %v4429
  %v4436 = vmax.f32 %v4349, %v4431
  %v4437 = vpack.c.bf16 %v4435, %v4435
  %v4438 = vpack.c.bf16 %v4436, %v4436
  %v4441 = vcombine.low %v4437, %v4438
  %v4443 = vunpack.c.l.s4 1966171168
  %v4444 = vunpack.c.0.s8 %v4443
  %v4445 = vlaneseq
  %v4446 = vshrl.u32 %v4445, 7
  %v4447 = vsub.s32 %v4444, %v4446
  %v4448 = vrot.slane %v4441, %v4447
  %v4450 = vunpack.c.l.s4 1966171168
  %v4451 = vunpack.c.0.s8 %v4450
  %v4452 = vlaneseq
  %v4453 = vshrl.u32 %v4452, 7
  %v4454 = vsub.s32 %v4451, %v4453
  %v4455 = vrot.slane %v4448, %v4454
  %v4456 = vunpack.i.l.s16 %v4455
  %v4457 = vunpack.i.h.s16 %v4455
  %v4458 = vpack.i.b16 %v4456, %v4456
  %v4459 = vpack.i.b16 %v4457, %v4457
  %v4461 = vunpack.c.l.s4 286326784
  %v4462 = vunpack.c.0.s8 %v4461
  %v4463 = vlaneseq
  %v4464 = vshrl.u32 %v4463, 7
  %v4465 = vsub.s32 %v4462, %v4464
  %v4466 = vrot.slane %v4458, %v4465
  %v4468 = vunpack.c.l.s4 286326784
  %v4469 = vunpack.c.0.s8 %v4468
  %v4470 = vlaneseq
  %v4471 = vshrl.u32 %v4470, 7
  %v4472 = vsub.s32 %v4469, %v4471
  %v4473 = vrot.slane %v4459, %v4472
  %v4476 = vld [vmem:[%s3 + $0x8] sm:$0x44]
  %v4477 = vsel %vm2122, %v4466, %v4476
  %4478 = vst [vmem:[%s3 + $0x8] sm:$0x44] %v4477
  %v4479 = vld [vmem:[%s3 + $0x18] sm:$0x44]
  %v4480 = vsel %vm2122, %v4473, %v4479
  %4481 = vst [vmem:[%s3 + $0x18] sm:$0x44] %v4480
  // Predicated region
  $region14: #{clasificador_conv_forward.7} parent=0 // pred_check
    _
  $region15: #{clasificador_conv_forward.7} parent=0 // pred_check_branch
    %4483 = sbr.rel (0) target = $region17
  $region16: #{clasificador_conv_forward.7} parent=0 // pred_region
    _
  $region17: #{clasificador_conv_forward.7} parent=0 // pred_fallthru
    _
  // Predicated region
  $region18: #{clasificador_conv_forward.7} parent=0 // pred_check
    _
  $region19: #{clasificador_conv_forward.7} parent=0 // pred_check_branch
    %4485 = sbr.rel (0) target = $region21
  $region20: #{clasificador_conv_forward.7} parent=0 // pred_region
    _
  $region21: #{clasificador_conv_forward.7} parent=0 // pred_fallthru
    _

// kernel: clasificador_conv_forward.9
$region0: #{clasificador_conv_forward.9}
  #allocation0 [shape = 'u32[]', space=smem, size = 0x4, offset = 0x4, fixed_abs, tag = 'smem constant byte address 0x4 - core index']
  #allocation1 [shape = 'u32[144,128]{1,0:T(1,128)}', space=vmem, size = 0x12000, scoped, tag = 'internal scratch']
  %s0 = inlined_call_operand.vmem [shape: bf16[2,11,352], index: 0, kind: input, shape index: {}]
  %s1 = inlined_call_operand.vmem [shape: bf16[352,160], index: 1, kind: input, shape index: {}]
  %s2 = inlined_call_operand.vmem [shape: bf16[352,160], index: 2, kind: input, shape index: {}]
  %s3 = inlined_call_operand.vmem [shape: bf16[2,5,160], index: 3, kind: output, shape index: {}]
  %s4 = sld [smem:[#allocation0]]
  $region22: #{clasificador_conv_forward.9} parent=0
    _
  %s6 = ssub.s32 1, %s4
  %s7 = scalar_select 0, %s6, %s4
  // Predicated region
  $region2: #{clasificador_conv_forward.9} parent=0 // pred_check
    _
  $region3: #{clasificador_conv_forward.9} parent=0 // pred_check_branch
    %9 = sbr.rel (0) target = $region5
  $region4: #{clasificador_conv_forward.9} parent=0 // pred_region
    _
  $region5: #{clasificador_conv_forward.9} parent=0 // pred_fallthru
    _
  // Predicated region
  $region6: #{clasificador_conv_forward.9} parent=0 // pred_check
    _
  $region7: #{clasificador_conv_forward.9} parent=0 // pred_check_branch
    %11 = sbr.rel (0) target = $region9
  $region8: #{clasificador_conv_forward.9} parent=0 // pred_region
    _
  $region9: #{clasificador_conv_forward.9} parent=0 // pred_fallthru
    _
  // Predicated region
  $region10: #{clasificador_conv_forward.9} parent=0 // pred_check
    _
  $region11: #{clasificador_conv_forward.9} parent=0 // pred_check_branch
    %13 = sbr.rel (0) target = $region13
  $region12: #{clasificador_conv_forward.9} parent=0 // pred_region
    _
  $region13: #{clasificador_conv_forward.9} parent=0 // pred_fallthru
    _
  %v15 = vld [vmem:[%s1] sm:$0xff]
  %v16 = vld [vmem:[%s1 + $0x8] sm:$0xff]
  %v17 = vld [vmem:[%s1 + $0x10] sm:$0xff]
  %v18 = vld [vmem:[%s1 + $0x18] sm:$0xff]
  %v19 = vld [vmem:[%s1 + $0x20] sm:$0xff]
  %v20 = vld [vmem:[%s1 + $0x28] sm:$0xff]
  %v21 = vld [vmem:[%s1 + $0x30] sm:$0xff]
  %v22 = vld [vmem:[%s1 + $0x38] sm:$0xff]
  %v23 = vld [vmem:[%s1 + $0x40] sm:$0xff]
  %v24 = vld [vmem:[%s1 + $0x48] sm:$0xff]
  %v25 = vld [vmem:[%s1 + $0x50] sm:$0xff]
  %v26 = vld [vmem:[%s1 + $0x58] sm:$0xff]
  %v27 = vld [vmem:[%s1 + $0x60] sm:$0xff]
  %v28 = vld [vmem:[%s1 + $0x68] sm:$0xff]
  %v29 = vld [vmem:[%s1 + $0x70] sm:$0xff]
  %v30 = vld [vmem:[%s1 + $0x78] sm:$0xff]
  %v31 = vld [vmem:[%s1 + $0x80] sm:$0xff]
  %v32 = vld [vmem:[%s1 + $0x88] sm:$0xff]
  %v33 = vld [vmem:[%s1 + $0x90] sm:$0xff]
  %v34 = vld [vmem:[%s1 + $0x98] sm:$0xff]
  %v35 = vld [vmem:[%s1 + $0xa0] sm:$0xff]
  %v36 = vld [vmem:[%s1 + $0xa8] sm:$0xff]
  %v37 = vld [vmem:[%s1 + $0xb0] sm:$0xff]
  %v38 = vld [vmem:[%s1 + $0xb8] sm:$0xff]
  %v39 = vld [vmem:[%s1 + $0xc0] sm:$0xff]
  %v40 = vld [vmem:[%s1 + $0xc8] sm:$0xff]
  %v41 = vld [vmem:[%s1 + $0xd0] sm:$0xff]
  %v42 = vld [vmem:[%s1 + $0xd8] sm:$0xff]
  %v43 = vld [vmem:[%s1 + $0xe0] sm:$0xff]
  %v44 = vld [vmem:[%s1 + $0xe8] sm:$0xff]
  %v45 = vld [vmem:[%s1 + $0xf0] sm:$0xff]
  %v46 = vld [vmem:[%s1 + $0xf8] sm:$0xff]
  %v47 = vld [vmem:[%s1 + $0x100] sm:$0xff]
  %v48 = vld [vmem:[%s1 + $0x108] sm:$0xff]
  %v49 = vld [vmem:[%s1 + $0x110] sm:$0xff]
  %v50 = vld [vmem:[%s1 + $0x118] sm:$0xff]
  %v51 = vld [vmem:[%s1 + $0x120] sm:$0xff]
  %v52 = vld [vmem:[%s1 + $0x128] sm:$0xff]
  %v53 = vld [vmem:[%s1 + $0x130] sm:$0xff]
  %v54 = vld [vmem:[%s1 + $0x138] sm:$0xff]
  %v55 = vld [vmem:[%s1 + $0x140] sm:$0xff]
  %v56 = vld [vmem:[%s1 + $0x148] sm:$0xff]
  %v57 = vld [vmem:[%s1 + $0x150] sm:$0xff]
  %v58 = vld [vmem:[%s1 + $0x158] sm:$0xff]
  %v59 = vld [vmem:[%s2] sm:$0xff]
  %v60 = vld [vmem:[%s2 + $0x8] sm:$0xff]
  %v61 = vld [vmem:[%s2 + $0x10] sm:$0xff]
  %v62 = vld [vmem:[%s2 + $0x18] sm:$0xff]
  %v63 = vld [vmem:[%s2 + $0x20] sm:$0xff]
  %v64 = vld [vmem:[%s2 + $0x28] sm:$0xff]
  %v65 = vld [vmem:[%s2 + $0x30] sm:$0xff]
  %v66 = vld [vmem:[%s2 + $0x38] sm:$0xff]
  %v67 = vld [vmem:[%s2 + $0x40] sm:$0xff]
  %v68 = vld [vmem:[%s2 + $0x48] sm:$0xff]
  %v69 = vld [vmem:[%s2 + $0x50] sm:$0xff]
  %v70 = vld [vmem:[%s2 + $0x58] sm:$0xff]
  %v71 = vld [vmem:[%s2 + $0x60] sm:$0xff]
  %v72 = vld [vmem:[%s2 + $0x68] sm:$0xff]
  %v73 = vld [vmem:[%s2 + $0x70] sm:$0xff]
  %v74 = vld [vmem:[%s2 + $0x78] sm:$0xff]
  %v75 = vld [vmem:[%s2 + $0x80] sm:$0xff]
  %v76 = vld [vmem:[%s2 + $0x88] sm:$0xff]
  %v77 = vld [vmem:[%s2 + $0x90] sm:$0xff]
  %v78 = vld [vmem:[%s2 + $0x98] sm:$0xff]
  %v79 = vld [vmem:[%s2 + $0xa0] sm:$0xff]
  %v80 = vld [vmem:[%s2 + $0xa8] sm:$0xff]
  %v81 = vld [vmem:[%s2 + $0xb0] sm:$0xff]
  %v82 = vld [vmem:[%s2 + $0xb8] sm:$0xff]
  %v83 = vld [vmem:[%s2 + $0xc0] sm:$0xff]
  %v84 = vld [vmem:[%s2 + $0xc8] sm:$0xff]
  %v85 = vld [vmem:[%s2 + $0xd0] sm:$0xff]
  %v86 = vld [vmem:[%s2 + $0xd8] sm:$0xff]
  %v87 = vld [vmem:[%s2 + $0xe0] sm:$0xff]
  %v88 = vld [vmem:[%s2 + $0xe8] sm:$0xff]
  %v89 = vld [vmem:[%s2 + $0xf0] sm:$0xff]
  %v90 = vld [vmem:[%s2 + $0xf8] sm:$0xff]
  %v91 = vld [vmem:[%s2 + $0x100] sm:$0xff]
  %v92 = vld [vmem:[%s2 + $0x108] sm:$0xff]
  %v93 = vld [vmem:[%s2 + $0x110] sm:$0xff]
  %v94 = vld [vmem:[%s2 + $0x118] sm:$0xff]
  %v95 = vld [vmem:[%s2 + $0x120] sm:$0xff]
  %v96 = vld [vmem:[%s2 + $0x128] sm:$0xff]
  %v97 = vld [vmem:[%s2 + $0x130] sm:$0xff]
  %v98 = vld [vmem:[%s2 + $0x138] sm:$0xff]
  %v99 = vld [vmem:[%s2 + $0x140] sm:$0xff]
  %v100 = vld [vmem:[%s2 + $0x148] sm:$0xff]
  %v101 = vld [vmem:[%s2 + $0x150] sm:$0xff]
  %v102 = vld [vmem:[%s2 + $0x158] sm:$0xff]
  %v103 = vld [vmem:[%s0] sm:$0x11]
  %v104 = vld [vmem:[%s0 + $0x8] sm:$0x1]
  %v105 = vld [vmem:[%s0 + $0x18] sm:$0x11]
  %v106 = vld [vmem:[%s0 + $0x20] sm:$0x1]
  %v108 = vshrl.u32 %v103, 16
  %v110 = vrot.slane %v108, 4
  %v111 = vrot.slane %v110, 4
  %v113 = vshrl.u32 %v104, 16
  %v115 = vrot.slane %v113, 4
  %v116 = vrot.slane %v115, 4
  %v118 = vshrl.u32 %v105, 16
  %v120 = vrot.slane %v118, 4
  %v121 = vrot.slane %v120, 4
  %v123 = vshrl.u32 %v106, 16
  %v125 = vrot.slane %v123, 4
  %v126 = vrot.slane %v125, 4
  %v131 = vmax.bf16 %v103, %v111
  %v132 = vmax.bf16 %v104, %v116
  %v133 = vmax.bf16 %v105, %v121
  %v134 = vmax.bf16 %v106, %v126
  %v139 = vunpack.c.l.b16 %v131
  %v140 = vunpack.c.h.b16 %v131
  %v141 = vunpack.c.l.b16 %v132
  %v142 = vunpack.c.l.b16 %v133
  %v143 = vunpack.c.h.b16 %v133
  %v144 = vunpack.c.l.b16 %v134
  %v145 = vpack.c.b16 %v139, %v139
  %v146 = vpack.c.b16 %v140, %v140
  %v147 = vpack.c.b16 %v141, %v141
  %v148 = vpack.c.b16 %v142, %v142
  %v149 = vpack.c.b16 %v143, %v143
  %v150 = vpack.c.b16 %v144, %v144
  %v151 = vunpack.c.l.b16 %v145
  %v152 = vunpack.c.l.b16 %v146
  %v153 = vunpack.c.l.b16 %v147
  %v154 = vunpack.c.l.b16 %v148
  %v155 = vunpack.c.l.b16 %v149
  %v156 = vunpack.c.l.b16 %v150
  %v157 = vrot.slane %v154, 7
  %vm158 = vcmask 1041409
  %v159 = vsel %vm158, %v157, %v151
  %v160 = vrot.slane %v155, 7
  %v161 = vsel %vm158, %v160, %v152
  %v162 = vrot.slane %v156, 7
  %v163 = vsel %vm158, %v162, %v153
  %v164 = vpack.c.b16 %v159, %v159
  %v165 = vpack.c.b16 %v161, %v161
  %v166 = vpack.c.b16 %v163, %v163
  %v213 = vunpack.c.l.b16 %v15
  %v214 = vunpack.c.h.b16 %v15
  %v215 = vunpack.c.l.b16 %v16
  %v216 = vunpack.c.h.b16 %v16
  %v217 = vunpack.c.l.b16 %v17
  %v218 = vunpack.c.h.b16 %v17
  %v219 = vunpack.c.l.b16 %v18
  %v220 = vunpack.c.h.b16 %v18
  %v221 = vunpack.c.l.b16 %v19
  %v222 = vunpack.c.h.b16 %v19
  %v223 = vunpack.c.l.b16 %v20
  %v224 = vunpack.c.h.b16 %v20
  %v225 = vunpack.c.l.b16 %v21
  %v226 = vunpack.c.h.b16 %v21
  %v227 = vunpack.c.l.b16 %v22
  %v228 = vunpack.c.h.b16 %v22
  %v229 = vunpack.c.l.b16 %v23
  %v230 = vunpack.c.h.b16 %v23
  %v231 = vunpack.c.l.b16 %v24
  %v232 = vunpack.c.h.b16 %v24
  %v233 = vunpack.c.l.b16 %v25
  %v234 = vunpack.c.h.b16 %v25
  %v235 = vunpack.c.l.b16 %v26
  %v236 = vunpack.c.h.b16 %v26
  %v237 = vunpack.c.l.b16 %v27
  %v238 = vunpack.c.h.b16 %v27
  %v239 = vunpack.c.l.b16 %v28
  %v240 = vunpack.c.h.b16 %v28
  %v241 = vunpack.c.l.b16 %v29
  %v242 = vunpack.c.h.b16 %v29
  %v243 = vunpack.c.l.b16 %v30
  %v244 = vunpack.c.h.b16 %v30
  %v245 = vunpack.c.l.b16 %v31
  %v246 = vunpack.c.h.b16 %v31
  %v247 = vunpack.c.l.b16 %v32
  %v248 = vunpack.c.h.b16 %v32
  %v249 = vunpack.c.l.b16 %v33
  %v250 = vunpack.c.h.b16 %v33
  %v251 = vunpack.c.l.b16 %v34
  %v252 = vunpack.c.h.b16 %v34
  %v253 = vunpack.c.l.b16 %v35
  %v254 = vunpack.c.h.b16 %v35
  %v255 = vunpack.c.l.b16 %v36
  %v256 = vunpack.c.h.b16 %v36
  %v257 = vunpack.c.l.b16 %v37
  %v258 = vunpack.c.h.b16 %v37
  %v259 = vunpack.c.l.b16 %v38
  %v260 = vunpack.c.h.b16 %v38
  %v261 = vunpack.c.l.b16 %v39
  %v262 = vunpack.c.h.b16 %v39
  %v263 = vunpack.c.l.b16 %v40
  %v264 = vunpack.c.h.b16 %v40
  %v265 = vunpack.c.l.b16 %v41
  %v266 = vunpack.c.h.b16 %v41
  %v267 = vunpack.c.l.b16 %v42
  %v268 = vunpack.c.h.b16 %v42
  %v269 = vunpack.c.l.b16 %v43
  %v270 = vunpack.c.h.b16 %v43
  %v271 = vunpack.c.l.b16 %v44
  %v272 = vunpack.c.h.b16 %v44
  %v273 = vunpack.c.l.b16 %v45
  %v274 = vunpack.c.h.b16 %v45
  %v275 = vunpack.c.l.b16 %v46
  %v276 = vunpack.c.h.b16 %v46
  %v277 = vunpack.c.l.b16 %v47
  %v278 = vunpack.c.h.b16 %v47
  %v279 = vunpack.c.l.b16 %v48
  %v280 = vunpack.c.h.b16 %v48
  %v281 = vunpack.c.l.b16 %v49
  %v282 = vunpack.c.h.b16 %v49
  %v283 = vunpack.c.l.b16 %v50
  %v284 = vunpack.c.h.b16 %v50
  %v285 = vunpack.c.l.b16 %v51
  %v286 = vunpack.c.h.b16 %v51
  %v287 = vunpack.c.l.b16 %v52
  %v288 = vunpack.c.h.b16 %v52
  %v289 = vunpack.c.l.b16 %v53
  %v290 = vunpack.c.h.b16 %v53
  %v291 = vunpack.c.l.b16 %v54
  %v292 = vunpack.c.h.b16 %v54
  %v293 = vunpack.c.l.b16 %v55
  %v294 = vunpack.c.h.b16 %v55
  %v295 = vunpack.c.l.b16 %v56
  %v296 = vunpack.c.h.b16 %v56
  %v297 = vunpack.c.l.b16 %v57
  %v298 = vunpack.c.h.b16 %v57
  %v299 = vunpack.c.l.b16 %v58
  %v300 = vunpack.c.h.b16 %v58
  %v301 = vpack.c.b16 %v215, %v213
  %v302 = vpack.c.b16 %v216, %v214
  %v303 = vpack.c.b16 %v219, %v217
  %v304 = vpack.c.b16 %v220, %v218
  %v305 = vpack.c.b16 %v223, %v221
  %v306 = vpack.c.b16 %v224, %v222
  %v307 = vpack.c.b16 %v227, %v225
  %v308 = vpack.c.b16 %v228, %v226
  %v309 = vpack.c.b16 %v231, %v229
  %v310 = vpack.c.b16 %v232, %v230
  %v311 = vpack.c.b16 %v235, %v233
  %v312 = vpack.c.b16 %v236, %v234
  %v313 = vpack.c.b16 %v239, %v237
  %v314 = vpack.c.b16 %v240, %v238
  %v315 = vpack.c.b16 %v243, %v241
  %v316 = vpack.c.b16 %v244, %v242
  %v317 = vpack.c.b16 %v247, %v245
  %v318 = vpack.c.b16 %v248, %v246
  %v319 = vpack.c.b16 %v251, %v249
  %v320 = vpack.c.b16 %v252, %v250
  %v321 = vpack.c.b16 %v255, %v253
  %v322 = vpack.c.b16 %v256, %v254
  %v323 = vpack.c.b16 %v259, %v257
  %v324 = vpack.c.b16 %v260, %v258
  %v325 = vpack.c.b16 %v263, %v261
  %v326 = vpack.c.b16 %v264, %v262
  %v327 = vpack.c.b16 %v267, %v265
  %v328 = vpack.c.b16 %v268, %v266
  %v329 = vpack.c.b16 %v271, %v269
  %v330 = vpack.c.b16 %v272, %v270
  %v331 = vpack.c.b16 %v275, %v273
  %v332 = vpack.c.b16 %v276, %v274
  %v333 = vpack.c.b16 %v279, %v277
  %v334 = vpack.c.b16 %v280, %v278
  %v335 = vpack.c.b16 %v283, %v281
  %v336 = vpack.c.b16 %v284, %v282
  %v337 = vpack.c.b16 %v287, %v285
  %v338 = vpack.c.b16 %v288, %v286
  %v339 = vpack.c.b16 %v291, %v289
  %v340 = vpack.c.b16 %v292, %v290
  %v341 = vpack.c.b16 %v295, %v293
  %v342 = vpack.c.b16 %v296, %v294
  %v343 = vpack.c.b16 %v299, %v297
  %v344 = vpack.c.b16 %v300, %v298
  %vm389 = vcmask 785408
  %v391 = vsel %vm389, %v166, 0
  %393 = vmatprep.subr.bf16.mxu0 %v316
  %394 = vmatpush1.bf16.msra.mxu0 %v315
  %395 = vmatprep.subr.bf16.mxu0 %v314
  %396 = vmatpush1.bf16.msra.mxu0 %v313
  %397 = vmatprep.subr.bf16.mxu0 %v312
  %398 = vmatpush1.bf16.msra.mxu0 %v311
  %399 = vmatprep.subr.bf16.mxu0 %v310
  %400 = vmatpush1.bf16.msra.mxu0 %v309
  %401 = vmatprep.subr.bf16.mxu0 %v308
  %402 = vmatpush1.bf16.msra.mxu0 %v307
  %403 = vmatprep.subr.bf16.mxu0 %v306
  %404 = vmatpush1.bf16.msra.mxu0 %v305
  %405 = vmatprep.subr.bf16.mxu0 %v304
  %406 = vmatpush1.bf16.msra.mxu0 %v303
  %407 = vmatprep.subr.bf16.mxu0 %v302
  %408 = vmatpush1.bf16.msra.mxu0 %v301
  %409 = vmatprep.subr.bf16.mxu0 %v332
  %410 = vmatpush2.bf16.msra.mxu0 %v331
  %411 = vmatprep.subr.bf16.mxu0 %v330
  %412 = vmatpush2.bf16.msra.mxu0 %v329
  %413 = vmatprep.subr.bf16.mxu0 %v328
  %414 = vmatpush2.bf16.msra.mxu0 %v327
  %415 = vmatprep.subr.bf16.mxu0 %v326
  %416 = vmatpush2.bf16.msra.mxu0 %v325
  %417 = vmatprep.subr.bf16.mxu0 %v324
  %418 = vmatpush2.bf16.msra.mxu0 %v323
  %419 = vmatprep.subr.bf16.mxu0 %v322
  %420 = vmatpush2.bf16.msra.mxu0 %v321
  %421 = vmatprep.subr.bf16.mxu0 %v320
  %422 = vmatpush2.bf16.msra.mxu0 %v319
  %423 = vmatprep.subr.bf16.mxu0 %v318
  %424 = vmatpush2.bf16.msra.mxu0 %v317
  %425 = vmatprep.mubr.bf16.mxu0 %v165
  %426 = vmatmul.mubr.bf16.gmra.mxu0 %v164
  %v427 = vpop.f32.mrf.mxu0
  %v428 = vadd.f32 0.0, %v427
  %v429 = vpop.f32.mrf.mxu0
  %v430 = vadd.f32 0.0, %v429
  %v431 = vpop.f32.mrf.mxu0
  %v432 = vpop.f32.mrf.mxu0
  %433 = vdwg.mxu0
  %434 = vmatprep.subr.bf16.mxu0 0
  %435 = vmatpush1.bf16.msra.mxu0 0
  %436 = vmatprep.subr.bf16.mxu0 0
  %437 = vmatpush1.bf16.msra.mxu0 0
  %438 = vmatprep.subr.bf16.mxu0 %v344
  %439 = vmatpush1.bf16.msra.mxu0 %v343
  %440 = vmatprep.subr.bf16.mxu0 %v342
  %441 = vmatpush1.bf16.msra.mxu0 %v341
  %442 = vmatprep.subr.bf16.mxu0 %v340
  %443 = vmatpush1.bf16.msra.mxu0 %v339
  %444 = vmatprep.subr.bf16.mxu0 %v338
  %445 = vmatpush1.bf16.msra.mxu0 %v337
  %446 = vmatprep.subr.bf16.mxu0 %v336
  %447 = vmatpush1.bf16.msra.mxu0 %v335
  %448 = vmatprep.subr.bf16.mxu0 %v334
  %449 = vmatpush1.bf16.msra.mxu0 %v333
  %450 = vmatprep.subr.bf16.mxu0 0
  %451 = vmatpush2.bf16.msra.mxu0 0
  %452 = vmatprep.subr.bf16.mxu0 0
  %453 = vmatpush2.bf16.msra.mxu0 0
  %454 = vmatprep.subr.bf16.mxu0 0
  %455 = vmatpush2.bf16.msra.mxu0 0
  %456 = vmatprep.subr.bf16.mxu0 0
  %457 = vmatpush2.bf16.msra.mxu0 0
  %458 = vmatprep.subr.bf16.mxu0 0
  %459 = vmatpush2.bf16.msra.mxu0 0
  %460 = vmatprep.subr.bf16.mxu0 0
  %461 = vmatpush2.bf16.msra.mxu0 0
  %462 = vmatprep.subr.bf16.mxu0 0
  %463 = vmatpush2.bf16.msra.mxu0 0
  %464 = vmatprep.subr.bf16.mxu0 0
  %465 = vmatpush2.bf16.msra.mxu0 0
  %466 = vmatprep.mubr.bf16.mxu0 0
  %467 = vmatmul.mubr.bf16.gmra.mxu0 %v391
  %v468 = vpop.f32.mrf.mxu0
  %v469 = vadd.f32 %v428, %v468
  %v470 = vpop.f32.mrf.mxu0
  %v471 = vadd.f32 %v430, %v470
  %v472 = vpop.f32.mrf.mxu0
  %v473 = vpop.f32.mrf.mxu0
  %474 = vdwg.mxu0
  %v519 = vunpack.c.l.b16 %v59
  %v520 = vunpack.c.h.b16 %v59
  %v521 = vunpack.c.l.b16 %v60
  %v522 = vunpack.c.h.b16 %v60
  %v523 = vunpack.c.l.b16 %v61
  %v524 = vunpack.c.h.b16 %v61
  %v525 = vunpack.c.l.b16 %v62
  %v526 = vunpack.c.h.b16 %v62
  %v527 = vunpack.c.l.b16 %v63
  %v528 = vunpack.c.h.b16 %v63
  %v529 = vunpack.c.l.b16 %v64
  %v530 = vunpack.c.h.b16 %v64
  %v531 = vunpack.c.l.b16 %v65
  %v532 = vunpack.c.h.b16 %v65
  %v533 = vunpack.c.l.b16 %v66
  %v534 = vunpack.c.h.b16 %v66
  %v535 = vunpack.c.l.b16 %v67
  %v536 = vunpack.c.h.b16 %v67
  %v537 = vunpack.c.l.b16 %v68
  %v538 = vunpack.c.h.b16 %v68
  %v539 = vunpack.c.l.b16 %v69
  %v540 = vunpack.c.h.b16 %v69
  %v541 = vunpack.c.l.b16 %v70
  %v542 = vunpack.c.h.b16 %v70
  %v543 = vunpack.c.l.b16 %v71
  %v544 = vunpack.c.h.b16 %v71
  %v545 = vunpack.c.l.b16 %v72
  %v546 = vunpack.c.h.b16 %v72
  %v547 = vunpack.c.l.b16 %v73
  %v548 = vunpack.c.h.b16 %v73
  %v549 = vunpack.c.l.b16 %v74
  %v550 = vunpack.c.h.b16 %v74
  %v551 = vunpack.c.l.b16 %v75
  %v552 = vunpack.c.h.b16 %v75
  %v553 = vunpack.c.l.b16 %v76
  %v554 = vunpack.c.h.b16 %v76
  %v555 = vunpack.c.l.b16 %v77
  %v556 = vunpack.c.h.b16 %v77
  %v557 = vunpack.c.l.b16 %v78
  %v558 = vunpack.c.h.b16 %v78
  %v559 = vunpack.c.l.b16 %v79
  %v560 = vunpack.c.h.b16 %v79
  %v561 = vunpack.c.l.b16 %v80
  %v562 = vunpack.c.h.b16 %v80
  %v563 = vunpack.c.l.b16 %v81
  %v564 = vunpack.c.h.b16 %v81
  %v565 = vunpack.c.l.b16 %v82
  %v566 = vunpack.c.h.b16 %v82
  %v567 = vunpack.c.l.b16 %v83
  %v568 = vunpack.c.h.b16 %v83
  %v569 = vunpack.c.l.b16 %v84
  %v570 = vunpack.c.h.b16 %v84
  %v571 = vunpack.c.l.b16 %v85
  %v572 = vunpack.c.h.b16 %v85
  %v573 = vunpack.c.l.b16 %v86
  %v574 = vunpack.c.h.b16 %v86
  %v575 = vunpack.c.l.b16 %v87
  %v576 = vunpack.c.h.b16 %v87
  %v577 = vunpack.c.l.b16 %v88
  %v578 = vunpack.c.h.b16 %v88
  %v579 = vunpack.c.l.b16 %v89
  %v580 = vunpack.c.h.b16 %v89
  %v581 = vunpack.c.l.b16 %v90
  %v582 = vunpack.c.h.b16 %v90
  %v583 = vunpack.c.l.b16 %v91
  %v584 = vunpack.c.h.b16 %v91
  %v585 = vunpack.c.l.b16 %v92
  %v586 = vunpack.c.h.b16 %v92
  %v587 = vunpack.c.l.b16 %v93
  %v588 = vunpack.c.h.b16 %v93
  %v589 = vunpack.c.l.b16 %v94
  %v590 = vunpack.c.h.b16 %v94
  %v591 = vunpack.c.l.b16 %v95
  %v592 = vunpack.c.h.b16 %v95
  %v593 = vunpack.c.l.b16 %v96
  %v594 = vunpack.c.h.b16 %v96
  %v595 = vunpack.c.l.b16 %v97
  %v596 = vunpack.c.h.b16 %v97
  %v597 = vunpack.c.l.b16 %v98
  %v598 = vunpack.c.h.b16 %v98
  %v599 = vunpack.c.l.b16 %v99
  %v600 = vunpack.c.h.b16 %v99
  %v601 = vunpack.c.l.b16 %v100
  %v602 = vunpack.c.h.b16 %v100
  %v603 = vunpack.c.l.b16 %v101
  %v604 = vunpack.c.h.b16 %v101
  %v605 = vunpack.c.l.b16 %v102
  %v606 = vunpack.c.h.b16 %v102
  %v607 = vpack.c.b16 %v521, %v519
  %v608 = vpack.c.b16 %v522, %v520
  %v609 = vpack.c.b16 %v525, %v523
  %v610 = vpack.c.b16 %v526, %v524
  %v611 = vpack.c.b16 %v529, %v527
  %v612 = vpack.c.b16 %v530, %v528
  %v613 = vpack.c.b16 %v533, %v531
  %v614 = vpack.c.b16 %v534, %v532
  %v615 = vpack.c.b16 %v537, %v535
  %v616 = vpack.c.b16 %v538, %v536
  %v617 = vpack.c.b16 %v541, %v539
  %v618 = vpack.c.b16 %v542, %v540
  %v619 = vpack.c.b16 %v545, %v543
  %v620 = vpack.c.b16 %v546, %v544
  %v621 = vpack.c.b16 %v549, %v547
  %v622 = vpack.c.b16 %v550, %v548
  %v623 = vpack.c.b16 %v553, %v551
  %v624 = vpack.c.b16 %v554, %v552
  %v625 = vpack.c.b16 %v557, %v555
  %v626 = vpack.c.b16 %v558, %v556
  %v627 = vpack.c.b16 %v561, %v559
  %v628 = vpack.c.b16 %v562, %v560
  %v629 = vpack.c.b16 %v565, %v563
  %v630 = vpack.c.b16 %v566, %v564
  %v631 = vpack.c.b16 %v569, %v567
  %v632 = vpack.c.b16 %v570, %v568
  %v633 = vpack.c.b16 %v573, %v571
  %v634 = vpack.c.b16 %v574, %v572
  %v635 = vpack.c.b16 %v577, %v575
  %v636 = vpack.c.b16 %v578, %v576
  %v637 = vpack.c.b16 %v581, %v579
  %v638 = vpack.c.b16 %v582, %v580
  %v639 = vpack.c.b16 %v585, %v583
  %v640 = vpack.c.b16 %v586, %v584
  %v641 = vpack.c.b16 %v589, %v587
  %v642 = vpack.c.b16 %v590, %v588
  %v643 = vpack.c.b16 %v593, %v591
  %v644 = vpack.c.b16 %v594, %v592
  %v645 = vpack.c.b16 %v597, %v595
  %v646 = vpack.c.b16 %v598, %v596
  %v647 = vpack.c.b16 %v601, %v599
  %v648 = vpack.c.b16 %v602, %v600
  %v649 = vpack.c.b16 %v605, %v603
  %v650 = vpack.c.b16 %v606, %v604
  %695 = vmatprep.subr.bf16.mxu0 %v622
  %696 = vmatpush1.bf16.msra.mxu0 %v621
  %697 = vmatprep.subr.bf16.mxu0 %v620
  %698 = vmatpush1.bf16.msra.mxu0 %v619
  %699 = vmatprep.subr.bf16.mxu0 %v618
  %700 = vmatpush1.bf16.msra.mxu0 %v617
  %701 = vmatprep.subr.bf16.mxu0 %v616
  %702 = vmatpush1.bf16.msra.mxu0 %v615
  %703 = vmatprep.subr.bf16.mxu0 %v614
  %704 = vmatpush1.bf16.msra.mxu0 %v613
  %705 = vmatprep.subr.bf16.mxu0 %v612
  %706 = vmatpush1.bf16.msra.mxu0 %v611
  %707 = vmatprep.subr.bf16.mxu0 %v610
  %708 = vmatpush1.bf16.msra.mxu0 %v609
  %709 = vmatprep.subr.bf16.mxu0 %v608
  %710 = vmatpush1.bf16.msra.mxu0 %v607
  %711 = vmatprep.subr.bf16.mxu0 %v638
  %712 = vmatpush2.bf16.msra.mxu0 %v637
  %713 = vmatprep.subr.bf16.mxu0 %v636
  %714 = vmatpush2.bf16.msra.mxu0 %v635
  %715 = vmatprep.subr.bf16.mxu0 %v634
  %716 = vmatpush2.bf16.msra.mxu0 %v633
  %717 = vmatprep.subr.bf16.mxu0 %v632
  %718 = vmatpush2.bf16.msra.mxu0 %v631
  %719 = vmatprep.subr.bf16.mxu0 %v630
  %720 = vmatpush2.bf16.msra.mxu0 %v629
  %721 = vmatprep.subr.bf16.mxu0 %v628
  %722 = vmatpush2.bf16.msra.mxu0 %v627
  %723 = vmatprep.subr.bf16.mxu0 %v626
  %724 = vmatpush2.bf16.msra.mxu0 %v625
  %725 = vmatprep.subr.bf16.mxu0 %v624
  %726 = vmatpush2.bf16.msra.mxu0 %v623
  %727 = vmatprep.mubr.bf16.mxu0 %v165
  %728 = vmatmul.mubr.bf16.gmra.mxu0 %v164
  %v729 = vpop.f32.mrf.mxu0
  %v730 = vadd.f32 0.0, %v729
  %v731 = vpop.f32.mrf.mxu0
  %v732 = vadd.f32 0.0, %v731
  %v733 = vpop.f32.mrf.mxu0
  %v734 = vpop.f32.mrf.mxu0
  %735 = vdwg.mxu0
  %736 = vmatprep.subr.bf16.mxu0 0
  %737 = vmatpush1.bf16.msra.mxu0 0
  %738 = vmatprep.subr.bf16.mxu0 0
  %739 = vmatpush1.bf16.msra.mxu0 0
  %740 = vmatprep.subr.bf16.mxu0 %v650
  %741 = vmatpush1.bf16.msra.mxu0 %v649
  %742 = vmatprep.subr.bf16.mxu0 %v648
  %743 = vmatpush1.bf16.msra.mxu0 %v647
  %744 = vmatprep.subr.bf16.mxu0 %v646
  %745 = vmatpush1.bf16.msra.mxu0 %v645
  %746 = vmatprep.subr.bf16.mxu0 %v644
  %747 = vmatpush1.bf16.msra.mxu0 %v643
  %748 = vmatprep.subr.bf16.mxu0 %v642
  %749 = vmatpush1.bf16.msra.mxu0 %v641
  %750 = vmatprep.subr.bf16.mxu0 %v640
  %751 = vmatpush1.bf16.msra.mxu0 %v639
  %752 = vmatprep.subr.bf16.mxu0 0
  %753 = vmatpush2.bf16.msra.mxu0 0
  %754 = vmatprep.subr.bf16.mxu0 0
  %755 = vmatpush2.bf16.msra.mxu0 0
  %756 = vmatprep.subr.bf16.mxu0 0
  %757 = vmatpush2.bf16.msra.mxu0 0
  %758 = vmatprep.subr.bf16.mxu0 0
  %759 = vmatpush2.bf16.msra.mxu0 0
  %760 = vmatprep.subr.bf16.mxu0 0
  %761 = vmatpush2.bf16.msra.mxu0 0
  %762 = vmatprep.subr.bf16.mxu0 0
  %763 = vmatpush2.bf16.msra.mxu0 0
  %764 = vmatprep.subr.bf16.mxu0 0
  %765 = vmatpush2.bf16.msra.mxu0 0
  %766 = vmatprep.subr.bf16.mxu0 0
  %767 = vmatpush2.bf16.msra.mxu0 0
  %768 = vmatprep.mubr.bf16.mxu0 0
  %769 = vmatmul.mubr.bf16.gmra.mxu0 %v391
  %v770 = vpop.f32.mrf.mxu0
  %v771 = vadd.f32 %v730, %v770
  %v772 = vpop.f32.mrf.mxu0
  %v773 = vadd.f32 %v732, %v772
  %v774 = vpop.f32.mrf.mxu0
  %v775 = vpop.f32.mrf.mxu0
  %776 = vdwg.mxu0
  %v777 = vmax.f32 %v469, %v771
  %v778 = vmax.f32 %v471, %v773
  %v779 = vpack.c.bf16 %v777, %v777
  %v780 = vpack.c.bf16 %v778, %v778
  %v783 = vcombine.low %v779, %v780
  %v785 = vunpack.c.l.s4 1966171168
  %v786 = vunpack.c.0.s8 %v785
  %v787 = vlaneseq
  %v788 = vshrl.u32 %v787, 7
  %v789 = vsub.s32 %v786, %v788
  %v790 = vrot.slane %v783, %v789
  %v792 = vunpack.c.l.s4 1966171168
  %v793 = vunpack.c.0.s8 %v792
  %v794 = vlaneseq
  %v795 = vshrl.u32 %v794, 7
  %v796 = vsub.s32 %v793, %v795
  %v797 = vrot.slane %v790, %v796
  %v798 = vunpack.i.l.s16 %v797
  %v799 = vunpack.i.h.s16 %v797
  %v800 = vpack.i.b16 %v798, %v798
  %v801 = vpack.i.b16 %v799, %v799
  %v803 = vunpack.c.l.s4 286326784
  %v804 = vunpack.c.0.s8 %v803
  %v805 = vlaneseq
  %v806 = vshrl.u32 %v805, 7
  %v807 = vsub.s32 %v804, %v806
  %v808 = vrot.slane %v800, %v807
  %v810 = vunpack.c.l.s4 286326784
  %v811 = vunpack.c.0.s8 %v810
  %v812 = vlaneseq
  %v813 = vshrl.u32 %v812, 7
  %v814 = vsub.s32 %v811, %v813
  %v815 = vrot.slane %v801, %v814
  %vm818 = vcmask 1040384
  %vm819 = vsmask.f32 256
  %vm820 = vmand %vm818, %vm819
  %vm821 = vcmask 258052
  %vm822 = vsmask.f32 4352
  %vm823 = vmand %vm821, %vm822
  %vm824 = vmor %vm823, %vm820
  %v825 = vld [vmem:[%s3] sm:$0x11]
  %v826 = vsel %vm824, %v808, %v825
  %827 = vst [vmem:[%s3] sm:$0x11] %v826
  %v828 = vld [vmem:[%s3 + $0x8] sm:$0x11]
  %v829 = vsel %vm824, %v815, %v828
  %830 = vst [vmem:[%s3 + $0x8] sm:$0x11] %v829
  %v831 = vld [vmem:[%s0] sm:$0x22]
  %v832 = vld [vmem:[%s0 + $0x8] sm:$0x2]
  %v833 = vld [vmem:[%s0 + $0x18] sm:$0x22]
  %v834 = vld [vmem:[%s0 + $0x20] sm:$0x2]
  %v836 = vshrl.u32 %v831, 16
  %v838 = vrot.slane %v836, 4
  %v839 = vrot.slane %v838, 4
  %v841 = vshrl.u32 %v832, 16
  %v843 = vrot.slane %v841, 4
  %v844 = vrot.slane %v843, 4
  %v846 = vshrl.u32 %v833, 16
  %v848 = vrot.slane %v846, 4
  %v849 = vrot.slane %v848, 4
  %v851 = vshrl.u32 %v834, 16
  %v853 = vrot.slane %v851, 4
  %v854 = vrot.slane %v853, 4
  %v859 = vmax.bf16 %v831, %v839
  %v860 = vmax.bf16 %v832, %v844
  %v861 = vmax.bf16 %v833, %v849
  %v862 = vmax.bf16 %v834, %v854
  %v867 = vunpack.c.l.b16 %v859
  %v868 = vunpack.c.h.b16 %v859
  %v869 = vunpack.c.l.b16 %v860
  %v870 = vunpack.c.l.b16 %v861
  %v871 = vunpack.c.h.b16 %v861
  %v872 = vunpack.c.l.b16 %v862
  %v873 = vpack.c.b16 %v867, %v867
  %v874 = vpack.c.b16 %v868, %v868
  %v875 = vpack.c.b16 %v869, %v869
  %v876 = vpack.c.b16 %v870, %v870
  %v877 = vpack.c.b16 %v871, %v871
  %v878 = vpack.c.b16 %v872, %v872
  %v879 = vunpack.c.l.b16 %v873
  %v880 = vunpack.c.l.b16 %v874
  %v881 = vunpack.c.l.b16 %v875
  %v882 = vunpack.c.l.b16 %v876
  %v883 = vunpack.c.l.b16 %v877
  %v884 = vunpack.c.l.b16 %v878
  %v885 = vrot.slane %v879, 2
  %v886 = vrot.slane %v882, 1
  %v887 = vsel %vm158, %v886, %v885
  %v888 = vrot.slane %v880, 2
  %v889 = vrot.slane %v883, 1
  %v890 = vsel %vm158, %v889, %v888
  %v891 = vrot.slane %v881, 2
  %v892 = vrot.slane %v884, 1
  %v893 = vsel %vm158, %v892, %v891
  %v894 = vpack.c.b16 %v887, %v887
  %v895 = vpack.c.b16 %v890, %v890
  %v896 = vpack.c.b16 %v893, %v893
  %v900 = vsel %vm389, %v896, 0
  %902 = vmatprep.subr.bf16.mxu0 %v316
  %903 = vmatpush1.bf16.msra.mxu0 %v315
  %904 = vmatprep.subr.bf16.mxu0 %v314
  %905 = vmatpush1.bf16.msra.mxu0 %v313
  %906 = vmatprep.subr.bf16.mxu0 %v312
  %907 = vmatpush1.bf16.msra.mxu0 %v311
  %908 = vmatprep.subr.bf16.mxu0 %v310
  %909 = vmatpush1.bf16.msra.mxu0 %v309
  %910 = vmatprep.subr.bf16.mxu0 %v308
  %911 = vmatpush1.bf16.msra.mxu0 %v307
  %912 = vmatprep.subr.bf16.mxu0 %v306
  %913 = vmatpush1.bf16.msra.mxu0 %v305
  %914 = vmatprep.subr.bf16.mxu0 %v304
  %915 = vmatpush1.bf16.msra.mxu0 %v303
  %916 = vmatprep.subr.bf16.mxu0 %v302
  %917 = vmatpush1.bf16.msra.mxu0 %v301
  %918 = vmatprep.subr.bf16.mxu0 %v332
  %919 = vmatpush2.bf16.msra.mxu0 %v331
  %920 = vmatprep.subr.bf16.mxu0 %v330
  %921 = vmatpush2.bf16.msra.mxu0 %v329
  %922 = vmatprep.subr.bf16.mxu0 %v328
  %923 = vmatpush2.bf16.msra.mxu0 %v327
  %924 = vmatprep.subr.bf16.mxu0 %v326
  %925 = vmatpush2.bf16.msra.mxu0 %v325
  %926 = vmatprep.subr.bf16.mxu0 %v324
  %927 = vmatpush2.bf16.msra.mxu0 %v323
  %928 = vmatprep.subr.bf16.mxu0 %v322
  %929 = vmatpush2.bf16.msra.mxu0 %v321
  %930 = vmatprep.subr.bf16.mxu0 %v320
  %931 = vmatpush2.bf16.msra.mxu0 %v319
  %932 = vmatprep.subr.bf16.mxu0 %v318
  %933 = vmatpush2.bf16.msra.mxu0 %v317
  %934 = vmatprep.mubr.bf16.mxu0 %v895
  %935 = vmatmul.mubr.bf16.gmra.mxu0 %v894
  %v936 = vpop.f32.mrf.mxu0
  %v937 = vadd.f32 0.0, %v936
  %v938 = vpop.f32.mrf.mxu0
  %v939 = vadd.f32 0.0, %v938
  %v940 = vpop.f32.mrf.mxu0
  %v941 = vpop.f32.mrf.mxu0
  %942 = vdwg.mxu0
  %943 = vmatprep.subr.bf16.mxu0 0
  %944 = vmatpush1.bf16.msra.mxu0 0
  %945 = vmatprep.subr.bf16.mxu0 0
  %946 = vmatpush1.bf16.msra.mxu0 0
  %947 = vmatprep.subr.bf16.mxu0 %v344
  %948 = vmatpush1.bf16.msra.mxu0 %v343
  %949 = vmatprep.subr.bf16.mxu0 %v342
  %950 = vmatpush1.bf16.msra.mxu0 %v341
  %951 = vmatprep.subr.bf16.mxu0 %v340
  %952 = vmatpush1.bf16.msra.mxu0 %v339
  %953 = vmatprep.subr.bf16.mxu0 %v338
  %954 = vmatpush1.bf16.msra.mxu0 %v337
  %955 = vmatprep.subr.bf16.mxu0 %v336
  %956 = vmatpush1.bf16.msra.mxu0 %v335
  %957 = vmatprep.subr.bf16.mxu0 %v334
  %958 = vmatpush1.bf16.msra.mxu0 %v333
  %959 = vmatprep.subr.bf16.mxu0 0
  %960 = vmatpush2.bf16.msra.mxu0 0
  %961 = vmatprep.subr.bf16.mxu0 0
  %962 = vmatpush2.bf16.msra.mxu0 0
  %963 = vmatprep.subr.bf16.mxu0 0
  %964 = vmatpush2.bf16.msra.mxu0 0
  %965 = vmatprep.subr.bf16.mxu0 0
  %966 = vmatpush2.bf16.msra.mxu0 0
  %967 = vmatprep.subr.bf16.mxu0 0
  %968 = vmatpush2.bf16.msra.mxu0 0
  %969 = vmatprep.subr.bf16.mxu0 0
  %970 = vmatpush2.bf16.msra.mxu0 0
  %971 = vmatprep.subr.bf16.mxu0 0
  %972 = vmatpush2.bf16.msra.mxu0 0
  %973 = vmatprep.subr.bf16.mxu0 0
  %974 = vmatpush2.bf16.msra.mxu0 0
  %975 = vmatprep.mubr.bf16.mxu0 0
  %976 = vmatmul.mubr.bf16.gmra.mxu0 %v900
  %v977 = vpop.f32.mrf.mxu0
  %v978 = vadd.f32 %v937, %v977
  %v979 = vpop.f32.mrf.mxu0
  %v980 = vadd.f32 %v939, %v979
  %v981 = vpop.f32.mrf.mxu0
  %v982 = vpop.f32.mrf.mxu0
  %983 = vdwg.mxu0
  %984 = vmatprep.subr.bf16.mxu0 %v622
  %985 = vmatpush1.bf16.msra.mxu0 %v621
  %986 = vmatprep.subr.bf16.mxu0 %v620
  %987 = vmatpush1.bf16.msra.mxu0 %v619
  %988 = vmatprep.subr.bf16.mxu0 %v618
  %989 = vmatpush1.bf16.msra.mxu0 %v617
  %990 = vmatprep.subr.bf16.mxu0 %v616
  %991 = vmatpush1.bf16.msra.mxu0 %v615
  %992 = vmatprep.subr.bf16.mxu0 %v614
  %993 = vmatpush1.bf16.msra.mxu0 %v613
  %994 = vmatprep.subr.bf16.mxu0 %v612
  %995 = vmatpush1.bf16.msra.mxu0 %v611
  %996 = vmatprep.subr.bf16.mxu0 %v610
  %997 = vmatpush1.bf16.msra.mxu0 %v609
  %998 = vmatprep.subr.bf16.mxu0 %v608
  %999 = vmatpush1.bf16.msra.mxu0 %v607
  %1000 = vmatprep.subr.bf16.mxu0 %v638
  %1001 = vmatpush2.bf16.msra.mxu0 %v637
  %1002 = vmatprep.subr.bf16.mxu0 %v636
  %1003 = vmatpush2.bf16.msra.mxu0 %v635
  %1004 = vmatprep.subr.bf16.mxu0 %v634
  %1005 = vmatpush2.bf16.msra.mxu0 %v633
  %1006 = vmatprep.subr.bf16.mxu0 %v632
  %1007 = vmatpush2.bf16.msra.mxu0 %v631
  %1008 = vmatprep.subr.bf16.mxu0 %v630
  %1009 = vmatpush2.bf16.msra.mxu0 %v629
  %1010 = vmatprep.subr.bf16.mxu0 %v628
  %1011 = vmatpush2.bf16.msra.mxu0 %v627
  %1012 = vmatprep.subr.bf16.mxu0 %v626
  %1013 = vmatpush2.bf16.msra.mxu0 %v625
  %1014 = vmatprep.subr.bf16.mxu0 %v624
  %1015 = vmatpush2.bf16.msra.mxu0 %v623
  %1016 = vmatprep.mubr.bf16.mxu0 %v895
  %1017 = vmatmul.mubr.bf16.gmra.mxu0 %v894
  %v1018 = vpop.f32.mrf.mxu0
  %v1019 = vadd.f32 0.0, %v1018
  %v1020 = vpop.f32.mrf.mxu0
  %v1021 = vadd.f32 0.0, %v1020
  %v1022 = vpop.f32.mrf.mxu0
  %v1023 = vpop.f32.mrf.mxu0
  %1024 = vdwg.mxu0
  %1025 = vmatprep.subr.bf16.mxu0 0
  %1026 = vmatpush1.bf16.msra.mxu0 0
  %1027 = vmatprep.subr.bf16.mxu0 0
  %1028 = vmatpush1.bf16.msra.mxu0 0
  %1029 = vmatprep.subr.bf16.mxu0 %v650
  %1030 = vmatpush1.bf16.msra.mxu0 %v649
  %1031 = vmatprep.subr.bf16.mxu0 %v648
  %1032 = vmatpush1.bf16.msra.mxu0 %v647
  %1033 = vmatprep.subr.bf16.mxu0 %v646
  %1034 = vmatpush1.bf16.msra.mxu0 %v645
  %1035 = vmatprep.subr.bf16.mxu0 %v644
  %1036 = vmatpush1.bf16.msra.mxu0 %v643
  %1037 = vmatprep.subr.bf16.mxu0 %v642
  %1038 = vmatpush1.bf16.msra.mxu0 %v641
  %1039 = vmatprep.subr.bf16.mxu0 %v640
  %1040 = vmatpush1.bf16.msra.mxu0 %v639
  %1041 = vmatprep.subr.bf16.mxu0 0
  %1042 = vmatpush2.bf16.msra.mxu0 0
  %1043 = vmatprep.subr.bf16.mxu0 0
  %1044 = vmatpush2.bf16.msra.mxu0 0
  %1045 = vmatprep.subr.bf16.mxu0 0
  %1046 = vmatpush2.bf16.msra.mxu0 0
  %1047 = vmatprep.subr.bf16.mxu0 0
  %1048 = vmatpush2.bf16.msra.mxu0 0
  %1049 = vmatprep.subr.bf16.mxu0 0
  %1050 = vmatpush2.bf16.msra.mxu0 0
  %1051 = vmatprep.subr.bf16.mxu0 0
  %1052 = vmatpush2.bf16.msra.mxu0 0
  %1053 = vmatprep.subr.bf16.mxu0 0
  %1054 = vmatpush2.bf16.msra.mxu0 0
  %1055 = vmatprep.subr.bf16.mxu0 0
  %1056 = vmatpush2.bf16.msra.mxu0 0
  %1057 = vmatprep.mubr.bf16.mxu0 0
  %1058 = vmatmul.mubr.bf16.gmra.mxu0 %v900
  %v1059 = vpop.f32.mrf.mxu0
  %v1060 = vadd.f32 %v1019, %v1059
  %v1061 = vpop.f32.mrf.mxu0
  %v1062 = vadd.f32 %v1021, %v1061
  %v1063 = vpop.f32.mrf.mxu0
  %v1064 = vpop.f32.mrf.mxu0
  %1065 = vdwg.mxu0
  %v1066 = vmax.f32 %v978, %v1060
  %v1067 = vmax.f32 %v980, %v1062
  %v1068 = vpack.c.bf16 %v1066, %v1066
  %v1069 = vpack.c.bf16 %v1067, %v1067
  %v1072 = vcombine.low %v1068, %v1069
  %v1074 = vunpack.c.l.s4 1966171168
  %v1075 = vunpack.c.0.s8 %v1074
  %v1076 = vlaneseq
  %v1077 = vshrl.u32 %v1076, 7
  %v1078 = vsub.s32 %v1075, %v1077
  %v1079 = vrot.slane %v1072, %v1078
  %v1081 = vunpack.c.l.s4 1966171168
  %v1082 = vunpack.c.0.s8 %v1081
  %v1083 = vlaneseq
  %v1084 = vshrl.u32 %v1083, 7
  %v1085 = vsub.s32 %v1082, %v1084
  %v1086 = vrot.slane %v1079, %v1085
  %v1087 = vunpack.i.l.s16 %v1086
  %v1088 = vunpack.i.h.s16 %v1086
  %v1089 = vpack.i.b16 %v1087, %v1087
  %v1090 = vpack.i.b16 %v1088, %v1088
  %v1092 = vunpack.c.l.s4 286326784
  %v1093 = vunpack.c.0.s8 %v1092
  %v1094 = vlaneseq
  %v1095 = vshrl.u32 %v1094, 7
  %v1096 = vsub.s32 %v1093, %v1095
  %v1097 = vrot.slane %v1089, %v1096
  %v1099 = vunpack.c.l.s4 286326784
  %v1100 = vunpack.c.0.s8 %v1099
  %v1101 = vlaneseq
  %v1102 = vshrl.u32 %v1101, 7
  %v1103 = vsub.s32 %v1100, %v1102
  %v1104 = vrot.slane %v1090, %v1103
  %vm1107 = vsmask.f32 7938
  %vm1108 = vmand %vm818, %vm1107
  %vm1109 = vsmask.f32 7954
  %vm1110 = vmand %vm821, %vm1109
  %vm1111 = vmor %vm1110, %vm1108
  %v1112 = vld [vmem:[%s3] sm:$0x11]
  %v1113 = vsel %vm1111, %v1097, %v1112
  %1114 = vst [vmem:[%s3] sm:$0x11] %v1113
  %v1115 = vld [vmem:[%s3 + $0x8] sm:$0x11]
  %v1116 = vsel %vm1111, %v1104, %v1115
  %1117 = vst [vmem:[%s3 + $0x8] sm:$0x11] %v1116
  %v1118 = vld [vmem:[%s0] sm:$0x44]
  %v1119 = vld [vmem:[%s0 + $0x8] sm:$0x4]
  %v1120 = vld [vmem:[%s0 + $0x18] sm:$0x44]
  %v1121 = vld [vmem:[%s0 + $0x20] sm:$0x4]
  %v1123 = vshrl.u32 %v1118, 16
  %v1125 = vrot.slane %v1123, 4
  %v1126 = vrot.slane %v1125, 4
  %v1128 = vshrl.u32 %v1119, 16
  %v1130 = vrot.slane %v1128, 4
  %v1131 = vrot.slane %v1130, 4
  %v1133 = vshrl.u32 %v1120, 16
  %v1135 = vrot.slane %v1133, 4
  %v1136 = vrot.slane %v1135, 4
  %v1138 = vshrl.u32 %v1121, 16
  %v1140 = vrot.slane %v1138, 4
  %v1141 = vrot.slane %v1140, 4
  %v1146 = vmax.bf16 %v1118, %v1126
  %v1147 = vmax.bf16 %v1119, %v1131
  %v1148 = vmax.bf16 %v1120, %v1136
  %v1149 = vmax.bf16 %v1121, %v1141
  %v1154 = vunpack.c.l.b16 %v1146
  %v1155 = vunpack.c.h.b16 %v1146
  %v1156 = vunpack.c.l.b16 %v1147
  %v1157 = vunpack.c.l.b16 %v1148
  %v1158 = vunpack.c.h.b16 %v1148
  %v1159 = vunpack.c.l.b16 %v1149
  %v1160 = vpack.c.b16 %v1154, %v1154
  %v1161 = vpack.c.b16 %v1155, %v1155
  %v1162 = vpack.c.b16 %v1156, %v1156
  %v1163 = vpack.c.b16 %v1157, %v1157
  %v1164 = vpack.c.b16 %v1158, %v1158
  %v1165 = vpack.c.b16 %v1159, %v1159
  %v1166 = vunpack.c.l.b16 %v1160
  %v1167 = vunpack.c.l.b16 %v1161
  %v1168 = vunpack.c.l.b16 %v1162
  %v1169 = vunpack.c.l.b16 %v1163
  %v1170 = vunpack.c.l.b16 %v1164
  %v1171 = vunpack.c.l.b16 %v1165
  %v1172 = vrot.slane %v1166, 4
  %v1173 = vrot.slane %v1169, 3
  %v1174 = vsel %vm158, %v1173, %v1172
  %v1175 = vrot.slane %v1167, 4
  %v1176 = vrot.slane %v1170, 3
  %v1177 = vsel %vm158, %v1176, %v1175
  %v1178 = vrot.slane %v1168, 4
  %v1179 = vrot.slane %v1171, 3
  %v1180 = vsel %vm158, %v1179, %v1178
  %v1181 = vpack.c.b16 %v1174, %v1174
  %v1182 = vpack.c.b16 %v1177, %v1177
  %v1183 = vpack.c.b16 %v1180, %v1180
  %v1187 = vsel %vm389, %v1183, 0
  %1189 = vmatprep.subr.bf16.mxu0 %v316
  %1190 = vmatpush1.bf16.msra.mxu0 %v315
  %1191 = vmatprep.subr.bf16.mxu0 %v314
  %1192 = vmatpush1.bf16.msra.mxu0 %v313
  %1193 = vmatprep.subr.bf16.mxu0 %v312
  %1194 = vmatpush1.bf16.msra.mxu0 %v311
  %1195 = vmatprep.subr.bf16.mxu0 %v310
  %1196 = vmatpush1.bf16.msra.mxu0 %v309
  %1197 = vmatprep.subr.bf16.mxu0 %v308
  %1198 = vmatpush1.bf16.msra.mxu0 %v307
  %1199 = vmatprep.subr.bf16.mxu0 %v306
  %1200 = vmatpush1.bf16.msra.mxu0 %v305
  %1201 = vmatprep.subr.bf16.mxu0 %v304
  %1202 = vmatpush1.bf16.msra.mxu0 %v303
  %1203 = vmatprep.subr.bf16.mxu0 %v302
  %1204 = vmatpush1.bf16.msra.mxu0 %v301
  %1205 = vmatprep.subr.bf16.mxu0 %v332
  %1206 = vmatpush2.bf16.msra.mxu0 %v331
  %1207 = vmatprep.subr.bf16.mxu0 %v330
  %1208 = vmatpush2.bf16.msra.mxu0 %v329
  %1209 = vmatprep.subr.bf16.mxu0 %v328
  %1210 = vmatpush2.bf16.msra.mxu0 %v327
  %1211 = vmatprep.subr.bf16.mxu0 %v326
  %1212 = vmatpush2.bf16.msra.mxu0 %v325
  %1213 = vmatprep.subr.bf16.mxu0 %v324
  %1214 = vmatpush2.bf16.msra.mxu0 %v323
  %1215 = vmatprep.subr.bf16.mxu0 %v322
  %1216 = vmatpush2.bf16.msra.mxu0 %v321
  %1217 = vmatprep.subr.bf16.mxu0 %v320
  %1218 = vmatpush2.bf16.msra.mxu0 %v319
  %1219 = vmatprep.subr.bf16.mxu0 %v318
  %1220 = vmatpush2.bf16.msra.mxu0 %v317
  %1221 = vmatprep.mubr.bf16.mxu0 %v1182
  %1222 = vmatmul.mubr.bf16.gmra.mxu0 %v1181
  %v1223 = vpop.f32.mrf.mxu0
  %v1224 = vadd.f32 0.0, %v1223
  %v1225 = vpop.f32.mrf.mxu0
  %v1226 = vadd.f32 0.0, %v1225
  %v1227 = vpop.f32.mrf.mxu0
  %v1228 = vpop.f32.mrf.mxu0
  %1229 = vdwg.mxu0
  %1230 = vmatprep.subr.bf16.mxu0 0
  %1231 = vmatpush1.bf16.msra.mxu0 0
  %1232 = vmatprep.subr.bf16.mxu0 0
  %1233 = vmatpush1.bf16.msra.mxu0 0
  %1234 = vmatprep.subr.bf16.mxu0 %v344
  %1235 = vmatpush1.bf16.msra.mxu0 %v343
  %1236 = vmatprep.subr.bf16.mxu0 %v342
  %1237 = vmatpush1.bf16.msra.mxu0 %v341
  %1238 = vmatprep.subr.bf16.mxu0 %v340
  %1239 = vmatpush1.bf16.msra.mxu0 %v339
  %1240 = vmatprep.subr.bf16.mxu0 %v338
  %1241 = vmatpush1.bf16.msra.mxu0 %v337
  %1242 = vmatprep.subr.bf16.mxu0 %v336
  %1243 = vmatpush1.bf16.msra.mxu0 %v335
  %1244 = vmatprep.subr.bf16.mxu0 %v334
  %1245 = vmatpush1.bf16.msra.mxu0 %v333
  %1246 = vmatprep.subr.bf16.mxu0 0
  %1247 = vmatpush2.bf16.msra.mxu0 0
  %1248 = vmatprep.subr.bf16.mxu0 0
  %1249 = vmatpush2.bf16.msra.mxu0 0
  %1250 = vmatprep.subr.bf16.mxu0 0
  %1251 = vmatpush2.bf16.msra.mxu0 0
  %1252 = vmatprep.subr.bf16.mxu0 0
  %1253 = vmatpush2.bf16.msra.mxu0 0
  %1254 = vmatprep.subr.bf16.mxu0 0
  %1255 = vmatpush2.bf16.msra.mxu0 0
  %1256 = vmatprep.subr.bf16.mxu0 0
  %1257 = vmatpush2.bf16.msra.mxu0 0
  %1258 = vmatprep.subr.bf16.mxu0 0
  %1259 = vmatpush2.bf16.msra.mxu0 0
  %1260 = vmatprep.subr.bf16.mxu0 0
  %1261 = vmatpush2.bf16.msra.mxu0 0
  %1262 = vmatprep.mubr.bf16.mxu0 0
  %1263 = vmatmul.mubr.bf16.gmra.mxu0 %v1187
  %v1264 = vpop.f32.mrf.mxu0
  %v1265 = vadd.f32 %v1224, %v1264
  %v1266 = vpop.f32.mrf.mxu0
  %v1267 = vadd.f32 %v1226, %v1266
  %v1268 = vpop.f32.mrf.mxu0
  %v1269 = vpop.f32.mrf.mxu0
  %1270 = vdwg.mxu0
  %1271 = vmatprep.subr.bf16.mxu0 %v622
  %1272 = vmatpush1.bf16.msra.mxu0 %v621
  %1273 = vmatprep.subr.bf16.mxu0 %v620
  %1274 = vmatpush1.bf16.msra.mxu0 %v619
  %1275 = vmatprep.subr.bf16.mxu0 %v618
  %1276 = vmatpush1.bf16.msra.mxu0 %v617
  %1277 = vmatprep.subr.bf16.mxu0 %v616
  %1278 = vmatpush1.bf16.msra.mxu0 %v615
  %1279 = vmatprep.subr.bf16.mxu0 %v614
  %1280 = vmatpush1.bf16.msra.mxu0 %v613
  %1281 = vmatprep.subr.bf16.mxu0 %v612
  %1282 = vmatpush1.bf16.msra.mxu0 %v611
  %1283 = vmatprep.subr.bf16.mxu0 %v610
  %1284 = vmatpush1.bf16.msra.mxu0 %v609
  %1285 = vmatprep.subr.bf16.mxu0 %v608
  %1286 = vmatpush1.bf16.msra.mxu0 %v607
  %1287 = vmatprep.subr.bf16.mxu0 %v638
  %1288 = vmatpush2.bf16.msra.mxu0 %v637
  %1289 = vmatprep.subr.bf16.mxu0 %v636
  %1290 = vmatpush2.bf16.msra.mxu0 %v635
  %1291 = vmatprep.subr.bf16.mxu0 %v634
  %1292 = vmatpush2.bf16.msra.mxu0 %v633
  %1293 = vmatprep.subr.bf16.mxu0 %v632
  %1294 = vmatpush2.bf16.msra.mxu0 %v631
  %1295 = vmatprep.subr.bf16.mxu0 %v630
  %1296 = vmatpush2.bf16.msra.mxu0 %v629
  %1297 = vmatprep.subr.bf16.mxu0 %v628
  %1298 = vmatpush2.bf16.msra.mxu0 %v627
  %1299 = vmatprep.subr.bf16.mxu0 %v626
  %1300 = vmatpush2.bf16.msra.mxu0 %v625
  %1301 = vmatprep.subr.bf16.mxu0 %v624
  %1302 = vmatpush2.bf16.msra.mxu0 %v623
  %1303 = vmatprep.mubr.bf16.mxu0 %v1182
  %1304 = vmatmul.mubr.bf16.gmra.mxu0 %v1181
  %v1305 = vpop.f32.mrf.mxu0
  %v1306 = vadd.f32 0.0, %v1305
  %v1307 = vpop.f32.mrf.mxu0
  %v1308 = vadd.f32 0.0, %v1307
  %v1309 = vpop.f32.mrf.mxu0
  %v1310 = vpop.f32.mrf.mxu0
  %1311 = vdwg.mxu0
  %1312 = vmatprep.subr.bf16.mxu0 0
  %1313 = vmatpush1.bf16.msra.mxu0 0
  %1314 = vmatprep.subr.bf16.mxu0 0
  %1315 = vmatpush1.bf16.msra.mxu0 0
  %1316 = vmatprep.subr.bf16.mxu0 %v650
  %1317 = vmatpush1.bf16.msra.mxu0 %v649
  %1318 = vmatprep.subr.bf16.mxu0 %v648
  %1319 = vmatpush1.bf16.msra.mxu0 %v647
  %1320 = vmatprep.subr.bf16.mxu0 %v646
  %1321 = vmatpush1.bf16.msra.mxu0 %v645
  %1322 = vmatprep.subr.bf16.mxu0 %v644
  %1323 = vmatpush1.bf16.msra.mxu0 %v643
  %1324 = vmatprep.subr.bf16.mxu0 %v642
  %1325 = vmatpush1.bf16.msra.mxu0 %v641
  %1326 = vmatprep.subr.bf16.mxu0 %v640
  %1327 = vmatpush1.bf16.msra.mxu0 %v639
  %1328 = vmatprep.subr.bf16.mxu0 0
  %1329 = vmatpush2.bf16.msra.mxu0 0
  %1330 = vmatprep.subr.bf16.mxu0 0
  %1331 = vmatpush2.bf16.msra.mxu0 0
  %1332 = vmatprep.subr.bf16.mxu0 0
  %1333 = vmatpush2.bf16.msra.mxu0 0
  %1334 = vmatprep.subr.bf16.mxu0 0
  %1335 = vmatpush2.bf16.msra.mxu0 0
  %1336 = vmatprep.subr.bf16.mxu0 0
  %1337 = vmatpush2.bf16.msra.mxu0 0
  %1338 = vmatprep.subr.bf16.mxu0 0
  %1339 = vmatpush2.bf16.msra.mxu0 0
  %1340 = vmatprep.subr.bf16.mxu0 0
  %1341 = vmatpush2.bf16.msra.mxu0 0
  %1342 = vmatprep.subr.bf16.mxu0 0
  %1343 = vmatpush2.bf16.msra.mxu0 0
  %1344 = vmatprep.mubr.bf16.mxu0 0
  %1345 = vmatmul.mubr.bf16.gmra.mxu0 %v1187
  %v1346 = vpop.f32.mrf.mxu0
  %v1347 = vadd.f32 %v1306, %v1346
  %v1348 = vpop.f32.mrf.mxu0
  %v1349 = vadd.f32 %v1308, %v1348
  %v1350 = vpop.f32.mrf.mxu0
  %v1351 = vpop.f32.mrf.mxu0
  %1352 = vdwg.mxu0
  %v1353 = vmax.f32 %v1265, %v1347
  %v1354 = vmax.f32 %v1267, %v1349
  %v1355 = vpack.c.bf16 %v1353, %v1353
  %v1356 = vpack.c.bf16 %v1354, %v1354
  %v1359 = vcombine.low %v1355, %v1356
  %v1361 = vunpack.c.l.s4 1966171168
  %v1362 = vunpack.c.0.s8 %v1361
  %v1363 = vlaneseq
  %v1364 = vshrl.u32 %v1363, 7
  %v1365 = vsub.s32 %v1362, %v1364
  %v1366 = vrot.slane %v1359, %v1365
  %v1368 = vunpack.c.l.s4 1966171168
  %v1369 = vunpack.c.0.s8 %v1368
  %v1370 = vlaneseq
  %v1371 = vshrl.u32 %v1370, 7
  %v1372 = vsub.s32 %v1369, %v1371
  %v1373 = vrot.slane %v1366, %v1372
  %v1374 = vunpack.i.l.s16 %v1373
  %v1375 = vunpack.i.h.s16 %v1373
  %v1376 = vpack.i.b16 %v1374, %v1374
  %v1377 = vpack.i.b16 %v1375, %v1375
  %v1379 = vunpack.c.l.s4 286326784
  %v1380 = vunpack.c.0.s8 %v1379
  %v1381 = vlaneseq
  %v1382 = vshrl.u32 %v1381, 7
  %v1383 = vsub.s32 %v1380, %v1382
  %v1384 = vrot.slane %v1376, %v1383
  %v1386 = vunpack.c.l.s4 286326784
  %v1387 = vunpack.c.0.s8 %v1386
  %v1388 = vlaneseq
  %v1389 = vshrl.u32 %v1388, 7
  %v1390 = vsub.s32 %v1387, %v1389
  %v1391 = vrot.slane %v1377, %v1390
  %vm1394 = vcmask 1041409
  %vm1395 = vsmask.f32 1280
  %vm1396 = vmand %vm1394, %vm1395
  %vm1397 = vcmask 259077
  %vm1398 = vsmask.f32 5376
  %vm1399 = vmand %vm1397, %vm1398
  %vm1400 = vmor %vm1399, %vm1396
  %v1401 = vld [vmem:[%s3] sm:$0x22]
  %v1402 = vsel %vm1400, %v1384, %v1401
  %1403 = vst [vmem:[%s3] sm:$0x22] %v1402
  %v1404 = vld [vmem:[%s3 + $0x8] sm:$0x22]
  %v1405 = vsel %vm1400, %v1391, %v1404
  %1406 = vst [vmem:[%s3 + $0x8] sm:$0x22] %v1405
  %v1407 = vld [vmem:[%s0] sm:$0x88]
  %v1408 = vld [vmem:[%s0 + $0x8] sm:$0x8]
  %v1409 = vld [vmem:[%s0 + $0x18] sm:$0x88]
  %v1410 = vld [vmem:[%s0 + $0x20] sm:$0x8]
  %v1412 = vshrl.u32 %v1407, 16
  %v1414 = vrot.slane %v1412, 4
  %v1415 = vrot.slane %v1414, 4
  %v1417 = vshrl.u32 %v1408, 16
  %v1419 = vrot.slane %v1417, 4
  %v1420 = vrot.slane %v1419, 4
  %v1422 = vshrl.u32 %v1409, 16
  %v1424 = vrot.slane %v1422, 4
  %v1425 = vrot.slane %v1424, 4
  %v1427 = vshrl.u32 %v1410, 16
  %v1429 = vrot.slane %v1427, 4
  %v1430 = vrot.slane %v1429, 4
  %v1435 = vmax.bf16 %v1407, %v1415
  %v1436 = vmax.bf16 %v1408, %v1420
  %v1437 = vmax.bf16 %v1409, %v1425
  %v1438 = vmax.bf16 %v1410, %v1430
  %v1443 = vunpack.c.l.b16 %v1435
  %v1444 = vunpack.c.h.b16 %v1435
  %v1445 = vunpack.c.l.b16 %v1436
  %v1446 = vunpack.c.l.b16 %v1437
  %v1447 = vunpack.c.h.b16 %v1437
  %v1448 = vunpack.c.l.b16 %v1438
  %v1449 = vpack.c.b16 %v1443, %v1443
  %v1450 = vpack.c.b16 %v1444, %v1444
  %v1451 = vpack.c.b16 %v1445, %v1445
  %v1452 = vpack.c.b16 %v1446, %v1446
  %v1453 = vpack.c.b16 %v1447, %v1447
  %v1454 = vpack.c.b16 %v1448, %v1448
  %v1455 = vunpack.c.l.b16 %v1449
  %v1456 = vunpack.c.l.b16 %v1450
  %v1457 = vunpack.c.l.b16 %v1451
  %v1458 = vunpack.c.l.b16 %v1452
  %v1459 = vunpack.c.l.b16 %v1453
  %v1460 = vunpack.c.l.b16 %v1454
  %v1461 = vrot.slane %v1455, 6
  %v1462 = vrot.slane %v1458, 5
  %v1463 = vsel %vm158, %v1462, %v1461
  %v1464 = vrot.slane %v1456, 6
  %v1465 = vrot.slane %v1459, 5
  %v1466 = vsel %vm158, %v1465, %v1464
  %v1467 = vrot.slane %v1457, 6
  %v1468 = vrot.slane %v1460, 5
  %v1469 = vsel %vm158, %v1468, %v1467
  %v1470 = vpack.c.b16 %v1463, %v1463
  %v1471 = vpack.c.b16 %v1466, %v1466
  %v1472 = vpack.c.b16 %v1469, %v1469
  %v1476 = vsel %vm389, %v1472, 0
  %1478 = vmatprep.subr.bf16.mxu0 %v316
  %1479 = vmatpush1.bf16.msra.mxu0 %v315
  %1480 = vmatprep.subr.bf16.mxu0 %v314
  %1481 = vmatpush1.bf16.msra.mxu0 %v313
  %1482 = vmatprep.subr.bf16.mxu0 %v312
  %1483 = vmatpush1.bf16.msra.mxu0 %v311
  %1484 = vmatprep.subr.bf16.mxu0 %v310
  %1485 = vmatpush1.bf16.msra.mxu0 %v309
  %1486 = vmatprep.subr.bf16.mxu0 %v308
  %1487 = vmatpush1.bf16.msra.mxu0 %v307
  %1488 = vmatprep.subr.bf16.mxu0 %v306
  %1489 = vmatpush1.bf16.msra.mxu0 %v305
  %1490 = vmatprep.subr.bf16.mxu0 %v304
  %1491 = vmatpush1.bf16.msra.mxu0 %v303
  %1492 = vmatprep.subr.bf16.mxu0 %v302
  %1493 = vmatpush1.bf16.msra.mxu0 %v301
  %1494 = vmatprep.subr.bf16.mxu0 %v332
  %1495 = vmatpush2.bf16.msra.mxu0 %v331
  %1496 = vmatprep.subr.bf16.mxu0 %v330
  %1497 = vmatpush2.bf16.msra.mxu0 %v329
  %1498 = vmatprep.subr.bf16.mxu0 %v328
  %1499 = vmatpush2.bf16.msra.mxu0 %v327
  %1500 = vmatprep.subr.bf16.mxu0 %v326
  %1501 = vmatpush2.bf16.msra.mxu0 %v325
  %1502 = vmatprep.subr.bf16.mxu0 %v324
  %1503 = vmatpush2.bf16.msra.mxu0 %v323
  %1504 = vmatprep.subr.bf16.mxu0 %v322
  %1505 = vmatpush2.bf16.msra.mxu0 %v321
  %1506 = vmatprep.subr.bf16.mxu0 %v320
  %1507 = vmatpush2.bf16.msra.mxu0 %v319
  %1508 = vmatprep.subr.bf16.mxu0 %v318
  %1509 = vmatpush2.bf16.msra.mxu0 %v317
  %1510 = vmatprep.mubr.bf16.mxu0 %v1471
  %1511 = vmatmul.mubr.bf16.gmra.mxu0 %v1470
  %v1512 = vpop.f32.mrf.mxu0
  %v1513 = vadd.f32 0.0, %v1512
  %v1514 = vpop.f32.mrf.mxu0
  %v1515 = vadd.f32 0.0, %v1514
  %v1516 = vpop.f32.mrf.mxu0
  %v1517 = vpop.f32.mrf.mxu0
  %1518 = vdwg.mxu0
  %1519 = vmatprep.subr.bf16.mxu0 0
  %1520 = vmatpush1.bf16.msra.mxu0 0
  %1521 = vmatprep.subr.bf16.mxu0 0
  %1522 = vmatpush1.bf16.msra.mxu0 0
  %1523 = vmatprep.subr.bf16.mxu0 %v344
  %1524 = vmatpush1.bf16.msra.mxu0 %v343
  %1525 = vmatprep.subr.bf16.mxu0 %v342
  %1526 = vmatpush1.bf16.msra.mxu0 %v341
  %1527 = vmatprep.subr.bf16.mxu0 %v340
  %1528 = vmatpush1.bf16.msra.mxu0 %v339
  %1529 = vmatprep.subr.bf16.mxu0 %v338
  %1530 = vmatpush1.bf16.msra.mxu0 %v337
  %1531 = vmatprep.subr.bf16.mxu0 %v336
  %1532 = vmatpush1.bf16.msra.mxu0 %v335
  %1533 = vmatprep.subr.bf16.mxu0 %v334
  %1534 = vmatpush1.bf16.msra.mxu0 %v333
  %1535 = vmatprep.subr.bf16.mxu0 0
  %1536 = vmatpush2.bf16.msra.mxu0 0
  %1537 = vmatprep.subr.bf16.mxu0 0
  %1538 = vmatpush2.bf16.msra.mxu0 0
  %1539 = vmatprep.subr.bf16.mxu0 0
  %1540 = vmatpush2.bf16.msra.mxu0 0
  %1541 = vmatprep.subr.bf16.mxu0 0
  %1542 = vmatpush2.bf16.msra.mxu0 0
  %1543 = vmatprep.subr.bf16.mxu0 0
  %1544 = vmatpush2.bf16.msra.mxu0 0
  %1545 = vmatprep.subr.bf16.mxu0 0
  %1546 = vmatpush2.bf16.msra.mxu0 0
  %1547 = vmatprep.subr.bf16.mxu0 0
  %1548 = vmatpush2.bf16.msra.mxu0 0
  %1549 = vmatprep.subr.bf16.mxu0 0
  %1550 = vmatpush2.bf16.msra.mxu0 0
  %1551 = vmatprep.mubr.bf16.mxu0 0
  %1552 = vmatmul.mubr.bf16.gmra.mxu0 %v1476
  %v1553 = vpop.f32.mrf.mxu0
  %v1554 = vadd.f32 %v1513, %v1553
  %v1555 = vpop.f32.mrf.mxu0
  %v1556 = vadd.f32 %v1515, %v1555
  %v1557 = vpop.f32.mrf.mxu0
  %v1558 = vpop.f32.mrf.mxu0
  %1559 = vdwg.mxu0
  %1560 = vmatprep.subr.bf16.mxu0 %v622
  %1561 = vmatpush1.bf16.msra.mxu0 %v621
  %1562 = vmatprep.subr.bf16.mxu0 %v620
  %1563 = vmatpush1.bf16.msra.mxu0 %v619
  %1564 = vmatprep.subr.bf16.mxu0 %v618
  %1565 = vmatpush1.bf16.msra.mxu0 %v617
  %1566 = vmatprep.subr.bf16.mxu0 %v616
  %1567 = vmatpush1.bf16.msra.mxu0 %v615
  %1568 = vmatprep.subr.bf16.mxu0 %v614
  %1569 = vmatpush1.bf16.msra.mxu0 %v613
  %1570 = vmatprep.subr.bf16.mxu0 %v612
  %1571 = vmatpush1.bf16.msra.mxu0 %v611
  %1572 = vmatprep.subr.bf16.mxu0 %v610
  %1573 = vmatpush1.bf16.msra.mxu0 %v609
  %1574 = vmatprep.subr.bf16.mxu0 %v608
  %1575 = vmatpush1.bf16.msra.mxu0 %v607
  %1576 = vmatprep.subr.bf16.mxu0 %v638
  %1577 = vmatpush2.bf16.msra.mxu0 %v637
  %1578 = vmatprep.subr.bf16.mxu0 %v636
  %1579 = vmatpush2.bf16.msra.mxu0 %v635
  %1580 = vmatprep.subr.bf16.mxu0 %v634
  %1581 = vmatpush2.bf16.msra.mxu0 %v633
  %1582 = vmatprep.subr.bf16.mxu0 %v632
  %1583 = vmatpush2.bf16.msra.mxu0 %v631
  %1584 = vmatprep.subr.bf16.mxu0 %v630
  %1585 = vmatpush2.bf16.msra.mxu0 %v629
  %1586 = vmatprep.subr.bf16.mxu0 %v628
  %1587 = vmatpush2.bf16.msra.mxu0 %v627
  %1588 = vmatprep.subr.bf16.mxu0 %v626
  %1589 = vmatpush2.bf16.msra.mxu0 %v625
  %1590 = vmatprep.subr.bf16.mxu0 %v624
  %1591 = vmatpush2.bf16.msra.mxu0 %v623
  %1592 = vmatprep.mubr.bf16.mxu0 %v1471
  %1593 = vmatmul.mubr.bf16.gmra.mxu0 %v1470
  %v1594 = vpop.f32.mrf.mxu0
  %v1595 = vadd.f32 0.0, %v1594
  %v1596 = vpop.f32.mrf.mxu0
  %v1597 = vadd.f32 0.0, %v1596
  %v1598 = vpop.f32.mrf.mxu0
  %v1599 = vpop.f32.mrf.mxu0
  %1600 = vdwg.mxu0
  %1601 = vmatprep.subr.bf16.mxu0 0
  %1602 = vmatpush1.bf16.msra.mxu0 0
  %1603 = vmatprep.subr.bf16.mxu0 0
  %1604 = vmatpush1.bf16.msra.mxu0 0
  %1605 = vmatprep.subr.bf16.mxu0 %v650
  %1606 = vmatpush1.bf16.msra.mxu0 %v649
  %1607 = vmatprep.subr.bf16.mxu0 %v648
  %1608 = vmatpush1.bf16.msra.mxu0 %v647
  %1609 = vmatprep.subr.bf16.mxu0 %v646
  %1610 = vmatpush1.bf16.msra.mxu0 %v645
  %1611 = vmatprep.subr.bf16.mxu0 %v644
  %1612 = vmatpush1.bf16.msra.mxu0 %v643
  %1613 = vmatprep.subr.bf16.mxu0 %v642
  %1614 = vmatpush1.bf16.msra.mxu0 %v641
  %1615 = vmatprep.subr.bf16.mxu0 %v640
  %1616 = vmatpush1.bf16.msra.mxu0 %v639
  %1617 = vmatprep.subr.bf16.mxu0 0
  %1618 = vmatpush2.bf16.msra.mxu0 0
  %1619 = vmatprep.subr.bf16.mxu0 0
  %1620 = vmatpush2.bf16.msra.mxu0 0
  %1621 = vmatprep.subr.bf16.mxu0 0
  %1622 = vmatpush2.bf16.msra.mxu0 0
  %1623 = vmatprep.subr.bf16.mxu0 0
  %1624 = vmatpush2.bf16.msra.mxu0 0
  %1625 = vmatprep.subr.bf16.mxu0 0
  %1626 = vmatpush2.bf16.msra.mxu0 0
  %1627 = vmatprep.subr.bf16.mxu0 0
  %1628 = vmatpush2.bf16.msra.mxu0 0
  %1629 = vmatprep.subr.bf16.mxu0 0
  %1630 = vmatpush2.bf16.msra.mxu0 0
  %1631 = vmatprep.subr.bf16.mxu0 0
  %1632 = vmatpush2.bf16.msra.mxu0 0
  %1633 = vmatprep.mubr.bf16.mxu0 0
  %1634 = vmatmul.mubr.bf16.gmra.mxu0 %v1476
  %v1635 = vpop.f32.mrf.mxu0
  %v1636 = vadd.f32 %v1595, %v1635
  %v1637 = vpop.f32.mrf.mxu0
  %v1638 = vadd.f32 %v1597, %v1637
  %v1639 = vpop.f32.mrf.mxu0
  %v1640 = vpop.f32.mrf.mxu0
  %1641 = vdwg.mxu0
  %v1642 = vmax.f32 %v1554, %v1636
  %v1643 = vmax.f32 %v1556, %v1638
  %v1644 = vpack.c.bf16 %v1642, %v1642
  %v1645 = vpack.c.bf16 %v1643, %v1643
  %v1648 = vcombine.low %v1644, %v1645
  %v1650 = vunpack.c.l.s4 1966171168
  %v1651 = vunpack.c.0.s8 %v1650
  %v1652 = vlaneseq
  %v1653 = vshrl.u32 %v1652, 7
  %v1654 = vsub.s32 %v1651, %v1653
  %v1655 = vrot.slane %v1648, %v1654
  %v1657 = vunpack.c.l.s4 1966171168
  %v1658 = vunpack.c.0.s8 %v1657
  %v1659 = vlaneseq
  %v1660 = vshrl.u32 %v1659, 7
  %v1661 = vsub.s32 %v1658, %v1660
  %v1662 = vrot.slane %v1655, %v1661
  %v1663 = vunpack.i.l.s16 %v1662
  %v1664 = vunpack.i.h.s16 %v1662
  %v1665 = vpack.i.b16 %v1663, %v1663
  %v1666 = vpack.i.b16 %v1664, %v1664
  %v1668 = vunpack.c.l.s4 286326784
  %v1669 = vunpack.c.0.s8 %v1668
  %v1670 = vlaneseq
  %v1671 = vshrl.u32 %v1670, 7
  %v1672 = vsub.s32 %v1669, %v1671
  %v1673 = vrot.slane %v1665, %v1672
  %v1675 = vunpack.c.l.s4 286326784
  %v1676 = vunpack.c.0.s8 %v1675
  %v1677 = vlaneseq
  %v1678 = vshrl.u32 %v1677, 7
  %v1679 = vsub.s32 %v1676, %v1678
  %v1680 = vrot.slane %v1666, %v1679
  %vm1683 = vsmask.f32 7942
  %vm1684 = vmand %vm1394, %vm1683
  %vm1685 = vsmask.f32 7958
  %vm1686 = vmand %vm1397, %vm1685
  %vm1687 = vmor %vm1686, %vm1684
  %v1688 = vld [vmem:[%s3] sm:$0x22]
  %v1689 = vsel %vm1687, %v1673, %v1688
  %1690 = vst [vmem:[%s3] sm:$0x22] %v1689
  %v1691 = vld [vmem:[%s3 + $0x8] sm:$0x22]
  %v1692 = vsel %vm1687, %v1680, %v1691
  %1693 = vst [vmem:[%s3 + $0x8] sm:$0x22] %v1692
  %v1694 = vld [vmem:[%s0 + $0xc] sm:$0x11]
  %v1695 = vld [vmem:[%s0 + $0x14] sm:$0x1]
  %v1696 = vld [vmem:[%s0 + $0x24] sm:$0x11]
  %v1697 = vld [vmem:[%s0 + $0x2c] sm:$0x1]
  %v1699 = vshrl.u32 %v1694, 16
  %v1701 = vrot.slane %v1699, 4
  %v1702 = vrot.slane %v1701, 4
  %v1704 = vshrl.u32 %v1695, 16
  %v1706 = vrot.slane %v1704, 4
  %v1707 = vrot.slane %v1706, 4
  %v1709 = vshrl.u32 %v1696, 16
  %v1711 = vrot.slane %v1709, 4
  %v1712 = vrot.slane %v1711, 4
  %v1714 = vshrl.u32 %v1697, 16
  %v1716 = vrot.slane %v1714, 4
  %v1717 = vrot.slane %v1716, 4
  %v1722 = vmax.bf16 %v1694, %v1702
  %v1723 = vmax.bf16 %v1695, %v1707
  %v1724 = vmax.bf16 %v1696, %v1712
  %v1725 = vmax.bf16 %v1697, %v1717
  %v1730 = vunpack.c.l.b16 %v1722
  %v1731 = vunpack.c.h.b16 %v1722
  %v1732 = vunpack.c.l.b16 %v1723
  %v1733 = vunpack.c.l.b16 %v1724
  %v1734 = vunpack.c.h.b16 %v1724
  %v1735 = vunpack.c.l.b16 %v1725
  %v1736 = vpack.c.b16 %v1730, %v1730
  %v1737 = vpack.c.b16 %v1731, %v1731
  %v1738 = vpack.c.b16 %v1732, %v1732
  %v1739 = vpack.c.b16 %v1733, %v1733
  %v1740 = vpack.c.b16 %v1734, %v1734
  %v1741 = vpack.c.b16 %v1735, %v1735
  %v1742 = vunpack.c.l.b16 %v1736
  %v1743 = vunpack.c.l.b16 %v1737
  %v1744 = vunpack.c.l.b16 %v1738
  %v1745 = vunpack.c.l.b16 %v1739
  %v1746 = vunpack.c.l.b16 %v1740
  %v1747 = vunpack.c.l.b16 %v1741
  %v1748 = vrot.slane %v1745, 7
  %v1749 = vsel %vm158, %v1748, %v1742
  %v1750 = vrot.slane %v1746, 7
  %v1751 = vsel %vm158, %v1750, %v1743
  %v1752 = vrot.slane %v1747, 7
  %v1753 = vsel %vm158, %v1752, %v1744
  %v1754 = vpack.c.b16 %v1749, %v1749
  %v1755 = vpack.c.b16 %v1751, %v1751
  %v1756 = vpack.c.b16 %v1753, %v1753
  %v1760 = vsel %vm389, %v1756, 0
  %1762 = vmatprep.subr.bf16.mxu0 %v316
  %1763 = vmatpush1.bf16.msra.mxu0 %v315
  %1764 = vmatprep.subr.bf16.mxu0 %v314
  %1765 = vmatpush1.bf16.msra.mxu0 %v313
  %1766 = vmatprep.subr.bf16.mxu0 %v312
  %1767 = vmatpush1.bf16.msra.mxu0 %v311
  %1768 = vmatprep.subr.bf16.mxu0 %v310
  %1769 = vmatpush1.bf16.msra.mxu0 %v309
  %1770 = vmatprep.subr.bf16.mxu0 %v308
  %1771 = vmatpush1.bf16.msra.mxu0 %v307
  %1772 = vmatprep.subr.bf16.mxu0 %v306
  %1773 = vmatpush1.bf16.msra.mxu0 %v305
  %1774 = vmatprep.subr.bf16.mxu0 %v304
  %1775 = vmatpush1.bf16.msra.mxu0 %v303
  %1776 = vmatprep.subr.bf16.mxu0 %v302
  %1777 = vmatpush1.bf16.msra.mxu0 %v301
  %1778 = vmatprep.subr.bf16.mxu0 %v332
  %1779 = vmatpush2.bf16.msra.mxu0 %v331
  %1780 = vmatprep.subr.bf16.mxu0 %v330
  %1781 = vmatpush2.bf16.msra.mxu0 %v329
  %1782 = vmatprep.subr.bf16.mxu0 %v328
  %1783 = vmatpush2.bf16.msra.mxu0 %v327
  %1784 = vmatprep.subr.bf16.mxu0 %v326
  %1785 = vmatpush2.bf16.msra.mxu0 %v325
  %1786 = vmatprep.subr.bf16.mxu0 %v324
  %1787 = vmatpush2.bf16.msra.mxu0 %v323
  %1788 = vmatprep.subr.bf16.mxu0 %v322
  %1789 = vmatpush2.bf16.msra.mxu0 %v321
  %1790 = vmatprep.subr.bf16.mxu0 %v320
  %1791 = vmatpush2.bf16.msra.mxu0 %v319
  %1792 = vmatprep.subr.bf16.mxu0 %v318
  %1793 = vmatpush2.bf16.msra.mxu0 %v317
  %1794 = vmatprep.mubr.bf16.mxu0 %v1755
  %1795 = vmatmul.mubr.bf16.gmra.mxu0 %v1754
  %v1796 = vpop.f32.mrf.mxu0
  %v1797 = vadd.f32 0.0, %v1796
  %v1798 = vpop.f32.mrf.mxu0
  %v1799 = vadd.f32 0.0, %v1798
  %v1800 = vpop.f32.mrf.mxu0
  %v1801 = vpop.f32.mrf.mxu0
  %1802 = vdwg.mxu0
  %1803 = vmatprep.subr.bf16.mxu0 0
  %1804 = vmatpush1.bf16.msra.mxu0 0
  %1805 = vmatprep.subr.bf16.mxu0 0
  %1806 = vmatpush1.bf16.msra.mxu0 0
  %1807 = vmatprep.subr.bf16.mxu0 %v344
  %1808 = vmatpush1.bf16.msra.mxu0 %v343
  %1809 = vmatprep.subr.bf16.mxu0 %v342
  %1810 = vmatpush1.bf16.msra.mxu0 %v341
  %1811 = vmatprep.subr.bf16.mxu0 %v340
  %1812 = vmatpush1.bf16.msra.mxu0 %v339
  %1813 = vmatprep.subr.bf16.mxu0 %v338
  %1814 = vmatpush1.bf16.msra.mxu0 %v337
  %1815 = vmatprep.subr.bf16.mxu0 %v336
  %1816 = vmatpush1.bf16.msra.mxu0 %v335
  %1817 = vmatprep.subr.bf16.mxu0 %v334
  %1818 = vmatpush1.bf16.msra.mxu0 %v333
  %1819 = vmatprep.subr.bf16.mxu0 0
  %1820 = vmatpush2.bf16.msra.mxu0 0
  %1821 = vmatprep.subr.bf16.mxu0 0
  %1822 = vmatpush2.bf16.msra.mxu0 0
  %1823 = vmatprep.subr.bf16.mxu0 0
  %1824 = vmatpush2.bf16.msra.mxu0 0
  %1825 = vmatprep.subr.bf16.mxu0 0
  %1826 = vmatpush2.bf16.msra.mxu0 0
  %1827 = vmatprep.subr.bf16.mxu0 0
  %1828 = vmatpush2.bf16.msra.mxu0 0
  %1829 = vmatprep.subr.bf16.mxu0 0
  %1830 = vmatpush2.bf16.msra.mxu0 0
  %1831 = vmatprep.subr.bf16.mxu0 0
  %1832 = vmatpush2.bf16.msra.mxu0 0
  %1833 = vmatprep.subr.bf16.mxu0 0
  %1834 = vmatpush2.bf16.msra.mxu0 0
  %1835 = vmatprep.mubr.bf16.mxu0 0
  %1836 = vmatmul.mubr.bf16.gmra.mxu0 %v1760
  %v1837 = vpop.f32.mrf.mxu0
  %v1838 = vadd.f32 %v1797, %v1837
  %v1839 = vpop.f32.mrf.mxu0
  %v1840 = vadd.f32 %v1799, %v1839
  %v1841 = vpop.f32.mrf.mxu0
  %v1842 = vpop.f32.mrf.mxu0
  %1843 = vdwg.mxu0
  %1844 = vmatprep.subr.bf16.mxu0 %v622
  %1845 = vmatpush1.bf16.msra.mxu0 %v621
  %1846 = vmatprep.subr.bf16.mxu0 %v620
  %1847 = vmatpush1.bf16.msra.mxu0 %v619
  %1848 = vmatprep.subr.bf16.mxu0 %v618
  %1849 = vmatpush1.bf16.msra.mxu0 %v617
  %1850 = vmatprep.subr.bf16.mxu0 %v616
  %1851 = vmatpush1.bf16.msra.mxu0 %v615
  %1852 = vmatprep.subr.bf16.mxu0 %v614
  %1853 = vmatpush1.bf16.msra.mxu0 %v613
  %1854 = vmatprep.subr.bf16.mxu0 %v612
  %1855 = vmatpush1.bf16.msra.mxu0 %v611
  %1856 = vmatprep.subr.bf16.mxu0 %v610
  %1857 = vmatpush1.bf16.msra.mxu0 %v609
  %1858 = vmatprep.subr.bf16.mxu0 %v608
  %1859 = vmatpush1.bf16.msra.mxu0 %v607
  %1860 = vmatprep.subr.bf16.mxu0 %v638
  %1861 = vmatpush2.bf16.msra.mxu0 %v637
  %1862 = vmatprep.subr.bf16.mxu0 %v636
  %1863 = vmatpush2.bf16.msra.mxu0 %v635
  %1864 = vmatprep.subr.bf16.mxu0 %v634
  %1865 = vmatpush2.bf16.msra.mxu0 %v633
  %1866 = vmatprep.subr.bf16.mxu0 %v632
  %1867 = vmatpush2.bf16.msra.mxu0 %v631
  %1868 = vmatprep.subr.bf16.mxu0 %v630
  %1869 = vmatpush2.bf16.msra.mxu0 %v629
  %1870 = vmatprep.subr.bf16.mxu0 %v628
  %1871 = vmatpush2.bf16.msra.mxu0 %v627
  %1872 = vmatprep.subr.bf16.mxu0 %v626
  %1873 = vmatpush2.bf16.msra.mxu0 %v625
  %1874 = vmatprep.subr.bf16.mxu0 %v624
  %1875 = vmatpush2.bf16.msra.mxu0 %v623
  %1876 = vmatprep.mubr.bf16.mxu0 %v1755
  %1877 = vmatmul.mubr.bf16.gmra.mxu0 %v1754
  %v1878 = vpop.f32.mrf.mxu0
  %v1879 = vadd.f32 0.0, %v1878
  %v1880 = vpop.f32.mrf.mxu0
  %v1881 = vadd.f32 0.0, %v1880
  %v1882 = vpop.f32.mrf.mxu0
  %v1883 = vpop.f32.mrf.mxu0
  %1884 = vdwg.mxu0
  %1885 = vmatprep.subr.bf16.mxu0 0
  %1886 = vmatpush1.bf16.msra.mxu0 0
  %1887 = vmatprep.subr.bf16.mxu0 0
  %1888 = vmatpush1.bf16.msra.mxu0 0
  %1889 = vmatprep.subr.bf16.mxu0 %v650
  %1890 = vmatpush1.bf16.msra.mxu0 %v649
  %1891 = vmatprep.subr.bf16.mxu0 %v648
  %1892 = vmatpush1.bf16.msra.mxu0 %v647
  %1893 = vmatprep.subr.bf16.mxu0 %v646
  %1894 = vmatpush1.bf16.msra.mxu0 %v645
  %1895 = vmatprep.subr.bf16.mxu0 %v644
  %1896 = vmatpush1.bf16.msra.mxu0 %v643
  %1897 = vmatprep.subr.bf16.mxu0 %v642
  %1898 = vmatpush1.bf16.msra.mxu0 %v641
  %1899 = vmatprep.subr.bf16.mxu0 %v640
  %1900 = vmatpush1.bf16.msra.mxu0 %v639
  %1901 = vmatprep.subr.bf16.mxu0 0
  %1902 = vmatpush2.bf16.msra.mxu0 0
  %1903 = vmatprep.subr.bf16.mxu0 0
  %1904 = vmatpush2.bf16.msra.mxu0 0
  %1905 = vmatprep.subr.bf16.mxu0 0
  %1906 = vmatpush2.bf16.msra.mxu0 0
  %1907 = vmatprep.subr.bf16.mxu0 0
  %1908 = vmatpush2.bf16.msra.mxu0 0
  %1909 = vmatprep.subr.bf16.mxu0 0
  %1910 = vmatpush2.bf16.msra.mxu0 0
  %1911 = vmatprep.subr.bf16.mxu0 0
  %1912 = vmatpush2.bf16.msra.mxu0 0
  %1913 = vmatprep.subr.bf16.mxu0 0
  %1914 = vmatpush2.bf16.msra.mxu0 0
  %1915 = vmatprep.subr.bf16.mxu0 0
  %1916 = vmatpush2.bf16.msra.mxu0 0
  %1917 = vmatprep.mubr.bf16.mxu0 0
  %1918 = vmatmul.mubr.bf16.gmra.mxu0 %v1760
  %v1919 = vpop.f32.mrf.mxu0
  %v1920 = vadd.f32 %v1879, %v1919
  %v1921 = vpop.f32.mrf.mxu0
  %v1922 = vadd.f32 %v1881, %v1921
  %v1923 = vpop.f32.mrf.mxu0
  %v1924 = vpop.f32.mrf.mxu0
  %1925 = vdwg.mxu0
  %v1926 = vmax.f32 %v1838, %v1920
  %v1927 = vmax.f32 %v1840, %v1922
  %v1928 = vpack.c.bf16 %v1926, %v1926
  %v1929 = vpack.c.bf16 %v1927, %v1927
  %v1932 = vcombine.low %v1928, %v1929
  %v1934 = vunpack.c.l.s4 1966171168
  %v1935 = vunpack.c.0.s8 %v1934
  %v1936 = vlaneseq
  %v1937 = vshrl.u32 %v1936, 7
  %v1938 = vsub.s32 %v1935, %v1937
  %v1939 = vrot.slane %v1932, %v1938
  %v1941 = vunpack.c.l.s4 1966171168
  %v1942 = vunpack.c.0.s8 %v1941
  %v1943 = vlaneseq
  %v1944 = vshrl.u32 %v1943, 7
  %v1945 = vsub.s32 %v1942, %v1944
  %v1946 = vrot.slane %v1939, %v1945
  %v1947 = vunpack.i.l.s16 %v1946
  %v1948 = vunpack.i.h.s16 %v1946
  %v1949 = vpack.i.b16 %v1947, %v1947
  %v1950 = vpack.i.b16 %v1948, %v1948
  %v1952 = vunpack.c.l.s4 286326784
  %v1953 = vunpack.c.0.s8 %v1952
  %v1954 = vlaneseq
  %v1955 = vshrl.u32 %v1954, 7
  %v1956 = vsub.s32 %v1953, %v1955
  %v1957 = vrot.slane %v1949, %v1956
  %v1959 = vunpack.c.l.s4 286326784
  %v1960 = vunpack.c.0.s8 %v1959
  %v1961 = vlaneseq
  %v1962 = vshrl.u32 %v1961, 7
  %v1963 = vsub.s32 %v1960, %v1962
  %v1964 = vrot.slane %v1950, %v1963
  %vm1967 = vcmask 1042434
  %vm1968 = vsmask.f32 2304
  %vm1969 = vmand %vm1967, %vm1968
  %vm1970 = vcmask 260102
  %vm1971 = vsmask.f32 6400
  %vm1972 = vmand %vm1970, %vm1971
  %vm1973 = vmor %vm1972, %vm1969
  %v1974 = vld [vmem:[%s3] sm:$0x44]
  %v1975 = vsel %vm1973, %v1957, %v1974
  %1976 = vst [vmem:[%s3] sm:$0x44] %v1975
  %v1977 = vld [vmem:[%s3 + $0x8] sm:$0x44]
  %v1978 = vsel %vm1973, %v1964, %v1977
  %1979 = vst [vmem:[%s3 + $0x8] sm:$0x44] %v1978
  // Predicated region
  $region14: #{clasificador_conv_forward.9} parent=0 // pred_check
    _
  $region15: #{clasificador_conv_forward.9} parent=0 // pred_check_branch
    %1981 = sbr.rel (0) target = $region17
  $region16: #{clasificador_conv_forward.9} parent=0 // pred_region
    _
  $region17: #{clasificador_conv_forward.9} parent=0 // pred_fallthru
    _
  // Predicated region
  $region18: #{clasificador_conv_forward.9} parent=0 // pred_check
    _
  $region19: #{clasificador_conv_forward.9} parent=0 // pred_check_branch
    %1983 = sbr.rel (0) target = $region21
  $region20: #{clasificador_conv_forward.9} parent=0 // pred_region
    _
  $region21: #{clasificador_conv_forward.9} parent=0 // pred_fallthru
    _

// kernel: clasificador_conv_forward.11
$region0: #{clasificador_conv_forward.11}
  #allocation0 [shape = 'u32[]', space=smem, size = 0x4, offset = 0x4, fixed_abs, tag = 'smem constant byte address 0x4 - core index']
  #allocation1 [shape = 'u32[144,128]{1,0:T(1,128)}', space=vmem, size = 0x12000, scoped, tag = 'internal scratch']
  %s0 = inlined_call_operand.vmem [shape: bf16[8,512], index: 0, kind: input, shape index: {}]
  %s1 = inlined_call_operand.vmem [shape: bf16[512,10], index: 1, kind: input, shape index: {}]
  %s2 = inlined_call_operand.vmem [shape: f32[1,10], index: 2, kind: input, shape index: {}]
  %s3 = inlined_call_operand.vmem [shape: f32[8,10], index: 3, kind: output, shape index: {}]
  %s4 = sld [smem:[#allocation0]]
  $region22: #{clasificador_conv_forward.11} parent=0
    _
  %s6 = ssub.s32 1, %s4
  %s7 = scalar_select 0, %s6, %s4
  // Predicated region
  $region2: #{clasificador_conv_forward.11} parent=0 // pred_check
    _
  $region3: #{clasificador_conv_forward.11} parent=0 // pred_check_branch
    %9 = sbr.rel (0) target = $region5
  $region4: #{clasificador_conv_forward.11} parent=0 // pred_region
    _
  $region5: #{clasificador_conv_forward.11} parent=0 // pred_fallthru
    _
  // Predicated region
  $region6: #{clasificador_conv_forward.11} parent=0 // pred_check
    _
  $region7: #{clasificador_conv_forward.11} parent=0 // pred_check_branch
    %11 = sbr.rel (0) target = $region9
  $region8: #{clasificador_conv_forward.11} parent=0 // pred_region
    _
  $region9: #{clasificador_conv_forward.11} parent=0 // pred_fallthru
    _
  // Predicated region
  $region10: #{clasificador_conv_forward.11} parent=0 // pred_check
    _
  $region11: #{clasificador_conv_forward.11} parent=0 // pred_check_branch
    %13 = sbr.rel (0) target = $region13
  $region12: #{clasificador_conv_forward.11} parent=0 // pred_region
    _
  $region13: #{clasificador_conv_forward.11} parent=0 // pred_fallthru
    _
  %v15 = vld [vmem:[%s0] sm:$0xff]
  %v16 = vld [vmem:[%s0 + $0x8] sm:$0xff]
  %v17 = vld [vmem:[%s1] sm:$0xf]
  %v18 = vld [vmem:[%s1 + $0x4] sm:$0xf]
  %v19 = vld [vmem:[%s1 + $0x8] sm:$0xf]
  %v20 = vld [vmem:[%s1 + $0xc] sm:$0xf]
  %v21 = vld [vmem:[%s1 + $0x10] sm:$0xf]
  %v22 = vld [vmem:[%s1 + $0x14] sm:$0xf]
  %v23 = vld [vmem:[%s1 + $0x18] sm:$0xf]
  %v24 = vld [vmem:[%s1 + $0x1c] sm:$0xf]
  %v25 = vld [vmem:[%s1 + $0x20] sm:$0xf]
  %v26 = vld [vmem:[%s1 + $0x24] sm:$0xf]
  %v27 = vld [vmem:[%s1 + $0x28] sm:$0xf]
  %v28 = vld [vmem:[%s1 + $0x2c] sm:$0xf]
  %v29 = vld [vmem:[%s1 + $0x30] sm:$0xf]
  %v30 = vld [vmem:[%s1 + $0x34] sm:$0xf]
  %v31 = vld [vmem:[%s1 + $0x38] sm:$0xf]
  %v32 = vld [vmem:[%s1 + $0x3c] sm:$0xf]
  %v33 = vld [vmem:[%s1 + $0x40] sm:$0xf]
  %v34 = vld [vmem:[%s1 + $0x44] sm:$0xf]
  %v35 = vld [vmem:[%s1 + $0x48] sm:$0xf]
  %v36 = vld [vmem:[%s1 + $0x4c] sm:$0xf]
  %v37 = vld [vmem:[%s1 + $0x50] sm:$0xf]
  %v38 = vld [vmem:[%s1 + $0x54] sm:$0xf]
  %v39 = vld [vmem:[%s1 + $0x58] sm:$0xf]
  %v40 = vld [vmem:[%s1 + $0x5c] sm:$0xf]
  %v41 = vld [vmem:[%s1 + $0x60] sm:$0xf]
  %v42 = vld [vmem:[%s1 + $0x64] sm:$0xf]
  %v43 = vld [vmem:[%s1 + $0x68] sm:$0xf]
  %v44 = vld [vmem:[%s1 + $0x6c] sm:$0xf]
  %v45 = vld [vmem:[%s1 + $0x70] sm:$0xf]
  %v46 = vld [vmem:[%s1 + $0x74] sm:$0xf]
  %v47 = vld [vmem:[%s1 + $0x78] sm:$0xf]
  %v48 = vld [vmem:[%s1 + $0x7c] sm:$0xf]
  %v49 = vld [vmem:[%s1 + $0x80] sm:$0xf]
  %v50 = vld [vmem:[%s1 + $0x84] sm:$0xf]
  %v51 = vld [vmem:[%s1 + $0x88] sm:$0xf]
  %v52 = vld [vmem:[%s1 + $0x8c] sm:$0xf]
  %v53 = vld [vmem:[%s1 + $0x90] sm:$0xf]
  %v54 = vld [vmem:[%s1 + $0x94] sm:$0xf]
  %v55 = vld [vmem:[%s1 + $0x98] sm:$0xf]
  %v56 = vld [vmem:[%s1 + $0x9c] sm:$0xf]
  %v57 = vld [vmem:[%s1 + $0xa0] sm:$0xf]
  %v58 = vld [vmem:[%s1 + $0xa4] sm:$0xf]
  %v59 = vld [vmem:[%s1 + $0xa8] sm:$0xf]
  %v60 = vld [vmem:[%s1 + $0xac] sm:$0xf]
  %v61 = vld [vmem:[%s1 + $0xb0] sm:$0xf]
  %v62 = vld [vmem:[%s1 + $0xb4] sm:$0xf]
  %v63 = vld [vmem:[%s1 + $0xb8] sm:$0xf]
  %v64 = vld [vmem:[%s1 + $0xbc] sm:$0xf]
  %v65 = vld [vmem:[%s1 + $0xc0] sm:$0xf]
  %v66 = vld [vmem:[%s1 + $0xc4] sm:$0xf]
  %v67 = vld [vmem:[%s1 + $0xc8] sm:$0xf]
  %v68 = vld [vmem:[%s1 + $0xcc] sm:$0xf]
  %v69 = vld [vmem:[%s1 + $0xd0] sm:$0xf]
  %v70 = vld [vmem:[%s1 + $0xd4] sm:$0xf]
  %v71 = vld [vmem:[%s1 + $0xd8] sm:$0xf]
  %v72 = vld [vmem:[%s1 + $0xdc] sm:$0xf]
  %v73 = vld [vmem:[%s1 + $0xe0] sm:$0xf]
  %v74 = vld [vmem:[%s1 + $0xe4] sm:$0xf]
  %v75 = vld [vmem:[%s1 + $0xe8] sm:$0xf]
  %v76 = vld [vmem:[%s1 + $0xec] sm:$0xf]
  %v77 = vld [vmem:[%s1 + $0xf0] sm:$0xf]
  %v78 = vld [vmem:[%s1 + $0xf4] sm:$0xf]
  %v79 = vld [vmem:[%s1 + $0xf8] sm:$0xf]
  %v80 = vld [vmem:[%s1 + $0xfc] sm:$0xf]
  %v81 = vld [vmem:[%s2] sm:$0x1]
  %v83 = vlaneseq
  %v84 = vshrl.u32 %v83, 7
  %v85 = vsub.s32 0, %v84
  %v86 = vrot.slane %v81, %v85
  %v90 = vunpack.c.l.b16 %v15
  %v91 = vunpack.c.h.b16 %v15
  %v92 = vunpack.c.l.b16 %v16
  %v93 = vunpack.c.h.b16 %v16
  %v94 = vpack.c.b16 %v90, %v90
  %v95 = vpack.c.b16 %v91, %v91
  %v96 = vpack.c.b16 %v92, %v92
  %v97 = vpack.c.b16 %v93, %v93
  %v166 = vunpack.c.l.b16 %v17
  %v167 = vunpack.c.l.b16 %v18
  %v168 = vunpack.c.l.b16 %v19
  %v169 = vunpack.c.l.b16 %v20
  %v170 = vunpack.c.l.b16 %v21
  %v171 = vunpack.c.l.b16 %v22
  %v172 = vunpack.c.l.b16 %v23
  %v173 = vunpack.c.l.b16 %v24
  %v174 = vunpack.c.l.b16 %v25
  %v175 = vunpack.c.l.b16 %v26
  %v176 = vunpack.c.l.b16 %v27
  %v177 = vunpack.c.l.b16 %v28
  %v178 = vunpack.c.l.b16 %v29
  %v179 = vunpack.c.l.b16 %v30
  %v180 = vunpack.c.l.b16 %v31
  %v181 = vunpack.c.l.b16 %v32
  %v182 = vunpack.c.l.b16 %v33
  %v183 = vunpack.c.l.b16 %v34
  %v184 = vunpack.c.l.b16 %v35
  %v185 = vunpack.c.l.b16 %v36
  %v186 = vunpack.c.l.b16 %v37
  %v187 = vunpack.c.l.b16 %v38
  %v188 = vunpack.c.l.b16 %v39
  %v189 = vunpack.c.l.b16 %v40
  %v190 = vunpack.c.l.b16 %v41
  %v191 = vunpack.c.l.b16 %v42
  %v192 = vunpack.c.l.b16 %v43
  %v193 = vunpack.c.l.b16 %v44
  %v194 = vunpack.c.l.b16 %v45
  %v195 = vunpack.c.l.b16 %v46
  %v196 = vunpack.c.l.b16 %v47
  %v197 = vunpack.c.l.b16 %v48
  %v198 = vunpack.c.l.b16 %v49
  %v199 = vunpack.c.l.b16 %v50
  %v200 = vunpack.c.l.b16 %v51
  %v201 = vunpack.c.l.b16 %v52
  %v202 = vunpack.c.l.b16 %v53
  %v203 = vunpack.c.l.b16 %v54
  %v204 = vunpack.c.l.b16 %v55
  %v205 = vunpack.c.l.b16 %v56
  %v206 = vunpack.c.l.b16 %v57
  %v207 = vunpack.c.l.b16 %v58
  %v208 = vunpack.c.l.b16 %v59
  %v209 = vunpack.c.l.b16 %v60
  %v210 = vunpack.c.l.b16 %v61
  %v211 = vunpack.c.l.b16 %v62
  %v212 = vunpack.c.l.b16 %v63
  %v213 = vunpack.c.l.b16 %v64
  %v214 = vunpack.c.l.b16 %v65
  %v215 = vunpack.c.l.b16 %v66
  %v216 = vunpack.c.l.b16 %v67
  %v217 = vunpack.c.l.b16 %v68
  %v218 = vunpack.c.l.b16 %v69
  %v219 = vunpack.c.l.b16 %v70
  %v220 = vunpack.c.l.b16 %v71
  %v221 = vunpack.c.l.b16 %v72
  %v222 = vunpack.c.l.b16 %v73
  %v223 = vunpack.c.l.b16 %v74
  %v224 = vunpack.c.l.b16 %v75
  %v225 = vunpack.c.l.b16 %v76
  %v226 = vunpack.c.l.b16 %v77
  %v227 = vunpack.c.l.b16 %v78
  %v228 = vunpack.c.l.b16 %v79
  %v229 = vunpack.c.l.b16 %v80
  %v230 = vpack.c.b16 %v167, %v166
  %v231 = vpack.c.b16 %v169, %v168
  %v232 = vpack.c.b16 %v171, %v170
  %v233 = vpack.c.b16 %v173, %v172
  %v234 = vpack.c.b16 %v175, %v174
  %v235 = vpack.c.b16 %v177, %v176
  %v236 = vpack.c.b16 %v179, %v178
  %v237 = vpack.c.b16 %v181, %v180
  %v238 = vpack.c.b16 %v183, %v182
  %v239 = vpack.c.b16 %v185, %v184
  %v240 = vpack.c.b16 %v187, %v186
  %v241 = vpack.c.b16 %v189, %v188
  %v242 = vpack.c.b16 %v191, %v190
  %v243 = vpack.c.b16 %v193, %v192
  %v244 = vpack.c.b16 %v195, %v194
  %v245 = vpack.c.b16 %v197, %v196
  %v246 = vpack.c.b16 %v199, %v198
  %v247 = vpack.c.b16 %v201, %v200
  %v248 = vpack.c.b16 %v203, %v202
  %v249 = vpack.c.b16 %v205, %v204
  %v250 = vpack.c.b16 %v207, %v206
  %v251 = vpack.c.b16 %v209, %v208
  %v252 = vpack.c.b16 %v211, %v210
  %v253 = vpack.c.b16 %v213, %v212
  %v254 = vpack.c.b16 %v215, %v214
  %v255 = vpack.c.b16 %v217, %v216
  %v256 = vpack.c.b16 %v219, %v218
  %v257 = vpack.c.b16 %v221, %v220
  %v258 = vpack.c.b16 %v223, %v222
  %v259 = vpack.c.b16 %v225, %v224
  %v260 = vpack.c.b16 %v227, %v226
  %v261 = vpack.c.b16 %v229, %v228
  %294 = vmatprep.subr.bf16.mxu0 0
  %295 = vmatpush1.bf16.msra.mxu0 %v237
  %296 = vmatprep.subr.bf16.mxu0 0
  %297 = vmatpush1.bf16.msra.mxu0 %v236
  %298 = vmatprep.subr.bf16.mxu0 0
  %299 = vmatpush1.bf16.msra.mxu0 %v235
  %300 = vmatprep.subr.bf16.mxu0 0
  %301 = vmatpush1.bf16.msra.mxu0 %v234
  %302 = vmatprep.subr.bf16.mxu0 0
  %303 = vmatpush1.bf16.msra.mxu0 %v233
  %304 = vmatprep.subr.bf16.mxu0 0
  %305 = vmatpush1.bf16.msra.mxu0 %v232
  %306 = vmatprep.subr.bf16.mxu0 0
  %307 = vmatpush1.bf16.msra.mxu0 %v231
  %308 = vmatprep.subr.bf16.mxu0 0
  %309 = vmatpush1.bf16.msra.mxu0 %v230
  %310 = vmatprep.subr.bf16.mxu0 0
  %311 = vmatpush2.bf16.msra.mxu0 %v245
  %312 = vmatprep.subr.bf16.mxu0 0
  %313 = vmatpush2.bf16.msra.mxu0 %v244
  %314 = vmatprep.subr.bf16.mxu0 0
  %315 = vmatpush2.bf16.msra.mxu0 %v243
  %316 = vmatprep.subr.bf16.mxu0 0
  %317 = vmatpush2.bf16.msra.mxu0 %v242
  %318 = vmatprep.subr.bf16.mxu0 0
  %319 = vmatpush2.bf16.msra.mxu0 %v241
  %320 = vmatprep.subr.bf16.mxu0 0
  %321 = vmatpush2.bf16.msra.mxu0 %v240
  %322 = vmatprep.subr.bf16.mxu0 0
  %323 = vmatpush2.bf16.msra.mxu0 %v239
  %324 = vmatprep.subr.bf16.mxu0 0
  %325 = vmatpush2.bf16.msra.mxu0 %v238
  %326 = vmatprep.mubr.bf16.mxu0 %v95
  %327 = vmatmul.mubr.bf16.gmra.mxu0 %v94
  %v328 = vpop.f32.mrf.mxu0
  %v329 = vadd.f32 %v86, %v328
  %v330 = vpop.f32.mrf.mxu0
  %v331 = vpop.f32.mrf.mxu0
  %v332 = vpop.f32.mrf.mxu0
  %333 = vdwg.mxu0
  %334 = vmatprep.subr.bf16.mxu0 0
  %335 = vmatpush1.bf16.msra.mxu0 %v253
  %336 = vmatprep.subr.bf16.mxu0 0
  %337 = vmatpush1.bf16.msra.mxu0 %v252
  %338 = vmatprep.subr.bf16.mxu0 0
  %339 = vmatpush1.bf16.msra.mxu0 %v251
  %340 = vmatprep.subr.bf16.mxu0 0
  %341 = vmatpush1.bf16.msra.mxu0 %v250
  %342 = vmatprep.subr.bf16.mxu0 0
  %343 = vmatpush1.bf16.msra.mxu0 %v249
  %344 = vmatprep.subr.bf16.mxu0 0
  %345 = vmatpush1.bf16.msra.mxu0 %v248
  %346 = vmatprep.subr.bf16.mxu0 0
  %347 = vmatpush1.bf16.msra.mxu0 %v247
  %348 = vmatprep.subr.bf16.mxu0 0
  %349 = vmatpush1.bf16.msra.mxu0 %v246
  %350 = vmatprep.subr.bf16.mxu0 0
  %351 = vmatpush2.bf16.msra.mxu0 %v261
  %352 = vmatprep.subr.bf16.mxu0 0
  %353 = vmatpush2.bf16.msra.mxu0 %v260
  %354 = vmatprep.subr.bf16.mxu0 0
  %355 = vmatpush2.bf16.msra.mxu0 %v259
  %356 = vmatprep.subr.bf16.mxu0 0
  %357 = vmatpush2.bf16.msra.mxu0 %v258
  %358 = vmatprep.subr.bf16.mxu0 0
  %359 = vmatpush2.bf16.msra.mxu0 %v257
  %360 = vmatprep.subr.bf16.mxu0 0
  %361 = vmatpush2.bf16.msra.mxu0 %v256
  %362 = vmatprep.subr.bf16.mxu0 0
  %363 = vmatpush2.bf16.msra.mxu0 %v255
  %364 = vmatprep.subr.bf16.mxu0 0
  %365 = vmatpush2.bf16.msra.mxu0 %v254
  %366 = vmatprep.mubr.bf16.mxu0 %v97
  %367 = vmatmul.mubr.bf16.gmra.mxu0 %v96
  %v368 = vpop.f32.mrf.mxu0
  %v369 = vadd.f32 %v329, %v368
  %v370 = vpop.f32.mrf.mxu0
  %v371 = vpop.f32.mrf.mxu0
  %v372 = vpop.f32.mrf.mxu0
  %373 = vdwg.mxu0
  %v374 = vmax.f32 %v369, 0.0
  %vm375 = vcmask 80896
  %376 = vst.msk [vmem:[%s3] sm:$0xff] %vm375, %v374
  // Predicated region
  $region14: #{clasificador_conv_forward.11} parent=0 // pred_check
    _
  $region15: #{clasificador_conv_forward.11} parent=0 // pred_check_branch
    %378 = sbr.rel (0) target = $region17
  $region16: #{clasificador_conv_forward.11} parent=0 // pred_region
    _
  $region17: #{clasificador_conv_forward.11} parent=0 // pred_fallthru
    _
  // Predicated region
  $region18: #{clasificador_conv_forward.11} parent=0 // pred_check
    _
  $region19: #{clasificador_conv_forward.11} parent=0 // pred_check_branch
    %380 = sbr.rel (0) target = $region21
  $region20: #{clasificador_conv_forward.11} parent=0 // pred_region
    _
  $region21: #{clasificador_conv_forward.11} parent=0 // pred_fallthru
    _

// kernel: clasificador_conv_forward.10
$region0: #{clasificador_conv_forward.10}
  #allocation0 [shape = 'u32[]', space=smem, size = 0x4, offset = 0x4, fixed_abs, tag = 'smem constant byte address 0x4 - core index']
  #allocation1 [shape = 'u32[144,128]{1,0:T(1,128)}', space=vmem, size = 0x12000, scoped, tag = 'internal scratch']
  %s0 = inlined_call_operand.vmem [shape: bf16[8,800], index: 0, kind: input, shape index: {}]
  %s1 = inlined_call_operand.vmem [shape: bf16[800,512], index: 1, kind: input, shape index: {}]
  %s2 = inlined_call_operand.vmem [shape: f32[1,512], index: 2, kind: input, shape index: {}]
  %s3 = inlined_call_operand.vmem [shape: bf16[8,512], index: 3, kind: output, shape index: {}]
  %s4 = sld [smem:[#allocation0]]
  $region83: #{clasificador_conv_forward.10} parent=0
    _
  %s6 = ssub.s32 1, %s4
  %s7 = scalar_select 0, %s6, %s4
  $region1: #{clasificador_conv_forward.10} parent=0
    #allocation2 [shape = 'u8[819200]{0}', space=vmem, size = 0xc8000, scoped, tag = 'input window, operand 1']
    loop: start=0, step=1, limit=4
    $region2: #{clasificador_conv_forward.10} parent=1 // loop_pre_header
      _
    $region3: #{clasificador_conv_forward.10} parent=1 // loop_header
      %s9 = sphi 0, %s13
      %p10 = scmp.ge.s32.totalorder %s9, 4
      %s16 = sphi 0, %s28
      %s17 = sphi 0, %s24
      %s18 = sphi 0, %s16
      %s19 = sphi 0, %s17
      %s20 = sphi 0, %s18
      %s21 = sphi 0, %s19
      %s31 = sphi 0, %s33
      %s34 = sphi 0, %s31
      %s35 = sphi 0, %s34
      %s51 = sphi 0, %s35
      %s57 = sphi 0, %s59
      %s60 = sphi 0, %s57
      %s61 = sphi 0, %s60
      %s77 = sphi 0, %s61
      %s83 = sphi 0, %s85
      %s86 = sphi 0, %s83
      %s87 = sphi 0, %s86
      %s103 = sphi 0, %s87
      %s111 = sphi 0, %s113
      %s114 = sphi 0, %s111
      %s115 = sphi 0, %s114
      %s131 = sphi 0, %s115
    $region4: #{clasificador_conv_forward.10} parent=1 // loop_header_branch
      %12 = sbr.rel (%p10) target = $region8
    $region5: #{clasificador_conv_forward.10} parent=1 // loop_body
      %s14 = ssub.s32 %s9, 1
      %s15 = ssub.s32 %s9, 2
      %s22 = sadd.s32 1, %s17
      %p23 = scmp.ge.s32.totalorder %s22, 2
      %s24 = scalar_select %p23, 0, %s22
      %s25 = sadd.s32 1, %s16
      %s26 = scalar_select %p23, %s25, %s16
      %p27 = scmp.ge.s32.totalorder %s26, 1
      %s28 = scalar_select %p27, 0, %s26
      %s29 = ssub.s32 %s16, %s28
      %p30 = scmp.eq.s32.totalorder %s29, 0
      %s32 = sadd.s32 %s31, 1
      %s33 = scalar_select %p30, %s31, %s32
      %p36 = pneg %p30
      %p37 = scmp.eq.s32.totalorder %s9, 1
      %p38 = por %p36, %p37
      %p39 = scmp.ne.s32.totalorder %s31, %s34
      %p40 = scmp.eq.s32.totalorder %s9, 0
      %p41 = por %p39, %p40
      %p42 = scmp.ne.s32.totalorder %s31, %s34
      %p43 = scmp.eq.s32.totalorder %s14, 1
      %p44 = por %p42, %p43
      %p45 = scmp.ne.s32.totalorder %s34, %s35
      %p46 = scmp.eq.s32.totalorder %s14, 0
      %p47 = por %p45, %p46
      %p48 = scmp.ne.s32.totalorder %s34, %s35
      %p49 = scmp.eq.s32.totalorder %s15, 1
      %p50 = por %p48, %p49
      %p52 = scmp.ne.s32.totalorder %s35, %s51
      %p53 = scmp.eq.s32.totalorder %s15, 0
      %p54 = por %p52, %p53
      %s55 = ssub.s32 %s17, %s24
      %p56 = scmp.eq.s32.totalorder %s55, 0
      %s58 = sadd.s32 %s57, 1
      %s59 = scalar_select %p56, %s57, %s58
      %p62 = pneg %p56
      %p63 = scmp.eq.s32.totalorder %s9, 1
      %p64 = por %p62, %p63
      %p65 = scmp.ne.s32.totalorder %s57, %s60
      %p66 = scmp.eq.s32.totalorder %s9, 0
      %p67 = por %p65, %p66
      %p68 = scmp.ne.s32.totalorder %s57, %s60
      %p69 = scmp.eq.s32.totalorder %s14, 1
      %p70 = por %p68, %p69
      %p71 = scmp.ne.s32.totalorder %s60, %s61
      %p72 = scmp.eq.s32.totalorder %s14, 0
      %p73 = por %p71, %p72
      %p74 = scmp.ne.s32.totalorder %s60, %s61
      %p75 = scmp.eq.s32.totalorder %s15, 1
      %p76 = por %p74, %p75
      %p78 = scmp.ne.s32.totalorder %s61, %s77
      %p79 = scmp.eq.s32.totalorder %s15, 0
      %p80 = por %p78, %p79
      %s81 = ssub.s32 %s17, %s24
      %p82 = scmp.eq.s32.totalorder %s81, 0
      %s84 = sadd.s32 %s83, 1
      %s85 = scalar_select %p82, %s83, %s84
      %p88 = pneg %p82
      %p89 = scmp.eq.s32.totalorder %s9, 1
      %p90 = por %p88, %p89
      %p91 = scmp.ne.s32.totalorder %s83, %s86
      %p92 = scmp.eq.s32.totalorder %s9, 0
      %p93 = por %p91, %p92
      %p94 = scmp.ne.s32.totalorder %s83, %s86
      %p95 = scmp.eq.s32.totalorder %s14, 1
      %p96 = por %p94, %p95
      %p97 = scmp.ne.s32.totalorder %s86, %s87
      %p98 = scmp.eq.s32.totalorder %s14, 0
      %p99 = por %p97, %p98
      %p100 = scmp.ne.s32.totalorder %s86, %s87
      %p101 = scmp.eq.s32.totalorder %s15, 1
      %p102 = por %p100, %p101
      %p104 = scmp.ne.s32.totalorder %s87, %s103
      %p105 = scmp.eq.s32.totalorder %s15, 0
      %p106 = por %p104, %p105
      %s107 = ssub.s32 %s16, %s28
      %s108 = ssub.s32 %s17, %s24
      %s109 = sor.u32 %s107, %s108
      %p110 = scmp.eq.s32.totalorder %s109, 0
      %s112 = sadd.s32 %s111, 1
      %s113 = scalar_select %p110, %s111, %s112
      %p116 = pneg %p110
      %p117 = scmp.eq.s32.totalorder %s9, 1
      %p118 = por %p116, %p117
      %p119 = scmp.ne.s32.totalorder %s111, %s114
      %p120 = scmp.eq.s32.totalorder %s9, 0
      %p121 = por %p119, %p120
      %p122 = scmp.ne.s32.totalorder %s111, %s114
      %p123 = scmp.eq.s32.totalorder %s14, 1
      %p124 = por %p122, %p123
      %p125 = scmp.ne.s32.totalorder %s114, %s115
      %p126 = scmp.eq.s32.totalorder %s14, 0
      %p127 = por %p125, %p126
      %p128 = scmp.ne.s32.totalorder %s114, %s115
      %p129 = scmp.eq.s32.totalorder %s15, 1
      %p130 = por %p128, %p129
      %p132 = scmp.ne.s32.totalorder %s115, %s131
      %p133 = scmp.eq.s32.totalorder %s15, 0
      %p134 = por %p132, %p133
      %p135 = scmp.le.s32.totalorder 1, %s9
      %p136 = scmp.lt.s32.totalorder %s9, 3
      %p137 = pnand %p135, %p136
      %p138 = pneg %p137
      // Predicated region
      $region9: #{clasificador_conv_forward.10} parent=5 // pred_check
        _
      $region10: #{clasificador_conv_forward.10} parent=5 // pred_check_branch
        %140 = sbr.rel (%p137) target = $region12
      $region11: #{clasificador_conv_forward.10} parent=5 // pred_region
        %s141 = ssub.s32 %s9, 1
        // Predicated region
        $region13: #{clasificador_conv_forward.10} parent=11 // pred_check
          %p142 = pneg %p47
        $region14: #{clasificador_conv_forward.10} parent=11 // pred_check_branch
          %144 = sbr.rel (%p142) target = $region16
        $region15: #{clasificador_conv_forward.10} parent=11 // pred_region
          %p145 = scmp.lt.s32.totalorder %s18, 0
          %s146 = scalar_select %p145, %s18, 0
          %s147 = smul.addr %s146, 7
          %s148 = smul.addr %s147, 4
          %s149 = scalar_lea.vmem %s0, %s148
        $region16: #{clasificador_conv_forward.10} parent=11 // pred_fallthru
          _
      $region12: #{clasificador_conv_forward.10} parent=5 // pred_fallthru
        _
      %p150 = scmp.lt.s32.totalorder %s9, 2
      // Predicated region
      $region17: #{clasificador_conv_forward.10} parent=5 // pred_check
        %p151 = pneg %p150
      $region18: #{clasificador_conv_forward.10} parent=5 // pred_check_branch
        %153 = sbr.rel (%p151) target = $region20
      $region19: #{clasificador_conv_forward.10} parent=5 // pred_region
        // Predicated region
        $region21: #{clasificador_conv_forward.10} parent=19 // pred_check
          %p154 = pneg %p67
        $region22: #{clasificador_conv_forward.10} parent=19 // pred_check_branch
          %156 = sbr.rel (%p154) target = $region24
        $region23: #{clasificador_conv_forward.10} parent=19 // pred_region
          %s157 = sand.u32 %s57, 1
          %s158 = sand.u32 %s57, 1
          %s159 = smul.addr %s158, 800
          %s160 = scalar_lea.vmem [#allocation2], %s159
          %s161 = smul.u32 2, %s17
          %s162 = smul.addr %s161, 4
          %s163 = scalar_lea.vmem %s1, %s162
          // Predicated region
          $region25: #{clasificador_conv_forward.10} parent=23 // pred_check
            _
          $region26: #{clasificador_conv_forward.10} parent=23 // pred_check_branch
            %165 = sbr.rel (0) target = $region28
          $region27: #{clasificador_conv_forward.10} parent=23 // pred_region
            // Predicated region
            $region29: #{clasificador_conv_forward.10} parent=27 // pred_check
              _
            $region30: #{clasificador_conv_forward.10} parent=27 // pred_check_branch
              %167 = sbr.rel (0) target = $region32
            $region31: #{clasificador_conv_forward.10} parent=27 // pred_region
              // Predicated region
              $region44: #{clasificador_conv_forward.10} parent=31 // pred_check
                _
              $region45: #{clasificador_conv_forward.10} parent=31 // pred_check_branch
                %381 = sbr.rel (0) target = $region47
              $region46: #{clasificador_conv_forward.10} parent=31 // pred_region
                loop: start=0, step=1, limit=1
                $region48: #{clasificador_conv_forward.10} parent=46 // loop_pre_header
                  _
                $region49: #{clasificador_conv_forward.10} parent=46 // loop_header
                  %s383 = sphi 0, %s387
                  %p384 = scmp.ge.s32.totalorder %s383, 1
                  %s388 = sphi %s163, %s163
                  %s389 = sphi %s160, %s160
                $region50: #{clasificador_conv_forward.10} parent=46 // loop_header_branch
                  %386 = sbr.rel (%p384) target = $region54
                $region51: #{clasificador_conv_forward.10} parent=46 // loop_body
                  %v390 = vld [vmem:[%s388] sm:$0xff]
                  %391 = vst [vmem:[%s389] sm:$0xff] %v390
                  %v392 = vld [vmem:[%s388 + $0x10] sm:$0xff]
                  %393 = vst [vmem:[%s389 + $0x8] sm:$0xff] %v392
                  %v394 = vld [vmem:[%s388 + $0x20] sm:$0xff]
                  %395 = vst [vmem:[%s389 + $0x10] sm:$0xff] %v394
                  %v396 = vld [vmem:[%s388 + $0x30] sm:$0xff]
                  %397 = vst [vmem:[%s389 + $0x18] sm:$0xff] %v396
                  %v398 = vld [vmem:[%s388 + $0x40] sm:$0xff]
                  %399 = vst [vmem:[%s389 + $0x20] sm:$0xff] %v398
                  %v400 = vld [vmem:[%s388 + $0x50] sm:$0xff]
                  %401 = vst [vmem:[%s389 + $0x28] sm:$0xff] %v400
                  %v402 = vld [vmem:[%s388 + $0x60] sm:$0xff]
                  %403 = vst [vmem:[%s389 + $0x30] sm:$0xff] %v402
                  %v404 = vld [vmem:[%s388 + $0x70] sm:$0xff]
                  %405 = vst [vmem:[%s389 + $0x38] sm:$0xff] %v404
                  %v406 = vld [vmem:[%s388 + $0x80] sm:$0xff]
                  %407 = vst [vmem:[%s389 + $0x40] sm:$0xff] %v406
                  %v408 = vld [vmem:[%s388 + $0x90] sm:$0xff]
                  %409 = vst [vmem:[%s389 + $0x48] sm:$0xff] %v408
                  %v410 = vld [vmem:[%s388 + $0xa0] sm:$0xff]
                  %411 = vst [vmem:[%s389 + $0x50] sm:$0xff] %v410
                  %v412 = vld [vmem:[%s388 + $0xb0] sm:$0xff]
                  %413 = vst [vmem:[%s389 + $0x58] sm:$0xff] %v412
                  %v414 = vld [vmem:[%s388 + $0xc0] sm:$0xff]
                  %415 = vst [vmem:[%s389 + $0x60] sm:$0xff] %v414
                  %v416 = vld [vmem:[%s388 + $0xd0] sm:$0xff]
                  %417 = vst [vmem:[%s389 + $0x68] sm:$0xff] %v416
                  %v418 = vld [vmem:[%s388 + $0xe0] sm:$0xff]
                  %419 = vst [vmem:[%s389 + $0x70] sm:$0xff] %v418
                  %v420 = vld [vmem:[%s388 + $0xf0] sm:$0xff]
                  %421 = vst [vmem:[%s389 + $0x78] sm:$0xff] %v420
                  %v422 = vld [vmem:[%s388 + $0x100] sm:$0xff]
                  %423 = vst [vmem:[%s389 + $0x80] sm:$0xff] %v422
                  %v424 = vld [vmem:[%s388 + $0x110] sm:$0xff]
                  %425 = vst [vmem:[%s389 + $0x88] sm:$0xff] %v424
                  %v426 = vld [vmem:[%s388 + $0x120] sm:$0xff]
                  %427 = vst [vmem:[%s389 + $0x90] sm:$0xff] %v426
                  %v428 = vld [vmem:[%s388 + $0x130] sm:$0xff]
                  %429 = vst [vmem:[%s389 + $0x98] sm:$0xff] %v428
                  %v430 = vld [vmem:[%s388 + $0x140] sm:$0xff]
                  %431 = vst [vmem:[%s389 + $0xa0] sm:$0xff] %v430
                  %v432 = vld [vmem:[%s388 + $0x150] sm:$0xff]
                  %433 = vst [vmem:[%s389 + $0xa8] sm:$0xff] %v432
                  %v434 = vld [vmem:[%s388 + $0x160] sm:$0xff]
                  %435 = vst [vmem:[%s389 + $0xb0] sm:$0xff] %v434
                  %v436 = vld [vmem:[%s388 + $0x170] sm:$0xff]
                  %437 = vst [vmem:[%s389 + $0xb8] sm:$0xff] %v436
                  %v438 = vld [vmem:[%s388 + $0x180] sm:$0xff]
                  %439 = vst [vmem:[%s389 + $0xc0] sm:$0xff] %v438
                  %v440 = vld [vmem:[%s388 + $0x190] sm:$0xff]
                  %441 = vst [vmem:[%s389 + $0xc8] sm:$0xff] %v440
                  %v442 = vld [vmem:[%s388 + $0x1a0] sm:$0xff]
                  %443 = vst [vmem:[%s389 + $0xd0] sm:$0xff] %v442
                  %v444 = vld [vmem:[%s388 + $0x1b0] sm:$0xff]
                  %445 = vst [vmem:[%s389 + $0xd8] sm:$0xff] %v444
                  %v446 = vld [vmem:[%s388 + $0x1c0] sm:$0xff]
                  %447 = vst [vmem:[%s389 + $0xe0] sm:$0xff] %v446
                  %v448 = vld [vmem:[%s388 + $0x1d0] sm:$0xff]
                  %449 = vst [vmem:[%s389 + $0xe8] sm:$0xff] %v448
                  %v450 = vld [vmem:[%s388 + $0x1e0] sm:$0xff]
                  %451 = vst [vmem:[%s389 + $0xf0] sm:$0xff] %v450
                  %v452 = vld [vmem:[%s388 + $0x1f0] sm:$0xff]
                  %453 = vst [vmem:[%s389 + $0xf8] sm:$0xff] %v452
                  %v454 = vld [vmem:[%s388 + $0x200] sm:$0xff]
                  %455 = vst [vmem:[%s389 + $0x100] sm:$0xff] %v454
                  %v456 = vld [vmem:[%s388 + $0x210] sm:$0xff]
                  %457 = vst [vmem:[%s389 + $0x108] sm:$0xff] %v456
                  %v458 = vld [vmem:[%s388 + $0x220] sm:$0xff]
                  %459 = vst [vmem:[%s389 + $0x110] sm:$0xff] %v458
                  %v460 = vld [vmem:[%s388 + $0x230] sm:$0xff]
                  %461 = vst [vmem:[%s389 + $0x118] sm:$0xff] %v460
                  %v462 = vld [vmem:[%s388 + $0x240] sm:$0xff]
                  %463 = vst [vmem:[%s389 + $0x120] sm:$0xff] %v462
                  %v464 = vld [vmem:[%s388 + $0x250] sm:$0xff]
                  %465 = vst [vmem:[%s389 + $0x128] sm:$0xff] %v464
                  %v466 = vld [vmem:[%s388 + $0x260] sm:$0xff]
                  %467 = vst [vmem:[%s389 + $0x130] sm:$0xff] %v466
                  %v468 = vld [vmem:[%s388 + $0x270] sm:$0xff]
                  %469 = vst [vmem:[%s389 + $0x138] sm:$0xff] %v468
                  %v470 = vld [vmem:[%s388 + $0x280] sm:$0xff]
                  %471 = vst [vmem:[%s389 + $0x140] sm:$0xff] %v470
                  %v472 = vld [vmem:[%s388 + $0x290] sm:$0xff]
                  %473 = vst [vmem:[%s389 + $0x148] sm:$0xff] %v472
                  %v474 = vld [vmem:[%s388 + $0x2a0] sm:$0xff]
                  %475 = vst [vmem:[%s389 + $0x150] sm:$0xff] %v474
                  %v476 = vld [vmem:[%s388 + $0x2b0] sm:$0xff]
                  %477 = vst [vmem:[%s389 + $0x158] sm:$0xff] %v476
                  %v478 = vld [vmem:[%s388 + $0x2c0] sm:$0xff]
                  %479 = vst [vmem:[%s389 + $0x160] sm:$0xff] %v478
                  %v480 = vld [vmem:[%s388 + $0x2d0] sm:$0xff]
                  %481 = vst [vmem:[%s389 + $0x168] sm:$0xff] %v480
                  %v482 = vld [vmem:[%s388 + $0x2e0] sm:$0xff]
                  %483 = vst [vmem:[%s389 + $0x170] sm:$0xff] %v482
                  %v484 = vld [vmem:[%s388 + $0x2f0] sm:$0xff]
                  %485 = vst [vmem:[%s389 + $0x178] sm:$0xff] %v484
                  %v486 = vld [vmem:[%s388 + $0x300] sm:$0xff]
                  %487 = vst [vmem:[%s389 + $0x180] sm:$0xff] %v486
                  %v488 = vld [vmem:[%s388 + $0x310] sm:$0xff]
                  %489 = vst [vmem:[%s389 + $0x188] sm:$0xff] %v488
                  %v490 = vld [vmem:[%s388 + $0x320] sm:$0xff]
                  %491 = vst [vmem:[%s389 + $0x190] sm:$0xff] %v490
                  %v492 = vld [vmem:[%s388 + $0x330] sm:$0xff]
                  %493 = vst [vmem:[%s389 + $0x198] sm:$0xff] %v492
                  %v494 = vld [vmem:[%s388 + $0x340] sm:$0xff]
                  %495 = vst [vmem:[%s389 + $0x1a0] sm:$0xff] %v494
                  %v496 = vld [vmem:[%s388 + $0x350] sm:$0xff]
                  %497 = vst [vmem:[%s389 + $0x1a8] sm:$0xff] %v496
                  %v498 = vld [vmem:[%s388 + $0x360] sm:$0xff]
                  %499 = vst [vmem:[%s389 + $0x1b0] sm:$0xff] %v498
                  %v500 = vld [vmem:[%s388 + $0x370] sm:$0xff]
                  %501 = vst [vmem:[%s389 + $0x1b8] sm:$0xff] %v500
                  %v502 = vld [vmem:[%s388 + $0x380] sm:$0xff]
                  %503 = vst [vmem:[%s389 + $0x1c0] sm:$0xff] %v502
                  %v504 = vld [vmem:[%s388 + $0x390] sm:$0xff]
                  %505 = vst [vmem:[%s389 + $0x1c8] sm:$0xff] %v504
                  %v506 = vld [vmem:[%s388 + $0x3a0] sm:$0xff]
                  %507 = vst [vmem:[%s389 + $0x1d0] sm:$0xff] %v506
                  %v508 = vld [vmem:[%s388 + $0x3b0] sm:$0xff]
                  %509 = vst [vmem:[%s389 + $0x1d8] sm:$0xff] %v508
                  %v510 = vld [vmem:[%s388 + $0x3c0] sm:$0xff]
                  %511 = vst [vmem:[%s389 + $0x1e0] sm:$0xff] %v510
                  %v512 = vld [vmem:[%s388 + $0x3d0] sm:$0xff]
                  %513 = vst [vmem:[%s389 + $0x1e8] sm:$0xff] %v512
                  %v514 = vld [vmem:[%s388 + $0x3e0] sm:$0xff]
                  %515 = vst [vmem:[%s389 + $0x1f0] sm:$0xff] %v514
                  %v516 = vld [vmem:[%s388 + $0x3f0] sm:$0xff]
                  %517 = vst [vmem:[%s389 + $0x1f8] sm:$0xff] %v516
                  %v518 = vld [vmem:[%s388 + $0x400] sm:$0xff]
                  %519 = vst [vmem:[%s389 + $0x200] sm:$0xff] %v518
                  %v520 = vld [vmem:[%s388 + $0x410] sm:$0xff]
                  %521 = vst [vmem:[%s389 + $0x208] sm:$0xff] %v520
                  %v522 = vld [vmem:[%s388 + $0x420] sm:$0xff]
                  %523 = vst [vmem:[%s389 + $0x210] sm:$0xff] %v522
                  %v524 = vld [vmem:[%s388 + $0x430] sm:$0xff]
                  %525 = vst [vmem:[%s389 + $0x218] sm:$0xff] %v524
                  %v526 = vld [vmem:[%s388 + $0x440] sm:$0xff]
                  %527 = vst [vmem:[%s389 + $0x220] sm:$0xff] %v526
                  %v528 = vld [vmem:[%s388 + $0x450] sm:$0xff]
                  %529 = vst [vmem:[%s389 + $0x228] sm:$0xff] %v528
                  %v530 = vld [vmem:[%s388 + $0x460] sm:$0xff]
                  %531 = vst [vmem:[%s389 + $0x230] sm:$0xff] %v530
                  %v532 = vld [vmem:[%s388 + $0x470] sm:$0xff]
                  %533 = vst [vmem:[%s389 + $0x238] sm:$0xff] %v532
                  %v534 = vld [vmem:[%s388 + $0x480] sm:$0xff]
                  %535 = vst [vmem:[%s389 + $0x240] sm:$0xff] %v534
                  %v536 = vld [vmem:[%s388 + $0x490] sm:$0xff]
                  %537 = vst [vmem:[%s389 + $0x248] sm:$0xff] %v536
                  %v538 = vld [vmem:[%s388 + $0x4a0] sm:$0xff]
                  %539 = vst [vmem:[%s389 + $0x250] sm:$0xff] %v538
                  %v540 = vld [vmem:[%s388 + $0x4b0] sm:$0xff]
                  %541 = vst [vmem:[%s389 + $0x258] sm:$0xff] %v540
                  %v542 = vld [vmem:[%s388 + $0x4c0] sm:$0xff]
                  %543 = vst [vmem:[%s389 + $0x260] sm:$0xff] %v542
                  %v544 = vld [vmem:[%s388 + $0x4d0] sm:$0xff]
                  %545 = vst [vmem:[%s389 + $0x268] sm:$0xff] %v544
                  %v546 = vld [vmem:[%s388 + $0x4e0] sm:$0xff]
                  %547 = vst [vmem:[%s389 + $0x270] sm:$0xff] %v546
                  %v548 = vld [vmem:[%s388 + $0x4f0] sm:$0xff]
                  %549 = vst [vmem:[%s389 + $0x278] sm:$0xff] %v548
                  %v550 = vld [vmem:[%s388 + $0x500] sm:$0xff]
                  %551 = vst [vmem:[%s389 + $0x280] sm:$0xff] %v550
                  %v552 = vld [vmem:[%s388 + $0x510] sm:$0xff]
                  %553 = vst [vmem:[%s389 + $0x288] sm:$0xff] %v552
                  %v554 = vld [vmem:[%s388 + $0x520] sm:$0xff]
                  %555 = vst [vmem:[%s389 + $0x290] sm:$0xff] %v554
                  %v556 = vld [vmem:[%s388 + $0x530] sm:$0xff]
                  %557 = vst [vmem:[%s389 + $0x298] sm:$0xff] %v556
                  %v558 = vld [vmem:[%s388 + $0x540] sm:$0xff]
                  %559 = vst [vmem:[%s389 + $0x2a0] sm:$0xff] %v558
                  %v560 = vld [vmem:[%s388 + $0x550] sm:$0xff]
                  %561 = vst [vmem:[%s389 + $0x2a8] sm:$0xff] %v560
                  %v562 = vld [vmem:[%s388 + $0x560] sm:$0xff]
                  %563 = vst [vmem:[%s389 + $0x2b0] sm:$0xff] %v562
                  %v564 = vld [vmem:[%s388 + $0x570] sm:$0xff]
                  %565 = vst [vmem:[%s389 + $0x2b8] sm:$0xff] %v564
                  %v566 = vld [vmem:[%s388 + $0x580] sm:$0xff]
                  %567 = vst [vmem:[%s389 + $0x2c0] sm:$0xff] %v566
                  %v568 = vld [vmem:[%s388 + $0x590] sm:$0xff]
                  %569 = vst [vmem:[%s389 + $0x2c8] sm:$0xff] %v568
                  %v570 = vld [vmem:[%s388 + $0x5a0] sm:$0xff]
                  %571 = vst [vmem:[%s389 + $0x2d0] sm:$0xff] %v570
                  %v572 = vld [vmem:[%s388 + $0x5b0] sm:$0xff]
                  %573 = vst [vmem:[%s389 + $0x2d8] sm:$0xff] %v572
                  %v574 = vld [vmem:[%s388 + $0x5c0] sm:$0xff]
                  %575 = vst [vmem:[%s389 + $0x2e0] sm:$0xff] %v574
                  %v576 = vld [vmem:[%s388 + $0x5d0] sm:$0xff]
                  %577 = vst [vmem:[%s389 + $0x2e8] sm:$0xff] %v576
                  %v578 = vld [vmem:[%s388 + $0x5e0] sm:$0xff]
                  %579 = vst [vmem:[%s389 + $0x2f0] sm:$0xff] %v578
                  %v580 = vld [vmem:[%s388 + $0x5f0] sm:$0xff]
                  %581 = vst [vmem:[%s389 + $0x2f8] sm:$0xff] %v580
                  %v582 = vld [vmem:[%s388 + $0x600] sm:$0xff]
                  %583 = vst [vmem:[%s389 + $0x300] sm:$0xff] %v582
                  %v584 = vld [vmem:[%s388 + $0x610] sm:$0xff]
                  %585 = vst [vmem:[%s389 + $0x308] sm:$0xff] %v584
                  %v586 = vld [vmem:[%s388 + $0x620] sm:$0xff]
                  %587 = vst [vmem:[%s389 + $0x310] sm:$0xff] %v586
                  %v588 = vld [vmem:[%s388 + $0x630] sm:$0xff]
                  %589 = vst [vmem:[%s389 + $0x318] sm:$0xff] %v588
                $region52: #{clasificador_conv_forward.10} parent=46 // loop_footer
                  %s387 = sadd.s32 1, %s383
                $region53: #{clasificador_conv_forward.10} parent=46 // loop_footer_branch
                  %382 = sbr.rel target = $region49
                $region54: #{clasificador_conv_forward.10} parent=46 // loop_exit
                  _
              $region47: #{clasificador_conv_forward.10} parent=31 // pred_fallthru
                _
              // Predicated region
              $region55: #{clasificador_conv_forward.10} parent=31 // pred_check
                _
              $region56: #{clasificador_conv_forward.10} parent=31 // pred_check_branch
                %591 = sbr.rel target = $region58
              $region57: #{clasificador_conv_forward.10} parent=31 // pred_region
                _
              $region58: #{clasificador_conv_forward.10} parent=31 // pred_fallthru
                _
            $region32: #{clasificador_conv_forward.10} parent=27 // pred_fallthru
              _
            // Predicated region
            $region33: #{clasificador_conv_forward.10} parent=27 // pred_check
              _
            $region34: #{clasificador_conv_forward.10} parent=27 // pred_check_branch
              %169 = sbr.rel target = $region36
            $region35: #{clasificador_conv_forward.10} parent=27 // pred_region
              %s171 = ssub.s32 256, 1
              loop: start=0, step=1, limit=1
              $region37: #{clasificador_conv_forward.10} parent=35 // loop_pre_header
                _
              $region38: #{clasificador_conv_forward.10} parent=35 // loop_header
                %s173 = sphi 0, %s177
                %p174 = scmp.ge.s32.totalorder %s173, 1
                %s178 = sphi %s163, %s163
                %s179 = sphi %s160, %s160
              $region39: #{clasificador_conv_forward.10} parent=35 // loop_header_branch
                %176 = sbr.rel (%p174) target = $region43
              $region40: #{clasificador_conv_forward.10} parent=35 // loop_body
                %v180 = vld [vmem:[%s178] sm:%s171]
                %181 = vst [vmem:[%s179] sm:%s171] %v180
                %v182 = vld [vmem:[%s178 + $0x10] sm:%s171]
                %183 = vst [vmem:[%s179 + $0x8] sm:%s171] %v182
                %v184 = vld [vmem:[%s178 + $0x20] sm:%s171]
                %185 = vst [vmem:[%s179 + $0x10] sm:%s171] %v184
                %v186 = vld [vmem:[%s178 + $0x30] sm:%s171]
                %187 = vst [vmem:[%s179 + $0x18] sm:%s171] %v186
                %v188 = vld [vmem:[%s178 + $0x40] sm:%s171]
                %189 = vst [vmem:[%s179 + $0x20] sm:%s171] %v188
                %v190 = vld [vmem:[%s178 + $0x50] sm:%s171]
                %191 = vst [vmem:[%s179 + $0x28] sm:%s171] %v190
                %v192 = vld [vmem:[%s178 + $0x60] sm:%s171]
                %193 = vst [vmem:[%s179 + $0x30] sm:%s171] %v192
                %v194 = vld [vmem:[%s178 + $0x70] sm:%s171]
                %195 = vst [vmem:[%s179 + $0x38] sm:%s171] %v194
                %v196 = vld [vmem:[%s178 + $0x80] sm:%s171]
                %197 = vst [vmem:[%s179 + $0x40] sm:%s171] %v196
                %v198 = vld [vmem:[%s178 + $0x90] sm:%s171]
                %199 = vst [vmem:[%s179 + $0x48] sm:%s171] %v198
                %v200 = vld [vmem:[%s178 + $0xa0] sm:%s171]
                %201 = vst [vmem:[%s179 + $0x50] sm:%s171] %v200
                %v202 = vld [vmem:[%s178 + $0xb0] sm:%s171]
                %203 = vst [vmem:[%s179 + $0x58] sm:%s171] %v202
                %v204 = vld [vmem:[%s178 + $0xc0] sm:%s171]
                %205 = vst [vmem:[%s179 + $0x60] sm:%s171] %v204
                %v206 = vld [vmem:[%s178 + $0xd0] sm:%s171]
                %207 = vst [vmem:[%s179 + $0x68] sm:%s171] %v206
                %v208 = vld [vmem:[%s178 + $0xe0] sm:%s171]
                %209 = vst [vmem:[%s179 + $0x70] sm:%s171] %v208
                %v210 = vld [vmem:[%s178 + $0xf0] sm:%s171]
                %211 = vst [vmem:[%s179 + $0x78] sm:%s171] %v210
                %v212 = vld [vmem:[%s178 + $0x100] sm:%s171]
                %213 = vst [vmem:[%s179 + $0x80] sm:%s171] %v212
                %v214 = vld [vmem:[%s178 + $0x110] sm:%s171]
                %215 = vst [vmem:[%s179 + $0x88] sm:%s171] %v214
                %v216 = vld [vmem:[%s178 + $0x120] sm:%s171]
                %217 = vst [vmem:[%s179 + $0x90] sm:%s171] %v216
                %v218 = vld [vmem:[%s178 + $0x130] sm:%s171]
                %219 = vst [vmem:[%s179 + $0x98] sm:%s171] %v218
                %v220 = vld [vmem:[%s178 + $0x140] sm:%s171]
                %221 = vst [vmem:[%s179 + $0xa0] sm:%s171] %v220
                %v222 = vld [vmem:[%s178 + $0x150] sm:%s171]
                %223 = vst [vmem:[%s179 + $0xa8] sm:%s171] %v222
                %v224 = vld [vmem:[%s178 + $0x160] sm:%s171]
                %225 = vst [vmem:[%s179 + $0xb0] sm:%s171] %v224
                %v226 = vld [vmem:[%s178 + $0x170] sm:%s171]
                %227 = vst [vmem:[%s179 + $0xb8] sm:%s171] %v226
                %v228 = vld [vmem:[%s178 + $0x180] sm:%s171]
                %229 = vst [vmem:[%s179 + $0xc0] sm:%s171] %v228
                %v230 = vld [vmem:[%s178 + $0x190] sm:%s171]
                %231 = vst [vmem:[%s179 + $0xc8] sm:%s171] %v230
                %v232 = vld [vmem:[%s178 + $0x1a0] sm:%s171]
                %233 = vst [vmem:[%s179 + $0xd0] sm:%s171] %v232
                %v234 = vld [vmem:[%s178 + $0x1b0] sm:%s171]
                %235 = vst [vmem:[%s179 + $0xd8] sm:%s171] %v234
                %v236 = vld [vmem:[%s178 + $0x1c0] sm:%s171]
                %237 = vst [vmem:[%s179 + $0xe0] sm:%s171] %v236
                %v238 = vld [vmem:[%s178 + $0x1d0] sm:%s171]
                %239 = vst [vmem:[%s179 + $0xe8] sm:%s171] %v238
                %v240 = vld [vmem:[%s178 + $0x1e0] sm:%s171]
                %241 = vst [vmem:[%s179 + $0xf0] sm:%s171] %v240
                %v242 = vld [vmem:[%s178 + $0x1f0] sm:%s171]
                %243 = vst [vmem:[%s179 + $0xf8] sm:%s171] %v242
                %v244 = vld [vmem:[%s178 + $0x200] sm:%s171]
                %245 = vst [vmem:[%s179 + $0x100] sm:%s171] %v244
                %v246 = vld [vmem:[%s178 + $0x210] sm:%s171]
                %247 = vst [vmem:[%s179 + $0x108] sm:%s171] %v246
                %v248 = vld [vmem:[%s178 + $0x220] sm:%s171]
                %249 = vst [vmem:[%s179 + $0x110] sm:%s171] %v248
                %v250 = vld [vmem:[%s178 + $0x230] sm:%s171]
                %251 = vst [vmem:[%s179 + $0x118] sm:%s171] %v250
                %v252 = vld [vmem:[%s178 + $0x240] sm:%s171]
                %253 = vst [vmem:[%s179 + $0x120] sm:%s171] %v252
                %v254 = vld [vmem:[%s178 + $0x250] sm:%s171]
                %255 = vst [vmem:[%s179 + $0x128] sm:%s171] %v254
                %v256 = vld [vmem:[%s178 + $0x260] sm:%s171]
                %257 = vst [vmem:[%s179 + $0x130] sm:%s171] %v256
                %v258 = vld [vmem:[%s178 + $0x270] sm:%s171]
                %259 = vst [vmem:[%s179 + $0x138] sm:%s171] %v258
                %v260 = vld [vmem:[%s178 + $0x280] sm:%s171]
                %261 = vst [vmem:[%s179 + $0x140] sm:%s171] %v260
                %v262 = vld [vmem:[%s178 + $0x290] sm:%s171]
                %263 = vst [vmem:[%s179 + $0x148] sm:%s171] %v262
                %v264 = vld [vmem:[%s178 + $0x2a0] sm:%s171]
                %265 = vst [vmem:[%s179 + $0x150] sm:%s171] %v264
                %v266 = vld [vmem:[%s178 + $0x2b0] sm:%s171]
                %267 = vst [vmem:[%s179 + $0x158] sm:%s171] %v266
                %v268 = vld [vmem:[%s178 + $0x2c0] sm:%s171]
                %269 = vst [vmem:[%s179 + $0x160] sm:%s171] %v268
                %v270 = vld [vmem:[%s178 + $0x2d0] sm:%s171]
                %271 = vst [vmem:[%s179 + $0x168] sm:%s171] %v270
                %v272 = vld [vmem:[%s178 + $0x2e0] sm:%s171]
                %273 = vst [vmem:[%s179 + $0x170] sm:%s171] %v272
                %v274 = vld [vmem:[%s178 + $0x2f0] sm:%s171]
                %275 = vst [vmem:[%s179 + $0x178] sm:%s171] %v274
                %v276 = vld [vmem:[%s178 + $0x300] sm:%s171]
                %277 = vst [vmem:[%s179 + $0x180] sm:%s171] %v276
                %v278 = vld [vmem:[%s178 + $0x310] sm:%s171]
                %279 = vst [vmem:[%s179 + $0x188] sm:%s171] %v278
                %v280 = vld [vmem:[%s178 + $0x320] sm:%s171]
                %281 = vst [vmem:[%s179 + $0x190] sm:%s171] %v280
                %v282 = vld [vmem:[%s178 + $0x330] sm:%s171]
                %283 = vst [vmem:[%s179 + $0x198] sm:%s171] %v282
                %v284 = vld [vmem:[%s178 + $0x340] sm:%s171]
                %285 = vst [vmem:[%s179 + $0x1a0] sm:%s171] %v284
                %v286 = vld [vmem:[%s178 + $0x350] sm:%s171]
                %287 = vst [vmem:[%s179 + $0x1a8] sm:%s171] %v286
                %v288 = vld [vmem:[%s178 + $0x360] sm:%s171]
                %289 = vst [vmem:[%s179 + $0x1b0] sm:%s171] %v288
                %v290 = vld [vmem:[%s178 + $0x370] sm:%s171]
                %291 = vst [vmem:[%s179 + $0x1b8] sm:%s171] %v290
                %v292 = vld [vmem:[%s178 + $0x380] sm:%s171]
                %293 = vst [vmem:[%s179 + $0x1c0] sm:%s171] %v292
                %v294 = vld [vmem:[%s178 + $0x390] sm:%s171]
                %295 = vst [vmem:[%s179 + $0x1c8] sm:%s171] %v294
                %v296 = vld [vmem:[%s178 + $0x3a0] sm:%s171]
                %297 = vst [vmem:[%s179 + $0x1d0] sm:%s171] %v296
                %v298 = vld [vmem:[%s178 + $0x3b0] sm:%s171]
                %299 = vst [vmem:[%s179 + $0x1d8] sm:%s171] %v298
                %v300 = vld [vmem:[%s178 + $0x3c0] sm:%s171]
                %301 = vst [vmem:[%s179 + $0x1e0] sm:%s171] %v300
                %v302 = vld [vmem:[%s178 + $0x3d0] sm:%s171]
                %303 = vst [vmem:[%s179 + $0x1e8] sm:%s171] %v302
                %v304 = vld [vmem:[%s178 + $0x3e0] sm:%s171]
                %305 = vst [vmem:[%s179 + $0x1f0] sm:%s171] %v304
                %v306 = vld [vmem:[%s178 + $0x3f0] sm:%s171]
                %307 = vst [vmem:[%s179 + $0x1f8] sm:%s171] %v306
                %v308 = vld [vmem:[%s178 + $0x400] sm:%s171]
                %309 = vst [vmem:[%s179 + $0x200] sm:%s171] %v308
                %v310 = vld [vmem:[%s178 + $0x410] sm:%s171]
                %311 = vst [vmem:[%s179 + $0x208] sm:%s171] %v310
                %v312 = vld [vmem:[%s178 + $0x420] sm:%s171]
                %313 = vst [vmem:[%s179 + $0x210] sm:%s171] %v312
                %v314 = vld [vmem:[%s178 + $0x430] sm:%s171]
                %315 = vst [vmem:[%s179 + $0x218] sm:%s171] %v314
                %v316 = vld [vmem:[%s178 + $0x440] sm:%s171]
                %317 = vst [vmem:[%s179 + $0x220] sm:%s171] %v316
                %v318 = vld [vmem:[%s178 + $0x450] sm:%s171]
                %319 = vst [vmem:[%s179 + $0x228] sm:%s171] %v318
                %v320 = vld [vmem:[%s178 + $0x460] sm:%s171]
                %321 = vst [vmem:[%s179 + $0x230] sm:%s171] %v320
                %v322 = vld [vmem:[%s178 + $0x470] sm:%s171]
                %323 = vst [vmem:[%s179 + $0x238] sm:%s171] %v322
                %v324 = vld [vmem:[%s178 + $0x480] sm:%s171]
                %325 = vst [vmem:[%s179 + $0x240] sm:%s171] %v324
                %v326 = vld [vmem:[%s178 + $0x490] sm:%s171]
                %327 = vst [vmem:[%s179 + $0x248] sm:%s171] %v326
                %v328 = vld [vmem:[%s178 + $0x4a0] sm:%s171]
                %329 = vst [vmem:[%s179 + $0x250] sm:%s171] %v328
                %v330 = vld [vmem:[%s178 + $0x4b0] sm:%s171]
                %331 = vst [vmem:[%s179 + $0x258] sm:%s171] %v330
                %v332 = vld [vmem:[%s178 + $0x4c0] sm:%s171]
                %333 = vst [vmem:[%s179 + $0x260] sm:%s171] %v332
                %v334 = vld [vmem:[%s178 + $0x4d0] sm:%s171]
                %335 = vst [vmem:[%s179 + $0x268] sm:%s171] %v334
                %v336 = vld [vmem:[%s178 + $0x4e0] sm:%s171]
                %337 = vst [vmem:[%s179 + $0x270] sm:%s171] %v336
                %v338 = vld [vmem:[%s178 + $0x4f0] sm:%s171]
                %339 = vst [vmem:[%s179 + $0x278] sm:%s171] %v338
                %v340 = vld [vmem:[%s178 + $0x500] sm:%s171]
                %341 = vst [vmem:[%s179 + $0x280] sm:%s171] %v340
                %v342 = vld [vmem:[%s178 + $0x510] sm:%s171]
                %343 = vst [vmem:[%s179 + $0x288] sm:%s171] %v342
                %v344 = vld [vmem:[%s178 + $0x520] sm:%s171]
                %345 = vst [vmem:[%s179 + $0x290] sm:%s171] %v344
                %v346 = vld [vmem:[%s178 + $0x530] sm:%s171]
                %347 = vst [vmem:[%s179 + $0x298] sm:%s171] %v346
                %v348 = vld [vmem:[%s178 + $0x540] sm:%s171]
                %349 = vst [vmem:[%s179 + $0x2a0] sm:%s171] %v348
                %v350 = vld [vmem:[%s178 + $0x550] sm:%s171]
                %351 = vst [vmem:[%s179 + $0x2a8] sm:%s171] %v350
                %v352 = vld [vmem:[%s178 + $0x560] sm:%s171]
                %353 = vst [vmem:[%s179 + $0x2b0] sm:%s171] %v352
                %v354 = vld [vmem:[%s178 + $0x570] sm:%s171]
                %355 = vst [vmem:[%s179 + $0x2b8] sm:%s171] %v354
                %v356 = vld [vmem:[%s178 + $0x580] sm:%s171]
                %357 = vst [vmem:[%s179 + $0x2c0] sm:%s171] %v356
                %v358 = vld [vmem:[%s178 + $0x590] sm:%s171]
                %359 = vst [vmem:[%s179 + $0x2c8] sm:%s171] %v358
                %v360 = vld [vmem:[%s178 + $0x5a0] sm:%s171]
                %361 = vst [vmem:[%s179 + $0x2d0] sm:%s171] %v360
                %v362 = vld [vmem:[%s178 + $0x5b0] sm:%s171]
                %363 = vst [vmem:[%s179 + $0x2d8] sm:%s171] %v362
                %v364 = vld [vmem:[%s178 + $0x5c0] sm:%s171]
                %365 = vst [vmem:[%s179 + $0x2e0] sm:%s171] %v364
                %v366 = vld [vmem:[%s178 + $0x5d0] sm:%s171]
                %367 = vst [vmem:[%s179 + $0x2e8] sm:%s171] %v366
                %v368 = vld [vmem:[%s178 + $0x5e0] sm:%s171]
                %369 = vst [vmem:[%s179 + $0x2f0] sm:%s171] %v368
                %v370 = vld [vmem:[%s178 + $0x5f0] sm:%s171]
                %371 = vst [vmem:[%s179 + $0x2f8] sm:%s171] %v370
                %v372 = vld [vmem:[%s178 + $0x600] sm:%s171]
                %373 = vst [vmem:[%s179 + $0x300] sm:%s171] %v372
                %v374 = vld [vmem:[%s178 + $0x610] sm:%s171]
                %375 = vst [vmem:[%s179 + $0x308] sm:%s171] %v374
                %v376 = vld [vmem:[%s178 + $0x620] sm:%s171]
                %377 = vst [vmem:[%s179 + $0x310] sm:%s171] %v376
                %v378 = vld [vmem:[%s178 + $0x630] sm:%s171]
                %379 = vst [vmem:[%s179 + $0x318] sm:%s171] %v378
              $region41: #{clasificador_conv_forward.10} parent=35 // loop_footer
                %s177 = sadd.s32 1, %s173
              $region42: #{clasificador_conv_forward.10} parent=35 // loop_footer_branch
                %172 = sbr.rel target = $region38
              $region43: #{clasificador_conv_forward.10} parent=35 // loop_exit
                _
            $region36: #{clasificador_conv_forward.10} parent=27 // pred_fallthru
              _
          $region28: #{clasificador_conv_forward.10} parent=23 // pred_fallthru
            _
          %592 = vnop
        $region24: #{clasificador_conv_forward.10} parent=19 // pred_fallthru
          _
        // Predicated region
        $region59: #{clasificador_conv_forward.10} parent=19 // pred_check
          %p593 = pneg %p93
        $region60: #{clasificador_conv_forward.10} parent=19 // pred_check_branch
          %595 = sbr.rel (%p593) target = $region62
        $region61: #{clasificador_conv_forward.10} parent=19 // pred_region
          %s596 = smul.u32 2, %s17
          %p597 = scmp.lt.s32.totalorder %s596, 3
          %s598 = scalar_select %p597, %s596, 3
          %s599 = scalar_lea.vmem %s2, %s598
          %s600 = smul.u32 2, %s17
        $region62: #{clasificador_conv_forward.10} parent=19 // pred_fallthru
          _
      $region20: #{clasificador_conv_forward.10} parent=5 // pred_fallthru
        _
      %p601 = scmp.le.s32.totalorder 1, %s9
      %p602 = scmp.lt.s32.totalorder %s9, 3
      %p603 = pnand %p601, %p602
      %p604 = pneg %p603
      // Predicated region
      $region63: #{clasificador_conv_forward.10} parent=5 // pred_check
        _
      $region64: #{clasificador_conv_forward.10} parent=5 // pred_check_branch
        %606 = sbr.rel (%p603) target = $region66
      $region65: #{clasificador_conv_forward.10} parent=5 // pred_region
        %s607 = ssub.s32 %s9, 1
        %s608 = sand.u32 %s60, 1
        %s609 = sand.u32 %s60, 1
        %s610 = smul.addr %s609, 800
        %s611 = scalar_lea.vmem [#allocation2], %s610
        // Predicated region
        $region67: #{clasificador_conv_forward.10} parent=65 // pred_check
          %p612 = pneg %p73
        $region68: #{clasificador_conv_forward.10} parent=65 // pred_check_branch
          %614 = sbr.rel (%p612) target = $region70
        $region69: #{clasificador_conv_forward.10} parent=65 // pred_region
          _
        $region70: #{clasificador_conv_forward.10} parent=65 // pred_fallthru
          _
        %p615 = scmp.lt.s32.totalorder %s18, 0
        %s616 = scalar_select %p615, %s18, 0
        %s617 = smul.addr %s616, 7
        %s618 = smul.addr %s617, 4
        %s619 = scalar_lea.vmem %s0, %s618
        %p620 = pneg %p47
        %p621 = pneg %p44
        %s622 = sand.u32 %s60, 1
        %s623 = sand.u32 %s60, 1
        %s624 = smul.addr %s623, 800
        %s625 = scalar_lea.vmem [#allocation2], %s624
        %p626 = pneg %p73
        %p627 = pneg %p70
        %s628 = smul.u32 2, %s19
        %p629 = scmp.lt.s32.totalorder %s628, 3
        %s630 = scalar_select %p629, %s628, 3
        %s631 = scalar_lea.vmem %s2, %s630
        %p632 = pneg %p99
        %p633 = pneg %p96
        %p634 = pneg %p127
        %p635 = pneg %p124
        %s636 = smul.u32 2, %s19
        %p637 = scmp.lt.s32.totalorder %s18, 0
        %s638 = scalar_select %p637, %s18, 0
        %p639 = scmp.lt.s32.totalorder %s636, 3
        %s640 = scalar_select %p639, %s636, 3
        %s641 = smul.addr %s638, 4
        %s642 = sadd.s32 %s640, %s641
        %s643 = smul.addr %s642, 4
        %s644 = scalar_lea.vmem %s3, %s643
        %p645 = scmp.lt.s32.totalorder %s18, 0
        %s646 = scalar_select %p645, %s18, 0
        %s647 = smul.addr %s646, 7
        %s648 = smul.addr %s647, 4
        %s649 = scalar_lea.vmem %s0, %s648
        %s650 = smul.u32 2, %s19
        %s651 = smul.u32 2, %s19
        %p652 = scmp.lt.s32.totalorder %s651, 3
        %s653 = scalar_select %p652, %s651, 3
        %s654 = scalar_lea.vmem %s2, %s653
        %s655 = smul.u32 2, %s19
        %s656 = smul.u32 2, %s19
        %p657 = scmp.lt.s32.totalorder %s18, 0
        %s658 = scalar_select %p657, %s18, 0
        %p659 = scmp.lt.s32.totalorder %s656, 3
        %s660 = scalar_select %p659, %s656, 3
        %s661 = smul.addr %s658, 4
        %s662 = sadd.s32 %s660, %s661
        %s663 = smul.addr %s662, 4
        %s664 = scalar_lea.vmem %s3, %s663
        %s665 = smul.u32 2, %s19
        %v667 = vld [vmem:[%s649] sm:$0xff]
        %v668 = vld [vmem:[%s649 + $0x8] sm:$0xff]
        %v669 = vld [vmem:[%s649 + $0x10] sm:$0xff]
        %v670 = vld [vmem:[%s649 + $0x18] sm:$0xf]
        %v671 = vld [vmem:[%s611] sm:$0xff]
        %v672 = vld [vmem:[%s611 + $0x8] sm:$0xff]
        %v673 = vld [vmem:[%s611 + $0x10] sm:$0xff]
        %v674 = vld [vmem:[%s611 + $0x18] sm:$0xff]
        %v675 = vld [vmem:[%s611 + $0x20] sm:$0xff]
        %v676 = vld [vmem:[%s611 + $0x28] sm:$0xff]
        %v677 = vld [vmem:[%s611 + $0x30] sm:$0xff]
        %v678 = vld [vmem:[%s611 + $0x38] sm:$0xff]
        %v679 = vld [vmem:[%s611 + $0x40] sm:$0xff]
        %v680 = vld [vmem:[%s611 + $0x48] sm:$0xff]
        %v681 = vld [vmem:[%s611 + $0x50] sm:$0xff]
        %v682 = vld [vmem:[%s611 + $0x58] sm:$0xff]
        %v683 = vld [vmem:[%s611 + $0x60] sm:$0xff]
        %v684 = vld [vmem:[%s611 + $0x68] sm:$0xff]
        %v685 = vld [vmem:[%s611 + $0x70] sm:$0xff]
        %v686 = vld [vmem:[%s611 + $0x78] sm:$0xff]
        %v687 = vld [vmem:[%s611 + $0x80] sm:$0xff]
        %v688 = vld [vmem:[%s611 + $0x88] sm:$0xff]
        %v689 = vld [vmem:[%s611 + $0x90] sm:$0xff]
        %v690 = vld [vmem:[%s611 + $0x98] sm:$0xff]
        %v691 = vld [vmem:[%s611 + $0xa0] sm:$0xff]
        %v692 = vld [vmem:[%s611 + $0xa8] sm:$0xff]
        %v693 = vld [vmem:[%s611 + $0xb0] sm:$0xff]
        %v694 = vld [vmem:[%s611 + $0xb8] sm:$0xff]
        %v695 = vld [vmem:[%s611 + $0xc0] sm:$0xff]
        %v696 = vld [vmem:[%s611 + $0xc8] sm:$0xff]
        %v697 = vld [vmem:[%s611 + $0xd0] sm:$0xff]
        %v698 = vld [vmem:[%s611 + $0xd8] sm:$0xff]
        %v699 = vld [vmem:[%s611 + $0xe0] sm:$0xff]
        %v700 = vld [vmem:[%s611 + $0xe8] sm:$0xff]
        %v701 = vld [vmem:[%s611 + $0xf0] sm:$0xff]
        %v702 = vld [vmem:[%s611 + $0xf8] sm:$0xff]
        %v703 = vld [vmem:[%s611 + $0x100] sm:$0xff]
        %v704 = vld [vmem:[%s611 + $0x108] sm:$0xff]
        %v705 = vld [vmem:[%s611 + $0x110] sm:$0xff]
        %v706 = vld [vmem:[%s611 + $0x118] sm:$0xff]
        %v707 = vld [vmem:[%s611 + $0x120] sm:$0xff]
        %v708 = vld [vmem:[%s611 + $0x128] sm:$0xff]
        %v709 = vld [vmem:[%s611 + $0x130] sm:$0xff]
        %v710 = vld [vmem:[%s611 + $0x138] sm:$0xff]
        %v711 = vld [vmem:[%s611 + $0x140] sm:$0xff]
        %v712 = vld [vmem:[%s611 + $0x148] sm:$0xff]
        %v713 = vld [vmem:[%s611 + $0x150] sm:$0xff]
        %v714 = vld [vmem:[%s611 + $0x158] sm:$0xff]
        %v715 = vld [vmem:[%s611 + $0x160] sm:$0xff]
        %v716 = vld [vmem:[%s611 + $0x168] sm:$0xff]
        %v717 = vld [vmem:[%s611 + $0x170] sm:$0xff]
        %v718 = vld [vmem:[%s611 + $0x178] sm:$0xff]
        %v719 = vld [vmem:[%s611 + $0x180] sm:$0xff]
        %v720 = vld [vmem:[%s611 + $0x188] sm:$0xff]
        %v721 = vld [vmem:[%s611 + $0x190] sm:$0xff]
        %v722 = vld [vmem:[%s611 + $0x198] sm:$0xff]
        %v723 = vld [vmem:[%s611 + $0x1a0] sm:$0xff]
        %v724 = vld [vmem:[%s611 + $0x1a8] sm:$0xff]
        %v725 = vld [vmem:[%s611 + $0x1b0] sm:$0xff]
        %v726 = vld [vmem:[%s611 + $0x1b8] sm:$0xff]
        %v727 = vld [vmem:[%s611 + $0x1c0] sm:$0xff]
        %v728 = vld [vmem:[%s611 + $0x1c8] sm:$0xff]
        %v729 = vld [vmem:[%s611 + $0x1d0] sm:$0xff]
        %v730 = vld [vmem:[%s611 + $0x1d8] sm:$0xff]
        %v731 = vld [vmem:[%s611 + $0x1e0] sm:$0xff]
        %v732 = vld [vmem:[%s611 + $0x1e8] sm:$0xff]
        %v733 = vld [vmem:[%s611 + $0x1f0] sm:$0xff]
        %v734 = vld [vmem:[%s611 + $0x1f8] sm:$0xff]
        %v735 = vld [vmem:[%s611 + $0x200] sm:$0xff]
        %v736 = vld [vmem:[%s611 + $0x208] sm:$0xff]
        %v737 = vld [vmem:[%s611 + $0x210] sm:$0xff]
        %v738 = vld [vmem:[%s611 + $0x218] sm:$0xff]
        %v739 = vld [vmem:[%s611 + $0x220] sm:$0xff]
        %v740 = vld [vmem:[%s611 + $0x228] sm:$0xff]
        %v741 = vld [vmem:[%s611 + $0x230] sm:$0xff]
        %v742 = vld [vmem:[%s611 + $0x238] sm:$0xff]
        %v743 = vld [vmem:[%s611 + $0x240] sm:$0xff]
        %v744 = vld [vmem:[%s611 + $0x248] sm:$0xff]
        %v745 = vld [vmem:[%s611 + $0x250] sm:$0xff]
        %v746 = vld [vmem:[%s611 + $0x258] sm:$0xff]
        %v747 = vld [vmem:[%s611 + $0x260] sm:$0xff]
        %v748 = vld [vmem:[%s611 + $0x268] sm:$0xff]
        %v749 = vld [vmem:[%s611 + $0x270] sm:$0xff]
        %v750 = vld [vmem:[%s611 + $0x278] sm:$0xff]
        %v751 = vld [vmem:[%s611 + $0x280] sm:$0xff]
        %v752 = vld [vmem:[%s611 + $0x288] sm:$0xff]
        %v753 = vld [vmem:[%s611 + $0x290] sm:$0xff]
        %v754 = vld [vmem:[%s611 + $0x298] sm:$0xff]
        %v755 = vld [vmem:[%s611 + $0x2a0] sm:$0xff]
        %v756 = vld [vmem:[%s611 + $0x2a8] sm:$0xff]
        %v757 = vld [vmem:[%s611 + $0x2b0] sm:$0xff]
        %v758 = vld [vmem:[%s611 + $0x2b8] sm:$0xff]
        %v759 = vld [vmem:[%s611 + $0x2c0] sm:$0xff]
        %v760 = vld [vmem:[%s611 + $0x2c8] sm:$0xff]
        %v761 = vld [vmem:[%s611 + $0x2d0] sm:$0xff]
        %v762 = vld [vmem:[%s611 + $0x2d8] sm:$0xff]
        %v763 = vld [vmem:[%s611 + $0x2e0] sm:$0xff]
        %v764 = vld [vmem:[%s611 + $0x2e8] sm:$0xff]
        %v765 = vld [vmem:[%s611 + $0x2f0] sm:$0xff]
        %v766 = vld [vmem:[%s611 + $0x2f8] sm:$0xff]
        %v767 = vld [vmem:[%s611 + $0x300] sm:$0xff]
        %v768 = vld [vmem:[%s611 + $0x308] sm:$0xff]
        %v769 = vld [vmem:[%s611 + $0x310] sm:$0xff]
        %v770 = vld [vmem:[%s611 + $0x318] sm:$0xff]
        %v771 = vld [vmem:[%s654] sm:$0x3]
        %v773 = vlaneseq
        %v774 = vshrl.u32 %v773, 7
        %v775 = vsub.s32 0, %v774
        %v776 = vrot.slane %v771, %v775
        %v777 = vlaneseq
        %v778 = vshrl.u32 %v777, 7
        %v779 = vsub.s32 1, %v778
        %v780 = vrot.slane %v771, %v779
        %v787 = vunpack.c.l.b16 %v667
        %v788 = vunpack.c.h.b16 %v667
        %v789 = vunpack.c.l.b16 %v668
        %v790 = vunpack.c.h.b16 %v668
        %v791 = vunpack.c.l.b16 %v669
        %v792 = vunpack.c.h.b16 %v669
        %v793 = vunpack.c.l.b16 %v670
        %v794 = vpack.c.b16 %v787, %v787
        %v795 = vpack.c.b16 %v788, %v788
        %v796 = vpack.c.b16 %v789, %v789
        %v797 = vpack.c.b16 %v790, %v790
        %v798 = vpack.c.b16 %v791, %v791
        %v799 = vpack.c.b16 %v792, %v792
        %v800 = vpack.c.b16 %v793, %v793
        %v907 = vunpack.c.l.b16 %v671
        %v908 = vunpack.c.h.b16 %v671
        %v909 = vunpack.c.l.b16 %v672
        %v910 = vunpack.c.h.b16 %v672
        %v911 = vunpack.c.l.b16 %v673
        %v912 = vunpack.c.h.b16 %v673
        %v913 = vunpack.c.l.b16 %v674
        %v914 = vunpack.c.h.b16 %v674
        %v915 = vunpack.c.l.b16 %v675
        %v916 = vunpack.c.h.b16 %v675
        %v917 = vunpack.c.l.b16 %v676
        %v918 = vunpack.c.h.b16 %v676
        %v919 = vunpack.c.l.b16 %v677
        %v920 = vunpack.c.h.b16 %v677
        %v921 = vunpack.c.l.b16 %v678
        %v922 = vunpack.c.h.b16 %v678
        %v923 = vunpack.c.l.b16 %v679
        %v924 = vunpack.c.h.b16 %v679
        %v925 = vunpack.c.l.b16 %v680
        %v926 = vunpack.c.h.b16 %v680
        %v927 = vunpack.c.l.b16 %v681
        %v928 = vunpack.c.h.b16 %v681
        %v929 = vunpack.c.l.b16 %v682
        %v930 = vunpack.c.h.b16 %v682
        %v931 = vunpack.c.l.b16 %v683
        %v932 = vunpack.c.h.b16 %v683
        %v933 = vunpack.c.l.b16 %v684
        %v934 = vunpack.c.h.b16 %v684
        %v935 = vunpack.c.l.b16 %v685
        %v936 = vunpack.c.h.b16 %v685
        %v937 = vunpack.c.l.b16 %v686
        %v938 = vunpack.c.h.b16 %v686
        %v939 = vunpack.c.l.b16 %v687
        %v940 = vunpack.c.h.b16 %v687
        %v941 = vunpack.c.l.b16 %v688
        %v942 = vunpack.c.h.b16 %v688
        %v943 = vunpack.c.l.b16 %v689
        %v944 = vunpack.c.h.b16 %v689
        %v945 = vunpack.c.l.b16 %v690
        %v946 = vunpack.c.h.b16 %v690
        %v947 = vunpack.c.l.b16 %v691
        %v948 = vunpack.c.h.b16 %v691
        %v949 = vunpack.c.l.b16 %v692
        %v950 = vunpack.c.h.b16 %v692
        %v951 = vunpack.c.l.b16 %v693
        %v952 = vunpack.c.h.b16 %v693
        %v953 = vunpack.c.l.b16 %v694
        %v954 = vunpack.c.h.b16 %v694
        %v955 = vunpack.c.l.b16 %v695
        %v956 = vunpack.c.h.b16 %v695
        %v957 = vunpack.c.l.b16 %v696
        %v958 = vunpack.c.h.b16 %v696
        %v959 = vunpack.c.l.b16 %v697
        %v960 = vunpack.c.h.b16 %v697
        %v961 = vunpack.c.l.b16 %v698
        %v962 = vunpack.c.h.b16 %v698
        %v963 = vunpack.c.l.b16 %v699
        %v964 = vunpack.c.h.b16 %v699
        %v965 = vunpack.c.l.b16 %v700
        %v966 = vunpack.c.h.b16 %v700
        %v967 = vunpack.c.l.b16 %v701
        %v968 = vunpack.c.h.b16 %v701
        %v969 = vunpack.c.l.b16 %v702
        %v970 = vunpack.c.h.b16 %v702
        %v971 = vunpack.c.l.b16 %v703
        %v972 = vunpack.c.h.b16 %v703
        %v973 = vunpack.c.l.b16 %v704
        %v974 = vunpack.c.h.b16 %v704
        %v975 = vunpack.c.l.b16 %v705
        %v976 = vunpack.c.h.b16 %v705
        %v977 = vunpack.c.l.b16 %v706
        %v978 = vunpack.c.h.b16 %v706
        %v979 = vunpack.c.l.b16 %v707
        %v980 = vunpack.c.h.b16 %v707
        %v981 = vunpack.c.l.b16 %v708
        %v982 = vunpack.c.h.b16 %v708
        %v983 = vunpack.c.l.b16 %v709
        %v984 = vunpack.c.h.b16 %v709
        %v985 = vunpack.c.l.b16 %v710
        %v986 = vunpack.c.h.b16 %v710
        %v987 = vunpack.c.l.b16 %v711
        %v988 = vunpack.c.h.b16 %v711
        %v989 = vunpack.c.l.b16 %v712
        %v990 = vunpack.c.h.b16 %v712
        %v991 = vunpack.c.l.b16 %v713
        %v992 = vunpack.c.h.b16 %v713
        %v993 = vunpack.c.l.b16 %v714
        %v994 = vunpack.c.h.b16 %v714
        %v995 = vunpack.c.l.b16 %v715
        %v996 = vunpack.c.h.b16 %v715
        %v997 = vunpack.c.l.b16 %v716
        %v998 = vunpack.c.h.b16 %v716
        %v999 = vunpack.c.l.b16 %v717
        %v1000 = vunpack.c.h.b16 %v717
        %v1001 = vunpack.c.l.b16 %v718
        %v1002 = vunpack.c.h.b16 %v718
        %v1003 = vunpack.c.l.b16 %v719
        %v1004 = vunpack.c.h.b16 %v719
        %v1005 = vunpack.c.l.b16 %v720
        %v1006 = vunpack.c.h.b16 %v720
        %v1007 = vunpack.c.l.b16 %v721
        %v1008 = vunpack.c.h.b16 %v721
        %v1009 = vunpack.c.l.b16 %v722
        %v1010 = vunpack.c.h.b16 %v722
        %v1011 = vunpack.c.l.b16 %v723
        %v1012 = vunpack.c.h.b16 %v723
        %v1013 = vunpack.c.l.b16 %v724
        %v1014 = vunpack.c.h.b16 %v724
        %v1015 = vunpack.c.l.b16 %v725
        %v1016 = vunpack.c.h.b16 %v725
        %v1017 = vunpack.c.l.b16 %v726
        %v1018 = vunpack.c.h.b16 %v726
        %v1019 = vunpack.c.l.b16 %v727
        %v1020 = vunpack.c.h.b16 %v727
        %v1021 = vunpack.c.l.b16 %v728
        %v1022 = vunpack.c.h.b16 %v728
        %v1023 = vunpack.c.l.b16 %v729
        %v1024 = vunpack.c.h.b16 %v729
        %v1025 = vunpack.c.l.b16 %v730
        %v1026 = vunpack.c.h.b16 %v730
        %v1027 = vunpack.c.l.b16 %v731
        %v1028 = vunpack.c.h.b16 %v731
        %v1029 = vunpack.c.l.b16 %v732
        %v1030 = vunpack.c.h.b16 %v732
        %v1031 = vunpack.c.l.b16 %v733
        %v1032 = vunpack.c.h.b16 %v733
        %v1033 = vunpack.c.l.b16 %v734
        %v1034 = vunpack.c.h.b16 %v734
        %v1035 = vunpack.c.l.b16 %v735
        %v1036 = vunpack.c.h.b16 %v735
        %v1037 = vunpack.c.l.b16 %v736
        %v1038 = vunpack.c.h.b16 %v736
        %v1039 = vunpack.c.l.b16 %v737
        %v1040 = vunpack.c.h.b16 %v737
        %v1041 = vunpack.c.l.b16 %v738
        %v1042 = vunpack.c.h.b16 %v738
        %v1043 = vunpack.c.l.b16 %v739
        %v1044 = vunpack.c.h.b16 %v739
        %v1045 = vunpack.c.l.b16 %v740
        %v1046 = vunpack.c.h.b16 %v740
        %v1047 = vunpack.c.l.b16 %v741
        %v1048 = vunpack.c.h.b16 %v741
        %v1049 = vunpack.c.l.b16 %v742
        %v1050 = vunpack.c.h.b16 %v742
        %v1051 = vunpack.c.l.b16 %v743
        %v1052 = vunpack.c.h.b16 %v743
        %v1053 = vunpack.c.l.b16 %v744
        %v1054 = vunpack.c.h.b16 %v744
        %v1055 = vunpack.c.l.b16 %v745
        %v1056 = vunpack.c.h.b16 %v745
        %v1057 = vunpack.c.l.b16 %v746
        %v1058 = vunpack.c.h.b16 %v746
        %v1059 = vunpack.c.l.b16 %v747
        %v1060 = vunpack.c.h.b16 %v747
        %v1061 = vunpack.c.l.b16 %v748
        %v1062 = vunpack.c.h.b16 %v748
        %v1063 = vunpack.c.l.b16 %v749
        %v1064 = vunpack.c.h.b16 %v749
        %v1065 = vunpack.c.l.b16 %v750
        %v1066 = vunpack.c.h.b16 %v750
        %v1067 = vunpack.c.l.b16 %v751
        %v1068 = vunpack.c.h.b16 %v751
        %v1069 = vunpack.c.l.b16 %v752
        %v1070 = vunpack.c.h.b16 %v752
        %v1071 = vunpack.c.l.b16 %v753
        %v1072 = vunpack.c.h.b16 %v753
        %v1073 = vunpack.c.l.b16 %v754
        %v1074 = vunpack.c.h.b16 %v754
        %v1075 = vunpack.c.l.b16 %v755
        %v1076 = vunpack.c.h.b16 %v755
        %v1077 = vunpack.c.l.b16 %v756
        %v1078 = vunpack.c.h.b16 %v756
        %v1079 = vunpack.c.l.b16 %v757
        %v1080 = vunpack.c.h.b16 %v757
        %v1081 = vunpack.c.l.b16 %v758
        %v1082 = vunpack.c.h.b16 %v758
        %v1083 = vunpack.c.l.b16 %v759
        %v1084 = vunpack.c.h.b16 %v759
        %v1085 = vunpack.c.l.b16 %v760
        %v1086 = vunpack.c.h.b16 %v760
        %v1087 = vunpack.c.l.b16 %v761
        %v1088 = vunpack.c.h.b16 %v761
        %v1089 = vunpack.c.l.b16 %v762
        %v1090 = vunpack.c.h.b16 %v762
        %v1091 = vunpack.c.l.b16 %v763
        %v1092 = vunpack.c.h.b16 %v763
        %v1093 = vunpack.c.l.b16 %v764
        %v1094 = vunpack.c.h.b16 %v764
        %v1095 = vunpack.c.l.b16 %v765
        %v1096 = vunpack.c.h.b16 %v765
        %v1097 = vunpack.c.l.b16 %v766
        %v1098 = vunpack.c.h.b16 %v766
        %v1099 = vunpack.c.l.b16 %v767
        %v1100 = vunpack.c.h.b16 %v767
        %v1101 = vunpack.c.l.b16 %v768
        %v1102 = vunpack.c.h.b16 %v768
        %v1103 = vunpack.c.l.b16 %v769
        %v1104 = vunpack.c.h.b16 %v769
        %v1105 = vunpack.c.l.b16 %v770
        %v1106 = vunpack.c.h.b16 %v770
        %v1107 = vpack.c.b16 %v909, %v907
        %v1108 = vpack.c.b16 %v910, %v908
        %v1109 = vpack.c.b16 %v913, %v911
        %v1110 = vpack.c.b16 %v914, %v912
        %v1111 = vpack.c.b16 %v917, %v915
        %v1112 = vpack.c.b16 %v918, %v916
        %v1113 = vpack.c.b16 %v921, %v919
        %v1114 = vpack.c.b16 %v922, %v920
        %v1115 = vpack.c.b16 %v925, %v923
        %v1116 = vpack.c.b16 %v926, %v924
        %v1117 = vpack.c.b16 %v929, %v927
        %v1118 = vpack.c.b16 %v930, %v928
        %v1119 = vpack.c.b16 %v933, %v931
        %v1120 = vpack.c.b16 %v934, %v932
        %v1121 = vpack.c.b16 %v937, %v935
        %v1122 = vpack.c.b16 %v938, %v936
        %v1123 = vpack.c.b16 %v941, %v939
        %v1124 = vpack.c.b16 %v942, %v940
        %v1125 = vpack.c.b16 %v945, %v943
        %v1126 = vpack.c.b16 %v946, %v944
        %v1127 = vpack.c.b16 %v949, %v947
        %v1128 = vpack.c.b16 %v950, %v948
        %v1129 = vpack.c.b16 %v953, %v951
        %v1130 = vpack.c.b16 %v954, %v952
        %v1131 = vpack.c.b16 %v957, %v955
        %v1132 = vpack.c.b16 %v958, %v956
        %v1133 = vpack.c.b16 %v961, %v959
        %v1134 = vpack.c.b16 %v962, %v960
        %v1135 = vpack.c.b16 %v965, %v963
        %v1136 = vpack.c.b16 %v966, %v964
        %v1137 = vpack.c.b16 %v969, %v967
        %v1138 = vpack.c.b16 %v970, %v968
        %v1139 = vpack.c.b16 %v973, %v971
        %v1140 = vpack.c.b16 %v974, %v972
        %v1141 = vpack.c.b16 %v977, %v975
        %v1142 = vpack.c.b16 %v978, %v976
        %v1143 = vpack.c.b16 %v981, %v979
        %v1144 = vpack.c.b16 %v982, %v980
        %v1145 = vpack.c.b16 %v985, %v983
        %v1146 = vpack.c.b16 %v986, %v984
        %v1147 = vpack.c.b16 %v989, %v987
        %v1148 = vpack.c.b16 %v990, %v988
        %v1149 = vpack.c.b16 %v993, %v991
        %v1150 = vpack.c.b16 %v994, %v992
        %v1151 = vpack.c.b16 %v997, %v995
        %v1152 = vpack.c.b16 %v998, %v996
        %v1153 = vpack.c.b16 %v1001, %v999
        %v1154 = vpack.c.b16 %v1002, %v1000
        %v1155 = vpack.c.b16 %v1005, %v1003
        %v1156 = vpack.c.b16 %v1006, %v1004
        %v1157 = vpack.c.b16 %v1009, %v1007
        %v1158 = vpack.c.b16 %v1010, %v1008
        %v1159 = vpack.c.b16 %v1013, %v1011
        %v1160 = vpack.c.b16 %v1014, %v1012
        %v1161 = vpack.c.b16 %v1017, %v1015
        %v1162 = vpack.c.b16 %v1018, %v1016
        %v1163 = vpack.c.b16 %v1021, %v1019
        %v1164 = vpack.c.b16 %v1022, %v1020
        %v1165 = vpack.c.b16 %v1025, %v1023
        %v1166 = vpack.c.b16 %v1026, %v1024
        %v1167 = vpack.c.b16 %v1029, %v1027
        %v1168 = vpack.c.b16 %v1030, %v1028
        %v1169 = vpack.c.b16 %v1033, %v1031
        %v1170 = vpack.c.b16 %v1034, %v1032
        %v1171 = vpack.c.b16 %v1037, %v1035
        %v1172 = vpack.c.b16 %v1038, %v1036
        %v1173 = vpack.c.b16 %v1041, %v1039
        %v1174 = vpack.c.b16 %v1042, %v1040
        %v1175 = vpack.c.b16 %v1045, %v1043
        %v1176 = vpack.c.b16 %v1046, %v1044
        %v1177 = vpack.c.b16 %v1049, %v1047
        %v1178 = vpack.c.b16 %v1050, %v1048
        %v1179 = vpack.c.b16 %v1053, %v1051
        %v1180 = vpack.c.b16 %v1054, %v1052
        %v1181 = vpack.c.b16 %v1057, %v1055
        %v1182 = vpack.c.b16 %v1058, %v1056
        %v1183 = vpack.c.b16 %v1061, %v1059
        %v1184 = vpack.c.b16 %v1062, %v1060
        %v1185 = vpack.c.b16 %v1065, %v1063
        %v1186 = vpack.c.b16 %v1066, %v1064
        %v1187 = vpack.c.b16 %v1069, %v1067
        %v1188 = vpack.c.b16 %v1070, %v1068
        %v1189 = vpack.c.b16 %v1073, %v1071
        %v1190 = vpack.c.b16 %v1074, %v1072
        %v1191 = vpack.c.b16 %v1077, %v1075
        %v1192 = vpack.c.b16 %v1078, %v1076
        %v1193 = vpack.c.b16 %v1081, %v1079
        %v1194 = vpack.c.b16 %v1082, %v1080
        %v1195 = vpack.c.b16 %v1085, %v1083
        %v1196 = vpack.c.b16 %v1086, %v1084
        %v1197 = vpack.c.b16 %v1089, %v1087
        %v1198 = vpack.c.b16 %v1090, %v1088
        %v1199 = vpack.c.b16 %v1093, %v1091
        %v1200 = vpack.c.b16 %v1094, %v1092
        %v1201 = vpack.c.b16 %v1097, %v1095
        %v1202 = vpack.c.b16 %v1098, %v1096
        %v1203 = vpack.c.b16 %v1101, %v1099
        %v1204 = vpack.c.b16 %v1102, %v1100
        %v1205 = vpack.c.b16 %v1105, %v1103
        %v1206 = vpack.c.b16 %v1106, %v1104
        %vm1307 = vcmask 261120
        %v1309 = vsel %vm1307, %v800, 0
        %1311 = vmatprep.subr.bf16.mxu0 %v1122
        %1312 = vmatpush1.bf16.msra.mxu0 %v1121
        %1313 = vmatprep.subr.bf16.mxu0 %v1120
        %1314 = vmatpush1.bf16.msra.mxu0 %v1119
        %1315 = vmatprep.subr.bf16.mxu0 %v1118
        %1316 = vmatpush1.bf16.msra.mxu0 %v1117
        %1317 = vmatprep.subr.bf16.mxu0 %v1116
        %1318 = vmatpush1.bf16.msra.mxu0 %v1115
        %1319 = vmatprep.subr.bf16.mxu0 %v1114
        %1320 = vmatpush1.bf16.msra.mxu0 %v1113
        %1321 = vmatprep.subr.bf16.mxu0 %v1112
        %1322 = vmatpush1.bf16.msra.mxu0 %v1111
        %1323 = vmatprep.subr.bf16.mxu0 %v1110
        %1324 = vmatpush1.bf16.msra.mxu0 %v1109
        %1325 = vmatprep.subr.bf16.mxu0 %v1108
        %1326 = vmatpush1.bf16.msra.mxu0 %v1107
        %1327 = vmatprep.subr.bf16.mxu0 %v1138
        %1328 = vmatpush2.bf16.msra.mxu0 %v1137
        %1329 = vmatprep.subr.bf16.mxu0 %v1136
        %1330 = vmatpush2.bf16.msra.mxu0 %v1135
        %1331 = vmatprep.subr.bf16.mxu0 %v1134
        %1332 = vmatpush2.bf16.msra.mxu0 %v1133
        %1333 = vmatprep.subr.bf16.mxu0 %v1132
        %1334 = vmatpush2.bf16.msra.mxu0 %v1131
        %1335 = vmatprep.subr.bf16.mxu0 %v1130
        %1336 = vmatpush2.bf16.msra.mxu0 %v1129
        %1337 = vmatprep.subr.bf16.mxu0 %v1128
        %1338 = vmatpush2.bf16.msra.mxu0 %v1127
        %1339 = vmatprep.subr.bf16.mxu0 %v1126
        %1340 = vmatpush2.bf16.msra.mxu0 %v1125
        %1341 = vmatprep.subr.bf16.mxu0 %v1124
        %1342 = vmatpush2.bf16.msra.mxu0 %v1123
        %1343 = vmatprep.mubr.bf16.mxu0 %v795
        %1344 = vmatmul.mubr.bf16.gmra.mxu0 %v794
        %v1345 = vpop.f32.mrf.mxu0
        %v1346 = vadd.f32 %v776, %v1345
        %v1347 = vpop.f32.mrf.mxu0
        %v1348 = vadd.f32 %v780, %v1347
        %v1349 = vpop.f32.mrf.mxu0
        %v1350 = vpop.f32.mrf.mxu0
        %1351 = vdwg.mxu0
        %1352 = vmatprep.subr.bf16.mxu0 %v1154
        %1353 = vmatpush1.bf16.msra.mxu0 %v1153
        %1354 = vmatprep.subr.bf16.mxu0 %v1152
        %1355 = vmatpush1.bf16.msra.mxu0 %v1151
        %1356 = vmatprep.subr.bf16.mxu0 %v1150
        %1357 = vmatpush1.bf16.msra.mxu0 %v1149
        %1358 = vmatprep.subr.bf16.mxu0 %v1148
        %1359 = vmatpush1.bf16.msra.mxu0 %v1147
        %1360 = vmatprep.subr.bf16.mxu0 %v1146
        %1361 = vmatpush1.bf16.msra.mxu0 %v1145
        %1362 = vmatprep.subr.bf16.mxu0 %v1144
        %1363 = vmatpush1.bf16.msra.mxu0 %v1143
        %1364 = vmatprep.subr.bf16.mxu0 %v1142
        %1365 = vmatpush1.bf16.msra.mxu0 %v1141
        %1366 = vmatprep.subr.bf16.mxu0 %v1140
        %1367 = vmatpush1.bf16.msra.mxu0 %v1139
        %1368 = vmatprep.subr.bf16.mxu0 %v1170
        %1369 = vmatpush2.bf16.msra.mxu0 %v1169
        %1370 = vmatprep.subr.bf16.mxu0 %v1168
        %1371 = vmatpush2.bf16.msra.mxu0 %v1167
        %1372 = vmatprep.subr.bf16.mxu0 %v1166
        %1373 = vmatpush2.bf16.msra.mxu0 %v1165
        %1374 = vmatprep.subr.bf16.mxu0 %v1164
        %1375 = vmatpush2.bf16.msra.mxu0 %v1163
        %1376 = vmatprep.subr.bf16.mxu0 %v1162
        %1377 = vmatpush2.bf16.msra.mxu0 %v1161
        %1378 = vmatprep.subr.bf16.mxu0 %v1160
        %1379 = vmatpush2.bf16.msra.mxu0 %v1159
        %1380 = vmatprep.subr.bf16.mxu0 %v1158
        %1381 = vmatpush2.bf16.msra.mxu0 %v1157
        %1382 = vmatprep.subr.bf16.mxu0 %v1156
        %1383 = vmatpush2.bf16.msra.mxu0 %v1155
        %1384 = vmatprep.mubr.bf16.mxu0 %v797
        %1385 = vmatmul.mubr.bf16.gmra.mxu0 %v796
        %v1386 = vpop.f32.mrf.mxu0
        %v1387 = vadd.f32 %v1346, %v1386
        %v1388 = vpop.f32.mrf.mxu0
        %v1389 = vadd.f32 %v1348, %v1388
        %v1390 = vpop.f32.mrf.mxu0
        %v1391 = vpop.f32.mrf.mxu0
        %1392 = vdwg.mxu0
        %1393 = vmatprep.subr.bf16.mxu0 %v1186
        %1394 = vmatpush1.bf16.msra.mxu0 %v1185
        %1395 = vmatprep.subr.bf16.mxu0 %v1184
        %1396 = vmatpush1.bf16.msra.mxu0 %v1183
        %1397 = vmatprep.subr.bf16.mxu0 %v1182
        %1398 = vmatpush1.bf16.msra.mxu0 %v1181
        %1399 = vmatprep.subr.bf16.mxu0 %v1180
        %1400 = vmatpush1.bf16.msra.mxu0 %v1179
        %1401 = vmatprep.subr.bf16.mxu0 %v1178
        %1402 = vmatpush1.bf16.msra.mxu0 %v1177
        %1403 = vmatprep.subr.bf16.mxu0 %v1176
        %1404 = vmatpush1.bf16.msra.mxu0 %v1175
        %1405 = vmatprep.subr.bf16.mxu0 %v1174
        %1406 = vmatpush1.bf16.msra.mxu0 %v1173
        %1407 = vmatprep.subr.bf16.mxu0 %v1172
        %1408 = vmatpush1.bf16.msra.mxu0 %v1171
        %1409 = vmatprep.subr.bf16.mxu0 %v1202
        %1410 = vmatpush2.bf16.msra.mxu0 %v1201
        %1411 = vmatprep.subr.bf16.mxu0 %v1200
        %1412 = vmatpush2.bf16.msra.mxu0 %v1199
        %1413 = vmatprep.subr.bf16.mxu0 %v1198
        %1414 = vmatpush2.bf16.msra.mxu0 %v1197
        %1415 = vmatprep.subr.bf16.mxu0 %v1196
        %1416 = vmatpush2.bf16.msra.mxu0 %v1195
        %1417 = vmatprep.subr.bf16.mxu0 %v1194
        %1418 = vmatpush2.bf16.msra.mxu0 %v1193
        %1419 = vmatprep.subr.bf16.mxu0 %v1192
        %1420 = vmatpush2.bf16.msra.mxu0 %v1191
        %1421 = vmatprep.subr.bf16.mxu0 %v1190
        %1422 = vmatpush2.bf16.msra.mxu0 %v1189
        %1423 = vmatprep.subr.bf16.mxu0 %v1188
        %1424 = vmatpush2.bf16.msra.mxu0 %v1187
        %1425 = vmatprep.mubr.bf16.mxu0 %v799
        %1426 = vmatmul.mubr.bf16.gmra.mxu0 %v798
        %v1427 = vpop.f32.mrf.mxu0
        %v1428 = vadd.f32 %v1387, %v1427
        %v1429 = vpop.f32.mrf.mxu0
        %v1430 = vadd.f32 %v1389, %v1429
        %v1431 = vpop.f32.mrf.mxu0
        %v1432 = vpop.f32.mrf.mxu0
        %1433 = vdwg.mxu0
        %1434 = vmatprep.subr.bf16.mxu0 0
        %1435 = vmatpush1.bf16.msra.mxu0 0
        %1436 = vmatprep.subr.bf16.mxu0 0
        %1437 = vmatpush1.bf16.msra.mxu0 0
        %1438 = vmatprep.subr.bf16.mxu0 0
        %1439 = vmatpush1.bf16.msra.mxu0 0
        %1440 = vmatprep.subr.bf16.mxu0 0
        %1441 = vmatpush1.bf16.msra.mxu0 0
        %1442 = vmatprep.subr.bf16.mxu0 0
        %1443 = vmatpush1.bf16.msra.mxu0 0
        %1444 = vmatprep.subr.bf16.mxu0 0
        %1445 = vmatpush1.bf16.msra.mxu0 0
        %1446 = vmatprep.subr.bf16.mxu0 %v1206
        %1447 = vmatpush1.bf16.msra.mxu0 %v1205
        %1448 = vmatprep.subr.bf16.mxu0 %v1204
        %1449 = vmatpush1.bf16.msra.mxu0 %v1203
        %1450 = vmatprep.subr.bf16.mxu0 0
        %1451 = vmatpush2.bf16.msra.mxu0 0
        %1452 = vmatprep.subr.bf16.mxu0 0
        %1453 = vmatpush2.bf16.msra.mxu0 0
        %1454 = vmatprep.subr.bf16.mxu0 0
        %1455 = vmatpush2.bf16.msra.mxu0 0
        %1456 = vmatprep.subr.bf16.mxu0 0
        %1457 = vmatpush2.bf16.msra.mxu0 0
        %1458 = vmatprep.subr.bf16.mxu0 0
        %1459 = vmatpush2.bf16.msra.mxu0 0
        %1460 = vmatprep.subr.bf16.mxu0 0
        %1461 = vmatpush2.bf16.msra.mxu0 0
        %1462 = vmatprep.subr.bf16.mxu0 0
        %1463 = vmatpush2.bf16.msra.mxu0 0
        %1464 = vmatprep.subr.bf16.mxu0 0
        %1465 = vmatpush2.bf16.msra.mxu0 0
        %1466 = vmatprep.mubr.bf16.mxu0 0
        %1467 = vmatmul.mubr.bf16.gmra.mxu0 %v1309
        %v1468 = vpop.f32.mrf.mxu0
        %v1469 = vadd.f32 %v1428, %v1468
        %v1470 = vpop.f32.mrf.mxu0
        %v1471 = vadd.f32 %v1430, %v1470
        %v1472 = vpop.f32.mrf.mxu0
        %v1473 = vpop.f32.mrf.mxu0
        %1474 = vdwg.mxu0
        %v1475 = vmax.f32 %v1469, 0.0
        %v1476 = vmax.f32 %v1471, 0.0
        %v1477 = vpack.c.bf16 %v1475, %v1475
        %v1478 = vpack.c.bf16 %v1476, %v1476
        %v1481 = vunpack.c.l.b16 %v1477
        %v1482 = vunpack.c.l.b16 %v1478
        %v1483 = vpack.c.b16 %v1482, %v1481
        %1485 = vst [vmem:[%s664] sm:$0xff] %v1483
        %s1486 = smul.u32 2, %s19
        %p1487 = scmp.lt.s32.totalorder %s18, 0
        %s1488 = scalar_select %p1487, %s18, 0
        %p1489 = scmp.lt.s32.totalorder %s1486, 3
        %s1490 = scalar_select %p1489, %s1486, 3
        %s1491 = smul.addr %s1488, 4
        %s1492 = sadd.s32 %s1490, %s1491
        %s1493 = smul.addr %s1492, 4
        %s1494 = scalar_lea.vmem %s3, %s1493
        // Predicated region
        $region71: #{clasificador_conv_forward.10} parent=65 // pred_check
          %p1495 = pneg %p124
        $region72: #{clasificador_conv_forward.10} parent=65 // pred_check_branch
          %1497 = sbr.rel (%p1495) target = $region74
        $region73: #{clasificador_conv_forward.10} parent=65 // pred_region
          %s1498 = smul.u32 2, %s19
        $region74: #{clasificador_conv_forward.10} parent=65 // pred_fallthru
          _
      $region66: #{clasificador_conv_forward.10} parent=5 // pred_fallthru
        _
      %p1499 = scmp.le.s32.totalorder 2, %s9
      // Predicated region
      $region75: #{clasificador_conv_forward.10} parent=5 // pred_check
        %p1500 = pneg %p1499
      $region76: #{clasificador_conv_forward.10} parent=5 // pred_check_branch
        %1502 = sbr.rel (%p1500) target = $region78
      $region77: #{clasificador_conv_forward.10} parent=5 // pred_region
        %s1503 = ssub.s32 %s9, 2
        // Predicated region
        $region79: #{clasificador_conv_forward.10} parent=77 // pred_check
          %p1504 = pneg %p130
        $region80: #{clasificador_conv_forward.10} parent=77 // pred_check_branch
          %1506 = sbr.rel (%p1504) target = $region82
        $region81: #{clasificador_conv_forward.10} parent=77 // pred_region
          %s1507 = smul.u32 2, %s21
          %p1508 = scmp.lt.s32.totalorder %s20, 0
          %s1509 = scalar_select %p1508, %s20, 0
          %p1510 = scmp.lt.s32.totalorder %s1507, 3
          %s1511 = scalar_select %p1510, %s1507, 3
          %s1512 = smul.addr %s1509, 4
          %s1513 = sadd.s32 %s1511, %s1512
          %s1514 = smul.addr %s1513, 4
          %s1515 = scalar_lea.vmem %s3, %s1514
        $region82: #{clasificador_conv_forward.10} parent=77 // pred_fallthru
          _
      $region78: #{clasificador_conv_forward.10} parent=5 // pred_fallthru
        _
    $region6: #{clasificador_conv_forward.10} parent=1 // loop_footer
      %s13 = sadd.s32 1, %s9
    $region7: #{clasificador_conv_forward.10} parent=1 // loop_footer_branch
      %8 = sbr.rel target = $region3
    $region8: #{clasificador_conv_forward.10} parent=1 // loop_exit
      _

</llo_original>
